<compile_context>
chip_gen: v6e
topology: v6e:2x2x1
jax: 0.10.0
libtpu: 0.0.40
codegen_flags: <defaults>
</compile_context>

<pallas_src>
import functools

import numpy as np
import jax
import jax.numpy as jnp
from jax.experimental import pallas as pl
from jax.experimental.pallas import tpu as pltpu


def _tensorcores_per_device() -> int:
    """Best-effort TensorCore count of device 0 (falls back to 1)."""
    try:
        dev = jax.devices()[0]
        for attr in ("num_cores", "core_count"):
            n = getattr(dev, attr, None)
            if n:
                return max(1, int(n))
    except Exception:
        pass
    return 1


def segse_kernel(x_ref, mhw_ref, md_ref, w_ref, b_ref, o_ref, *, H, W, dil):
    # x_ref  : (NB, Cin, S)    VMEM; S = D*H*W flattened spatial on the lane axis
    # mhw_ref: (9, S)          VMEM; (kh,kw) validity masks (zero padding, h/w axes)
    # md_ref : (3, S)          VMEM; kd validity masks (zero padding, d axis)
    # w_ref  : (Cout, 27*Cin)  VMEM; fused weights, column = (kd*9+kh*3+kw)*Cin + ci
    # b_ref  : (Cout, 1)       VMEM; fused bias
    # o_ref  : (NB, Cout, S)   VMEM
    NB, Cin, S = x_ref.shape
    Cout = o_ref.shape[1]
    HW = H * W

    x = x_ref[...]                                   # (NB, Cin, S)

    # Single packed f32 accumulator: every FMA below touches all NB*Cout rows.
    acc = jnp.zeros((NB, Cout, S), jnp.float32)

    for kh in range(3):
        for kw in range(3):
            # In-plane (h, w) tap shift: one "real" cross-lane roll per (kh, kw).
            s_hw = dil * ((kh - 1) * W + (kw - 1))
            x_hw = x if s_hw % S == 0 else jnp.roll(x, shift=(-s_hw) % S, axis=2)
            if not (kh == 1 and kw == 1):            # centre row is all-ones: skip
                m_hw = mhw_ref[pl.ds(kh * 3 + kw, 1), :]      # (1, S)
                x_hw = x_hw * m_hw                            # zero padding (h, w)
            for kd in range(3):
                # Depth tap shift: +-dil*H*W lanes (a whole number of vregs here),
                # cheap on top of the already-shifted plane.
                s_d = dil * (kd - 1) * HW
                xt = x_hw if s_d % S == 0 else jnp.roll(x_hw, shift=(-s_d) % S, axis=2)
                if kd != 1:                          # centre depth row is all-ones
                    m_d = md_ref[pl.ds(kd, 1), :]             # (1, S)
                    xt = xt * m_d                             # zero padding (d)
                t = (kd * 3 + kh) * 3 + kw
                for ci in range(Cin):
                    # (Cout, 1) weight column: one small VMEM vector read, lane-
                    # broadcast in the multiply (no per-co scalar splats).
                    wcol = w_ref[:, pl.ds(t * Cin + ci, 1)]            # (Cout, 1)
                    # (NB, 1, S) input row, sublane-broadcast across Cout.
                    xrow = jax.lax.slice(xt, (0, ci, 0), (NB, ci + 1, S))
                    acc = acc + wcol * xrow                   # (NB, Cout, S) FMA

    out = acc + b_ref[...]                                    # (Cout,1) broadcast
    o_ref[...] = jax.nn.sigmoid(out).astype(o_ref.dtype)


def segse_forward(x_ncdhw, w1_oidhw, b1, w2_oidhw, b2, *, dilation=2,
                  compute_dtype=None):
    """x_ncdhw: (N, C, D, H, W). Returns sigmoid(conv1(dila_conv(x)))."""
    N, C, D, H, W = x_ncdhw.shape
    Cout = w2_oidhw.shape[0]
    S = D * H * W
    cdt = jnp.dtype(compute_dtype or x_ncdhw.dtype)   # bf16 option for v6e/v7x

    # --- Fuse the two convolutions (exact; no nonlinearity in between).
    w2m = w2_oidhw[:, :, 0, 0, 0]                               # (Cout, Cmid)
    # w1: (Cmid, Cin, 3, 3, 3) -> W_eff: (kd, kh, kw, Cin, Cout)
    w_eff = jnp.einsum('om,miabc->abcio', w2m, w1_oidhw)
    w_cols = jnp.transpose(w_eff.reshape(27 * C, Cout)).astype(cdt)  # (Cout, 27*Cin)
    b_col = (w2m @ b1 + b2).reshape(Cout, 1).astype(jnp.float32)     # (Cout, 1)

    # --- Factored per-axis validity masks over the flattened spatial (lane) axis.
    lin = np.arange(S)
    d_idx = lin // (H * W)
    h_idx = (lin // W) % H
    w_idx = lin % W
    md_rows = []
    for kd in range(3):
        od = (kd - 1) * dilation
        md_rows.append((d_idx + od >= 0) & (d_idx + od < D))
    mhw_rows = []
    for kh in range(3):
        for kw in range(3):
            oh = (kh - 1) * dilation
            ow = (kw - 1) * dilation
            mhw_rows.append((h_idx + oh >= 0) & (h_idx + oh < H) &
                            (w_idx + ow >= 0) & (w_idx + ow < W))
    m_d = jnp.asarray(np.stack(md_rows, 0).astype(np.float32)).astype(cdt)    # (3, S)
    m_hw = jnp.asarray(np.stack(mhw_rows, 0).astype(np.float32)).astype(cdt)  # (9, S)

    # NCDHW -> (N, C, D*H*W): contiguous reshape, no transpose, no pad.
    x3 = x_ncdhw.reshape(N, C, S).astype(cdt)

    # --- Batch folding vs. grid parallelism.
    #   single-TC chips (v5e/v6e): fold the batch into one block -> 8/8 sublane
    #   occupancy, no serial grid loop.  multi-TC chips (v7x): one batch element
    #   per "parallel" grid step so every core gets work.
    cores = _tensorcores_per_device()
    nb = 1
    if cores <= 1:
        nb = max(1, min(N, 8 // max(C, 1)))
        while N % nb:
            nb -= 1
    grid = (N // nb,)

    kernel = functools.partial(segse_kernel, H=H, W=W, dil=dilation)

    out3 = pl.pallas_call(
        kernel,
        out_shape=jax.ShapeDtypeStruct((N, Cout, S), x_ncdhw.dtype),
        grid=grid,
        in_specs=[
            pl.BlockSpec((nb, C, S), lambda g: (g, 0, 0)),       # x
            pl.BlockSpec((9, S), lambda g: (0, 0)),              # hw masks
            pl.BlockSpec((3, S), lambda g: (0, 0)),              # d masks
            pl.BlockSpec((Cout, 27 * C), lambda g: (0, 0)),      # fused weights
            pl.BlockSpec((Cout, 1), lambda g: (0, 0)),           # fused bias
        ],
        out_specs=pl.BlockSpec((nb, Cout, S), lambda g: (g, 0, 0)),
        compiler_params=pltpu.CompilerParams(
            dimension_semantics=("parallel",)),
    )(x3, m_hw, m_d, w_cols, b_col)

    return out3.reshape(N, Cout, D, H, W).astype(x_ncdhw.dtype)


def segse_reference(x, w1, b1, w2, b2):
    """Plain-JAX reference matching the PyTorch module (NCDHW)."""
    dn1 = jax.lax.conv_dimension_numbers(x.shape, w1.shape,
                                         ("NCDHW", "OIDHW", "NCDHW"))
    y = jax.lax.conv_general_dilated(x, w1, window_strides=(1, 1, 1),
                                     padding=[(2, 2)] * 3,
                                     rhs_dilation=(2, 2, 2),
                                     dimension_numbers=dn1)
    y = y + b1.reshape(1, -1, 1, 1, 1)
    dn2 = jax.lax.conv_dimension_numbers(y.shape, w2.shape,
                                         ("NCDHW", "OIDHW", "NCDHW"))
    z = jax.lax.conv_general_dilated(y, w2, window_strides=(1, 1, 1),
                                     padding=[(0, 0)] * 3,
                                     dimension_numbers=dn2)
    z = z + b2.reshape(1, -1, 1, 1, 1)
    return jax.nn.sigmoid(z)


if __name__ == "__main__":
    # Small shapes consistent with the module: in_channels=4, rate=2, 8^3 volume.
    N, C, D, H, W = 2, 4, 8, 8, 8
    rate = 2
    Cmid = C // rate

    key = jax.random.PRNGKey(0)
    kx, kw1, kb1, kw2, kb2 = jax.random.split(key, 5)

    x = jax.random.normal(kx, (N, C, D, H, W), jnp.float32)
    # Conv3d weight layout: (O, I, kD, kH, kW).
    w1 = 0.1 * jax.random.normal(kw1, (Cmid, C, 3, 3, 3), jnp.float32)
    b1 = 0.1 * jax.random.normal(kb1, (Cmid,), jnp.float32)
    w2 = 0.1 * jax.random.normal(kw2, (C, Cmid, 1, 1, 1), jnp.float32)
    b2 = 0.1 * jax.random.normal(kb2, (C,), jnp.float32)

    out = jax.block_until_ready(jax.jit(segse_forward)(x, w1, b1, w2, b2))

    ref = jax.block_until_ready(segse_reference(x, w1, b1, w2, b2))
    assert out.shape == (N, C, D, H, W)
    assert bool(jnp.allclose(out, ref, atol=1e-5, rtol=1e-5)), "mismatch vs reference"

    print("KERNEL_OK")
</pallas_src>

<mosaic_0001>
module attributes {stable_mosaic.version = 11 : i64} {
  func.func @segse_kernel(%arg0: i32, %arg1: memref<2x4x512xf32, #tpu.memory_space<vmem>>, %arg2: memref<9x512xf32, #tpu.memory_space<vmem>>, %arg3: memref<3x512xf32, #tpu.memory_space<vmem>>, %arg4: memref<4x108xf32, #tpu.memory_space<vmem>>, %arg5: memref<4x1xf32, #tpu.memory_space<vmem>>, %arg6: memref<2x4x512xf32, #tpu.memory_space<vmem>>) attributes {dimension_semantics = [#tpu.dimension_semantics<parallel>], iteration_bounds = array<i64: 1>, scalar_prefetch = 0 : i64, scratch_operands = 0 : i64, tpu.core_type = #tpu.core_type<tc>, window_params = [{transform_indices = @transform_0, window_bounds = array<i64: 2, 4, 512>}, {pipeline_mode = #tpu.pipeline_mode<synchronous>, transform_indices = @transform_1, window_bounds = array<i64: 9, 512>}, {pipeline_mode = #tpu.pipeline_mode<synchronous>, transform_indices = @transform_2, window_bounds = array<i64: 3, 512>}, {pipeline_mode = #tpu.pipeline_mode<synchronous>, transform_indices = @transform_3, window_bounds = array<i64: 4, 108>}, {pipeline_mode = #tpu.pipeline_mode<synchronous>, transform_indices = @transform_4, window_bounds = array<i64: 4, 1>}, {transform_indices = @transform_5, window_bounds = array<i64: 2, 4, 512>}]} {
    %c0 = arith.constant 0 : index
    %c0_0 = arith.constant 0 : index
    %c0_1 = arith.constant 0 : index
    %0 = vector.load %arg1[%c0, %c0_0, %c0_1] : memref<2x4x512xf32, #tpu.memory_space<vmem>>, vector<2x4x512xf32>
    %cst = arith.constant 0.000000e+00 : f32
    %1 = vector.broadcast %cst : f32 to vector<2x4x512xf32>
    %2 = vector.extract_strided_slice %0 {offsets = [0, 0, 494], sizes = [2, 4, 18], strides = [1, 1, 1]} : vector<2x4x512xf32> to vector<2x4x18xf32>
    %3 = vector.extract_strided_slice %0 {offsets = [0, 0, 0], sizes = [2, 4, 494], strides = [1, 1, 1]} : vector<2x4x512xf32> to vector<2x4x494xf32>
    %4 = tpu.concatenate %2, %3 in 2 : vector<2x4x18xf32>, vector<2x4x494xf32> -> vector<2x4x512xf32>
    %c0_2 = arith.constant 0 : index
    %c0_3 = arith.constant 0 : index
    %5 = vector.load %arg2[%c0_2, %c0_3] : memref<9x512xf32, #tpu.memory_space<vmem>>, vector<1x512xf32>
    %6 = vector.shape_cast %5 : vector<1x512xf32> to vector<1x1x512xf32>
    %7 = vector.broadcast %6 : vector<1x1x512xf32> to vector<2x4x512xf32>
    %8 = arith.mulf %4, %7 : vector<2x4x512xf32>
    %9 = vector.extract_strided_slice %8 {offsets = [0, 0, 384], sizes = [2, 4, 128], strides = [1, 1, 1]} : vector<2x4x512xf32> to vector<2x4x128xf32>
    %10 = vector.extract_strided_slice %8 {offsets = [0, 0, 0], sizes = [2, 4, 384], strides = [1, 1, 1]} : vector<2x4x512xf32> to vector<2x4x384xf32>
    %11 = tpu.concatenate %9, %10 in 2 : vector<2x4x128xf32>, vector<2x4x384xf32> -> vector<2x4x512xf32>
    %c0_4 = arith.constant 0 : index
    %c0_5 = arith.constant 0 : index
    %12 = vector.load %arg3[%c0_4, %c0_5] : memref<3x512xf32, #tpu.memory_space<vmem>>, vector<1x512xf32>
    %13 = vector.shape_cast %12 : vector<1x512xf32> to vector<1x1x512xf32>
    %14 = vector.broadcast %13 : vector<1x1x512xf32> to vector<2x4x512xf32>
    %15 = arith.mulf %11, %14 : vector<2x4x512xf32>
    %c0_6 = arith.constant 0 : index
    %c0_7 = arith.constant 0 : index
    %16 = vector.load %arg4[%c0_6, %c0_7] : memref<4x108xf32, #tpu.memory_space<vmem>>, vector<4x1xf32>
    %17 = vector.extract_strided_slice %15 {offsets = [0, 0, 0], sizes = [2, 1, 512], strides = [1, 1, 1]} : vector<2x4x512xf32> to vector<2x1x512xf32>
    %18 = vector.shape_cast %16 : vector<4x1xf32> to vector<1x4x1xf32>
    %19 = vector.broadcast %18 : vector<1x4x1xf32> to vector<2x4x512xf32>
    %20 = vector.broadcast %17 : vector<2x1x512xf32> to vector<2x4x512xf32>
    %21 = arith.mulf %19, %20 : vector<2x4x512xf32>
    %22 = arith.addf %1, %21 : vector<2x4x512xf32>
    %c0_8 = arith.constant 0 : index
    %c1 = arith.constant 1 : index
    %23 = vector.load %arg4[%c0_8, %c1] : memref<4x108xf32, #tpu.memory_space<vmem>>, vector<4x1xf32>
    %24 = vector.extract_strided_slice %15 {offsets = [0, 1, 0], sizes = [2, 1, 512], strides = [1, 1, 1]} : vector<2x4x512xf32> to vector<2x1x512xf32>
    %25 = vector.shape_cast %23 : vector<4x1xf32> to vector<1x4x1xf32>
    %26 = vector.broadcast %25 : vector<1x4x1xf32> to vector<2x4x512xf32>
    %27 = vector.broadcast %24 : vector<2x1x512xf32> to vector<2x4x512xf32>
    %28 = arith.mulf %26, %27 : vector<2x4x512xf32>
    %29 = arith.addf %22, %28 : vector<2x4x512xf32>
    %c0_9 = arith.constant 0 : index
    %c2 = arith.constant 2 : index
    %30 = vector.load %arg4[%c0_9, %c2] : memref<4x108xf32, #tpu.memory_space<vmem>>, vector<4x1xf32>
    %31 = vector.extract_strided_slice %15 {offsets = [0, 2, 0], sizes = [2, 1, 512], strides = [1, 1, 1]} : vector<2x4x512xf32> to vector<2x1x512xf32>
    %32 = vector.shape_cast %30 : vector<4x1xf32> to vector<1x4x1xf32>
    %33 = vector.broadcast %32 : vector<1x4x1xf32> to vector<2x4x512xf32>
    %34 = vector.broadcast %31 : vector<2x1x512xf32> to vector<2x4x512xf32>
    %35 = arith.mulf %33, %34 : vector<2x4x512xf32>
    %36 = arith.addf %29, %35 : vector<2x4x512xf32>
    %c0_10 = arith.constant 0 : index
    %c3 = arith.constant 3 : index
    %37 = vector.load %arg4[%c0_10, %c3] : memref<4x108xf32, #tpu.memory_space<vmem>>, vector<4x1xf32>
    %38 = vector.extract_strided_slice %15 {offsets = [0, 3, 0], sizes = [2, 1, 512], strides = [1, 1, 1]} : vector<2x4x512xf32> to vector<2x1x512xf32>
    %39 = vector.shape_cast %37 : vector<4x1xf32> to vector<1x4x1xf32>
    %40 = vector.broadcast %39 : vector<1x4x1xf32> to vector<2x4x512xf32>
    %41 = vector.broadcast %38 : vector<2x1x512xf32> to vector<2x4x512xf32>
    %42 = arith.mulf %40, %41 : vector<2x4x512xf32>
    %43 = arith.addf %36, %42 : vector<2x4x512xf32>
    %c0_11 = arith.constant 0 : index
    %c36 = arith.constant 36 : index
    %44 = vector.load %arg4[%c0_11, %c36] : memref<4x108xf32, #tpu.memory_space<vmem>>, vector<4x1xf32>
    %45 = vector.extract_strided_slice %8 {offsets = [0, 0, 0], sizes = [2, 1, 512], strides = [1, 1, 1]} : vector<2x4x512xf32> to vector<2x1x512xf32>
    %46 = vector.shape_cast %44 : vector<4x1xf32> to vector<1x4x1xf32>
    %47 = vector.broadcast %46 : vector<1x4x1xf32> to vector<2x4x512xf32>
    %48 = vector.broadcast %45 : vector<2x1x512xf32> to vector<2x4x512xf32>
    %49 = arith.mulf %47, %48 : vector<2x4x512xf32>
    %50 = arith.addf %43, %49 : vector<2x4x512xf32>
    %c0_12 = arith.constant 0 : index
    %c37 = arith.constant 37 : index
    %51 = vector.load %arg4[%c0_12, %c37] : memref<4x108xf32, #tpu.memory_space<vmem>>, vector<4x1xf32>
    %52 = vector.extract_strided_slice %8 {offsets = [0, 1, 0], sizes = [2, 1, 512], strides = [1, 1, 1]} : vector<2x4x512xf32> to vector<2x1x512xf32>
    %53 = vector.shape_cast %51 : vector<4x1xf32> to vector<1x4x1xf32>
    %54 = vector.broadcast %53 : vector<1x4x1xf32> to vector<2x4x512xf32>
    %55 = vector.broadcast %52 : vector<2x1x512xf32> to vector<2x4x512xf32>
    %56 = arith.mulf %54, %55 : vector<2x4x512xf32>
    %57 = arith.addf %50, %56 : vector<2x4x512xf32>
    %c0_13 = arith.constant 0 : index
    %c38 = arith.constant 38 : index
    %58 = vector.load %arg4[%c0_13, %c38] : memref<4x108xf32, #tpu.memory_space<vmem>>, vector<4x1xf32>
    %59 = vector.extract_strided_slice %8 {offsets = [0, 2, 0], sizes = [2, 1, 512], strides = [1, 1, 1]} : vector<2x4x512xf32> to vector<2x1x512xf32>
    %60 = vector.shape_cast %58 : vector<4x1xf32> to vector<1x4x1xf32>
    %61 = vector.broadcast %60 : vector<1x4x1xf32> to vector<2x4x512xf32>
    %62 = vector.broadcast %59 : vector<2x1x512xf32> to vector<2x4x512xf32>
    %63 = arith.mulf %61, %62 : vector<2x4x512xf32>
    %64 = arith.addf %57, %63 : vector<2x4x512xf32>
    %c0_14 = arith.constant 0 : index
    %c39 = arith.constant 39 : index
    %65 = vector.load %arg4[%c0_14, %c39] : memref<4x108xf32, #tpu.memory_space<vmem>>, vector<4x1xf32>
    %66 = vector.extract_strided_slice %8 {offsets = [0, 3, 0], sizes = [2, 1, 512], strides = [1, 1, 1]} : vector<2x4x512xf32> to vector<2x1x512xf32>
    %67 = vector.shape_cast %65 : vector<4x1xf32> to vector<1x4x1xf32>
    %68 = vector.broadcast %67 : vector<1x4x1xf32> to vector<2x4x512xf32>
    %69 = vector.broadcast %66 : vector<2x1x512xf32> to vector<2x4x512xf32>
    %70 = arith.mulf %68, %69 : vector<2x4x512xf32>
    %71 = arith.addf %64, %70 : vector<2x4x512xf32>
    %72 = vector.extract_strided_slice %8 {offsets = [0, 0, 128], sizes = [2, 4, 384], strides = [1, 1, 1]} : vector<2x4x512xf32> to vector<2x4x384xf32>
    %73 = vector.extract_strided_slice %8 {offsets = [0, 0, 0], sizes = [2, 4, 128], strides = [1, 1, 1]} : vector<2x4x512xf32> to vector<2x4x128xf32>
    %74 = tpu.concatenate %72, %73 in 2 : vector<2x4x384xf32>, vector<2x4x128xf32> -> vector<2x4x512xf32>
    %c2_15 = arith.constant 2 : index
    %c0_16 = arith.constant 0 : index
    %75 = vector.load %arg3[%c2_15, %c0_16] : memref<3x512xf32, #tpu.memory_space<vmem>>, vector<1x512xf32>
    %76 = vector.shape_cast %75 : vector<1x512xf32> to vector<1x1x512xf32>
    %77 = vector.broadcast %76 : vector<1x1x512xf32> to vector<2x4x512xf32>
    %78 = arith.mulf %74, %77 : vector<2x4x512xf32>
    %c0_17 = arith.constant 0 : index
    %c72 = arith.constant 72 : index
    %79 = vector.load %arg4[%c0_17, %c72] : memref<4x108xf32, #tpu.memory_space<vmem>>, vector<4x1xf32>
    %80 = vector.extract_strided_slice %78 {offsets = [0, 0, 0], sizes = [2, 1, 512], strides = [1, 1, 1]} : vector<2x4x512xf32> to vector<2x1x512xf32>
    %81 = vector.shape_cast %79 : vector<4x1xf32> to vector<1x4x1xf32>
    %82 = vector.broadcast %81 : vector<1x4x1xf32> to vector<2x4x512xf32>
    %83 = vector.broadcast %80 : vector<2x1x512xf32> to vector<2x4x512xf32>
    %84 = arith.mulf %82, %83 : vector<2x4x512xf32>
    %85 = arith.addf %71, %84 : vector<2x4x512xf32>
    %c0_18 = arith.constant 0 : index
    %c73 = arith.constant 73 : index
    %86 = vector.load %arg4[%c0_18, %c73] : memref<4x108xf32, #tpu.memory_space<vmem>>, vector<4x1xf32>
    %87 = vector.extract_strided_slice %78 {offsets = [0, 1, 0], sizes = [2, 1, 512], strides = [1, 1, 1]} : vector<2x4x512xf32> to vector<2x1x512xf32>
    %88 = vector.shape_cast %86 : vector<4x1xf32> to vector<1x4x1xf32>
    %89 = vector.broadcast %88 : vector<1x4x1xf32> to vector<2x4x512xf32>
    %90 = vector.broadcast %87 : vector<2x1x512xf32> to vector<2x4x512xf32>
    %91 = arith.mulf %89, %90 : vector<2x4x512xf32>
    %92 = arith.addf %85, %91 : vector<2x4x512xf32>
    %c0_19 = arith.constant 0 : index
    %c74 = arith.constant 74 : index
    %93 = vector.load %arg4[%c0_19, %c74] : memref<4x108xf32, #tpu.memory_space<vmem>>, vector<4x1xf32>
    %94 = vector.extract_strided_slice %78 {offsets = [0, 2, 0], sizes = [2, 1, 512], strides = [1, 1, 1]} : vector<2x4x512xf32> to vector<2x1x512xf32>
    %95 = vector.shape_cast %93 : vector<4x1xf32> to vector<1x4x1xf32>
    %96 = vector.broadcast %95 : vector<1x4x1xf32> to vector<2x4x512xf32>
    %97 = vector.broadcast %94 : vector<2x1x512xf32> to vector<2x4x512xf32>
    %98 = arith.mulf %96, %97 : vector<2x4x512xf32>
    %99 = arith.addf %92, %98 : vector<2x4x512xf32>
    %c0_20 = arith.constant 0 : index
    %c75 = arith.constant 75 : index
    %100 = vector.load %arg4[%c0_20, %c75] : memref<4x108xf32, #tpu.memory_space<vmem>>, vector<4x1xf32>
    %101 = vector.extract_strided_slice %78 {offsets = [0, 3, 0], sizes = [2, 1, 512], strides = [1, 1, 1]} : vector<2x4x512xf32> to vector<2x1x512xf32>
    %102 = vector.shape_cast %100 : vector<4x1xf32> to vector<1x4x1xf32>
    %103 = vector.broadcast %102 : vector<1x4x1xf32> to vector<2x4x512xf32>
    %104 = vector.broadcast %101 : vector<2x1x512xf32> to vector<2x4x512xf32>
    %105 = arith.mulf %103, %104 : vector<2x4x512xf32>
    %106 = arith.addf %99, %105 : vector<2x4x512xf32>
    %107 = vector.extract_strided_slice %0 {offsets = [0, 0, 496], sizes = [2, 4, 16], strides = [1, 1, 1]} : vector<2x4x512xf32> to vector<2x4x16xf32>
    %108 = vector.extract_strided_slice %0 {offsets = [0, 0, 0], sizes = [2, 4, 496], strides = [1, 1, 1]} : vector<2x4x512xf32> to vector<2x4x496xf32>
    %109 = tpu.concatenate %107, %108 in 2 : vector<2x4x16xf32>, vector<2x4x496xf32> -> vector<2x4x512xf32>
    %c1_21 = arith.constant 1 : index
    %c0_22 = arith.constant 0 : index
    %110 = vector.load %arg2[%c1_21, %c0_22] : memref<9x512xf32, #tpu.memory_space<vmem>>, vector<1x512xf32>
    %111 = vector.shape_cast %110 : vector<1x512xf32> to vector<1x1x512xf32>
    %112 = vector.broadcast %111 : vector<1x1x512xf32> to vector<2x4x512xf32>
    %113 = arith.mulf %109, %112 : vector<2x4x512xf32>
    %114 = vector.extract_strided_slice %113 {offsets = [0, 0, 384], sizes = [2, 4, 128], strides = [1, 1, 1]} : vector<2x4x512xf32> to vector<2x4x128xf32>
    %115 = vector.extract_strided_slice %113 {offsets = [0, 0, 0], sizes = [2, 4, 384], strides = [1, 1, 1]} : vector<2x4x512xf32> to vector<2x4x384xf32>
    %116 = tpu.concatenate %114, %115 in 2 : vector<2x4x128xf32>, vector<2x4x384xf32> -> vector<2x4x512xf32>
    %c0_23 = arith.constant 0 : index
    %c0_24 = arith.constant 0 : index
    %117 = vector.load %arg3[%c0_23, %c0_24] : memref<3x512xf32, #tpu.memory_space<vmem>>, vector<1x512xf32>
    %118 = vector.shape_cast %117 : vector<1x512xf32> to vector<1x1x512xf32>
    %119 = vector.broadcast %118 : vector<1x1x512xf32> to vector<2x4x512xf32>
    %120 = arith.mulf %116, %119 : vector<2x4x512xf32>
    %c0_25 = arith.constant 0 : index
    %c4 = arith.constant 4 : index
    %121 = vector.load %arg4[%c0_25, %c4] : memref<4x108xf32, #tpu.memory_space<vmem>>, vector<4x1xf32>
    %122 = vector.extract_strided_slice %120 {offsets = [0, 0, 0], sizes = [2, 1, 512], strides = [1, 1, 1]} : vector<2x4x512xf32> to vector<2x1x512xf32>
    %123 = vector.shape_cast %121 : vector<4x1xf32> to vector<1x4x1xf32>
    %124 = vector.broadcast %123 : vector<1x4x1xf32> to vector<2x4x512xf32>
    %125 = vector.broadcast %122 : vector<2x1x512xf32> to vector<2x4x512xf32>
    %126 = arith.mulf %124, %125 : vector<2x4x512xf32>
    %127 = arith.addf %106, %126 : vector<2x4x512xf32>
    %c0_26 = arith.constant 0 : index
    %c5 = arith.constant 5 : index
    %128 = vector.load %arg4[%c0_26, %c5] : memref<4x108xf32, #tpu.memory_space<vmem>>, vector<4x1xf32>
    %129 = vector.extract_strided_slice %120 {offsets = [0, 1, 0], sizes = [2, 1, 512], strides = [1, 1, 1]} : vector<2x4x512xf32> to vector<2x1x512xf32>
    %130 = vector.shape_cast %128 : vector<4x1xf32> to vector<1x4x1xf32>
    %131 = vector.broadcast %130 : vector<1x4x1xf32> to vector<2x4x512xf32>
    %132 = vector.broadcast %129 : vector<2x1x512xf32> to vector<2x4x512xf32>
    %133 = arith.mulf %131, %132 : vector<2x4x512xf32>
    %134 = arith.addf %127, %133 : vector<2x4x512xf32>
    %c0_27 = arith.constant 0 : index
    %c6 = arith.constant 6 : index
    %135 = vector.load %arg4[%c0_27, %c6] : memref<4x108xf32, #tpu.memory_space<vmem>>, vector<4x1xf32>
    %136 = vector.extract_strided_slice %120 {offsets = [0, 2, 0], sizes = [2, 1, 512], strides = [1, 1, 1]} : vector<2x4x512xf32> to vector<2x1x512xf32>
    %137 = vector.shape_cast %135 : vector<4x1xf32> to vector<1x4x1xf32>
    %138 = vector.broadcast %137 : vector<1x4x1xf32> to vector<2x4x512xf32>
    %139 = vector.broadcast %136 : vector<2x1x512xf32> to vector<2x4x512xf32>
    %140 = arith.mulf %138, %139 : vector<2x4x512xf32>
    %141 = arith.addf %134, %140 : vector<2x4x512xf32>
    %c0_28 = arith.constant 0 : index
    %c7 = arith.constant 7 : index
    %142 = vector.load %arg4[%c0_28, %c7] : memref<4x108xf32, #tpu.memory_space<vmem>>, vector<4x1xf32>
    %143 = vector.extract_strided_slice %120 {offsets = [0, 3, 0], sizes = [2, 1, 512], strides = [1, 1, 1]} : vector<2x4x512xf32> to vector<2x1x512xf32>
    %144 = vector.shape_cast %142 : vector<4x1xf32> to vector<1x4x1xf32>
    %145 = vector.broadcast %144 : vector<1x4x1xf32> to vector<2x4x512xf32>
    %146 = vector.broadcast %143 : vector<2x1x512xf32> to vector<2x4x512xf32>
    %147 = arith.mulf %145, %146 : vector<2x4x512xf32>
    %148 = arith.addf %141, %147 : vector<2x4x512xf32>
    %c0_29 = arith.constant 0 : index
    %c40 = arith.constant 40 : index
    %149 = vector.load %arg4[%c0_29, %c40] : memref<4x108xf32, #tpu.memory_space<vmem>>, vector<4x1xf32>
    %150 = vector.extract_strided_slice %113 {offsets = [0, 0, 0], sizes = [2, 1, 512], strides = [1, 1, 1]} : vector<2x4x512xf32> to vector<2x1x512xf32>
    %151 = vector.shape_cast %149 : vector<4x1xf32> to vector<1x4x1xf32>
    %152 = vector.broadcast %151 : vector<1x4x1xf32> to vector<2x4x512xf32>
    %153 = vector.broadcast %150 : vector<2x1x512xf32> to vector<2x4x512xf32>
    %154 = arith.mulf %152, %153 : vector<2x4x512xf32>
    %155 = arith.addf %148, %154 : vector<2x4x512xf32>
    %c0_30 = arith.constant 0 : index
    %c41 = arith.constant 41 : index
    %156 = vector.load %arg4[%c0_30, %c41] : memref<4x108xf32, #tpu.memory_space<vmem>>, vector<4x1xf32>
    %157 = vector.extract_strided_slice %113 {offsets = [0, 1, 0], sizes = [2, 1, 512], strides = [1, 1, 1]} : vector<2x4x512xf32> to vector<2x1x512xf32>
    %158 = vector.shape_cast %156 : vector<4x1xf32> to vector<1x4x1xf32>
    %159 = vector.broadcast %158 : vector<1x4x1xf32> to vector<2x4x512xf32>
    %160 = vector.broadcast %157 : vector<2x1x512xf32> to vector<2x4x512xf32>
    %161 = arith.mulf %159, %160 : vector<2x4x512xf32>
    %162 = arith.addf %155, %161 : vector<2x4x512xf32>
    %c0_31 = arith.constant 0 : index
    %c42 = arith.constant 42 : index
    %163 = vector.load %arg4[%c0_31, %c42] : memref<4x108xf32, #tpu.memory_space<vmem>>, vector<4x1xf32>
    %164 = vector.extract_strided_slice %113 {offsets = [0, 2, 0], sizes = [2, 1, 512], strides = [1, 1, 1]} : vector<2x4x512xf32> to vector<2x1x512xf32>
    %165 = vector.shape_cast %163 : vector<4x1xf32> to vector<1x4x1xf32>
    %166 = vector.broadcast %165 : vector<1x4x1xf32> to vector<2x4x512xf32>
    %167 = vector.broadcast %164 : vector<2x1x512xf32> to vector<2x4x512xf32>
    %168 = arith.mulf %166, %167 : vector<2x4x512xf32>
    %169 = arith.addf %162, %168 : vector<2x4x512xf32>
    %c0_32 = arith.constant 0 : index
    %c43 = arith.constant 43 : index
    %170 = vector.load %arg4[%c0_32, %c43] : memref<4x108xf32, #tpu.memory_space<vmem>>, vector<4x1xf32>
    %171 = vector.extract_strided_slice %113 {offsets = [0, 3, 0], sizes = [2, 1, 512], strides = [1, 1, 1]} : vector<2x4x512xf32> to vector<2x1x512xf32>
    %172 = vector.shape_cast %170 : vector<4x1xf32> to vector<1x4x1xf32>
    %173 = vector.broadcast %172 : vector<1x4x1xf32> to vector<2x4x512xf32>
    %174 = vector.broadcast %171 : vector<2x1x512xf32> to vector<2x4x512xf32>
    %175 = arith.mulf %173, %174 : vector<2x4x512xf32>
    %176 = arith.addf %169, %175 : vector<2x4x512xf32>
    %177 = vector.extract_strided_slice %113 {offsets = [0, 0, 128], sizes = [2, 4, 384], strides = [1, 1, 1]} : vector<2x4x512xf32> to vector<2x4x384xf32>
    %178 = vector.extract_strided_slice %113 {offsets = [0, 0, 0], sizes = [2, 4, 128], strides = [1, 1, 1]} : vector<2x4x512xf32> to vector<2x4x128xf32>
    %179 = tpu.concatenate %177, %178 in 2 : vector<2x4x384xf32>, vector<2x4x128xf32> -> vector<2x4x512xf32>
    %c2_33 = arith.constant 2 : index
    %c0_34 = arith.constant 0 : index
    %180 = vector.load %arg3[%c2_33, %c0_34] : memref<3x512xf32, #tpu.memory_space<vmem>>, vector<1x512xf32>
    %181 = vector.shape_cast %180 : vector<1x512xf32> to vector<1x1x512xf32>
    %182 = vector.broadcast %181 : vector<1x1x512xf32> to vector<2x4x512xf32>
    %183 = arith.mulf %179, %182 : vector<2x4x512xf32>
    %c0_35 = arith.constant 0 : index
    %c76 = arith.constant 76 : index
    %184 = vector.load %arg4[%c0_35, %c76] : memref<4x108xf32, #tpu.memory_space<vmem>>, vector<4x1xf32>
    %185 = vector.extract_strided_slice %183 {offsets = [0, 0, 0], sizes = [2, 1, 512], strides = [1, 1, 1]} : vector<2x4x512xf32> to vector<2x1x512xf32>
    %186 = vector.shape_cast %184 : vector<4x1xf32> to vector<1x4x1xf32>
    %187 = vector.broadcast %186 : vector<1x4x1xf32> to vector<2x4x512xf32>
    %188 = vector.broadcast %185 : vector<2x1x512xf32> to vector<2x4x512xf32>
    %189 = arith.mulf %187, %188 : vector<2x4x512xf32>
    %190 = arith.addf %176, %189 : vector<2x4x512xf32>
    %c0_36 = arith.constant 0 : index
    %c77 = arith.constant 77 : index
    %191 = vector.load %arg4[%c0_36, %c77] : memref<4x108xf32, #tpu.memory_space<vmem>>, vector<4x1xf32>
    %192 = vector.extract_strided_slice %183 {offsets = [0, 1, 0], sizes = [2, 1, 512], strides = [1, 1, 1]} : vector<2x4x512xf32> to vector<2x1x512xf32>
    %193 = vector.shape_cast %191 : vector<4x1xf32> to vector<1x4x1xf32>
    %194 = vector.broadcast %193 : vector<1x4x1xf32> to vector<2x4x512xf32>
    %195 = vector.broadcast %192 : vector<2x1x512xf32> to vector<2x4x512xf32>
    %196 = arith.mulf %194, %195 : vector<2x4x512xf32>
    %197 = arith.addf %190, %196 : vector<2x4x512xf32>
    %c0_37 = arith.constant 0 : index
    %c78 = arith.constant 78 : index
    %198 = vector.load %arg4[%c0_37, %c78] : memref<4x108xf32, #tpu.memory_space<vmem>>, vector<4x1xf32>
    %199 = vector.extract_strided_slice %183 {offsets = [0, 2, 0], sizes = [2, 1, 512], strides = [1, 1, 1]} : vector<2x4x512xf32> to vector<2x1x512xf32>
    %200 = vector.shape_cast %198 : vector<4x1xf32> to vector<1x4x1xf32>
    %201 = vector.broadcast %200 : vector<1x4x1xf32> to vector<2x4x512xf32>
    %202 = vector.broadcast %199 : vector<2x1x512xf32> to vector<2x4x512xf32>
    %203 = arith.mulf %201, %202 : vector<2x4x512xf32>
    %204 = arith.addf %197, %203 : vector<2x4x512xf32>
    %c0_38 = arith.constant 0 : index
    %c79 = arith.constant 79 : index
    %205 = vector.load %arg4[%c0_38, %c79] : memref<4x108xf32, #tpu.memory_space<vmem>>, vector<4x1xf32>
    %206 = vector.extract_strided_slice %183 {offsets = [0, 3, 0], sizes = [2, 1, 512], strides = [1, 1, 1]} : vector<2x4x512xf32> to vector<2x1x512xf32>
    %207 = vector.shape_cast %205 : vector<4x1xf32> to vector<1x4x1xf32>
    %208 = vector.broadcast %207 : vector<1x4x1xf32> to vector<2x4x512xf32>
    %209 = vector.broadcast %206 : vector<2x1x512xf32> to vector<2x4x512xf32>
    %210 = arith.mulf %208, %209 : vector<2x4x512xf32>
    %211 = arith.addf %204, %210 : vector<2x4x512xf32>
    %212 = vector.extract_strided_slice %0 {offsets = [0, 0, 498], sizes = [2, 4, 14], strides = [1, 1, 1]} : vector<2x4x512xf32> to vector<2x4x14xf32>
    %213 = vector.extract_strided_slice %0 {offsets = [0, 0, 0], sizes = [2, 4, 498], strides = [1, 1, 1]} : vector<2x4x512xf32> to vector<2x4x498xf32>
    %214 = tpu.concatenate %212, %213 in 2 : vector<2x4x14xf32>, vector<2x4x498xf32> -> vector<2x4x512xf32>
    %c2_39 = arith.constant 2 : index
    %c0_40 = arith.constant 0 : index
    %215 = vector.load %arg2[%c2_39, %c0_40] : memref<9x512xf32, #tpu.memory_space<vmem>>, vector<1x512xf32>
    %216 = vector.shape_cast %215 : vector<1x512xf32> to vector<1x1x512xf32>
    %217 = vector.broadcast %216 : vector<1x1x512xf32> to vector<2x4x512xf32>
    %218 = arith.mulf %214, %217 : vector<2x4x512xf32>
    %219 = vector.extract_strided_slice %218 {offsets = [0, 0, 384], sizes = [2, 4, 128], strides = [1, 1, 1]} : vector<2x4x512xf32> to vector<2x4x128xf32>
    %220 = vector.extract_strided_slice %218 {offsets = [0, 0, 0], sizes = [2, 4, 384], strides = [1, 1, 1]} : vector<2x4x512xf32> to vector<2x4x384xf32>
    %221 = tpu.concatenate %219, %220 in 2 : vector<2x4x128xf32>, vector<2x4x384xf32> -> vector<2x4x512xf32>
    %c0_41 = arith.constant 0 : index
    %c0_42 = arith.constant 0 : index
    %222 = vector.load %arg3[%c0_41, %c0_42] : memref<3x512xf32, #tpu.memory_space<vmem>>, vector<1x512xf32>
    %223 = vector.shape_cast %222 : vector<1x512xf32> to vector<1x1x512xf32>
    %224 = vector.broadcast %223 : vector<1x1x512xf32> to vector<2x4x512xf32>
    %225 = arith.mulf %221, %224 : vector<2x4x512xf32>
    %c0_43 = arith.constant 0 : index
    %c8 = arith.constant 8 : index
    %226 = vector.load %arg4[%c0_43, %c8] : memref<4x108xf32, #tpu.memory_space<vmem>>, vector<4x1xf32>
    %227 = vector.extract_strided_slice %225 {offsets = [0, 0, 0], sizes = [2, 1, 512], strides = [1, 1, 1]} : vector<2x4x512xf32> to vector<2x1x512xf32>
    %228 = vector.shape_cast %226 : vector<4x1xf32> to vector<1x4x1xf32>
    %229 = vector.broadcast %228 : vector<1x4x1xf32> to vector<2x4x512xf32>
    %230 = vector.broadcast %227 : vector<2x1x512xf32> to vector<2x4x512xf32>
    %231 = arith.mulf %229, %230 : vector<2x4x512xf32>
    %232 = arith.addf %211, %231 : vector<2x4x512xf32>
    %c0_44 = arith.constant 0 : index
    %c9 = arith.constant 9 : index
    %233 = vector.load %arg4[%c0_44, %c9] : memref<4x108xf32, #tpu.memory_space<vmem>>, vector<4x1xf32>
    %234 = vector.extract_strided_slice %225 {offsets = [0, 1, 0], sizes = [2, 1, 512], strides = [1, 1, 1]} : vector<2x4x512xf32> to vector<2x1x512xf32>
    %235 = vector.shape_cast %233 : vector<4x1xf32> to vector<1x4x1xf32>
    %236 = vector.broadcast %235 : vector<1x4x1xf32> to vector<2x4x512xf32>
    %237 = vector.broadcast %234 : vector<2x1x512xf32> to vector<2x4x512xf32>
    %238 = arith.mulf %236, %237 : vector<2x4x512xf32>
    %239 = arith.addf %232, %238 : vector<2x4x512xf32>
    %c0_45 = arith.constant 0 : index
    %c10 = arith.constant 10 : index
    %240 = vector.load %arg4[%c0_45, %c10] : memref<4x108xf32, #tpu.memory_space<vmem>>, vector<4x1xf32>
    %241 = vector.extract_strided_slice %225 {offsets = [0, 2, 0], sizes = [2, 1, 512], strides = [1, 1, 1]} : vector<2x4x512xf32> to vector<2x1x512xf32>
    %242 = vector.shape_cast %240 : vector<4x1xf32> to vector<1x4x1xf32>
    %243 = vector.broadcast %242 : vector<1x4x1xf32> to vector<2x4x512xf32>
    %244 = vector.broadcast %241 : vector<2x1x512xf32> to vector<2x4x512xf32>
    %245 = arith.mulf %243, %244 : vector<2x4x512xf32>
    %246 = arith.addf %239, %245 : vector<2x4x512xf32>
    %c0_46 = arith.constant 0 : index
    %c11 = arith.constant 11 : index
    %247 = vector.load %arg4[%c0_46, %c11] : memref<4x108xf32, #tpu.memory_space<vmem>>, vector<4x1xf32>
    %248 = vector.extract_strided_slice %225 {offsets = [0, 3, 0], sizes = [2, 1, 512], strides = [1, 1, 1]} : vector<2x4x512xf32> to vector<2x1x512xf32>
    %249 = vector.shape_cast %247 : vector<4x1xf32> to vector<1x4x1xf32>
    %250 = vector.broadcast %249 : vector<1x4x1xf32> to vector<2x4x512xf32>
    %251 = vector.broadcast %248 : vector<2x1x512xf32> to vector<2x4x512xf32>
    %252 = arith.mulf %250, %251 : vector<2x4x512xf32>
    %253 = arith.addf %246, %252 : vector<2x4x512xf32>
    %c0_47 = arith.constant 0 : index
    %c44 = arith.constant 44 : index
    %254 = vector.load %arg4[%c0_47, %c44] : memref<4x108xf32, #tpu.memory_space<vmem>>, vector<4x1xf32>
    %255 = vector.extract_strided_slice %218 {offsets = [0, 0, 0], sizes = [2, 1, 512], strides = [1, 1, 1]} : vector<2x4x512xf32> to vector<2x1x512xf32>
    %256 = vector.shape_cast %254 : vector<4x1xf32> to vector<1x4x1xf32>
    %257 = vector.broadcast %256 : vector<1x4x1xf32> to vector<2x4x512xf32>
    %258 = vector.broadcast %255 : vector<2x1x512xf32> to vector<2x4x512xf32>
    %259 = arith.mulf %257, %258 : vector<2x4x512xf32>
    %260 = arith.addf %253, %259 : vector<2x4x512xf32>
    %c0_48 = arith.constant 0 : index
    %c45 = arith.constant 45 : index
    %261 = vector.load %arg4[%c0_48, %c45] : memref<4x108xf32, #tpu.memory_space<vmem>>, vector<4x1xf32>
    %262 = vector.extract_strided_slice %218 {offsets = [0, 1, 0], sizes = [2, 1, 512], strides = [1, 1, 1]} : vector<2x4x512xf32> to vector<2x1x512xf32>
    %263 = vector.shape_cast %261 : vector<4x1xf32> to vector<1x4x1xf32>
    %264 = vector.broadcast %263 : vector<1x4x1xf32> to vector<2x4x512xf32>
    %265 = vector.broadcast %262 : vector<2x1x512xf32> to vector<2x4x512xf32>
    %266 = arith.mulf %264, %265 : vector<2x4x512xf32>
    %267 = arith.addf %260, %266 : vector<2x4x512xf32>
    %c0_49 = arith.constant 0 : index
    %c46 = arith.constant 46 : index
    %268 = vector.load %arg4[%c0_49, %c46] : memref<4x108xf32, #tpu.memory_space<vmem>>, vector<4x1xf32>
    %269 = vector.extract_strided_slice %218 {offsets = [0, 2, 0], sizes = [2, 1, 512], strides = [1, 1, 1]} : vector<2x4x512xf32> to vector<2x1x512xf32>
    %270 = vector.shape_cast %268 : vector<4x1xf32> to vector<1x4x1xf32>
    %271 = vector.broadcast %270 : vector<1x4x1xf32> to vector<2x4x512xf32>
    %272 = vector.broadcast %269 : vector<2x1x512xf32> to vector<2x4x512xf32>
    %273 = arith.mulf %271, %272 : vector<2x4x512xf32>
    %274 = arith.addf %267, %273 : vector<2x4x512xf32>
    %c0_50 = arith.constant 0 : index
    %c47 = arith.constant 47 : index
    %275 = vector.load %arg4[%c0_50, %c47] : memref<4x108xf32, #tpu.memory_space<vmem>>, vector<4x1xf32>
    %276 = vector.extract_strided_slice %218 {offsets = [0, 3, 0], sizes = [2, 1, 512], strides = [1, 1, 1]} : vector<2x4x512xf32> to vector<2x1x512xf32>
    %277 = vector.shape_cast %275 : vector<4x1xf32> to vector<1x4x1xf32>
    %278 = vector.broadcast %277 : vector<1x4x1xf32> to vector<2x4x512xf32>
    %279 = vector.broadcast %276 : vector<2x1x512xf32> to vector<2x4x512xf32>
    %280 = arith.mulf %278, %279 : vector<2x4x512xf32>
    %281 = arith.addf %274, %280 : vector<2x4x512xf32>
    %282 = vector.extract_strided_slice %218 {offsets = [0, 0, 128], sizes = [2, 4, 384], strides = [1, 1, 1]} : vector<2x4x512xf32> to vector<2x4x384xf32>
    %283 = vector.extract_strided_slice %218 {offsets = [0, 0, 0], sizes = [2, 4, 128], strides = [1, 1, 1]} : vector<2x4x512xf32> to vector<2x4x128xf32>
    %284 = tpu.concatenate %282, %283 in 2 : vector<2x4x384xf32>, vector<2x4x128xf32> -> vector<2x4x512xf32>
    %c2_51 = arith.constant 2 : index
    %c0_52 = arith.constant 0 : index
    %285 = vector.load %arg3[%c2_51, %c0_52] : memref<3x512xf32, #tpu.memory_space<vmem>>, vector<1x512xf32>
    %286 = vector.shape_cast %285 : vector<1x512xf32> to vector<1x1x512xf32>
    %287 = vector.broadcast %286 : vector<1x1x512xf32> to vector<2x4x512xf32>
    %288 = arith.mulf %284, %287 : vector<2x4x512xf32>
    %c0_53 = arith.constant 0 : index
    %c80 = arith.constant 80 : index
    %289 = vector.load %arg4[%c0_53, %c80] : memref<4x108xf32, #tpu.memory_space<vmem>>, vector<4x1xf32>
    %290 = vector.extract_strided_slice %288 {offsets = [0, 0, 0], sizes = [2, 1, 512], strides = [1, 1, 1]} : vector<2x4x512xf32> to vector<2x1x512xf32>
    %291 = vector.shape_cast %289 : vector<4x1xf32> to vector<1x4x1xf32>
    %292 = vector.broadcast %291 : vector<1x4x1xf32> to vector<2x4x512xf32>
    %293 = vector.broadcast %290 : vector<2x1x512xf32> to vector<2x4x512xf32>
    %294 = arith.mulf %292, %293 : vector<2x4x512xf32>
    %295 = arith.addf %281, %294 : vector<2x4x512xf32>
    %c0_54 = arith.constant 0 : index
    %c81 = arith.constant 81 : index
    %296 = vector.load %arg4[%c0_54, %c81] : memref<4x108xf32, #tpu.memory_space<vmem>>, vector<4x1xf32>
    %297 = vector.extract_strided_slice %288 {offsets = [0, 1, 0], sizes = [2, 1, 512], strides = [1, 1, 1]} : vector<2x4x512xf32> to vector<2x1x512xf32>
    %298 = vector.shape_cast %296 : vector<4x1xf32> to vector<1x4x1xf32>
    %299 = vector.broadcast %298 : vector<1x4x1xf32> to vector<2x4x512xf32>
    %300 = vector.broadcast %297 : vector<2x1x512xf32> to vector<2x4x512xf32>
    %301 = arith.mulf %299, %300 : vector<2x4x512xf32>
    %302 = arith.addf %295, %301 : vector<2x4x512xf32>
    %c0_55 = arith.constant 0 : index
    %c82 = arith.constant 82 : index
    %303 = vector.load %arg4[%c0_55, %c82] : memref<4x108xf32, #tpu.memory_space<vmem>>, vector<4x1xf32>
    %304 = vector.extract_strided_slice %288 {offsets = [0, 2, 0], sizes = [2, 1, 512], strides = [1, 1, 1]} : vector<2x4x512xf32> to vector<2x1x512xf32>
    %305 = vector.shape_cast %303 : vector<4x1xf32> to vector<1x4x1xf32>
    %306 = vector.broadcast %305 : vector<1x4x1xf32> to vector<2x4x512xf32>
    %307 = vector.broadcast %304 : vector<2x1x512xf32> to vector<2x4x512xf32>
    %308 = arith.mulf %306, %307 : vector<2x4x512xf32>
    %309 = arith.addf %302, %308 : vector<2x4x512xf32>
    %c0_56 = arith.constant 0 : index
    %c83 = arith.constant 83 : index
    %310 = vector.load %arg4[%c0_56, %c83] : memref<4x108xf32, #tpu.memory_space<vmem>>, vector<4x1xf32>
    %311 = vector.extract_strided_slice %288 {offsets = [0, 3, 0], sizes = [2, 1, 512], strides = [1, 1, 1]} : vector<2x4x512xf32> to vector<2x1x512xf32>
    %312 = vector.shape_cast %310 : vector<4x1xf32> to vector<1x4x1xf32>
    %313 = vector.broadcast %312 : vector<1x4x1xf32> to vector<2x4x512xf32>
    %314 = vector.broadcast %311 : vector<2x1x512xf32> to vector<2x4x512xf32>
    %315 = arith.mulf %313, %314 : vector<2x4x512xf32>
    %316 = arith.addf %309, %315 : vector<2x4x512xf32>
    %317 = vector.extract_strided_slice %0 {offsets = [0, 0, 510], sizes = [2, 4, 2], strides = [1, 1, 1]} : vector<2x4x512xf32> to vector<2x4x2xf32>
    %318 = vector.extract_strided_slice %0 {offsets = [0, 0, 0], sizes = [2, 4, 510], strides = [1, 1, 1]} : vector<2x4x512xf32> to vector<2x4x510xf32>
    %319 = tpu.concatenate %317, %318 in 2 : vector<2x4x2xf32>, vector<2x4x510xf32> -> vector<2x4x512xf32>
    %c3_57 = arith.constant 3 : index
    %c0_58 = arith.constant 0 : index
    %320 = vector.load %arg2[%c3_57, %c0_58] : memref<9x512xf32, #tpu.memory_space<vmem>>, vector<1x512xf32>
    %321 = vector.shape_cast %320 : vector<1x512xf32> to vector<1x1x512xf32>
    %322 = vector.broadcast %321 : vector<1x1x512xf32> to vector<2x4x512xf32>
    %323 = arith.mulf %319, %322 : vector<2x4x512xf32>
    %324 = vector.extract_strided_slice %323 {offsets = [0, 0, 384], sizes = [2, 4, 128], strides = [1, 1, 1]} : vector<2x4x512xf32> to vector<2x4x128xf32>
    %325 = vector.extract_strided_slice %323 {offsets = [0, 0, 0], sizes = [2, 4, 384], strides = [1, 1, 1]} : vector<2x4x512xf32> to vector<2x4x384xf32>
    %326 = tpu.concatenate %324, %325 in 2 : vector<2x4x128xf32>, vector<2x4x384xf32> -> vector<2x4x512xf32>
    %c0_59 = arith.constant 0 : index
    %c0_60 = arith.constant 0 : index
    %327 = vector.load %arg3[%c0_59, %c0_60] : memref<3x512xf32, #tpu.memory_space<vmem>>, vector<1x512xf32>
    %328 = vector.shape_cast %327 : vector<1x512xf32> to vector<1x1x512xf32>
    %329 = vector.broadcast %328 : vector<1x1x512xf32> to vector<2x4x512xf32>
    %330 = arith.mulf %326, %329 : vector<2x4x512xf32>
    %c0_61 = arith.constant 0 : index
    %c12 = arith.constant 12 : index
    %331 = vector.load %arg4[%c0_61, %c12] : memref<4x108xf32, #tpu.memory_space<vmem>>, vector<4x1xf32>
    %332 = vector.extract_strided_slice %330 {offsets = [0, 0, 0], sizes = [2, 1, 512], strides = [1, 1, 1]} : vector<2x4x512xf32> to vector<2x1x512xf32>
    %333 = vector.shape_cast %331 : vector<4x1xf32> to vector<1x4x1xf32>
    %334 = vector.broadcast %333 : vector<1x4x1xf32> to vector<2x4x512xf32>
    %335 = vector.broadcast %332 : vector<2x1x512xf32> to vector<2x4x512xf32>
    %336 = arith.mulf %334, %335 : vector<2x4x512xf32>
    %337 = arith.addf %316, %336 : vector<2x4x512xf32>
    %c0_62 = arith.constant 0 : index
    %c13 = arith.constant 13 : index
    %338 = vector.load %arg4[%c0_62, %c13] : memref<4x108xf32, #tpu.memory_space<vmem>>, vector<4x1xf32>
    %339 = vector.extract_strided_slice %330 {offsets = [0, 1, 0], sizes = [2, 1, 512], strides = [1, 1, 1]} : vector<2x4x512xf32> to vector<2x1x512xf32>
    %340 = vector.shape_cast %338 : vector<4x1xf32> to vector<1x4x1xf32>
    %341 = vector.broadcast %340 : vector<1x4x1xf32> to vector<2x4x512xf32>
    %342 = vector.broadcast %339 : vector<2x1x512xf32> to vector<2x4x512xf32>
    %343 = arith.mulf %341, %342 : vector<2x4x512xf32>
    %344 = arith.addf %337, %343 : vector<2x4x512xf32>
    %c0_63 = arith.constant 0 : index
    %c14 = arith.constant 14 : index
    %345 = vector.load %arg4[%c0_63, %c14] : memref<4x108xf32, #tpu.memory_space<vmem>>, vector<4x1xf32>
    %346 = vector.extract_strided_slice %330 {offsets = [0, 2, 0], sizes = [2, 1, 512], strides = [1, 1, 1]} : vector<2x4x512xf32> to vector<2x1x512xf32>
    %347 = vector.shape_cast %345 : vector<4x1xf32> to vector<1x4x1xf32>
    %348 = vector.broadcast %347 : vector<1x4x1xf32> to vector<2x4x512xf32>
    %349 = vector.broadcast %346 : vector<2x1x512xf32> to vector<2x4x512xf32>
    %350 = arith.mulf %348, %349 : vector<2x4x512xf32>
    %351 = arith.addf %344, %350 : vector<2x4x512xf32>
    %c0_64 = arith.constant 0 : index
    %c15 = arith.constant 15 : index
    %352 = vector.load %arg4[%c0_64, %c15] : memref<4x108xf32, #tpu.memory_space<vmem>>, vector<4x1xf32>
    %353 = vector.extract_strided_slice %330 {offsets = [0, 3, 0], sizes = [2, 1, 512], strides = [1, 1, 1]} : vector<2x4x512xf32> to vector<2x1x512xf32>
    %354 = vector.shape_cast %352 : vector<4x1xf32> to vector<1x4x1xf32>
    %355 = vector.broadcast %354 : vector<1x4x1xf32> to vector<2x4x512xf32>
    %356 = vector.broadcast %353 : vector<2x1x512xf32> to vector<2x4x512xf32>
    %357 = arith.mulf %355, %356 : vector<2x4x512xf32>
    %358 = arith.addf %351, %357 : vector<2x4x512xf32>
    %c0_65 = arith.constant 0 : index
    %c48 = arith.constant 48 : index
    %359 = vector.load %arg4[%c0_65, %c48] : memref<4x108xf32, #tpu.memory_space<vmem>>, vector<4x1xf32>
    %360 = vector.extract_strided_slice %323 {offsets = [0, 0, 0], sizes = [2, 1, 512], strides = [1, 1, 1]} : vector<2x4x512xf32> to vector<2x1x512xf32>
    %361 = vector.shape_cast %359 : vector<4x1xf32> to vector<1x4x1xf32>
    %362 = vector.broadcast %361 : vector<1x4x1xf32> to vector<2x4x512xf32>
    %363 = vector.broadcast %360 : vector<2x1x512xf32> to vector<2x4x512xf32>
    %364 = arith.mulf %362, %363 : vector<2x4x512xf32>
    %365 = arith.addf %358, %364 : vector<2x4x512xf32>
    %c0_66 = arith.constant 0 : index
    %c49 = arith.constant 49 : index
    %366 = vector.load %arg4[%c0_66, %c49] : memref<4x108xf32, #tpu.memory_space<vmem>>, vector<4x1xf32>
    %367 = vector.extract_strided_slice %323 {offsets = [0, 1, 0], sizes = [2, 1, 512], strides = [1, 1, 1]} : vector<2x4x512xf32> to vector<2x1x512xf32>
    %368 = vector.shape_cast %366 : vector<4x1xf32> to vector<1x4x1xf32>
    %369 = vector.broadcast %368 : vector<1x4x1xf32> to vector<2x4x512xf32>
    %370 = vector.broadcast %367 : vector<2x1x512xf32> to vector<2x4x512xf32>
    %371 = arith.mulf %369, %370 : vector<2x4x512xf32>
    %372 = arith.addf %365, %371 : vector<2x4x512xf32>
    %c0_67 = arith.constant 0 : index
    %c50 = arith.constant 50 : index
    %373 = vector.load %arg4[%c0_67, %c50] : memref<4x108xf32, #tpu.memory_space<vmem>>, vector<4x1xf32>
    %374 = vector.extract_strided_slice %323 {offsets = [0, 2, 0], sizes = [2, 1, 512], strides = [1, 1, 1]} : vector<2x4x512xf32> to vector<2x1x512xf32>
    %375 = vector.shape_cast %373 : vector<4x1xf32> to vector<1x4x1xf32>
    %376 = vector.broadcast %375 : vector<1x4x1xf32> to vector<2x4x512xf32>
    %377 = vector.broadcast %374 : vector<2x1x512xf32> to vector<2x4x512xf32>
    %378 = arith.mulf %376, %377 : vector<2x4x512xf32>
    %379 = arith.addf %372, %378 : vector<2x4x512xf32>
    %c0_68 = arith.constant 0 : index
    %c51 = arith.constant 51 : index
    %380 = vector.load %arg4[%c0_68, %c51] : memref<4x108xf32, #tpu.memory_space<vmem>>, vector<4x1xf32>
    %381 = vector.extract_strided_slice %323 {offsets = [0, 3, 0], sizes = [2, 1, 512], strides = [1, 1, 1]} : vector<2x4x512xf32> to vector<2x1x512xf32>
    %382 = vector.shape_cast %380 : vector<4x1xf32> to vector<1x4x1xf32>
    %383 = vector.broadcast %382 : vector<1x4x1xf32> to vector<2x4x512xf32>
    %384 = vector.broadcast %381 : vector<2x1x512xf32> to vector<2x4x512xf32>
    %385 = arith.mulf %383, %384 : vector<2x4x512xf32>
    %386 = arith.addf %379, %385 : vector<2x4x512xf32>
    %387 = vector.extract_strided_slice %323 {offsets = [0, 0, 128], sizes = [2, 4, 384], strides = [1, 1, 1]} : vector<2x4x512xf32> to vector<2x4x384xf32>
    %388 = vector.extract_strided_slice %323 {offsets = [0, 0, 0], sizes = [2, 4, 128], strides = [1, 1, 1]} : vector<2x4x512xf32> to vector<2x4x128xf32>
    %389 = tpu.concatenate %387, %388 in 2 : vector<2x4x384xf32>, vector<2x4x128xf32> -> vector<2x4x512xf32>
    %c2_69 = arith.constant 2 : index
    %c0_70 = arith.constant 0 : index
    %390 = vector.load %arg3[%c2_69, %c0_70] : memref<3x512xf32, #tpu.memory_space<vmem>>, vector<1x512xf32>
    %391 = vector.shape_cast %390 : vector<1x512xf32> to vector<1x1x512xf32>
    %392 = vector.broadcast %391 : vector<1x1x512xf32> to vector<2x4x512xf32>
    %393 = arith.mulf %389, %392 : vector<2x4x512xf32>
    %c0_71 = arith.constant 0 : index
    %c84 = arith.constant 84 : index
    %394 = vector.load %arg4[%c0_71, %c84] : memref<4x108xf32, #tpu.memory_space<vmem>>, vector<4x1xf32>
    %395 = vector.extract_strided_slice %393 {offsets = [0, 0, 0], sizes = [2, 1, 512], strides = [1, 1, 1]} : vector<2x4x512xf32> to vector<2x1x512xf32>
    %396 = vector.shape_cast %394 : vector<4x1xf32> to vector<1x4x1xf32>
    %397 = vector.broadcast %396 : vector<1x4x1xf32> to vector<2x4x512xf32>
    %398 = vector.broadcast %395 : vector<2x1x512xf32> to vector<2x4x512xf32>
    %399 = arith.mulf %397, %398 : vector<2x4x512xf32>
    %400 = arith.addf %386, %399 : vector<2x4x512xf32>
    %c0_72 = arith.constant 0 : index
    %c85 = arith.constant 85 : index
    %401 = vector.load %arg4[%c0_72, %c85] : memref<4x108xf32, #tpu.memory_space<vmem>>, vector<4x1xf32>
    %402 = vector.extract_strided_slice %393 {offsets = [0, 1, 0], sizes = [2, 1, 512], strides = [1, 1, 1]} : vector<2x4x512xf32> to vector<2x1x512xf32>
    %403 = vector.shape_cast %401 : vector<4x1xf32> to vector<1x4x1xf32>
    %404 = vector.broadcast %403 : vector<1x4x1xf32> to vector<2x4x512xf32>
    %405 = vector.broadcast %402 : vector<2x1x512xf32> to vector<2x4x512xf32>
    %406 = arith.mulf %404, %405 : vector<2x4x512xf32>
    %407 = arith.addf %400, %406 : vector<2x4x512xf32>
    %c0_73 = arith.constant 0 : index
    %c86 = arith.constant 86 : index
    %408 = vector.load %arg4[%c0_73, %c86] : memref<4x108xf32, #tpu.memory_space<vmem>>, vector<4x1xf32>
    %409 = vector.extract_strided_slice %393 {offsets = [0, 2, 0], sizes = [2, 1, 512], strides = [1, 1, 1]} : vector<2x4x512xf32> to vector<2x1x512xf32>
    %410 = vector.shape_cast %408 : vector<4x1xf32> to vector<1x4x1xf32>
    %411 = vector.broadcast %410 : vector<1x4x1xf32> to vector<2x4x512xf32>
    %412 = vector.broadcast %409 : vector<2x1x512xf32> to vector<2x4x512xf32>
    %413 = arith.mulf %411, %412 : vector<2x4x512xf32>
    %414 = arith.addf %407, %413 : vector<2x4x512xf32>
    %c0_74 = arith.constant 0 : index
    %c87 = arith.constant 87 : index
    %415 = vector.load %arg4[%c0_74, %c87] : memref<4x108xf32, #tpu.memory_space<vmem>>, vector<4x1xf32>
    %416 = vector.extract_strided_slice %393 {offsets = [0, 3, 0], sizes = [2, 1, 512], strides = [1, 1, 1]} : vector<2x4x512xf32> to vector<2x1x512xf32>
    %417 = vector.shape_cast %415 : vector<4x1xf32> to vector<1x4x1xf32>
    %418 = vector.broadcast %417 : vector<1x4x1xf32> to vector<2x4x512xf32>
    %419 = vector.broadcast %416 : vector<2x1x512xf32> to vector<2x4x512xf32>
    %420 = arith.mulf %418, %419 : vector<2x4x512xf32>
    %421 = arith.addf %414, %420 : vector<2x4x512xf32>
    %422 = vector.extract_strided_slice %0 {offsets = [0, 0, 384], sizes = [2, 4, 128], strides = [1, 1, 1]} : vector<2x4x512xf32> to vector<2x4x128xf32>
    %423 = vector.extract_strided_slice %0 {offsets = [0, 0, 0], sizes = [2, 4, 384], strides = [1, 1, 1]} : vector<2x4x512xf32> to vector<2x4x384xf32>
    %424 = tpu.concatenate %422, %423 in 2 : vector<2x4x128xf32>, vector<2x4x384xf32> -> vector<2x4x512xf32>
    %c0_75 = arith.constant 0 : index
    %c0_76 = arith.constant 0 : index
    %425 = vector.load %arg3[%c0_75, %c0_76] : memref<3x512xf32, #tpu.memory_space<vmem>>, vector<1x512xf32>
    %426 = vector.shape_cast %425 : vector<1x512xf32> to vector<1x1x512xf32>
    %427 = vector.broadcast %426 : vector<1x1x512xf32> to vector<2x4x512xf32>
    %428 = arith.mulf %424, %427 : vector<2x4x512xf32>
    %c0_77 = arith.constant 0 : index
    %c16 = arith.constant 16 : index
    %429 = vector.load %arg4[%c0_77, %c16] : memref<4x108xf32, #tpu.memory_space<vmem>>, vector<4x1xf32>
    %430 = vector.extract_strided_slice %428 {offsets = [0, 0, 0], sizes = [2, 1, 512], strides = [1, 1, 1]} : vector<2x4x512xf32> to vector<2x1x512xf32>
    %431 = vector.shape_cast %429 : vector<4x1xf32> to vector<1x4x1xf32>
    %432 = vector.broadcast %431 : vector<1x4x1xf32> to vector<2x4x512xf32>
    %433 = vector.broadcast %430 : vector<2x1x512xf32> to vector<2x4x512xf32>
    %434 = arith.mulf %432, %433 : vector<2x4x512xf32>
    %435 = arith.addf %421, %434 : vector<2x4x512xf32>
    %c0_78 = arith.constant 0 : index
    %c17 = arith.constant 17 : index
    %436 = vector.load %arg4[%c0_78, %c17] : memref<4x108xf32, #tpu.memory_space<vmem>>, vector<4x1xf32>
    %437 = vector.extract_strided_slice %428 {offsets = [0, 1, 0], sizes = [2, 1, 512], strides = [1, 1, 1]} : vector<2x4x512xf32> to vector<2x1x512xf32>
    %438 = vector.shape_cast %436 : vector<4x1xf32> to vector<1x4x1xf32>
    %439 = vector.broadcast %438 : vector<1x4x1xf32> to vector<2x4x512xf32>
    %440 = vector.broadcast %437 : vector<2x1x512xf32> to vector<2x4x512xf32>
    %441 = arith.mulf %439, %440 : vector<2x4x512xf32>
    %442 = arith.addf %435, %441 : vector<2x4x512xf32>
    %c0_79 = arith.constant 0 : index
    %c18 = arith.constant 18 : index
    %443 = vector.load %arg4[%c0_79, %c18] : memref<4x108xf32, #tpu.memory_space<vmem>>, vector<4x1xf32>
    %444 = vector.extract_strided_slice %428 {offsets = [0, 2, 0], sizes = [2, 1, 512], strides = [1, 1, 1]} : vector<2x4x512xf32> to vector<2x1x512xf32>
    %445 = vector.shape_cast %443 : vector<4x1xf32> to vector<1x4x1xf32>
    %446 = vector.broadcast %445 : vector<1x4x1xf32> to vector<2x4x512xf32>
    %447 = vector.broadcast %444 : vector<2x1x512xf32> to vector<2x4x512xf32>
    %448 = arith.mulf %446, %447 : vector<2x4x512xf32>
    %449 = arith.addf %442, %448 : vector<2x4x512xf32>
    %c0_80 = arith.constant 0 : index
    %c19 = arith.constant 19 : index
    %450 = vector.load %arg4[%c0_80, %c19] : memref<4x108xf32, #tpu.memory_space<vmem>>, vector<4x1xf32>
    %451 = vector.extract_strided_slice %428 {offsets = [0, 3, 0], sizes = [2, 1, 512], strides = [1, 1, 1]} : vector<2x4x512xf32> to vector<2x1x512xf32>
    %452 = vector.shape_cast %450 : vector<4x1xf32> to vector<1x4x1xf32>
    %453 = vector.broadcast %452 : vector<1x4x1xf32> to vector<2x4x512xf32>
    %454 = vector.broadcast %451 : vector<2x1x512xf32> to vector<2x4x512xf32>
    %455 = arith.mulf %453, %454 : vector<2x4x512xf32>
    %456 = arith.addf %449, %455 : vector<2x4x512xf32>
    %c0_81 = arith.constant 0 : index
    %c52 = arith.constant 52 : index
    %457 = vector.load %arg4[%c0_81, %c52] : memref<4x108xf32, #tpu.memory_space<vmem>>, vector<4x1xf32>
    %458 = vector.extract_strided_slice %0 {offsets = [0, 0, 0], sizes = [2, 1, 512], strides = [1, 1, 1]} : vector<2x4x512xf32> to vector<2x1x512xf32>
    %459 = vector.shape_cast %457 : vector<4x1xf32> to vector<1x4x1xf32>
    %460 = vector.broadcast %459 : vector<1x4x1xf32> to vector<2x4x512xf32>
    %461 = vector.broadcast %458 : vector<2x1x512xf32> to vector<2x4x512xf32>
    %462 = arith.mulf %460, %461 : vector<2x4x512xf32>
    %463 = arith.addf %456, %462 : vector<2x4x512xf32>
    %c0_82 = arith.constant 0 : index
    %c53 = arith.constant 53 : index
    %464 = vector.load %arg4[%c0_82, %c53] : memref<4x108xf32, #tpu.memory_space<vmem>>, vector<4x1xf32>
    %465 = vector.extract_strided_slice %0 {offsets = [0, 1, 0], sizes = [2, 1, 512], strides = [1, 1, 1]} : vector<2x4x512xf32> to vector<2x1x512xf32>
    %466 = vector.shape_cast %464 : vector<4x1xf32> to vector<1x4x1xf32>
    %467 = vector.broadcast %466 : vector<1x4x1xf32> to vector<2x4x512xf32>
    %468 = vector.broadcast %465 : vector<2x1x512xf32> to vector<2x4x512xf32>
    %469 = arith.mulf %467, %468 : vector<2x4x512xf32>
    %470 = arith.addf %463, %469 : vector<2x4x512xf32>
    %c0_83 = arith.constant 0 : index
    %c54 = arith.constant 54 : index
    %471 = vector.load %arg4[%c0_83, %c54] : memref<4x108xf32, #tpu.memory_space<vmem>>, vector<4x1xf32>
    %472 = vector.extract_strided_slice %0 {offsets = [0, 2, 0], sizes = [2, 1, 512], strides = [1, 1, 1]} : vector<2x4x512xf32> to vector<2x1x512xf32>
    %473 = vector.shape_cast %471 : vector<4x1xf32> to vector<1x4x1xf32>
    %474 = vector.broadcast %473 : vector<1x4x1xf32> to vector<2x4x512xf32>
    %475 = vector.broadcast %472 : vector<2x1x512xf32> to vector<2x4x512xf32>
    %476 = arith.mulf %474, %475 : vector<2x4x512xf32>
    %477 = arith.addf %470, %476 : vector<2x4x512xf32>
    %c0_84 = arith.constant 0 : index
    %c55 = arith.constant 55 : index
    %478 = vector.load %arg4[%c0_84, %c55] : memref<4x108xf32, #tpu.memory_space<vmem>>, vector<4x1xf32>
    %479 = vector.extract_strided_slice %0 {offsets = [0, 3, 0], sizes = [2, 1, 512], strides = [1, 1, 1]} : vector<2x4x512xf32> to vector<2x1x512xf32>
    %480 = vector.shape_cast %478 : vector<4x1xf32> to vector<1x4x1xf32>
    %481 = vector.broadcast %480 : vector<1x4x1xf32> to vector<2x4x512xf32>
    %482 = vector.broadcast %479 : vector<2x1x512xf32> to vector<2x4x512xf32>
    %483 = arith.mulf %481, %482 : vector<2x4x512xf32>
    %484 = arith.addf %477, %483 : vector<2x4x512xf32>
    %485 = vector.extract_strided_slice %0 {offsets = [0, 0, 128], sizes = [2, 4, 384], strides = [1, 1, 1]} : vector<2x4x512xf32> to vector<2x4x384xf32>
    %486 = vector.extract_strided_slice %0 {offsets = [0, 0, 0], sizes = [2, 4, 128], strides = [1, 1, 1]} : vector<2x4x512xf32> to vector<2x4x128xf32>
    %487 = tpu.concatenate %485, %486 in 2 : vector<2x4x384xf32>, vector<2x4x128xf32> -> vector<2x4x512xf32>
    %c2_85 = arith.constant 2 : index
    %c0_86 = arith.constant 0 : index
    %488 = vector.load %arg3[%c2_85, %c0_86] : memref<3x512xf32, #tpu.memory_space<vmem>>, vector<1x512xf32>
    %489 = vector.shape_cast %488 : vector<1x512xf32> to vector<1x1x512xf32>
    %490 = vector.broadcast %489 : vector<1x1x512xf32> to vector<2x4x512xf32>
    %491 = arith.mulf %487, %490 : vector<2x4x512xf32>
    %c0_87 = arith.constant 0 : index
    %c88 = arith.constant 88 : index
    %492 = vector.load %arg4[%c0_87, %c88] : memref<4x108xf32, #tpu.memory_space<vmem>>, vector<4x1xf32>
    %493 = vector.extract_strided_slice %491 {offsets = [0, 0, 0], sizes = [2, 1, 512], strides = [1, 1, 1]} : vector<2x4x512xf32> to vector<2x1x512xf32>
    %494 = vector.shape_cast %492 : vector<4x1xf32> to vector<1x4x1xf32>
    %495 = vector.broadcast %494 : vector<1x4x1xf32> to vector<2x4x512xf32>
    %496 = vector.broadcast %493 : vector<2x1x512xf32> to vector<2x4x512xf32>
    %497 = arith.mulf %495, %496 : vector<2x4x512xf32>
    %498 = arith.addf %484, %497 : vector<2x4x512xf32>
    %c0_88 = arith.constant 0 : index
    %c89 = arith.constant 89 : index
    %499 = vector.load %arg4[%c0_88, %c89] : memref<4x108xf32, #tpu.memory_space<vmem>>, vector<4x1xf32>
    %500 = vector.extract_strided_slice %491 {offsets = [0, 1, 0], sizes = [2, 1, 512], strides = [1, 1, 1]} : vector<2x4x512xf32> to vector<2x1x512xf32>
    %501 = vector.shape_cast %499 : vector<4x1xf32> to vector<1x4x1xf32>
    %502 = vector.broadcast %501 : vector<1x4x1xf32> to vector<2x4x512xf32>
    %503 = vector.broadcast %500 : vector<2x1x512xf32> to vector<2x4x512xf32>
    %504 = arith.mulf %502, %503 : vector<2x4x512xf32>
    %505 = arith.addf %498, %504 : vector<2x4x512xf32>
    %c0_89 = arith.constant 0 : index
    %c90 = arith.constant 90 : index
    %506 = vector.load %arg4[%c0_89, %c90] : memref<4x108xf32, #tpu.memory_space<vmem>>, vector<4x1xf32>
    %507 = vector.extract_strided_slice %491 {offsets = [0, 2, 0], sizes = [2, 1, 512], strides = [1, 1, 1]} : vector<2x4x512xf32> to vector<2x1x512xf32>
    %508 = vector.shape_cast %506 : vector<4x1xf32> to vector<1x4x1xf32>
    %509 = vector.broadcast %508 : vector<1x4x1xf32> to vector<2x4x512xf32>
    %510 = vector.broadcast %507 : vector<2x1x512xf32> to vector<2x4x512xf32>
    %511 = arith.mulf %509, %510 : vector<2x4x512xf32>
    %512 = arith.addf %505, %511 : vector<2x4x512xf32>
    %c0_90 = arith.constant 0 : index
    %c91 = arith.constant 91 : index
    %513 = vector.load %arg4[%c0_90, %c91] : memref<4x108xf32, #tpu.memory_space<vmem>>, vector<4x1xf32>
    %514 = vector.extract_strided_slice %491 {offsets = [0, 3, 0], sizes = [2, 1, 512], strides = [1, 1, 1]} : vector<2x4x512xf32> to vector<2x1x512xf32>
    %515 = vector.shape_cast %513 : vector<4x1xf32> to vector<1x4x1xf32>
    %516 = vector.broadcast %515 : vector<1x4x1xf32> to vector<2x4x512xf32>
    %517 = vector.broadcast %514 : vector<2x1x512xf32> to vector<2x4x512xf32>
    %518 = arith.mulf %516, %517 : vector<2x4x512xf32>
    %519 = arith.addf %512, %518 : vector<2x4x512xf32>
    %520 = vector.extract_strided_slice %0 {offsets = [0, 0, 2], sizes = [2, 4, 510], strides = [1, 1, 1]} : vector<2x4x512xf32> to vector<2x4x510xf32>
    %521 = vector.extract_strided_slice %0 {offsets = [0, 0, 0], sizes = [2, 4, 2], strides = [1, 1, 1]} : vector<2x4x512xf32> to vector<2x4x2xf32>
    %522 = tpu.concatenate %520, %521 in 2 : vector<2x4x510xf32>, vector<2x4x2xf32> -> vector<2x4x512xf32>
    %c5_91 = arith.constant 5 : index
    %c0_92 = arith.constant 0 : index
    %523 = vector.load %arg2[%c5_91, %c0_92] : memref<9x512xf32, #tpu.memory_space<vmem>>, vector<1x512xf32>
    %524 = vector.shape_cast %523 : vector<1x512xf32> to vector<1x1x512xf32>
    %525 = vector.broadcast %524 : vector<1x1x512xf32> to vector<2x4x512xf32>
    %526 = arith.mulf %522, %525 : vector<2x4x512xf32>
    %527 = vector.extract_strided_slice %526 {offsets = [0, 0, 384], sizes = [2, 4, 128], strides = [1, 1, 1]} : vector<2x4x512xf32> to vector<2x4x128xf32>
    %528 = vector.extract_strided_slice %526 {offsets = [0, 0, 0], sizes = [2, 4, 384], strides = [1, 1, 1]} : vector<2x4x512xf32> to vector<2x4x384xf32>
    %529 = tpu.concatenate %527, %528 in 2 : vector<2x4x128xf32>, vector<2x4x384xf32> -> vector<2x4x512xf32>
    %c0_93 = arith.constant 0 : index
    %c0_94 = arith.constant 0 : index
    %530 = vector.load %arg3[%c0_93, %c0_94] : memref<3x512xf32, #tpu.memory_space<vmem>>, vector<1x512xf32>
    %531 = vector.shape_cast %530 : vector<1x512xf32> to vector<1x1x512xf32>
    %532 = vector.broadcast %531 : vector<1x1x512xf32> to vector<2x4x512xf32>
    %533 = arith.mulf %529, %532 : vector<2x4x512xf32>
    %c0_95 = arith.constant 0 : index
    %c20 = arith.constant 20 : index
    %534 = vector.load %arg4[%c0_95, %c20] : memref<4x108xf32, #tpu.memory_space<vmem>>, vector<4x1xf32>
    %535 = vector.extract_strided_slice %533 {offsets = [0, 0, 0], sizes = [2, 1, 512], strides = [1, 1, 1]} : vector<2x4x512xf32> to vector<2x1x512xf32>
    %536 = vector.shape_cast %534 : vector<4x1xf32> to vector<1x4x1xf32>
    %537 = vector.broadcast %536 : vector<1x4x1xf32> to vector<2x4x512xf32>
    %538 = vector.broadcast %535 : vector<2x1x512xf32> to vector<2x4x512xf32>
    %539 = arith.mulf %537, %538 : vector<2x4x512xf32>
    %540 = arith.addf %519, %539 : vector<2x4x512xf32>
    %c0_96 = arith.constant 0 : index
    %c21 = arith.constant 21 : index
    %541 = vector.load %arg4[%c0_96, %c21] : memref<4x108xf32, #tpu.memory_space<vmem>>, vector<4x1xf32>
    %542 = vector.extract_strided_slice %533 {offsets = [0, 1, 0], sizes = [2, 1, 512], strides = [1, 1, 1]} : vector<2x4x512xf32> to vector<2x1x512xf32>
    %543 = vector.shape_cast %541 : vector<4x1xf32> to vector<1x4x1xf32>
    %544 = vector.broadcast %543 : vector<1x4x1xf32> to vector<2x4x512xf32>
    %545 = vector.broadcast %542 : vector<2x1x512xf32> to vector<2x4x512xf32>
    %546 = arith.mulf %544, %545 : vector<2x4x512xf32>
    %547 = arith.addf %540, %546 : vector<2x4x512xf32>
    %c0_97 = arith.constant 0 : index
    %c22 = arith.constant 22 : index
    %548 = vector.load %arg4[%c0_97, %c22] : memref<4x108xf32, #tpu.memory_space<vmem>>, vector<4x1xf32>
    %549 = vector.extract_strided_slice %533 {offsets = [0, 2, 0], sizes = [2, 1, 512], strides = [1, 1, 1]} : vector<2x4x512xf32> to vector<2x1x512xf32>
    %550 = vector.shape_cast %548 : vector<4x1xf32> to vector<1x4x1xf32>
    %551 = vector.broadcast %550 : vector<1x4x1xf32> to vector<2x4x512xf32>
    %552 = vector.broadcast %549 : vector<2x1x512xf32> to vector<2x4x512xf32>
    %553 = arith.mulf %551, %552 : vector<2x4x512xf32>
    %554 = arith.addf %547, %553 : vector<2x4x512xf32>
    %c0_98 = arith.constant 0 : index
    %c23 = arith.constant 23 : index
    %555 = vector.load %arg4[%c0_98, %c23] : memref<4x108xf32, #tpu.memory_space<vmem>>, vector<4x1xf32>
    %556 = vector.extract_strided_slice %533 {offsets = [0, 3, 0], sizes = [2, 1, 512], strides = [1, 1, 1]} : vector<2x4x512xf32> to vector<2x1x512xf32>
    %557 = vector.shape_cast %555 : vector<4x1xf32> to vector<1x4x1xf32>
    %558 = vector.broadcast %557 : vector<1x4x1xf32> to vector<2x4x512xf32>
    %559 = vector.broadcast %556 : vector<2x1x512xf32> to vector<2x4x512xf32>
    %560 = arith.mulf %558, %559 : vector<2x4x512xf32>
    %561 = arith.addf %554, %560 : vector<2x4x512xf32>
    %c0_99 = arith.constant 0 : index
    %c56 = arith.constant 56 : index
    %562 = vector.load %arg4[%c0_99, %c56] : memref<4x108xf32, #tpu.memory_space<vmem>>, vector<4x1xf32>
    %563 = vector.extract_strided_slice %526 {offsets = [0, 0, 0], sizes = [2, 1, 512], strides = [1, 1, 1]} : vector<2x4x512xf32> to vector<2x1x512xf32>
    %564 = vector.shape_cast %562 : vector<4x1xf32> to vector<1x4x1xf32>
    %565 = vector.broadcast %564 : vector<1x4x1xf32> to vector<2x4x512xf32>
    %566 = vector.broadcast %563 : vector<2x1x512xf32> to vector<2x4x512xf32>
    %567 = arith.mulf %565, %566 : vector<2x4x512xf32>
    %568 = arith.addf %561, %567 : vector<2x4x512xf32>
    %c0_100 = arith.constant 0 : index
    %c57 = arith.constant 57 : index
    %569 = vector.load %arg4[%c0_100, %c57] : memref<4x108xf32, #tpu.memory_space<vmem>>, vector<4x1xf32>
    %570 = vector.extract_strided_slice %526 {offsets = [0, 1, 0], sizes = [2, 1, 512], strides = [1, 1, 1]} : vector<2x4x512xf32> to vector<2x1x512xf32>
    %571 = vector.shape_cast %569 : vector<4x1xf32> to vector<1x4x1xf32>
    %572 = vector.broadcast %571 : vector<1x4x1xf32> to vector<2x4x512xf32>
    %573 = vector.broadcast %570 : vector<2x1x512xf32> to vector<2x4x512xf32>
    %574 = arith.mulf %572, %573 : vector<2x4x512xf32>
    %575 = arith.addf %568, %574 : vector<2x4x512xf32>
    %c0_101 = arith.constant 0 : index
    %c58 = arith.constant 58 : index
    %576 = vector.load %arg4[%c0_101, %c58] : memref<4x108xf32, #tpu.memory_space<vmem>>, vector<4x1xf32>
    %577 = vector.extract_strided_slice %526 {offsets = [0, 2, 0], sizes = [2, 1, 512], strides = [1, 1, 1]} : vector<2x4x512xf32> to vector<2x1x512xf32>
    %578 = vector.shape_cast %576 : vector<4x1xf32> to vector<1x4x1xf32>
    %579 = vector.broadcast %578 : vector<1x4x1xf32> to vector<2x4x512xf32>
    %580 = vector.broadcast %577 : vector<2x1x512xf32> to vector<2x4x512xf32>
    %581 = arith.mulf %579, %580 : vector<2x4x512xf32>
    %582 = arith.addf %575, %581 : vector<2x4x512xf32>
    %c0_102 = arith.constant 0 : index
    %c59 = arith.constant 59 : index
    %583 = vector.load %arg4[%c0_102, %c59] : memref<4x108xf32, #tpu.memory_space<vmem>>, vector<4x1xf32>
    %584 = vector.extract_strided_slice %526 {offsets = [0, 3, 0], sizes = [2, 1, 512], strides = [1, 1, 1]} : vector<2x4x512xf32> to vector<2x1x512xf32>
    %585 = vector.shape_cast %583 : vector<4x1xf32> to vector<1x4x1xf32>
    %586 = vector.broadcast %585 : vector<1x4x1xf32> to vector<2x4x512xf32>
    %587 = vector.broadcast %584 : vector<2x1x512xf32> to vector<2x4x512xf32>
    %588 = arith.mulf %586, %587 : vector<2x4x512xf32>
    %589 = arith.addf %582, %588 : vector<2x4x512xf32>
    %590 = vector.extract_strided_slice %526 {offsets = [0, 0, 128], sizes = [2, 4, 384], strides = [1, 1, 1]} : vector<2x4x512xf32> to vector<2x4x384xf32>
    %591 = vector.extract_strided_slice %526 {offsets = [0, 0, 0], sizes = [2, 4, 128], strides = [1, 1, 1]} : vector<2x4x512xf32> to vector<2x4x128xf32>
    %592 = tpu.concatenate %590, %591 in 2 : vector<2x4x384xf32>, vector<2x4x128xf32> -> vector<2x4x512xf32>
    %c2_103 = arith.constant 2 : index
    %c0_104 = arith.constant 0 : index
    %593 = vector.load %arg3[%c2_103, %c0_104] : memref<3x512xf32, #tpu.memory_space<vmem>>, vector<1x512xf32>
    %594 = vector.shape_cast %593 : vector<1x512xf32> to vector<1x1x512xf32>
    %595 = vector.broadcast %594 : vector<1x1x512xf32> to vector<2x4x512xf32>
    %596 = arith.mulf %592, %595 : vector<2x4x512xf32>
    %c0_105 = arith.constant 0 : index
    %c92 = arith.constant 92 : index
    %597 = vector.load %arg4[%c0_105, %c92] : memref<4x108xf32, #tpu.memory_space<vmem>>, vector<4x1xf32>
    %598 = vector.extract_strided_slice %596 {offsets = [0, 0, 0], sizes = [2, 1, 512], strides = [1, 1, 1]} : vector<2x4x512xf32> to vector<2x1x512xf32>
    %599 = vector.shape_cast %597 : vector<4x1xf32> to vector<1x4x1xf32>
    %600 = vector.broadcast %599 : vector<1x4x1xf32> to vector<2x4x512xf32>
    %601 = vector.broadcast %598 : vector<2x1x512xf32> to vector<2x4x512xf32>
    %602 = arith.mulf %600, %601 : vector<2x4x512xf32>
    %603 = arith.addf %589, %602 : vector<2x4x512xf32>
    %c0_106 = arith.constant 0 : index
    %c93 = arith.constant 93 : index
    %604 = vector.load %arg4[%c0_106, %c93] : memref<4x108xf32, #tpu.memory_space<vmem>>, vector<4x1xf32>
    %605 = vector.extract_strided_slice %596 {offsets = [0, 1, 0], sizes = [2, 1, 512], strides = [1, 1, 1]} : vector<2x4x512xf32> to vector<2x1x512xf32>
    %606 = vector.shape_cast %604 : vector<4x1xf32> to vector<1x4x1xf32>
    %607 = vector.broadcast %606 : vector<1x4x1xf32> to vector<2x4x512xf32>
    %608 = vector.broadcast %605 : vector<2x1x512xf32> to vector<2x4x512xf32>
    %609 = arith.mulf %607, %608 : vector<2x4x512xf32>
    %610 = arith.addf %603, %609 : vector<2x4x512xf32>
    %c0_107 = arith.constant 0 : index
    %c94 = arith.constant 94 : index
    %611 = vector.load %arg4[%c0_107, %c94] : memref<4x108xf32, #tpu.memory_space<vmem>>, vector<4x1xf32>
    %612 = vector.extract_strided_slice %596 {offsets = [0, 2, 0], sizes = [2, 1, 512], strides = [1, 1, 1]} : vector<2x4x512xf32> to vector<2x1x512xf32>
    %613 = vector.shape_cast %611 : vector<4x1xf32> to vector<1x4x1xf32>
    %614 = vector.broadcast %613 : vector<1x4x1xf32> to vector<2x4x512xf32>
    %615 = vector.broadcast %612 : vector<2x1x512xf32> to vector<2x4x512xf32>
    %616 = arith.mulf %614, %615 : vector<2x4x512xf32>
    %617 = arith.addf %610, %616 : vector<2x4x512xf32>
    %c0_108 = arith.constant 0 : index
    %c95 = arith.constant 95 : index
    %618 = vector.load %arg4[%c0_108, %c95] : memref<4x108xf32, #tpu.memory_space<vmem>>, vector<4x1xf32>
    %619 = vector.extract_strided_slice %596 {offsets = [0, 3, 0], sizes = [2, 1, 512], strides = [1, 1, 1]} : vector<2x4x512xf32> to vector<2x1x512xf32>
    %620 = vector.shape_cast %618 : vector<4x1xf32> to vector<1x4x1xf32>
    %621 = vector.broadcast %620 : vector<1x4x1xf32> to vector<2x4x512xf32>
    %622 = vector.broadcast %619 : vector<2x1x512xf32> to vector<2x4x512xf32>
    %623 = arith.mulf %621, %622 : vector<2x4x512xf32>
    %624 = arith.addf %617, %623 : vector<2x4x512xf32>
    %625 = vector.extract_strided_slice %0 {offsets = [0, 0, 14], sizes = [2, 4, 498], strides = [1, 1, 1]} : vector<2x4x512xf32> to vector<2x4x498xf32>
    %626 = vector.extract_strided_slice %0 {offsets = [0, 0, 0], sizes = [2, 4, 14], strides = [1, 1, 1]} : vector<2x4x512xf32> to vector<2x4x14xf32>
    %627 = tpu.concatenate %625, %626 in 2 : vector<2x4x498xf32>, vector<2x4x14xf32> -> vector<2x4x512xf32>
    %c6_109 = arith.constant 6 : index
    %c0_110 = arith.constant 0 : index
    %628 = vector.load %arg2[%c6_109, %c0_110] : memref<9x512xf32, #tpu.memory_space<vmem>>, vector<1x512xf32>
    %629 = vector.shape_cast %628 : vector<1x512xf32> to vector<1x1x512xf32>
    %630 = vector.broadcast %629 : vector<1x1x512xf32> to vector<2x4x512xf32>
    %631 = arith.mulf %627, %630 : vector<2x4x512xf32>
    %632 = vector.extract_strided_slice %631 {offsets = [0, 0, 384], sizes = [2, 4, 128], strides = [1, 1, 1]} : vector<2x4x512xf32> to vector<2x4x128xf32>
    %633 = vector.extract_strided_slice %631 {offsets = [0, 0, 0], sizes = [2, 4, 384], strides = [1, 1, 1]} : vector<2x4x512xf32> to vector<2x4x384xf32>
    %634 = tpu.concatenate %632, %633 in 2 : vector<2x4x128xf32>, vector<2x4x384xf32> -> vector<2x4x512xf32>
    %c0_111 = arith.constant 0 : index
    %c0_112 = arith.constant 0 : index
    %635 = vector.load %arg3[%c0_111, %c0_112] : memref<3x512xf32, #tpu.memory_space<vmem>>, vector<1x512xf32>
    %636 = vector.shape_cast %635 : vector<1x512xf32> to vector<1x1x512xf32>
    %637 = vector.broadcast %636 : vector<1x1x512xf32> to vector<2x4x512xf32>
    %638 = arith.mulf %634, %637 : vector<2x4x512xf32>
    %c0_113 = arith.constant 0 : index
    %c24 = arith.constant 24 : index
    %639 = vector.load %arg4[%c0_113, %c24] : memref<4x108xf32, #tpu.memory_space<vmem>>, vector<4x1xf32>
    %640 = vector.extract_strided_slice %638 {offsets = [0, 0, 0], sizes = [2, 1, 512], strides = [1, 1, 1]} : vector<2x4x512xf32> to vector<2x1x512xf32>
    %641 = vector.shape_cast %639 : vector<4x1xf32> to vector<1x4x1xf32>
    %642 = vector.broadcast %641 : vector<1x4x1xf32> to vector<2x4x512xf32>
    %643 = vector.broadcast %640 : vector<2x1x512xf32> to vector<2x4x512xf32>
    %644 = arith.mulf %642, %643 : vector<2x4x512xf32>
    %645 = arith.addf %624, %644 : vector<2x4x512xf32>
    %c0_114 = arith.constant 0 : index
    %c25 = arith.constant 25 : index
    %646 = vector.load %arg4[%c0_114, %c25] : memref<4x108xf32, #tpu.memory_space<vmem>>, vector<4x1xf32>
    %647 = vector.extract_strided_slice %638 {offsets = [0, 1, 0], sizes = [2, 1, 512], strides = [1, 1, 1]} : vector<2x4x512xf32> to vector<2x1x512xf32>
    %648 = vector.shape_cast %646 : vector<4x1xf32> to vector<1x4x1xf32>
    %649 = vector.broadcast %648 : vector<1x4x1xf32> to vector<2x4x512xf32>
    %650 = vector.broadcast %647 : vector<2x1x512xf32> to vector<2x4x512xf32>
    %651 = arith.mulf %649, %650 : vector<2x4x512xf32>
    %652 = arith.addf %645, %651 : vector<2x4x512xf32>
    %c0_115 = arith.constant 0 : index
    %c26 = arith.constant 26 : index
    %653 = vector.load %arg4[%c0_115, %c26] : memref<4x108xf32, #tpu.memory_space<vmem>>, vector<4x1xf32>
    %654 = vector.extract_strided_slice %638 {offsets = [0, 2, 0], sizes = [2, 1, 512], strides = [1, 1, 1]} : vector<2x4x512xf32> to vector<2x1x512xf32>
    %655 = vector.shape_cast %653 : vector<4x1xf32> to vector<1x4x1xf32>
    %656 = vector.broadcast %655 : vector<1x4x1xf32> to vector<2x4x512xf32>
    %657 = vector.broadcast %654 : vector<2x1x512xf32> to vector<2x4x512xf32>
    %658 = arith.mulf %656, %657 : vector<2x4x512xf32>
    %659 = arith.addf %652, %658 : vector<2x4x512xf32>
    %c0_116 = arith.constant 0 : index
    %c27 = arith.constant 27 : index
    %660 = vector.load %arg4[%c0_116, %c27] : memref<4x108xf32, #tpu.memory_space<vmem>>, vector<4x1xf32>
    %661 = vector.extract_strided_slice %638 {offsets = [0, 3, 0], sizes = [2, 1, 512], strides = [1, 1, 1]} : vector<2x4x512xf32> to vector<2x1x512xf32>
    %662 = vector.shape_cast %660 : vector<4x1xf32> to vector<1x4x1xf32>
    %663 = vector.broadcast %662 : vector<1x4x1xf32> to vector<2x4x512xf32>
    %664 = vector.broadcast %661 : vector<2x1x512xf32> to vector<2x4x512xf32>
    %665 = arith.mulf %663, %664 : vector<2x4x512xf32>
    %666 = arith.addf %659, %665 : vector<2x4x512xf32>
    %c0_117 = arith.constant 0 : index
    %c60 = arith.constant 60 : index
    %667 = vector.load %arg4[%c0_117, %c60] : memref<4x108xf32, #tpu.memory_space<vmem>>, vector<4x1xf32>
    %668 = vector.extract_strided_slice %631 {offsets = [0, 0, 0], sizes = [2, 1, 512], strides = [1, 1, 1]} : vector<2x4x512xf32> to vector<2x1x512xf32>
    %669 = vector.shape_cast %667 : vector<4x1xf32> to vector<1x4x1xf32>
    %670 = vector.broadcast %669 : vector<1x4x1xf32> to vector<2x4x512xf32>
    %671 = vector.broadcast %668 : vector<2x1x512xf32> to vector<2x4x512xf32>
    %672 = arith.mulf %670, %671 : vector<2x4x512xf32>
    %673 = arith.addf %666, %672 : vector<2x4x512xf32>
    %c0_118 = arith.constant 0 : index
    %c61 = arith.constant 61 : index
    %674 = vector.load %arg4[%c0_118, %c61] : memref<4x108xf32, #tpu.memory_space<vmem>>, vector<4x1xf32>
    %675 = vector.extract_strided_slice %631 {offsets = [0, 1, 0], sizes = [2, 1, 512], strides = [1, 1, 1]} : vector<2x4x512xf32> to vector<2x1x512xf32>
    %676 = vector.shape_cast %674 : vector<4x1xf32> to vector<1x4x1xf32>
    %677 = vector.broadcast %676 : vector<1x4x1xf32> to vector<2x4x512xf32>
    %678 = vector.broadcast %675 : vector<2x1x512xf32> to vector<2x4x512xf32>
    %679 = arith.mulf %677, %678 : vector<2x4x512xf32>
    %680 = arith.addf %673, %679 : vector<2x4x512xf32>
    %c0_119 = arith.constant 0 : index
    %c62 = arith.constant 62 : index
    %681 = vector.load %arg4[%c0_119, %c62] : memref<4x108xf32, #tpu.memory_space<vmem>>, vector<4x1xf32>
    %682 = vector.extract_strided_slice %631 {offsets = [0, 2, 0], sizes = [2, 1, 512], strides = [1, 1, 1]} : vector<2x4x512xf32> to vector<2x1x512xf32>
    %683 = vector.shape_cast %681 : vector<4x1xf32> to vector<1x4x1xf32>
    %684 = vector.broadcast %683 : vector<1x4x1xf32> to vector<2x4x512xf32>
    %685 = vector.broadcast %682 : vector<2x1x512xf32> to vector<2x4x512xf32>
    %686 = arith.mulf %684, %685 : vector<2x4x512xf32>
    %687 = arith.addf %680, %686 : vector<2x4x512xf32>
    %c0_120 = arith.constant 0 : index
    %c63 = arith.constant 63 : index
    %688 = vector.load %arg4[%c0_120, %c63] : memref<4x108xf32, #tpu.memory_space<vmem>>, vector<4x1xf32>
    %689 = vector.extract_strided_slice %631 {offsets = [0, 3, 0], sizes = [2, 1, 512], strides = [1, 1, 1]} : vector<2x4x512xf32> to vector<2x1x512xf32>
    %690 = vector.shape_cast %688 : vector<4x1xf32> to vector<1x4x1xf32>
    %691 = vector.broadcast %690 : vector<1x4x1xf32> to vector<2x4x512xf32>
    %692 = vector.broadcast %689 : vector<2x1x512xf32> to vector<2x4x512xf32>
    %693 = arith.mulf %691, %692 : vector<2x4x512xf32>
    %694 = arith.addf %687, %693 : vector<2x4x512xf32>
    %695 = vector.extract_strided_slice %631 {offsets = [0, 0, 128], sizes = [2, 4, 384], strides = [1, 1, 1]} : vector<2x4x512xf32> to vector<2x4x384xf32>
    %696 = vector.extract_strided_slice %631 {offsets = [0, 0, 0], sizes = [2, 4, 128], strides = [1, 1, 1]} : vector<2x4x512xf32> to vector<2x4x128xf32>
    %697 = tpu.concatenate %695, %696 in 2 : vector<2x4x384xf32>, vector<2x4x128xf32> -> vector<2x4x512xf32>
    %c2_121 = arith.constant 2 : index
    %c0_122 = arith.constant 0 : index
    %698 = vector.load %arg3[%c2_121, %c0_122] : memref<3x512xf32, #tpu.memory_space<vmem>>, vector<1x512xf32>
    %699 = vector.shape_cast %698 : vector<1x512xf32> to vector<1x1x512xf32>
    %700 = vector.broadcast %699 : vector<1x1x512xf32> to vector<2x4x512xf32>
    %701 = arith.mulf %697, %700 : vector<2x4x512xf32>
    %c0_123 = arith.constant 0 : index
    %c96 = arith.constant 96 : index
    %702 = vector.load %arg4[%c0_123, %c96] : memref<4x108xf32, #tpu.memory_space<vmem>>, vector<4x1xf32>
    %703 = vector.extract_strided_slice %701 {offsets = [0, 0, 0], sizes = [2, 1, 512], strides = [1, 1, 1]} : vector<2x4x512xf32> to vector<2x1x512xf32>
    %704 = vector.shape_cast %702 : vector<4x1xf32> to vector<1x4x1xf32>
    %705 = vector.broadcast %704 : vector<1x4x1xf32> to vector<2x4x512xf32>
    %706 = vector.broadcast %703 : vector<2x1x512xf32> to vector<2x4x512xf32>
    %707 = arith.mulf %705, %706 : vector<2x4x512xf32>
    %708 = arith.addf %694, %707 : vector<2x4x512xf32>
    %c0_124 = arith.constant 0 : index
    %c97 = arith.constant 97 : index
    %709 = vector.load %arg4[%c0_124, %c97] : memref<4x108xf32, #tpu.memory_space<vmem>>, vector<4x1xf32>
    %710 = vector.extract_strided_slice %701 {offsets = [0, 1, 0], sizes = [2, 1, 512], strides = [1, 1, 1]} : vector<2x4x512xf32> to vector<2x1x512xf32>
    %711 = vector.shape_cast %709 : vector<4x1xf32> to vector<1x4x1xf32>
    %712 = vector.broadcast %711 : vector<1x4x1xf32> to vector<2x4x512xf32>
    %713 = vector.broadcast %710 : vector<2x1x512xf32> to vector<2x4x512xf32>
    %714 = arith.mulf %712, %713 : vector<2x4x512xf32>
    %715 = arith.addf %708, %714 : vector<2x4x512xf32>
    %c0_125 = arith.constant 0 : index
    %c98 = arith.constant 98 : index
    %716 = vector.load %arg4[%c0_125, %c98] : memref<4x108xf32, #tpu.memory_space<vmem>>, vector<4x1xf32>
    %717 = vector.extract_strided_slice %701 {offsets = [0, 2, 0], sizes = [2, 1, 512], strides = [1, 1, 1]} : vector<2x4x512xf32> to vector<2x1x512xf32>
    %718 = vector.shape_cast %716 : vector<4x1xf32> to vector<1x4x1xf32>
    %719 = vector.broadcast %718 : vector<1x4x1xf32> to vector<2x4x512xf32>
    %720 = vector.broadcast %717 : vector<2x1x512xf32> to vector<2x4x512xf32>
    %721 = arith.mulf %719, %720 : vector<2x4x512xf32>
    %722 = arith.addf %715, %721 : vector<2x4x512xf32>
    %c0_126 = arith.constant 0 : index
    %c99 = arith.constant 99 : index
    %723 = vector.load %arg4[%c0_126, %c99] : memref<4x108xf32, #tpu.memory_space<vmem>>, vector<4x1xf32>
    %724 = vector.extract_strided_slice %701 {offsets = [0, 3, 0], sizes = [2, 1, 512], strides = [1, 1, 1]} : vector<2x4x512xf32> to vector<2x1x512xf32>
    %725 = vector.shape_cast %723 : vector<4x1xf32> to vector<1x4x1xf32>
    %726 = vector.broadcast %725 : vector<1x4x1xf32> to vector<2x4x512xf32>
    %727 = vector.broadcast %724 : vector<2x1x512xf32> to vector<2x4x512xf32>
    %728 = arith.mulf %726, %727 : vector<2x4x512xf32>
    %729 = arith.addf %722, %728 : vector<2x4x512xf32>
    %730 = vector.extract_strided_slice %0 {offsets = [0, 0, 16], sizes = [2, 4, 496], strides = [1, 1, 1]} : vector<2x4x512xf32> to vector<2x4x496xf32>
    %731 = vector.extract_strided_slice %0 {offsets = [0, 0, 0], sizes = [2, 4, 16], strides = [1, 1, 1]} : vector<2x4x512xf32> to vector<2x4x16xf32>
    %732 = tpu.concatenate %730, %731 in 2 : vector<2x4x496xf32>, vector<2x4x16xf32> -> vector<2x4x512xf32>
    %c7_127 = arith.constant 7 : index
    %c0_128 = arith.constant 0 : index
    %733 = vector.load %arg2[%c7_127, %c0_128] : memref<9x512xf32, #tpu.memory_space<vmem>>, vector<1x512xf32>
    %734 = vector.shape_cast %733 : vector<1x512xf32> to vector<1x1x512xf32>
    %735 = vector.broadcast %734 : vector<1x1x512xf32> to vector<2x4x512xf32>
    %736 = arith.mulf %732, %735 : vector<2x4x512xf32>
    %737 = vector.extract_strided_slice %736 {offsets = [0, 0, 384], sizes = [2, 4, 128], strides = [1, 1, 1]} : vector<2x4x512xf32> to vector<2x4x128xf32>
    %738 = vector.extract_strided_slice %736 {offsets = [0, 0, 0], sizes = [2, 4, 384], strides = [1, 1, 1]} : vector<2x4x512xf32> to vector<2x4x384xf32>
    %739 = tpu.concatenate %737, %738 in 2 : vector<2x4x128xf32>, vector<2x4x384xf32> -> vector<2x4x512xf32>
    %c0_129 = arith.constant 0 : index
    %c0_130 = arith.constant 0 : index
    %740 = vector.load %arg3[%c0_129, %c0_130] : memref<3x512xf32, #tpu.memory_space<vmem>>, vector<1x512xf32>
    %741 = vector.shape_cast %740 : vector<1x512xf32> to vector<1x1x512xf32>
    %742 = vector.broadcast %741 : vector<1x1x512xf32> to vector<2x4x512xf32>
    %743 = arith.mulf %739, %742 : vector<2x4x512xf32>
    %c0_131 = arith.constant 0 : index
    %c28 = arith.constant 28 : index
    %744 = vector.load %arg4[%c0_131, %c28] : memref<4x108xf32, #tpu.memory_space<vmem>>, vector<4x1xf32>
    %745 = vector.extract_strided_slice %743 {offsets = [0, 0, 0], sizes = [2, 1, 512], strides = [1, 1, 1]} : vector<2x4x512xf32> to vector<2x1x512xf32>
    %746 = vector.shape_cast %744 : vector<4x1xf32> to vector<1x4x1xf32>
    %747 = vector.broadcast %746 : vector<1x4x1xf32> to vector<2x4x512xf32>
    %748 = vector.broadcast %745 : vector<2x1x512xf32> to vector<2x4x512xf32>
    %749 = arith.mulf %747, %748 : vector<2x4x512xf32>
    %750 = arith.addf %729, %749 : vector<2x4x512xf32>
    %c0_132 = arith.constant 0 : index
    %c29 = arith.constant 29 : index
    %751 = vector.load %arg4[%c0_132, %c29] : memref<4x108xf32, #tpu.memory_space<vmem>>, vector<4x1xf32>
    %752 = vector.extract_strided_slice %743 {offsets = [0, 1, 0], sizes = [2, 1, 512], strides = [1, 1, 1]} : vector<2x4x512xf32> to vector<2x1x512xf32>
    %753 = vector.shape_cast %751 : vector<4x1xf32> to vector<1x4x1xf32>
    %754 = vector.broadcast %753 : vector<1x4x1xf32> to vector<2x4x512xf32>
    %755 = vector.broadcast %752 : vector<2x1x512xf32> to vector<2x4x512xf32>
    %756 = arith.mulf %754, %755 : vector<2x4x512xf32>
    %757 = arith.addf %750, %756 : vector<2x4x512xf32>
    %c0_133 = arith.constant 0 : index
    %c30 = arith.constant 30 : index
    %758 = vector.load %arg4[%c0_133, %c30] : memref<4x108xf32, #tpu.memory_space<vmem>>, vector<4x1xf32>
    %759 = vector.extract_strided_slice %743 {offsets = [0, 2, 0], sizes = [2, 1, 512], strides = [1, 1, 1]} : vector<2x4x512xf32> to vector<2x1x512xf32>
    %760 = vector.shape_cast %758 : vector<4x1xf32> to vector<1x4x1xf32>
    %761 = vector.broadcast %760 : vector<1x4x1xf32> to vector<2x4x512xf32>
    %762 = vector.broadcast %759 : vector<2x1x512xf32> to vector<2x4x512xf32>
    %763 = arith.mulf %761, %762 : vector<2x4x512xf32>
    %764 = arith.addf %757, %763 : vector<2x4x512xf32>
    %c0_134 = arith.constant 0 : index
    %c31 = arith.constant 31 : index
    %765 = vector.load %arg4[%c0_134, %c31] : memref<4x108xf32, #tpu.memory_space<vmem>>, vector<4x1xf32>
    %766 = vector.extract_strided_slice %743 {offsets = [0, 3, 0], sizes = [2, 1, 512], strides = [1, 1, 1]} : vector<2x4x512xf32> to vector<2x1x512xf32>
    %767 = vector.shape_cast %765 : vector<4x1xf32> to vector<1x4x1xf32>
    %768 = vector.broadcast %767 : vector<1x4x1xf32> to vector<2x4x512xf32>
    %769 = vector.broadcast %766 : vector<2x1x512xf32> to vector<2x4x512xf32>
    %770 = arith.mulf %768, %769 : vector<2x4x512xf32>
    %771 = arith.addf %764, %770 : vector<2x4x512xf32>
    %c0_135 = arith.constant 0 : index
    %c64 = arith.constant 64 : index
    %772 = vector.load %arg4[%c0_135, %c64] : memref<4x108xf32, #tpu.memory_space<vmem>>, vector<4x1xf32>
    %773 = vector.extract_strided_slice %736 {offsets = [0, 0, 0], sizes = [2, 1, 512], strides = [1, 1, 1]} : vector<2x4x512xf32> to vector<2x1x512xf32>
    %774 = vector.shape_cast %772 : vector<4x1xf32> to vector<1x4x1xf32>
    %775 = vector.broadcast %774 : vector<1x4x1xf32> to vector<2x4x512xf32>
    %776 = vector.broadcast %773 : vector<2x1x512xf32> to vector<2x4x512xf32>
    %777 = arith.mulf %775, %776 : vector<2x4x512xf32>
    %778 = arith.addf %771, %777 : vector<2x4x512xf32>
    %c0_136 = arith.constant 0 : index
    %c65 = arith.constant 65 : index
    %779 = vector.load %arg4[%c0_136, %c65] : memref<4x108xf32, #tpu.memory_space<vmem>>, vector<4x1xf32>
    %780 = vector.extract_strided_slice %736 {offsets = [0, 1, 0], sizes = [2, 1, 512], strides = [1, 1, 1]} : vector<2x4x512xf32> to vector<2x1x512xf32>
    %781 = vector.shape_cast %779 : vector<4x1xf32> to vector<1x4x1xf32>
    %782 = vector.broadcast %781 : vector<1x4x1xf32> to vector<2x4x512xf32>
    %783 = vector.broadcast %780 : vector<2x1x512xf32> to vector<2x4x512xf32>
    %784 = arith.mulf %782, %783 : vector<2x4x512xf32>
    %785 = arith.addf %778, %784 : vector<2x4x512xf32>
    %c0_137 = arith.constant 0 : index
    %c66 = arith.constant 66 : index
    %786 = vector.load %arg4[%c0_137, %c66] : memref<4x108xf32, #tpu.memory_space<vmem>>, vector<4x1xf32>
    %787 = vector.extract_strided_slice %736 {offsets = [0, 2, 0], sizes = [2, 1, 512], strides = [1, 1, 1]} : vector<2x4x512xf32> to vector<2x1x512xf32>
    %788 = vector.shape_cast %786 : vector<4x1xf32> to vector<1x4x1xf32>
    %789 = vector.broadcast %788 : vector<1x4x1xf32> to vector<2x4x512xf32>
    %790 = vector.broadcast %787 : vector<2x1x512xf32> to vector<2x4x512xf32>
    %791 = arith.mulf %789, %790 : vector<2x4x512xf32>
    %792 = arith.addf %785, %791 : vector<2x4x512xf32>
    %c0_138 = arith.constant 0 : index
    %c67 = arith.constant 67 : index
    %793 = vector.load %arg4[%c0_138, %c67] : memref<4x108xf32, #tpu.memory_space<vmem>>, vector<4x1xf32>
    %794 = vector.extract_strided_slice %736 {offsets = [0, 3, 0], sizes = [2, 1, 512], strides = [1, 1, 1]} : vector<2x4x512xf32> to vector<2x1x512xf32>
    %795 = vector.shape_cast %793 : vector<4x1xf32> to vector<1x4x1xf32>
    %796 = vector.broadcast %795 : vector<1x4x1xf32> to vector<2x4x512xf32>
    %797 = vector.broadcast %794 : vector<2x1x512xf32> to vector<2x4x512xf32>
    %798 = arith.mulf %796, %797 : vector<2x4x512xf32>
    %799 = arith.addf %792, %798 : vector<2x4x512xf32>
    %800 = vector.extract_strided_slice %736 {offsets = [0, 0, 128], sizes = [2, 4, 384], strides = [1, 1, 1]} : vector<2x4x512xf32> to vector<2x4x384xf32>
    %801 = vector.extract_strided_slice %736 {offsets = [0, 0, 0], sizes = [2, 4, 128], strides = [1, 1, 1]} : vector<2x4x512xf32> to vector<2x4x128xf32>
    %802 = tpu.concatenate %800, %801 in 2 : vector<2x4x384xf32>, vector<2x4x128xf32> -> vector<2x4x512xf32>
    %c2_139 = arith.constant 2 : index
    %c0_140 = arith.constant 0 : index
    %803 = vector.load %arg3[%c2_139, %c0_140] : memref<3x512xf32, #tpu.memory_space<vmem>>, vector<1x512xf32>
    %804 = vector.shape_cast %803 : vector<1x512xf32> to vector<1x1x512xf32>
    %805 = vector.broadcast %804 : vector<1x1x512xf32> to vector<2x4x512xf32>
    %806 = arith.mulf %802, %805 : vector<2x4x512xf32>
    %c0_141 = arith.constant 0 : index
    %c100 = arith.constant 100 : index
    %807 = vector.load %arg4[%c0_141, %c100] : memref<4x108xf32, #tpu.memory_space<vmem>>, vector<4x1xf32>
    %808 = vector.extract_strided_slice %806 {offsets = [0, 0, 0], sizes = [2, 1, 512], strides = [1, 1, 1]} : vector<2x4x512xf32> to vector<2x1x512xf32>
    %809 = vector.shape_cast %807 : vector<4x1xf32> to vector<1x4x1xf32>
    %810 = vector.broadcast %809 : vector<1x4x1xf32> to vector<2x4x512xf32>
    %811 = vector.broadcast %808 : vector<2x1x512xf32> to vector<2x4x512xf32>
    %812 = arith.mulf %810, %811 : vector<2x4x512xf32>
    %813 = arith.addf %799, %812 : vector<2x4x512xf32>
    %c0_142 = arith.constant 0 : index
    %c101 = arith.constant 101 : index
    %814 = vector.load %arg4[%c0_142, %c101] : memref<4x108xf32, #tpu.memory_space<vmem>>, vector<4x1xf32>
    %815 = vector.extract_strided_slice %806 {offsets = [0, 1, 0], sizes = [2, 1, 512], strides = [1, 1, 1]} : vector<2x4x512xf32> to vector<2x1x512xf32>
    %816 = vector.shape_cast %814 : vector<4x1xf32> to vector<1x4x1xf32>
    %817 = vector.broadcast %816 : vector<1x4x1xf32> to vector<2x4x512xf32>
    %818 = vector.broadcast %815 : vector<2x1x512xf32> to vector<2x4x512xf32>
    %819 = arith.mulf %817, %818 : vector<2x4x512xf32>
    %820 = arith.addf %813, %819 : vector<2x4x512xf32>
    %c0_143 = arith.constant 0 : index
    %c102 = arith.constant 102 : index
    %821 = vector.load %arg4[%c0_143, %c102] : memref<4x108xf32, #tpu.memory_space<vmem>>, vector<4x1xf32>
    %822 = vector.extract_strided_slice %806 {offsets = [0, 2, 0], sizes = [2, 1, 512], strides = [1, 1, 1]} : vector<2x4x512xf32> to vector<2x1x512xf32>
    %823 = vector.shape_cast %821 : vector<4x1xf32> to vector<1x4x1xf32>
    %824 = vector.broadcast %823 : vector<1x4x1xf32> to vector<2x4x512xf32>
    %825 = vector.broadcast %822 : vector<2x1x512xf32> to vector<2x4x512xf32>
    %826 = arith.mulf %824, %825 : vector<2x4x512xf32>
    %827 = arith.addf %820, %826 : vector<2x4x512xf32>
    %c0_144 = arith.constant 0 : index
    %c103 = arith.constant 103 : index
    %828 = vector.load %arg4[%c0_144, %c103] : memref<4x108xf32, #tpu.memory_space<vmem>>, vector<4x1xf32>
    %829 = vector.extract_strided_slice %806 {offsets = [0, 3, 0], sizes = [2, 1, 512], strides = [1, 1, 1]} : vector<2x4x512xf32> to vector<2x1x512xf32>
    %830 = vector.shape_cast %828 : vector<4x1xf32> to vector<1x4x1xf32>
    %831 = vector.broadcast %830 : vector<1x4x1xf32> to vector<2x4x512xf32>
    %832 = vector.broadcast %829 : vector<2x1x512xf32> to vector<2x4x512xf32>
    %833 = arith.mulf %831, %832 : vector<2x4x512xf32>
    %834 = arith.addf %827, %833 : vector<2x4x512xf32>
    %835 = vector.extract_strided_slice %0 {offsets = [0, 0, 18], sizes = [2, 4, 494], strides = [1, 1, 1]} : vector<2x4x512xf32> to vector<2x4x494xf32>
    %836 = vector.extract_strided_slice %0 {offsets = [0, 0, 0], sizes = [2, 4, 18], strides = [1, 1, 1]} : vector<2x4x512xf32> to vector<2x4x18xf32>
    %837 = tpu.concatenate %835, %836 in 2 : vector<2x4x494xf32>, vector<2x4x18xf32> -> vector<2x4x512xf32>
    %c8_145 = arith.constant 8 : index
    %c0_146 = arith.constant 0 : index
    %838 = vector.load %arg2[%c8_145, %c0_146] : memref<9x512xf32, #tpu.memory_space<vmem>>, vector<1x512xf32>
    %839 = vector.shape_cast %838 : vector<1x512xf32> to vector<1x1x512xf32>
    %840 = vector.broadcast %839 : vector<1x1x512xf32> to vector<2x4x512xf32>
    %841 = arith.mulf %837, %840 : vector<2x4x512xf32>
    %842 = vector.extract_strided_slice %841 {offsets = [0, 0, 384], sizes = [2, 4, 128], strides = [1, 1, 1]} : vector<2x4x512xf32> to vector<2x4x128xf32>
    %843 = vector.extract_strided_slice %841 {offsets = [0, 0, 0], sizes = [2, 4, 384], strides = [1, 1, 1]} : vector<2x4x512xf32> to vector<2x4x384xf32>
    %844 = tpu.concatenate %842, %843 in 2 : vector<2x4x128xf32>, vector<2x4x384xf32> -> vector<2x4x512xf32>
    %c0_147 = arith.constant 0 : index
    %c0_148 = arith.constant 0 : index
    %845 = vector.load %arg3[%c0_147, %c0_148] : memref<3x512xf32, #tpu.memory_space<vmem>>, vector<1x512xf32>
    %846 = vector.shape_cast %845 : vector<1x512xf32> to vector<1x1x512xf32>
    %847 = vector.broadcast %846 : vector<1x1x512xf32> to vector<2x4x512xf32>
    %848 = arith.mulf %844, %847 : vector<2x4x512xf32>
    %c0_149 = arith.constant 0 : index
    %c32 = arith.constant 32 : index
    %849 = vector.load %arg4[%c0_149, %c32] : memref<4x108xf32, #tpu.memory_space<vmem>>, vector<4x1xf32>
    %850 = vector.extract_strided_slice %848 {offsets = [0, 0, 0], sizes = [2, 1, 512], strides = [1, 1, 1]} : vector<2x4x512xf32> to vector<2x1x512xf32>
    %851 = vector.shape_cast %849 : vector<4x1xf32> to vector<1x4x1xf32>
    %852 = vector.broadcast %851 : vector<1x4x1xf32> to vector<2x4x512xf32>
    %853 = vector.broadcast %850 : vector<2x1x512xf32> to vector<2x4x512xf32>
    %854 = arith.mulf %852, %853 : vector<2x4x512xf32>
    %855 = arith.addf %834, %854 : vector<2x4x512xf32>
    %c0_150 = arith.constant 0 : index
    %c33 = arith.constant 33 : index
    %856 = vector.load %arg4[%c0_150, %c33] : memref<4x108xf32, #tpu.memory_space<vmem>>, vector<4x1xf32>
    %857 = vector.extract_strided_slice %848 {offsets = [0, 1, 0], sizes = [2, 1, 512], strides = [1, 1, 1]} : vector<2x4x512xf32> to vector<2x1x512xf32>
    %858 = vector.shape_cast %856 : vector<4x1xf32> to vector<1x4x1xf32>
    %859 = vector.broadcast %858 : vector<1x4x1xf32> to vector<2x4x512xf32>
    %860 = vector.broadcast %857 : vector<2x1x512xf32> to vector<2x4x512xf32>
    %861 = arith.mulf %859, %860 : vector<2x4x512xf32>
    %862 = arith.addf %855, %861 : vector<2x4x512xf32>
    %c0_151 = arith.constant 0 : index
    %c34 = arith.constant 34 : index
    %863 = vector.load %arg4[%c0_151, %c34] : memref<4x108xf32, #tpu.memory_space<vmem>>, vector<4x1xf32>
    %864 = vector.extract_strided_slice %848 {offsets = [0, 2, 0], sizes = [2, 1, 512], strides = [1, 1, 1]} : vector<2x4x512xf32> to vector<2x1x512xf32>
    %865 = vector.shape_cast %863 : vector<4x1xf32> to vector<1x4x1xf32>
    %866 = vector.broadcast %865 : vector<1x4x1xf32> to vector<2x4x512xf32>
    %867 = vector.broadcast %864 : vector<2x1x512xf32> to vector<2x4x512xf32>
    %868 = arith.mulf %866, %867 : vector<2x4x512xf32>
    %869 = arith.addf %862, %868 : vector<2x4x512xf32>
    %c0_152 = arith.constant 0 : index
    %c35 = arith.constant 35 : index
    %870 = vector.load %arg4[%c0_152, %c35] : memref<4x108xf32, #tpu.memory_space<vmem>>, vector<4x1xf32>
    %871 = vector.extract_strided_slice %848 {offsets = [0, 3, 0], sizes = [2, 1, 512], strides = [1, 1, 1]} : vector<2x4x512xf32> to vector<2x1x512xf32>
    %872 = vector.shape_cast %870 : vector<4x1xf32> to vector<1x4x1xf32>
    %873 = vector.broadcast %872 : vector<1x4x1xf32> to vector<2x4x512xf32>
    %874 = vector.broadcast %871 : vector<2x1x512xf32> to vector<2x4x512xf32>
    %875 = arith.mulf %873, %874 : vector<2x4x512xf32>
    %876 = arith.addf %869, %875 : vector<2x4x512xf32>
    %c0_153 = arith.constant 0 : index
    %c68 = arith.constant 68 : index
    %877 = vector.load %arg4[%c0_153, %c68] : memref<4x108xf32, #tpu.memory_space<vmem>>, vector<4x1xf32>
    %878 = vector.extract_strided_slice %841 {offsets = [0, 0, 0], sizes = [2, 1, 512], strides = [1, 1, 1]} : vector<2x4x512xf32> to vector<2x1x512xf32>
    %879 = vector.shape_cast %877 : vector<4x1xf32> to vector<1x4x1xf32>
    %880 = vector.broadcast %879 : vector<1x4x1xf32> to vector<2x4x512xf32>
    %881 = vector.broadcast %878 : vector<2x1x512xf32> to vector<2x4x512xf32>
    %882 = arith.mulf %880, %881 : vector<2x4x512xf32>
    %883 = arith.addf %876, %882 : vector<2x4x512xf32>
    %c0_154 = arith.constant 0 : index
    %c69 = arith.constant 69 : index
    %884 = vector.load %arg4[%c0_154, %c69] : memref<4x108xf32, #tpu.memory_space<vmem>>, vector<4x1xf32>
    %885 = vector.extract_strided_slice %841 {offsets = [0, 1, 0], sizes = [2, 1, 512], strides = [1, 1, 1]} : vector<2x4x512xf32> to vector<2x1x512xf32>
    %886 = vector.shape_cast %884 : vector<4x1xf32> to vector<1x4x1xf32>
    %887 = vector.broadcast %886 : vector<1x4x1xf32> to vector<2x4x512xf32>
    %888 = vector.broadcast %885 : vector<2x1x512xf32> to vector<2x4x512xf32>
    %889 = arith.mulf %887, %888 : vector<2x4x512xf32>
    %890 = arith.addf %883, %889 : vector<2x4x512xf32>
    %c0_155 = arith.constant 0 : index
    %c70 = arith.constant 70 : index
    %891 = vector.load %arg4[%c0_155, %c70] : memref<4x108xf32, #tpu.memory_space<vmem>>, vector<4x1xf32>
    %892 = vector.extract_strided_slice %841 {offsets = [0, 2, 0], sizes = [2, 1, 512], strides = [1, 1, 1]} : vector<2x4x512xf32> to vector<2x1x512xf32>
    %893 = vector.shape_cast %891 : vector<4x1xf32> to vector<1x4x1xf32>
    %894 = vector.broadcast %893 : vector<1x4x1xf32> to vector<2x4x512xf32>
    %895 = vector.broadcast %892 : vector<2x1x512xf32> to vector<2x4x512xf32>
    %896 = arith.mulf %894, %895 : vector<2x4x512xf32>
    %897 = arith.addf %890, %896 : vector<2x4x512xf32>
    %c0_156 = arith.constant 0 : index
    %c71 = arith.constant 71 : index
    %898 = vector.load %arg4[%c0_156, %c71] : memref<4x108xf32, #tpu.memory_space<vmem>>, vector<4x1xf32>
    %899 = vector.extract_strided_slice %841 {offsets = [0, 3, 0], sizes = [2, 1, 512], strides = [1, 1, 1]} : vector<2x4x512xf32> to vector<2x1x512xf32>
    %900 = vector.shape_cast %898 : vector<4x1xf32> to vector<1x4x1xf32>
    %901 = vector.broadcast %900 : vector<1x4x1xf32> to vector<2x4x512xf32>
    %902 = vector.broadcast %899 : vector<2x1x512xf32> to vector<2x4x512xf32>
    %903 = arith.mulf %901, %902 : vector<2x4x512xf32>
    %904 = arith.addf %897, %903 : vector<2x4x512xf32>
    %905 = vector.extract_strided_slice %841 {offsets = [0, 0, 128], sizes = [2, 4, 384], strides = [1, 1, 1]} : vector<2x4x512xf32> to vector<2x4x384xf32>
    %906 = vector.extract_strided_slice %841 {offsets = [0, 0, 0], sizes = [2, 4, 128], strides = [1, 1, 1]} : vector<2x4x512xf32> to vector<2x4x128xf32>
    %907 = tpu.concatenate %905, %906 in 2 : vector<2x4x384xf32>, vector<2x4x128xf32> -> vector<2x4x512xf32>
    %c2_157 = arith.constant 2 : index
    %c0_158 = arith.constant 0 : index
    %908 = vector.load %arg3[%c2_157, %c0_158] : memref<3x512xf32, #tpu.memory_space<vmem>>, vector<1x512xf32>
    %909 = vector.shape_cast %908 : vector<1x512xf32> to vector<1x1x512xf32>
    %910 = vector.broadcast %909 : vector<1x1x512xf32> to vector<2x4x512xf32>
    %911 = arith.mulf %907, %910 : vector<2x4x512xf32>
    %c0_159 = arith.constant 0 : index
    %c104 = arith.constant 104 : index
    %912 = vector.load %arg4[%c0_159, %c104] : memref<4x108xf32, #tpu.memory_space<vmem>>, vector<4x1xf32>
    %913 = vector.extract_strided_slice %911 {offsets = [0, 0, 0], sizes = [2, 1, 512], strides = [1, 1, 1]} : vector<2x4x512xf32> to vector<2x1x512xf32>
    %914 = vector.shape_cast %912 : vector<4x1xf32> to vector<1x4x1xf32>
    %915 = vector.broadcast %914 : vector<1x4x1xf32> to vector<2x4x512xf32>
    %916 = vector.broadcast %913 : vector<2x1x512xf32> to vector<2x4x512xf32>
    %917 = arith.mulf %915, %916 : vector<2x4x512xf32>
    %918 = arith.addf %904, %917 : vector<2x4x512xf32>
    %c0_160 = arith.constant 0 : index
    %c105 = arith.constant 105 : index
    %919 = vector.load %arg4[%c0_160, %c105] : memref<4x108xf32, #tpu.memory_space<vmem>>, vector<4x1xf32>
    %920 = vector.extract_strided_slice %911 {offsets = [0, 1, 0], sizes = [2, 1, 512], strides = [1, 1, 1]} : vector<2x4x512xf32> to vector<2x1x512xf32>
    %921 = vector.shape_cast %919 : vector<4x1xf32> to vector<1x4x1xf32>
    %922 = vector.broadcast %921 : vector<1x4x1xf32> to vector<2x4x512xf32>
    %923 = vector.broadcast %920 : vector<2x1x512xf32> to vector<2x4x512xf32>
    %924 = arith.mulf %922, %923 : vector<2x4x512xf32>
    %925 = arith.addf %918, %924 : vector<2x4x512xf32>
    %c0_161 = arith.constant 0 : index
    %c106 = arith.constant 106 : index
    %926 = vector.load %arg4[%c0_161, %c106] : memref<4x108xf32, #tpu.memory_space<vmem>>, vector<4x1xf32>
    %927 = vector.extract_strided_slice %911 {offsets = [0, 2, 0], sizes = [2, 1, 512], strides = [1, 1, 1]} : vector<2x4x512xf32> to vector<2x1x512xf32>
    %928 = vector.shape_cast %926 : vector<4x1xf32> to vector<1x4x1xf32>
    %929 = vector.broadcast %928 : vector<1x4x1xf32> to vector<2x4x512xf32>
    %930 = vector.broadcast %927 : vector<2x1x512xf32> to vector<2x4x512xf32>
    %931 = arith.mulf %929, %930 : vector<2x4x512xf32>
    %932 = arith.addf %925, %931 : vector<2x4x512xf32>
    %c0_162 = arith.constant 0 : index
    %c107 = arith.constant 107 : index
    %933 = vector.load %arg4[%c0_162, %c107] : memref<4x108xf32, #tpu.memory_space<vmem>>, vector<4x1xf32>
    %934 = vector.extract_strided_slice %911 {offsets = [0, 3, 0], sizes = [2, 1, 512], strides = [1, 1, 1]} : vector<2x4x512xf32> to vector<2x1x512xf32>
    %935 = vector.shape_cast %933 : vector<4x1xf32> to vector<1x4x1xf32>
    %936 = vector.broadcast %935 : vector<1x4x1xf32> to vector<2x4x512xf32>
    %937 = vector.broadcast %934 : vector<2x1x512xf32> to vector<2x4x512xf32>
    %938 = arith.mulf %936, %937 : vector<2x4x512xf32>
    %939 = arith.addf %932, %938 : vector<2x4x512xf32>
    %c0_163 = arith.constant 0 : index
    %c0_164 = arith.constant 0 : index
    %940 = vector.load %arg5[%c0_163, %c0_164] : memref<4x1xf32, #tpu.memory_space<vmem>>, vector<4x1xf32>
    %941 = vector.shape_cast %940 : vector<4x1xf32> to vector<1x4x1xf32>
    %942 = vector.broadcast %941 : vector<1x4x1xf32> to vector<2x4x512xf32>
    %943 = arith.addf %939, %942 : vector<2x4x512xf32>
    %944 = arith.negf %943 : vector<2x4x512xf32>
    %945 = math.exp %944 : vector<2x4x512xf32>
    %cst_165 = arith.constant 1.000000e+00 : f32
    %946 = vector.broadcast %cst_165 : f32 to vector<2x4x512xf32>
    %947 = arith.addf %946, %945 : vector<2x4x512xf32>
    %948 = arith.divf %946, %947 : vector<2x4x512xf32>
    %c0_166 = arith.constant 0 : index
    %c0_167 = arith.constant 0 : index
    %c0_168 = arith.constant 0 : index
    %949 = vector.load %arg6[%c0_166, %c0_167, %c0_168] : memref<2x4x512xf32, #tpu.memory_space<vmem>>, vector<2x4x512xf32>
    tpu.vector_store %arg6[%c0_166, %c0_167, %c0_168], %948 {strides = array<i32>} : memref<2x4x512xf32, #tpu.memory_space<vmem>>, vector<2x4x512xf32>,
    return
  }
  func.func @transform_0(%arg0: i32) -> (i32, i32, i32) {
    %c0_i32 = arith.constant 0 : i32
    %c0_i32_0 = arith.constant 0 : i32
    %c0_i32_1 = arith.constant 0 : i32
    return %arg0, %c0_i32, %c0_i32_0 : i32, i32, i32
  }
  func.func @transform_1(%arg0: i32) -> (i32, i32) {
    %c0_i32 = arith.constant 0 : i32
    %c0_i32_0 = arith.constant 0 : i32
    %c0_i32_1 = arith.constant 0 : i32
    return %c0_i32, %c0_i32_0 : i32, i32
  }
  func.func @transform_2(%arg0: i32) -> (i32, i32) {
    %c0_i32 = arith.constant 0 : i32
    %c0_i32_0 = arith.constant 0 : i32
    %c0_i32_1 = arith.constant 0 : i32
    return %c0_i32, %c0_i32_0 : i32, i32
  }
  func.func @transform_3(%arg0: i32) -> (i32, i32) {
    %c0_i32 = arith.constant 0 : i32
    %c0_i32_0 = arith.constant 0 : i32
    %c0_i32_1 = arith.constant 0 : i32
    return %c0_i32, %c0_i32_0 : i32, i32
  }
  func.func @transform_4(%arg0: i32) -> (i32, i32) {
    %c0_i32 = arith.constant 0 : i32
    %c0_i32_0 = arith.constant 0 : i32
    %c0_i32_1 = arith.constant 0 : i32
    return %c0_i32, %c0_i32_0 : i32, i32
  }
  func.func @transform_5(%arg0: i32) -> (i32, i32, i32) {
    %c0_i32 = arith.constant 0 : i32
    %c0_i32_0 = arith.constant 0 : i32
    %c0_i32_1 = arith.constant 0 : i32
    return %arg0, %c0_i32, %c0_i32_0 : i32, i32, i32
  }
}

</mosaic_0001>

<llo_original>
// kernel: segse_forward.1
$region0: #{segse_forward.1}
  #allocation0 [shape = 'u32[]', space=smem, size = 0x4, offset = 0x4, fixed_abs, tag = 'smem constant byte address 0x4 - core index']
  #allocation1 [shape = 'u32[144,128]{1,0:T(1,128)}', space=vmem, size = 0x12000, scoped, tag = 'internal scratch']
  %s0 = inlined_call_operand.vmem [shape: f32[2,4,512], index: 0, kind: input, shape index: {}]
  %s1 = inlined_call_operand.vmem [shape: f32[9,512], index: 1, kind: input, shape index: {}]
  %s2 = inlined_call_operand.vmem [shape: f32[3,512], index: 2, kind: input, shape index: {}]
  %s3 = inlined_call_operand.vmem [shape: f32[4,108], index: 3, kind: input, shape index: {}]
  %s4 = inlined_call_operand.vmem [shape: f32[4,1], index: 4, kind: input, shape index: {}]
  %s5 = inlined_call_operand.vmem [shape: f32[2,4,512], index: 5, kind: output, shape index: {}]
  %s6 = sld [smem:[#allocation0]]
  $region30: #{segse_forward.1} parent=0
    _
  %s8 = ssub.s32 1, %s6
  %s9 = scalar_select 0, %s8, %s6
  // Predicated region
  $region2: #{segse_forward.1} parent=0 // pred_check
    _
  $region3: #{segse_forward.1} parent=0 // pred_check_branch
    %11 = sbr.rel (0) target = $region5
  $region4: #{segse_forward.1} parent=0 // pred_region
    _
  $region5: #{segse_forward.1} parent=0 // pred_fallthru
    _
  // Predicated region
  $region6: #{segse_forward.1} parent=0 // pred_check
    _
  $region7: #{segse_forward.1} parent=0 // pred_check_branch
    %13 = sbr.rel (0) target = $region9
  $region8: #{segse_forward.1} parent=0 // pred_region
    _
  $region9: #{segse_forward.1} parent=0 // pred_fallthru
    _
  // Predicated region
  $region10: #{segse_forward.1} parent=0 // pred_check
    _
  $region11: #{segse_forward.1} parent=0 // pred_check_branch
    %15 = sbr.rel (0) target = $region13
  $region12: #{segse_forward.1} parent=0 // pred_region
    _
  $region13: #{segse_forward.1} parent=0 // pred_fallthru
    _
  // Predicated region
  $region14: #{segse_forward.1} parent=0 // pred_check
    _
  $region15: #{segse_forward.1} parent=0 // pred_check_branch
    %17 = sbr.rel (0) target = $region17
  $region16: #{segse_forward.1} parent=0 // pred_region
    _
  $region17: #{segse_forward.1} parent=0 // pred_fallthru
    _
  // Predicated region
  $region18: #{segse_forward.1} parent=0 // pred_check
    _
  $region19: #{segse_forward.1} parent=0 // pred_check_branch
    %19 = sbr.rel (0) target = $region21
  $region20: #{segse_forward.1} parent=0 // pred_region
    _
  $region21: #{segse_forward.1} parent=0 // pred_fallthru
    _
  %v20 = vld [vmem:[%s0] sm:$0xff]
  %v21 = vld [vmem:[%s0 + $0x8] sm:$0xff]
  %v22 = vld [vmem:[%s0 + $0x10] sm:$0xff]
  %v23 = vld [vmem:[%s0 + $0x18] sm:$0xff]
  %v26 = vcombine.high %v21, %v21
  %v27 = vcombine.high %v23, %v23
  %28 = vrot.lane.b32.xlu0 %v26, 18
  %v29 = vpop.permute.xlu0 %28
  %30 = vrot.lane.b32.xlu0 %v27, 18
  %v31 = vpop.permute.xlu0 %30
  %v36 = vcombine.high %v20, %v20
  %v37 = vcombine.high %v22, %v22
  %38 = vrot.lane.b32.xlu0 %v20, 18
  %v39 = vpop.permute.xlu0 %38
  %40 = vrot.lane.b32.xlu0 %v36, 18
  %v41 = vpop.permute.xlu0 %40
  %42 = vrot.lane.b32.xlu0 %v21, 18
  %v43 = vpop.permute.xlu0 %42
  %44 = vrot.lane.b32.xlu0 %v22, 18
  %v45 = vpop.permute.xlu0 %44
  %46 = vrot.lane.b32.xlu0 %v37, 18
  %v47 = vpop.permute.xlu0 %46
  %48 = vrot.lane.b32.xlu0 %v23, 18
  %v49 = vpop.permute.xlu0 %48
  %vm50 = vcmask 146432
  %v51 = vsel %vm50, %v39, %v41
  %v52 = vsel %vm50, %v41, %v43
  %v53 = vsel %vm50, %v43, %v29
  %v54 = vsel %vm50, %v45, %v47
  %v55 = vsel %vm50, %v47, %v49
  %v56 = vsel %vm50, %v49, %v31
  %v65 = vsel %vm50, %v29, %v39
  %v66 = vsel %vm50, %v31, %v45
  %v67 = vld [vmem:[%s1] ss:$8 sm:$0xf]
  %v69 = vlaneseq
  %v70 = vshrl.u32 %v69, 7
  %v71 = vsub.s32 0, %v70
  %v72 = vrot.slane %v67, %v71
  %v73 = vlaneseq
  %v74 = vshrl.u32 %v73, 7
  %v75 = vsub.s32 1, %v74
  %v76 = vrot.slane %v67, %v75
  %v77 = vlaneseq
  %v78 = vshrl.u32 %v77, 7
  %v79 = vsub.s32 2, %v78
  %v80 = vrot.slane %v67, %v79
  %v81 = vlaneseq
  %v82 = vshrl.u32 %v81, 7
  %v83 = vsub.s32 3, %v82
  %v84 = vrot.slane %v67, %v83
  %v89 = vmul.f32 %v65, %v72
  %v90 = vmul.f32 %v51, %v76
  %v91 = vmul.f32 %v52, %v80
  %v92 = vmul.f32 %v53, %v84
  %v93 = vmul.f32 %v66, %v72
  %v94 = vmul.f32 %v54, %v76
  %v95 = vmul.f32 %v55, %v80
  %v96 = vmul.f32 %v56, %v84
  %v97 = vld [vmem:[%s2] ss:$4 sm:$0xf]
  %v99 = vlaneseq
  %v100 = vshrl.u32 %v99, 7
  %v101 = vsub.s32 0, %v100
  %v102 = vrot.slane %v97, %v101
  %v103 = vlaneseq
  %v104 = vshrl.u32 %v103, 7
  %v105 = vsub.s32 1, %v104
  %v106 = vrot.slane %v97, %v105
  %v107 = vlaneseq
  %v108 = vshrl.u32 %v107, 7
  %v109 = vsub.s32 2, %v108
  %v110 = vrot.slane %v97, %v109
  %v111 = vlaneseq
  %v112 = vshrl.u32 %v111, 7
  %v113 = vsub.s32 3, %v112
  %v114 = vrot.slane %v97, %v113
  %v119 = vmul.f32 %v92, %v102
  %v120 = vmul.f32 %v89, %v106
  %v121 = vmul.f32 %v90, %v110
  %v122 = vmul.f32 %v91, %v114
  %v123 = vmul.f32 %v96, %v102
  %v124 = vmul.f32 %v93, %v106
  %v125 = vmul.f32 %v94, %v110
  %v126 = vmul.f32 %v95, %v114
  %v127 = vld [vmem:[%s3] sm:$0xf]
  %129 = vset.pattern.permute.xlu0 0
  %130 = vperm.xlu0 %129, %v127
  %v131 = vpop.permute.xlu0 %130
  %v133 = vlaneseq
  %v134 = vshrl.u32 %v133, 7
  %v135 = vsub.s32 0, %v134
  %v136 = vrot.slane %v119, %v135
  %v137 = vlaneseq
  %v138 = vshrl.u32 %v137, 7
  %v139 = vsub.s32 0, %v138
  %v140 = vrot.slane %v120, %v139
  %v141 = vlaneseq
  %v142 = vshrl.u32 %v141, 7
  %v143 = vsub.s32 0, %v142
  %v144 = vrot.slane %v121, %v143
  %v145 = vlaneseq
  %v146 = vshrl.u32 %v145, 7
  %v147 = vsub.s32 0, %v146
  %v148 = vrot.slane %v122, %v147
  %v149 = vlaneseq
  %v150 = vshrl.u32 %v149, 7
  %v151 = vsub.s32 0, %v150
  %v152 = vrot.slane %v123, %v151
  %v153 = vlaneseq
  %v154 = vshrl.u32 %v153, 7
  %v155 = vsub.s32 0, %v154
  %v156 = vrot.slane %v124, %v155
  %v157 = vlaneseq
  %v158 = vshrl.u32 %v157, 7
  %v159 = vsub.s32 0, %v158
  %v160 = vrot.slane %v125, %v159
  %v161 = vlaneseq
  %v162 = vshrl.u32 %v161, 7
  %v163 = vsub.s32 0, %v162
  %v164 = vrot.slane %v126, %v163
  %v165 = vmul.f32 %v131, %v136
  %v166 = vmul.f32 %v131, %v140
  %v167 = vmul.f32 %v131, %v144
  %v168 = vmul.f32 %v131, %v148
  %v169 = vmul.f32 %v131, %v152
  %v170 = vmul.f32 %v131, %v156
  %v171 = vmul.f32 %v131, %v160
  %v172 = vmul.f32 %v131, %v164
  %v173 = vadd.f32 %v165, 0.0
  %v174 = vadd.f32 %v166, 0.0
  %v175 = vadd.f32 %v167, 0.0
  %v176 = vadd.f32 %v168, 0.0
  %v177 = vadd.f32 %v169, 0.0
  %v178 = vadd.f32 %v170, 0.0
  %v179 = vadd.f32 %v171, 0.0
  %v180 = vadd.f32 %v172, 0.0
  %181 = vset.pattern.permute.xlu0 1
  %182 = vperm.xlu0 %181, %v127
  %v183 = vpop.permute.xlu0 %182
  %v185 = vlaneseq
  %v186 = vshrl.u32 %v185, 7
  %v187 = vsub.s32 1, %v186
  %v188 = vrot.slane %v119, %v187
  %v189 = vlaneseq
  %v190 = vshrl.u32 %v189, 7
  %v191 = vsub.s32 1, %v190
  %v192 = vrot.slane %v120, %v191
  %v193 = vlaneseq
  %v194 = vshrl.u32 %v193, 7
  %v195 = vsub.s32 1, %v194
  %v196 = vrot.slane %v121, %v195
  %v197 = vlaneseq
  %v198 = vshrl.u32 %v197, 7
  %v199 = vsub.s32 1, %v198
  %v200 = vrot.slane %v122, %v199
  %v201 = vlaneseq
  %v202 = vshrl.u32 %v201, 7
  %v203 = vsub.s32 1, %v202
  %v204 = vrot.slane %v123, %v203
  %v205 = vlaneseq
  %v206 = vshrl.u32 %v205, 7
  %v207 = vsub.s32 1, %v206
  %v208 = vrot.slane %v124, %v207
  %v209 = vlaneseq
  %v210 = vshrl.u32 %v209, 7
  %v211 = vsub.s32 1, %v210
  %v212 = vrot.slane %v125, %v211
  %v213 = vlaneseq
  %v214 = vshrl.u32 %v213, 7
  %v215 = vsub.s32 1, %v214
  %v216 = vrot.slane %v126, %v215
  %v217 = vmul.f32 %v183, %v188
  %v218 = vmul.f32 %v183, %v192
  %v219 = vmul.f32 %v183, %v196
  %v220 = vmul.f32 %v183, %v200
  %v221 = vmul.f32 %v183, %v204
  %v222 = vmul.f32 %v183, %v208
  %v223 = vmul.f32 %v183, %v212
  %v224 = vmul.f32 %v183, %v216
  %v225 = vadd.f32 %v173, %v217
  %v226 = vadd.f32 %v174, %v218
  %v227 = vadd.f32 %v175, %v219
  %v228 = vadd.f32 %v176, %v220
  %v229 = vadd.f32 %v177, %v221
  %v230 = vadd.f32 %v178, %v222
  %v231 = vadd.f32 %v179, %v223
  %v232 = vadd.f32 %v180, %v224
  %233 = vset.pattern.permute.xlu0 2
  %234 = vperm.xlu0 %233, %v127
  %v235 = vpop.permute.xlu0 %234
  %v237 = vlaneseq
  %v238 = vshrl.u32 %v237, 7
  %v239 = vsub.s32 2, %v238
  %v240 = vrot.slane %v119, %v239
  %v241 = vlaneseq
  %v242 = vshrl.u32 %v241, 7
  %v243 = vsub.s32 2, %v242
  %v244 = vrot.slane %v120, %v243
  %v245 = vlaneseq
  %v246 = vshrl.u32 %v245, 7
  %v247 = vsub.s32 2, %v246
  %v248 = vrot.slane %v121, %v247
  %v249 = vlaneseq
  %v250 = vshrl.u32 %v249, 7
  %v251 = vsub.s32 2, %v250
  %v252 = vrot.slane %v122, %v251
  %v253 = vlaneseq
  %v254 = vshrl.u32 %v253, 7
  %v255 = vsub.s32 2, %v254
  %v256 = vrot.slane %v123, %v255
  %v257 = vlaneseq
  %v258 = vshrl.u32 %v257, 7
  %v259 = vsub.s32 2, %v258
  %v260 = vrot.slane %v124, %v259
  %v261 = vlaneseq
  %v262 = vshrl.u32 %v261, 7
  %v263 = vsub.s32 2, %v262
  %v264 = vrot.slane %v125, %v263
  %v265 = vlaneseq
  %v266 = vshrl.u32 %v265, 7
  %v267 = vsub.s32 2, %v266
  %v268 = vrot.slane %v126, %v267
  %v269 = vmul.f32 %v235, %v240
  %v270 = vmul.f32 %v235, %v244
  %v271 = vmul.f32 %v235, %v248
  %v272 = vmul.f32 %v235, %v252
  %v273 = vmul.f32 %v235, %v256
  %v274 = vmul.f32 %v235, %v260
  %v275 = vmul.f32 %v235, %v264
  %v276 = vmul.f32 %v235, %v268
  %v277 = vadd.f32 %v225, %v269
  %v278 = vadd.f32 %v226, %v270
  %v279 = vadd.f32 %v227, %v271
  %v280 = vadd.f32 %v228, %v272
  %v281 = vadd.f32 %v229, %v273
  %v282 = vadd.f32 %v230, %v274
  %v283 = vadd.f32 %v231, %v275
  %v284 = vadd.f32 %v232, %v276
  %285 = vset.pattern.permute.xlu0 3
  %286 = vperm.xlu0 %285, %v127
  %v287 = vpop.permute.xlu0 %286
  %v289 = vlaneseq
  %v290 = vshrl.u32 %v289, 7
  %v291 = vsub.s32 3, %v290
  %v292 = vrot.slane %v119, %v291
  %v293 = vlaneseq
  %v294 = vshrl.u32 %v293, 7
  %v295 = vsub.s32 3, %v294
  %v296 = vrot.slane %v120, %v295
  %v297 = vlaneseq
  %v298 = vshrl.u32 %v297, 7
  %v299 = vsub.s32 3, %v298
  %v300 = vrot.slane %v121, %v299
  %v301 = vlaneseq
  %v302 = vshrl.u32 %v301, 7
  %v303 = vsub.s32 3, %v302
  %v304 = vrot.slane %v122, %v303
  %v305 = vlaneseq
  %v306 = vshrl.u32 %v305, 7
  %v307 = vsub.s32 3, %v306
  %v308 = vrot.slane %v123, %v307
  %v309 = vlaneseq
  %v310 = vshrl.u32 %v309, 7
  %v311 = vsub.s32 3, %v310
  %v312 = vrot.slane %v124, %v311
  %v313 = vlaneseq
  %v314 = vshrl.u32 %v313, 7
  %v315 = vsub.s32 3, %v314
  %v316 = vrot.slane %v125, %v315
  %v317 = vlaneseq
  %v318 = vshrl.u32 %v317, 7
  %v319 = vsub.s32 3, %v318
  %v320 = vrot.slane %v126, %v319
  %v321 = vmul.f32 %v287, %v292
  %v322 = vmul.f32 %v287, %v296
  %v323 = vmul.f32 %v287, %v300
  %v324 = vmul.f32 %v287, %v304
  %v325 = vmul.f32 %v287, %v308
  %v326 = vmul.f32 %v287, %v312
  %v327 = vmul.f32 %v287, %v316
  %v328 = vmul.f32 %v287, %v320
  %v329 = vadd.f32 %v277, %v321
  %v330 = vadd.f32 %v278, %v322
  %v331 = vadd.f32 %v279, %v323
  %v332 = vadd.f32 %v280, %v324
  %v333 = vadd.f32 %v281, %v325
  %v334 = vadd.f32 %v282, %v326
  %v335 = vadd.f32 %v283, %v327
  %v336 = vadd.f32 %v284, %v328
  %337 = vset.pattern.permute.xlu0 36
  %338 = vperm.xlu0 %337, %v127
  %v339 = vpop.permute.xlu0 %338
  %v341 = vlaneseq
  %v342 = vshrl.u32 %v341, 7
  %v343 = vsub.s32 0, %v342
  %v344 = vrot.slane %v89, %v343
  %v345 = vlaneseq
  %v346 = vshrl.u32 %v345, 7
  %v347 = vsub.s32 0, %v346
  %v348 = vrot.slane %v90, %v347
  %v349 = vlaneseq
  %v350 = vshrl.u32 %v349, 7
  %v351 = vsub.s32 0, %v350
  %v352 = vrot.slane %v91, %v351
  %v353 = vlaneseq
  %v354 = vshrl.u32 %v353, 7
  %v355 = vsub.s32 0, %v354
  %v356 = vrot.slane %v92, %v355
  %v357 = vlaneseq
  %v358 = vshrl.u32 %v357, 7
  %v359 = vsub.s32 0, %v358
  %v360 = vrot.slane %v93, %v359
  %v361 = vlaneseq
  %v362 = vshrl.u32 %v361, 7
  %v363 = vsub.s32 0, %v362
  %v364 = vrot.slane %v94, %v363
  %v365 = vlaneseq
  %v366 = vshrl.u32 %v365, 7
  %v367 = vsub.s32 0, %v366
  %v368 = vrot.slane %v95, %v367
  %v369 = vlaneseq
  %v370 = vshrl.u32 %v369, 7
  %v371 = vsub.s32 0, %v370
  %v372 = vrot.slane %v96, %v371
  %v373 = vmul.f32 %v339, %v344
  %v374 = vmul.f32 %v339, %v348
  %v375 = vmul.f32 %v339, %v352
  %v376 = vmul.f32 %v339, %v356
  %v377 = vmul.f32 %v339, %v360
  %v378 = vmul.f32 %v339, %v364
  %v379 = vmul.f32 %v339, %v368
  %v380 = vmul.f32 %v339, %v372
  %v381 = vadd.f32 %v329, %v373
  %v382 = vadd.f32 %v330, %v374
  %v383 = vadd.f32 %v331, %v375
  %v384 = vadd.f32 %v332, %v376
  %v385 = vadd.f32 %v333, %v377
  %v386 = vadd.f32 %v334, %v378
  %v387 = vadd.f32 %v335, %v379
  %v388 = vadd.f32 %v336, %v380
  %389 = vset.pattern.permute.xlu0 37
  %390 = vperm.xlu0 %389, %v127
  %v391 = vpop.permute.xlu0 %390
  %v393 = vlaneseq
  %v394 = vshrl.u32 %v393, 7
  %v395 = vsub.s32 1, %v394
  %v396 = vrot.slane %v89, %v395
  %v397 = vlaneseq
  %v398 = vshrl.u32 %v397, 7
  %v399 = vsub.s32 1, %v398
  %v400 = vrot.slane %v90, %v399
  %v401 = vlaneseq
  %v402 = vshrl.u32 %v401, 7
  %v403 = vsub.s32 1, %v402
  %v404 = vrot.slane %v91, %v403
  %v405 = vlaneseq
  %v406 = vshrl.u32 %v405, 7
  %v407 = vsub.s32 1, %v406
  %v408 = vrot.slane %v92, %v407
  %v409 = vlaneseq
  %v410 = vshrl.u32 %v409, 7
  %v411 = vsub.s32 1, %v410
  %v412 = vrot.slane %v93, %v411
  %v413 = vlaneseq
  %v414 = vshrl.u32 %v413, 7
  %v415 = vsub.s32 1, %v414
  %v416 = vrot.slane %v94, %v415
  %v417 = vlaneseq
  %v418 = vshrl.u32 %v417, 7
  %v419 = vsub.s32 1, %v418
  %v420 = vrot.slane %v95, %v419
  %v421 = vlaneseq
  %v422 = vshrl.u32 %v421, 7
  %v423 = vsub.s32 1, %v422
  %v424 = vrot.slane %v96, %v423
  %v425 = vmul.f32 %v391, %v396
  %v426 = vmul.f32 %v391, %v400
  %v427 = vmul.f32 %v391, %v404
  %v428 = vmul.f32 %v391, %v408
  %v429 = vmul.f32 %v391, %v412
  %v430 = vmul.f32 %v391, %v416
  %v431 = vmul.f32 %v391, %v420
  %v432 = vmul.f32 %v391, %v424
  %v433 = vadd.f32 %v381, %v425
  %v434 = vadd.f32 %v382, %v426
  %v435 = vadd.f32 %v383, %v427
  %v436 = vadd.f32 %v384, %v428
  %v437 = vadd.f32 %v385, %v429
  %v438 = vadd.f32 %v386, %v430
  %v439 = vadd.f32 %v387, %v431
  %v440 = vadd.f32 %v388, %v432
  %441 = vset.pattern.permute.xlu0 38
  %442 = vperm.xlu0 %441, %v127
  %v443 = vpop.permute.xlu0 %442
  %v445 = vlaneseq
  %v446 = vshrl.u32 %v445, 7
  %v447 = vsub.s32 2, %v446
  %v448 = vrot.slane %v89, %v447
  %v449 = vlaneseq
  %v450 = vshrl.u32 %v449, 7
  %v451 = vsub.s32 2, %v450
  %v452 = vrot.slane %v90, %v451
  %v453 = vlaneseq
  %v454 = vshrl.u32 %v453, 7
  %v455 = vsub.s32 2, %v454
  %v456 = vrot.slane %v91, %v455
  %v457 = vlaneseq
  %v458 = vshrl.u32 %v457, 7
  %v459 = vsub.s32 2, %v458
  %v460 = vrot.slane %v92, %v459
  %v461 = vlaneseq
  %v462 = vshrl.u32 %v461, 7
  %v463 = vsub.s32 2, %v462
  %v464 = vrot.slane %v93, %v463
  %v465 = vlaneseq
  %v466 = vshrl.u32 %v465, 7
  %v467 = vsub.s32 2, %v466
  %v468 = vrot.slane %v94, %v467
  %v469 = vlaneseq
  %v470 = vshrl.u32 %v469, 7
  %v471 = vsub.s32 2, %v470
  %v472 = vrot.slane %v95, %v471
  %v473 = vlaneseq
  %v474 = vshrl.u32 %v473, 7
  %v475 = vsub.s32 2, %v474
  %v476 = vrot.slane %v96, %v475
  %v477 = vmul.f32 %v443, %v448
  %v478 = vmul.f32 %v443, %v452
  %v479 = vmul.f32 %v443, %v456
  %v480 = vmul.f32 %v443, %v460
  %v481 = vmul.f32 %v443, %v464
  %v482 = vmul.f32 %v443, %v468
  %v483 = vmul.f32 %v443, %v472
  %v484 = vmul.f32 %v443, %v476
  %v485 = vadd.f32 %v433, %v477
  %v486 = vadd.f32 %v434, %v478
  %v487 = vadd.f32 %v435, %v479
  %v488 = vadd.f32 %v436, %v480
  %v489 = vadd.f32 %v437, %v481
  %v490 = vadd.f32 %v438, %v482
  %v491 = vadd.f32 %v439, %v483
  %v492 = vadd.f32 %v440, %v484
  %493 = vset.pattern.permute.xlu0 39
  %494 = vperm.xlu0 %493, %v127
  %v495 = vpop.permute.xlu0 %494
  %v497 = vlaneseq
  %v498 = vshrl.u32 %v497, 7
  %v499 = vsub.s32 3, %v498
  %v500 = vrot.slane %v89, %v499
  %v501 = vlaneseq
  %v502 = vshrl.u32 %v501, 7
  %v503 = vsub.s32 3, %v502
  %v504 = vrot.slane %v90, %v503
  %v505 = vlaneseq
  %v506 = vshrl.u32 %v505, 7
  %v507 = vsub.s32 3, %v506
  %v508 = vrot.slane %v91, %v507
  %v509 = vlaneseq
  %v510 = vshrl.u32 %v509, 7
  %v511 = vsub.s32 3, %v510
  %v512 = vrot.slane %v92, %v511
  %v513 = vlaneseq
  %v514 = vshrl.u32 %v513, 7
  %v515 = vsub.s32 3, %v514
  %v516 = vrot.slane %v93, %v515
  %v517 = vlaneseq
  %v518 = vshrl.u32 %v517, 7
  %v519 = vsub.s32 3, %v518
  %v520 = vrot.slane %v94, %v519
  %v521 = vlaneseq
  %v522 = vshrl.u32 %v521, 7
  %v523 = vsub.s32 3, %v522
  %v524 = vrot.slane %v95, %v523
  %v525 = vlaneseq
  %v526 = vshrl.u32 %v525, 7
  %v527 = vsub.s32 3, %v526
  %v528 = vrot.slane %v96, %v527
  %v529 = vmul.f32 %v495, %v500
  %v530 = vmul.f32 %v495, %v504
  %v531 = vmul.f32 %v495, %v508
  %v532 = vmul.f32 %v495, %v512
  %v533 = vmul.f32 %v495, %v516
  %v534 = vmul.f32 %v495, %v520
  %v535 = vmul.f32 %v495, %v524
  %v536 = vmul.f32 %v495, %v528
  %v537 = vadd.f32 %v485, %v529
  %v538 = vadd.f32 %v486, %v530
  %v539 = vadd.f32 %v487, %v531
  %v540 = vadd.f32 %v488, %v532
  %v541 = vadd.f32 %v489, %v533
  %v542 = vadd.f32 %v490, %v534
  %v543 = vadd.f32 %v491, %v535
  %v544 = vadd.f32 %v492, %v536
  %s545 = scalar_lea.vmem %s2, 2
  %v546 = vld [vmem:[%s545] ss:$4 sm:$0xf]
  %v548 = vlaneseq
  %v549 = vshrl.u32 %v548, 7
  %v550 = vsub.s32 0, %v549
  %v551 = vrot.slane %v546, %v550
  %v552 = vlaneseq
  %v553 = vshrl.u32 %v552, 7
  %v554 = vsub.s32 1, %v553
  %v555 = vrot.slane %v546, %v554
  %v556 = vlaneseq
  %v557 = vshrl.u32 %v556, 7
  %v558 = vsub.s32 2, %v557
  %v559 = vrot.slane %v546, %v558
  %v560 = vlaneseq
  %v561 = vshrl.u32 %v560, 7
  %v562 = vsub.s32 3, %v561
  %v563 = vrot.slane %v546, %v562
  %v568 = vmul.f32 %v90, %v551
  %v569 = vmul.f32 %v91, %v555
  %v570 = vmul.f32 %v92, %v559
  %v571 = vmul.f32 %v89, %v563
  %v572 = vmul.f32 %v94, %v551
  %v573 = vmul.f32 %v95, %v555
  %v574 = vmul.f32 %v96, %v559
  %v575 = vmul.f32 %v93, %v563
  %576 = vset.pattern.permute.xlu0 72
  %577 = vperm.xlu0 %576, %v127
  %v578 = vpop.permute.xlu0 %577
  %v580 = vlaneseq
  %v581 = vshrl.u32 %v580, 7
  %v582 = vsub.s32 0, %v581
  %v583 = vrot.slane %v568, %v582
  %v584 = vlaneseq
  %v585 = vshrl.u32 %v584, 7
  %v586 = vsub.s32 0, %v585
  %v587 = vrot.slane %v569, %v586
  %v588 = vlaneseq
  %v589 = vshrl.u32 %v588, 7
  %v590 = vsub.s32 0, %v589
  %v591 = vrot.slane %v570, %v590
  %v592 = vlaneseq
  %v593 = vshrl.u32 %v592, 7
  %v594 = vsub.s32 0, %v593
  %v595 = vrot.slane %v571, %v594
  %v596 = vlaneseq
  %v597 = vshrl.u32 %v596, 7
  %v598 = vsub.s32 0, %v597
  %v599 = vrot.slane %v572, %v598
  %v600 = vlaneseq
  %v601 = vshrl.u32 %v600, 7
  %v602 = vsub.s32 0, %v601
  %v603 = vrot.slane %v573, %v602
  %v604 = vlaneseq
  %v605 = vshrl.u32 %v604, 7
  %v606 = vsub.s32 0, %v605
  %v607 = vrot.slane %v574, %v606
  %v608 = vlaneseq
  %v609 = vshrl.u32 %v608, 7
  %v610 = vsub.s32 0, %v609
  %v611 = vrot.slane %v575, %v610
  %v612 = vmul.f32 %v578, %v583
  %v613 = vmul.f32 %v578, %v587
  %v614 = vmul.f32 %v578, %v591
  %v615 = vmul.f32 %v578, %v595
  %v616 = vmul.f32 %v578, %v599
  %v617 = vmul.f32 %v578, %v603
  %v618 = vmul.f32 %v578, %v607
  %v619 = vmul.f32 %v578, %v611
  %v620 = vadd.f32 %v537, %v612
  %v621 = vadd.f32 %v538, %v613
  %v622 = vadd.f32 %v539, %v614
  %v623 = vadd.f32 %v540, %v615
  %v624 = vadd.f32 %v541, %v616
  %v625 = vadd.f32 %v542, %v617
  %v626 = vadd.f32 %v543, %v618
  %v627 = vadd.f32 %v544, %v619
  %628 = vset.pattern.permute.xlu0 73
  %629 = vperm.xlu0 %628, %v127
  %v630 = vpop.permute.xlu0 %629
  %v632 = vlaneseq
  %v633 = vshrl.u32 %v632, 7
  %v634 = vsub.s32 1, %v633
  %v635 = vrot.slane %v568, %v634
  %v636 = vlaneseq
  %v637 = vshrl.u32 %v636, 7
  %v638 = vsub.s32 1, %v637
  %v639 = vrot.slane %v569, %v638
  %v640 = vlaneseq
  %v641 = vshrl.u32 %v640, 7
  %v642 = vsub.s32 1, %v641
  %v643 = vrot.slane %v570, %v642
  %v644 = vlaneseq
  %v645 = vshrl.u32 %v644, 7
  %v646 = vsub.s32 1, %v645
  %v647 = vrot.slane %v571, %v646
  %v648 = vlaneseq
  %v649 = vshrl.u32 %v648, 7
  %v650 = vsub.s32 1, %v649
  %v651 = vrot.slane %v572, %v650
  %v652 = vlaneseq
  %v653 = vshrl.u32 %v652, 7
  %v654 = vsub.s32 1, %v653
  %v655 = vrot.slane %v573, %v654
  %v656 = vlaneseq
  %v657 = vshrl.u32 %v656, 7
  %v658 = vsub.s32 1, %v657
  %v659 = vrot.slane %v574, %v658
  %v660 = vlaneseq
  %v661 = vshrl.u32 %v660, 7
  %v662 = vsub.s32 1, %v661
  %v663 = vrot.slane %v575, %v662
  %v664 = vmul.f32 %v630, %v635
  %v665 = vmul.f32 %v630, %v639
  %v666 = vmul.f32 %v630, %v643
  %v667 = vmul.f32 %v630, %v647
  %v668 = vmul.f32 %v630, %v651
  %v669 = vmul.f32 %v630, %v655
  %v670 = vmul.f32 %v630, %v659
  %v671 = vmul.f32 %v630, %v663
  %v672 = vadd.f32 %v620, %v664
  %v673 = vadd.f32 %v621, %v665
  %v674 = vadd.f32 %v622, %v666
  %v675 = vadd.f32 %v623, %v667
  %v676 = vadd.f32 %v624, %v668
  %v677 = vadd.f32 %v625, %v669
  %v678 = vadd.f32 %v626, %v670
  %v679 = vadd.f32 %v627, %v671
  %680 = vset.pattern.permute.xlu0 74
  %681 = vperm.xlu0 %680, %v127
  %v682 = vpop.permute.xlu0 %681
  %v684 = vlaneseq
  %v685 = vshrl.u32 %v684, 7
  %v686 = vsub.s32 2, %v685
  %v687 = vrot.slane %v568, %v686
  %v688 = vlaneseq
  %v689 = vshrl.u32 %v688, 7
  %v690 = vsub.s32 2, %v689
  %v691 = vrot.slane %v569, %v690
  %v692 = vlaneseq
  %v693 = vshrl.u32 %v692, 7
  %v694 = vsub.s32 2, %v693
  %v695 = vrot.slane %v570, %v694
  %v696 = vlaneseq
  %v697 = vshrl.u32 %v696, 7
  %v698 = vsub.s32 2, %v697
  %v699 = vrot.slane %v571, %v698
  %v700 = vlaneseq
  %v701 = vshrl.u32 %v700, 7
  %v702 = vsub.s32 2, %v701
  %v703 = vrot.slane %v572, %v702
  %v704 = vlaneseq
  %v705 = vshrl.u32 %v704, 7
  %v706 = vsub.s32 2, %v705
  %v707 = vrot.slane %v573, %v706
  %v708 = vlaneseq
  %v709 = vshrl.u32 %v708, 7
  %v710 = vsub.s32 2, %v709
  %v711 = vrot.slane %v574, %v710
  %v712 = vlaneseq
  %v713 = vshrl.u32 %v712, 7
  %v714 = vsub.s32 2, %v713
  %v715 = vrot.slane %v575, %v714
  %v716 = vmul.f32 %v682, %v687
  %v717 = vmul.f32 %v682, %v691
  %v718 = vmul.f32 %v682, %v695
  %v719 = vmul.f32 %v682, %v699
  %v720 = vmul.f32 %v682, %v703
  %v721 = vmul.f32 %v682, %v707
  %v722 = vmul.f32 %v682, %v711
  %v723 = vmul.f32 %v682, %v715
  %v724 = vadd.f32 %v672, %v716
  %v725 = vadd.f32 %v673, %v717
  %v726 = vadd.f32 %v674, %v718
  %v727 = vadd.f32 %v675, %v719
  %v728 = vadd.f32 %v676, %v720
  %v729 = vadd.f32 %v677, %v721
  %v730 = vadd.f32 %v678, %v722
  %v731 = vadd.f32 %v679, %v723
  %732 = vset.pattern.permute.xlu0 75
  %733 = vperm.xlu0 %732, %v127
  %v734 = vpop.permute.xlu0 %733
  %v736 = vlaneseq
  %v737 = vshrl.u32 %v736, 7
  %v738 = vsub.s32 3, %v737
  %v739 = vrot.slane %v568, %v738
  %v740 = vlaneseq
  %v741 = vshrl.u32 %v740, 7
  %v742 = vsub.s32 3, %v741
  %v743 = vrot.slane %v569, %v742
  %v744 = vlaneseq
  %v745 = vshrl.u32 %v744, 7
  %v746 = vsub.s32 3, %v745
  %v747 = vrot.slane %v570, %v746
  %v748 = vlaneseq
  %v749 = vshrl.u32 %v748, 7
  %v750 = vsub.s32 3, %v749
  %v751 = vrot.slane %v571, %v750
  %v752 = vlaneseq
  %v753 = vshrl.u32 %v752, 7
  %v754 = vsub.s32 3, %v753
  %v755 = vrot.slane %v572, %v754
  %v756 = vlaneseq
  %v757 = vshrl.u32 %v756, 7
  %v758 = vsub.s32 3, %v757
  %v759 = vrot.slane %v573, %v758
  %v760 = vlaneseq
  %v761 = vshrl.u32 %v760, 7
  %v762 = vsub.s32 3, %v761
  %v763 = vrot.slane %v574, %v762
  %v764 = vlaneseq
  %v765 = vshrl.u32 %v764, 7
  %v766 = vsub.s32 3, %v765
  %v767 = vrot.slane %v575, %v766
  %v768 = vmul.f32 %v734, %v739
  %v769 = vmul.f32 %v734, %v743
  %v770 = vmul.f32 %v734, %v747
  %v771 = vmul.f32 %v734, %v751
  %v772 = vmul.f32 %v734, %v755
  %v773 = vmul.f32 %v734, %v759
  %v774 = vmul.f32 %v734, %v763
  %v775 = vmul.f32 %v734, %v767
  %v776 = vadd.f32 %v724, %v768
  %v777 = vadd.f32 %v725, %v769
  %v778 = vadd.f32 %v726, %v770
  %v779 = vadd.f32 %v727, %v771
  %v780 = vadd.f32 %v728, %v772
  %v781 = vadd.f32 %v729, %v773
  %v782 = vadd.f32 %v730, %v774
  %v783 = vadd.f32 %v731, %v775
  %784 = vrot.lane.b32.xlu0 %v26, 16
  %v785 = vpop.permute.xlu0 %784
  %786 = vrot.lane.b32.xlu0 %v27, 16
  %v787 = vpop.permute.xlu0 %786
  %790 = vrot.lane.b32.xlu0 %v20, 16
  %v791 = vpop.permute.xlu0 %790
  %792 = vrot.lane.b32.xlu0 %v36, 16
  %v793 = vpop.permute.xlu0 %792
  %794 = vrot.lane.b32.xlu0 %v21, 16
  %v795 = vpop.permute.xlu0 %794
  %796 = vrot.lane.b32.xlu0 %v22, 16
  %v797 = vpop.permute.xlu0 %796
  %798 = vrot.lane.b32.xlu0 %v37, 16
  %v799 = vpop.permute.xlu0 %798
  %800 = vrot.lane.b32.xlu0 %v23, 16
  %v801 = vpop.permute.xlu0 %800
  %vm802 = vcmask 130048
  %v803 = vsel %vm802, %v791, %v793
  %v804 = vsel %vm802, %v793, %v795
  %v805 = vsel %vm802, %v795, %v785
  %v806 = vsel %vm802, %v797, %v799
  %v807 = vsel %vm802, %v799, %v801
  %v808 = vsel %vm802, %v801, %v787
  %v817 = vsel %vm802, %v785, %v791
  %v818 = vsel %vm802, %v787, %v797
  %s819 = scalar_lea.vmem %s1, 1
  %v820 = vld [vmem:[%s819] ss:$8 sm:$0xf]
  %v822 = vlaneseq
  %v823 = vshrl.u32 %v822, 7
  %v824 = vsub.s32 0, %v823
  %v825 = vrot.slane %v820, %v824
  %v826 = vlaneseq
  %v827 = vshrl.u32 %v826, 7
  %v828 = vsub.s32 1, %v827
  %v829 = vrot.slane %v820, %v828
  %v830 = vlaneseq
  %v831 = vshrl.u32 %v830, 7
  %v832 = vsub.s32 2, %v831
  %v833 = vrot.slane %v820, %v832
  %v834 = vlaneseq
  %v835 = vshrl.u32 %v834, 7
  %v836 = vsub.s32 3, %v835
  %v837 = vrot.slane %v820, %v836
  %v842 = vmul.f32 %v817, %v825
  %v843 = vmul.f32 %v803, %v829
  %v844 = vmul.f32 %v804, %v833
  %v845 = vmul.f32 %v805, %v837
  %v846 = vmul.f32 %v818, %v825
  %v847 = vmul.f32 %v806, %v829
  %v848 = vmul.f32 %v807, %v833
  %v849 = vmul.f32 %v808, %v837
  %v850 = vmul.f32 %v845, %v102
  %v851 = vmul.f32 %v842, %v106
  %v852 = vmul.f32 %v843, %v110
  %v853 = vmul.f32 %v844, %v114
  %v854 = vmul.f32 %v849, %v102
  %v855 = vmul.f32 %v846, %v106
  %v856 = vmul.f32 %v847, %v110
  %v857 = vmul.f32 %v848, %v114
  %v858 = vld [vmem:[%s3] sm:$0xf]
  %860 = vset.pattern.permute.xlu0 4
  %861 = vperm.xlu0 %860, %v858
  %v862 = vpop.permute.xlu0 %861
  %v864 = vlaneseq
  %v865 = vshrl.u32 %v864, 7
  %v866 = vsub.s32 0, %v865
  %v867 = vrot.slane %v850, %v866
  %v868 = vlaneseq
  %v869 = vshrl.u32 %v868, 7
  %v870 = vsub.s32 0, %v869
  %v871 = vrot.slane %v851, %v870
  %v872 = vlaneseq
  %v873 = vshrl.u32 %v872, 7
  %v874 = vsub.s32 0, %v873
  %v875 = vrot.slane %v852, %v874
  %v876 = vlaneseq
  %v877 = vshrl.u32 %v876, 7
  %v878 = vsub.s32 0, %v877
  %v879 = vrot.slane %v853, %v878
  %v880 = vlaneseq
  %v881 = vshrl.u32 %v880, 7
  %v882 = vsub.s32 0, %v881
  %v883 = vrot.slane %v854, %v882
  %v884 = vlaneseq
  %v885 = vshrl.u32 %v884, 7
  %v886 = vsub.s32 0, %v885
  %v887 = vrot.slane %v855, %v886
  %v888 = vlaneseq
  %v889 = vshrl.u32 %v888, 7
  %v890 = vsub.s32 0, %v889
  %v891 = vrot.slane %v856, %v890
  %v892 = vlaneseq
  %v893 = vshrl.u32 %v892, 7
  %v894 = vsub.s32 0, %v893
  %v895 = vrot.slane %v857, %v894
  %v896 = vmul.f32 %v862, %v867
  %v897 = vmul.f32 %v862, %v871
  %v898 = vmul.f32 %v862, %v875
  %v899 = vmul.f32 %v862, %v879
  %v900 = vmul.f32 %v862, %v883
  %v901 = vmul.f32 %v862, %v887
  %v902 = vmul.f32 %v862, %v891
  %v903 = vmul.f32 %v862, %v895
  %v904 = vadd.f32 %v776, %v896
  %v905 = vadd.f32 %v777, %v897
  %v906 = vadd.f32 %v778, %v898
  %v907 = vadd.f32 %v779, %v899
  %v908 = vadd.f32 %v780, %v900
  %v909 = vadd.f32 %v781, %v901
  %v910 = vadd.f32 %v782, %v902
  %v911 = vadd.f32 %v783, %v903
  %912 = vset.pattern.permute.xlu0 5
  %913 = vperm.xlu0 %912, %v858
  %v914 = vpop.permute.xlu0 %913
  %v916 = vlaneseq
  %v917 = vshrl.u32 %v916, 7
  %v918 = vsub.s32 1, %v917
  %v919 = vrot.slane %v850, %v918
  %v920 = vlaneseq
  %v921 = vshrl.u32 %v920, 7
  %v922 = vsub.s32 1, %v921
  %v923 = vrot.slane %v851, %v922
  %v924 = vlaneseq
  %v925 = vshrl.u32 %v924, 7
  %v926 = vsub.s32 1, %v925
  %v927 = vrot.slane %v852, %v926
  %v928 = vlaneseq
  %v929 = vshrl.u32 %v928, 7
  %v930 = vsub.s32 1, %v929
  %v931 = vrot.slane %v853, %v930
  %v932 = vlaneseq
  %v933 = vshrl.u32 %v932, 7
  %v934 = vsub.s32 1, %v933
  %v935 = vrot.slane %v854, %v934
  %v936 = vlaneseq
  %v937 = vshrl.u32 %v936, 7
  %v938 = vsub.s32 1, %v937
  %v939 = vrot.slane %v855, %v938
  %v940 = vlaneseq
  %v941 = vshrl.u32 %v940, 7
  %v942 = vsub.s32 1, %v941
  %v943 = vrot.slane %v856, %v942
  %v944 = vlaneseq
  %v945 = vshrl.u32 %v944, 7
  %v946 = vsub.s32 1, %v945
  %v947 = vrot.slane %v857, %v946
  %v948 = vmul.f32 %v914, %v919
  %v949 = vmul.f32 %v914, %v923
  %v950 = vmul.f32 %v914, %v927
  %v951 = vmul.f32 %v914, %v931
  %v952 = vmul.f32 %v914, %v935
  %v953 = vmul.f32 %v914, %v939
  %v954 = vmul.f32 %v914, %v943
  %v955 = vmul.f32 %v914, %v947
  %v956 = vadd.f32 %v904, %v948
  %v957 = vadd.f32 %v905, %v949
  %v958 = vadd.f32 %v906, %v950
  %v959 = vadd.f32 %v907, %v951
  %v960 = vadd.f32 %v908, %v952
  %v961 = vadd.f32 %v909, %v953
  %v962 = vadd.f32 %v910, %v954
  %v963 = vadd.f32 %v911, %v955
  %964 = vset.pattern.permute.xlu0 6
  %965 = vperm.xlu0 %964, %v858
  %v966 = vpop.permute.xlu0 %965
  %v968 = vlaneseq
  %v969 = vshrl.u32 %v968, 7
  %v970 = vsub.s32 2, %v969
  %v971 = vrot.slane %v850, %v970
  %v972 = vlaneseq
  %v973 = vshrl.u32 %v972, 7
  %v974 = vsub.s32 2, %v973
  %v975 = vrot.slane %v851, %v974
  %v976 = vlaneseq
  %v977 = vshrl.u32 %v976, 7
  %v978 = vsub.s32 2, %v977
  %v979 = vrot.slane %v852, %v978
  %v980 = vlaneseq
  %v981 = vshrl.u32 %v980, 7
  %v982 = vsub.s32 2, %v981
  %v983 = vrot.slane %v853, %v982
  %v984 = vlaneseq
  %v985 = vshrl.u32 %v984, 7
  %v986 = vsub.s32 2, %v985
  %v987 = vrot.slane %v854, %v986
  %v988 = vlaneseq
  %v989 = vshrl.u32 %v988, 7
  %v990 = vsub.s32 2, %v989
  %v991 = vrot.slane %v855, %v990
  %v992 = vlaneseq
  %v993 = vshrl.u32 %v992, 7
  %v994 = vsub.s32 2, %v993
  %v995 = vrot.slane %v856, %v994
  %v996 = vlaneseq
  %v997 = vshrl.u32 %v996, 7
  %v998 = vsub.s32 2, %v997
  %v999 = vrot.slane %v857, %v998
  %v1000 = vmul.f32 %v966, %v971
  %v1001 = vmul.f32 %v966, %v975
  %v1002 = vmul.f32 %v966, %v979
  %v1003 = vmul.f32 %v966, %v983
  %v1004 = vmul.f32 %v966, %v987
  %v1005 = vmul.f32 %v966, %v991
  %v1006 = vmul.f32 %v966, %v995
  %v1007 = vmul.f32 %v966, %v999
  %v1008 = vadd.f32 %v956, %v1000
  %v1009 = vadd.f32 %v957, %v1001
  %v1010 = vadd.f32 %v958, %v1002
  %v1011 = vadd.f32 %v959, %v1003
  %v1012 = vadd.f32 %v960, %v1004
  %v1013 = vadd.f32 %v961, %v1005
  %v1014 = vadd.f32 %v962, %v1006
  %v1015 = vadd.f32 %v963, %v1007
  %1016 = vset.pattern.permute.xlu0 7
  %1017 = vperm.xlu0 %1016, %v858
  %v1018 = vpop.permute.xlu0 %1017
  %v1020 = vlaneseq
  %v1021 = vshrl.u32 %v1020, 7
  %v1022 = vsub.s32 3, %v1021
  %v1023 = vrot.slane %v850, %v1022
  %v1024 = vlaneseq
  %v1025 = vshrl.u32 %v1024, 7
  %v1026 = vsub.s32 3, %v1025
  %v1027 = vrot.slane %v851, %v1026
  %v1028 = vlaneseq
  %v1029 = vshrl.u32 %v1028, 7
  %v1030 = vsub.s32 3, %v1029
  %v1031 = vrot.slane %v852, %v1030
  %v1032 = vlaneseq
  %v1033 = vshrl.u32 %v1032, 7
  %v1034 = vsub.s32 3, %v1033
  %v1035 = vrot.slane %v853, %v1034
  %v1036 = vlaneseq
  %v1037 = vshrl.u32 %v1036, 7
  %v1038 = vsub.s32 3, %v1037
  %v1039 = vrot.slane %v854, %v1038
  %v1040 = vlaneseq
  %v1041 = vshrl.u32 %v1040, 7
  %v1042 = vsub.s32 3, %v1041
  %v1043 = vrot.slane %v855, %v1042
  %v1044 = vlaneseq
  %v1045 = vshrl.u32 %v1044, 7
  %v1046 = vsub.s32 3, %v1045
  %v1047 = vrot.slane %v856, %v1046
  %v1048 = vlaneseq
  %v1049 = vshrl.u32 %v1048, 7
  %v1050 = vsub.s32 3, %v1049
  %v1051 = vrot.slane %v857, %v1050
  %v1052 = vmul.f32 %v1018, %v1023
  %v1053 = vmul.f32 %v1018, %v1027
  %v1054 = vmul.f32 %v1018, %v1031
  %v1055 = vmul.f32 %v1018, %v1035
  %v1056 = vmul.f32 %v1018, %v1039
  %v1057 = vmul.f32 %v1018, %v1043
  %v1058 = vmul.f32 %v1018, %v1047
  %v1059 = vmul.f32 %v1018, %v1051
  %v1060 = vadd.f32 %v1008, %v1052
  %v1061 = vadd.f32 %v1009, %v1053
  %v1062 = vadd.f32 %v1010, %v1054
  %v1063 = vadd.f32 %v1011, %v1055
  %v1064 = vadd.f32 %v1012, %v1056
  %v1065 = vadd.f32 %v1013, %v1057
  %v1066 = vadd.f32 %v1014, %v1058
  %v1067 = vadd.f32 %v1015, %v1059
  %1068 = vset.pattern.permute.xlu0 40
  %1069 = vperm.xlu0 %1068, %v858
  %v1070 = vpop.permute.xlu0 %1069
  %v1072 = vlaneseq
  %v1073 = vshrl.u32 %v1072, 7
  %v1074 = vsub.s32 0, %v1073
  %v1075 = vrot.slane %v842, %v1074
  %v1076 = vlaneseq
  %v1077 = vshrl.u32 %v1076, 7
  %v1078 = vsub.s32 0, %v1077
  %v1079 = vrot.slane %v843, %v1078
  %v1080 = vlaneseq
  %v1081 = vshrl.u32 %v1080, 7
  %v1082 = vsub.s32 0, %v1081
  %v1083 = vrot.slane %v844, %v1082
  %v1084 = vlaneseq
  %v1085 = vshrl.u32 %v1084, 7
  %v1086 = vsub.s32 0, %v1085
  %v1087 = vrot.slane %v845, %v1086
  %v1088 = vlaneseq
  %v1089 = vshrl.u32 %v1088, 7
  %v1090 = vsub.s32 0, %v1089
  %v1091 = vrot.slane %v846, %v1090
  %v1092 = vlaneseq
  %v1093 = vshrl.u32 %v1092, 7
  %v1094 = vsub.s32 0, %v1093
  %v1095 = vrot.slane %v847, %v1094
  %v1096 = vlaneseq
  %v1097 = vshrl.u32 %v1096, 7
  %v1098 = vsub.s32 0, %v1097
  %v1099 = vrot.slane %v848, %v1098
  %v1100 = vlaneseq
  %v1101 = vshrl.u32 %v1100, 7
  %v1102 = vsub.s32 0, %v1101
  %v1103 = vrot.slane %v849, %v1102
  %v1104 = vmul.f32 %v1070, %v1075
  %v1105 = vmul.f32 %v1070, %v1079
  %v1106 = vmul.f32 %v1070, %v1083
  %v1107 = vmul.f32 %v1070, %v1087
  %v1108 = vmul.f32 %v1070, %v1091
  %v1109 = vmul.f32 %v1070, %v1095
  %v1110 = vmul.f32 %v1070, %v1099
  %v1111 = vmul.f32 %v1070, %v1103
  %v1112 = vadd.f32 %v1060, %v1104
  %v1113 = vadd.f32 %v1061, %v1105
  %v1114 = vadd.f32 %v1062, %v1106
  %v1115 = vadd.f32 %v1063, %v1107
  %v1116 = vadd.f32 %v1064, %v1108
  %v1117 = vadd.f32 %v1065, %v1109
  %v1118 = vadd.f32 %v1066, %v1110
  %v1119 = vadd.f32 %v1067, %v1111
  %1120 = vset.pattern.permute.xlu0 41
  %1121 = vperm.xlu0 %1120, %v858
  %v1122 = vpop.permute.xlu0 %1121
  %v1124 = vlaneseq
  %v1125 = vshrl.u32 %v1124, 7
  %v1126 = vsub.s32 1, %v1125
  %v1127 = vrot.slane %v842, %v1126
  %v1128 = vlaneseq
  %v1129 = vshrl.u32 %v1128, 7
  %v1130 = vsub.s32 1, %v1129
  %v1131 = vrot.slane %v843, %v1130
  %v1132 = vlaneseq
  %v1133 = vshrl.u32 %v1132, 7
  %v1134 = vsub.s32 1, %v1133
  %v1135 = vrot.slane %v844, %v1134
  %v1136 = vlaneseq
  %v1137 = vshrl.u32 %v1136, 7
  %v1138 = vsub.s32 1, %v1137
  %v1139 = vrot.slane %v845, %v1138
  %v1140 = vlaneseq
  %v1141 = vshrl.u32 %v1140, 7
  %v1142 = vsub.s32 1, %v1141
  %v1143 = vrot.slane %v846, %v1142
  %v1144 = vlaneseq
  %v1145 = vshrl.u32 %v1144, 7
  %v1146 = vsub.s32 1, %v1145
  %v1147 = vrot.slane %v847, %v1146
  %v1148 = vlaneseq
  %v1149 = vshrl.u32 %v1148, 7
  %v1150 = vsub.s32 1, %v1149
  %v1151 = vrot.slane %v848, %v1150
  %v1152 = vlaneseq
  %v1153 = vshrl.u32 %v1152, 7
  %v1154 = vsub.s32 1, %v1153
  %v1155 = vrot.slane %v849, %v1154
  %v1156 = vmul.f32 %v1122, %v1127
  %v1157 = vmul.f32 %v1122, %v1131
  %v1158 = vmul.f32 %v1122, %v1135
  %v1159 = vmul.f32 %v1122, %v1139
  %v1160 = vmul.f32 %v1122, %v1143
  %v1161 = vmul.f32 %v1122, %v1147
  %v1162 = vmul.f32 %v1122, %v1151
  %v1163 = vmul.f32 %v1122, %v1155
  %v1164 = vadd.f32 %v1112, %v1156
  %v1165 = vadd.f32 %v1113, %v1157
  %v1166 = vadd.f32 %v1114, %v1158
  %v1167 = vadd.f32 %v1115, %v1159
  %v1168 = vadd.f32 %v1116, %v1160
  %v1169 = vadd.f32 %v1117, %v1161
  %v1170 = vadd.f32 %v1118, %v1162
  %v1171 = vadd.f32 %v1119, %v1163
  %1172 = vset.pattern.permute.xlu0 42
  %1173 = vperm.xlu0 %1172, %v858
  %v1174 = vpop.permute.xlu0 %1173
  %v1176 = vlaneseq
  %v1177 = vshrl.u32 %v1176, 7
  %v1178 = vsub.s32 2, %v1177
  %v1179 = vrot.slane %v842, %v1178
  %v1180 = vlaneseq
  %v1181 = vshrl.u32 %v1180, 7
  %v1182 = vsub.s32 2, %v1181
  %v1183 = vrot.slane %v843, %v1182
  %v1184 = vlaneseq
  %v1185 = vshrl.u32 %v1184, 7
  %v1186 = vsub.s32 2, %v1185
  %v1187 = vrot.slane %v844, %v1186
  %v1188 = vlaneseq
  %v1189 = vshrl.u32 %v1188, 7
  %v1190 = vsub.s32 2, %v1189
  %v1191 = vrot.slane %v845, %v1190
  %v1192 = vlaneseq
  %v1193 = vshrl.u32 %v1192, 7
  %v1194 = vsub.s32 2, %v1193
  %v1195 = vrot.slane %v846, %v1194
  %v1196 = vlaneseq
  %v1197 = vshrl.u32 %v1196, 7
  %v1198 = vsub.s32 2, %v1197
  %v1199 = vrot.slane %v847, %v1198
  %v1200 = vlaneseq
  %v1201 = vshrl.u32 %v1200, 7
  %v1202 = vsub.s32 2, %v1201
  %v1203 = vrot.slane %v848, %v1202
  %v1204 = vlaneseq
  %v1205 = vshrl.u32 %v1204, 7
  %v1206 = vsub.s32 2, %v1205
  %v1207 = vrot.slane %v849, %v1206
  %v1208 = vmul.f32 %v1174, %v1179
  %v1209 = vmul.f32 %v1174, %v1183
  %v1210 = vmul.f32 %v1174, %v1187
  %v1211 = vmul.f32 %v1174, %v1191
  %v1212 = vmul.f32 %v1174, %v1195
  %v1213 = vmul.f32 %v1174, %v1199
  %v1214 = vmul.f32 %v1174, %v1203
  %v1215 = vmul.f32 %v1174, %v1207
  %v1216 = vadd.f32 %v1164, %v1208
  %v1217 = vadd.f32 %v1165, %v1209
  %v1218 = vadd.f32 %v1166, %v1210
  %v1219 = vadd.f32 %v1167, %v1211
  %v1220 = vadd.f32 %v1168, %v1212
  %v1221 = vadd.f32 %v1169, %v1213
  %v1222 = vadd.f32 %v1170, %v1214
  %v1223 = vadd.f32 %v1171, %v1215
  %1224 = vset.pattern.permute.xlu0 43
  %1225 = vperm.xlu0 %1224, %v858
  %v1226 = vpop.permute.xlu0 %1225
  %v1228 = vlaneseq
  %v1229 = vshrl.u32 %v1228, 7
  %v1230 = vsub.s32 3, %v1229
  %v1231 = vrot.slane %v842, %v1230
  %v1232 = vlaneseq
  %v1233 = vshrl.u32 %v1232, 7
  %v1234 = vsub.s32 3, %v1233
  %v1235 = vrot.slane %v843, %v1234
  %v1236 = vlaneseq
  %v1237 = vshrl.u32 %v1236, 7
  %v1238 = vsub.s32 3, %v1237
  %v1239 = vrot.slane %v844, %v1238
  %v1240 = vlaneseq
  %v1241 = vshrl.u32 %v1240, 7
  %v1242 = vsub.s32 3, %v1241
  %v1243 = vrot.slane %v845, %v1242
  %v1244 = vlaneseq
  %v1245 = vshrl.u32 %v1244, 7
  %v1246 = vsub.s32 3, %v1245
  %v1247 = vrot.slane %v846, %v1246
  %v1248 = vlaneseq
  %v1249 = vshrl.u32 %v1248, 7
  %v1250 = vsub.s32 3, %v1249
  %v1251 = vrot.slane %v847, %v1250
  %v1252 = vlaneseq
  %v1253 = vshrl.u32 %v1252, 7
  %v1254 = vsub.s32 3, %v1253
  %v1255 = vrot.slane %v848, %v1254
  %v1256 = vlaneseq
  %v1257 = vshrl.u32 %v1256, 7
  %v1258 = vsub.s32 3, %v1257
  %v1259 = vrot.slane %v849, %v1258
  %v1260 = vmul.f32 %v1226, %v1231
  %v1261 = vmul.f32 %v1226, %v1235
  %v1262 = vmul.f32 %v1226, %v1239
  %v1263 = vmul.f32 %v1226, %v1243
  %v1264 = vmul.f32 %v1226, %v1247
  %v1265 = vmul.f32 %v1226, %v1251
  %v1266 = vmul.f32 %v1226, %v1255
  %v1267 = vmul.f32 %v1226, %v1259
  %v1268 = vadd.f32 %v1216, %v1260
  %v1269 = vadd.f32 %v1217, %v1261
  %v1270 = vadd.f32 %v1218, %v1262
  %v1271 = vadd.f32 %v1219, %v1263
  %v1272 = vadd.f32 %v1220, %v1264
  %v1273 = vadd.f32 %v1221, %v1265
  %v1274 = vadd.f32 %v1222, %v1266
  %v1275 = vadd.f32 %v1223, %v1267
  %v1276 = vmul.f32 %v843, %v551
  %v1277 = vmul.f32 %v844, %v555
  %v1278 = vmul.f32 %v845, %v559
  %v1279 = vmul.f32 %v842, %v563
  %v1280 = vmul.f32 %v847, %v551
  %v1281 = vmul.f32 %v848, %v555
  %v1282 = vmul.f32 %v849, %v559
  %v1283 = vmul.f32 %v846, %v563
  %1284 = vset.pattern.permute.xlu0 76
  %1285 = vperm.xlu0 %1284, %v858
  %v1286 = vpop.permute.xlu0 %1285
  %v1288 = vlaneseq
  %v1289 = vshrl.u32 %v1288, 7
  %v1290 = vsub.s32 0, %v1289
  %v1291 = vrot.slane %v1276, %v1290
  %v1292 = vlaneseq
  %v1293 = vshrl.u32 %v1292, 7
  %v1294 = vsub.s32 0, %v1293
  %v1295 = vrot.slane %v1277, %v1294
  %v1296 = vlaneseq
  %v1297 = vshrl.u32 %v1296, 7
  %v1298 = vsub.s32 0, %v1297
  %v1299 = vrot.slane %v1278, %v1298
  %v1300 = vlaneseq
  %v1301 = vshrl.u32 %v1300, 7
  %v1302 = vsub.s32 0, %v1301
  %v1303 = vrot.slane %v1279, %v1302
  %v1304 = vlaneseq
  %v1305 = vshrl.u32 %v1304, 7
  %v1306 = vsub.s32 0, %v1305
  %v1307 = vrot.slane %v1280, %v1306
  %v1308 = vlaneseq
  %v1309 = vshrl.u32 %v1308, 7
  %v1310 = vsub.s32 0, %v1309
  %v1311 = vrot.slane %v1281, %v1310
  %v1312 = vlaneseq
  %v1313 = vshrl.u32 %v1312, 7
  %v1314 = vsub.s32 0, %v1313
  %v1315 = vrot.slane %v1282, %v1314
  %v1316 = vlaneseq
  %v1317 = vshrl.u32 %v1316, 7
  %v1318 = vsub.s32 0, %v1317
  %v1319 = vrot.slane %v1283, %v1318
  %v1320 = vmul.f32 %v1286, %v1291
  %v1321 = vmul.f32 %v1286, %v1295
  %v1322 = vmul.f32 %v1286, %v1299
  %v1323 = vmul.f32 %v1286, %v1303
  %v1324 = vmul.f32 %v1286, %v1307
  %v1325 = vmul.f32 %v1286, %v1311
  %v1326 = vmul.f32 %v1286, %v1315
  %v1327 = vmul.f32 %v1286, %v1319
  %v1328 = vadd.f32 %v1268, %v1320
  %v1329 = vadd.f32 %v1269, %v1321
  %v1330 = vadd.f32 %v1270, %v1322
  %v1331 = vadd.f32 %v1271, %v1323
  %v1332 = vadd.f32 %v1272, %v1324
  %v1333 = vadd.f32 %v1273, %v1325
  %v1334 = vadd.f32 %v1274, %v1326
  %v1335 = vadd.f32 %v1275, %v1327
  %1336 = vset.pattern.permute.xlu0 77
  %1337 = vperm.xlu0 %1336, %v858
  %v1338 = vpop.permute.xlu0 %1337
  %v1340 = vlaneseq
  %v1341 = vshrl.u32 %v1340, 7
  %v1342 = vsub.s32 1, %v1341
  %v1343 = vrot.slane %v1276, %v1342
  %v1344 = vlaneseq
  %v1345 = vshrl.u32 %v1344, 7
  %v1346 = vsub.s32 1, %v1345
  %v1347 = vrot.slane %v1277, %v1346
  %v1348 = vlaneseq
  %v1349 = vshrl.u32 %v1348, 7
  %v1350 = vsub.s32 1, %v1349
  %v1351 = vrot.slane %v1278, %v1350
  %v1352 = vlaneseq
  %v1353 = vshrl.u32 %v1352, 7
  %v1354 = vsub.s32 1, %v1353
  %v1355 = vrot.slane %v1279, %v1354
  %v1356 = vlaneseq
  %v1357 = vshrl.u32 %v1356, 7
  %v1358 = vsub.s32 1, %v1357
  %v1359 = vrot.slane %v1280, %v1358
  %v1360 = vlaneseq
  %v1361 = vshrl.u32 %v1360, 7
  %v1362 = vsub.s32 1, %v1361
  %v1363 = vrot.slane %v1281, %v1362
  %v1364 = vlaneseq
  %v1365 = vshrl.u32 %v1364, 7
  %v1366 = vsub.s32 1, %v1365
  %v1367 = vrot.slane %v1282, %v1366
  %v1368 = vlaneseq
  %v1369 = vshrl.u32 %v1368, 7
  %v1370 = vsub.s32 1, %v1369
  %v1371 = vrot.slane %v1283, %v1370
  %v1372 = vmul.f32 %v1338, %v1343
  %v1373 = vmul.f32 %v1338, %v1347
  %v1374 = vmul.f32 %v1338, %v1351
  %v1375 = vmul.f32 %v1338, %v1355
  %v1376 = vmul.f32 %v1338, %v1359
  %v1377 = vmul.f32 %v1338, %v1363
  %v1378 = vmul.f32 %v1338, %v1367
  %v1379 = vmul.f32 %v1338, %v1371
  %v1380 = vadd.f32 %v1328, %v1372
  %v1381 = vadd.f32 %v1329, %v1373
  %v1382 = vadd.f32 %v1330, %v1374
  %v1383 = vadd.f32 %v1331, %v1375
  %v1384 = vadd.f32 %v1332, %v1376
  %v1385 = vadd.f32 %v1333, %v1377
  %v1386 = vadd.f32 %v1334, %v1378
  %v1387 = vadd.f32 %v1335, %v1379
  %1388 = vset.pattern.permute.xlu0 78
  %1389 = vperm.xlu0 %1388, %v858
  %v1390 = vpop.permute.xlu0 %1389
  %v1392 = vlaneseq
  %v1393 = vshrl.u32 %v1392, 7
  %v1394 = vsub.s32 2, %v1393
  %v1395 = vrot.slane %v1276, %v1394
  %v1396 = vlaneseq
  %v1397 = vshrl.u32 %v1396, 7
  %v1398 = vsub.s32 2, %v1397
  %v1399 = vrot.slane %v1277, %v1398
  %v1400 = vlaneseq
  %v1401 = vshrl.u32 %v1400, 7
  %v1402 = vsub.s32 2, %v1401
  %v1403 = vrot.slane %v1278, %v1402
  %v1404 = vlaneseq
  %v1405 = vshrl.u32 %v1404, 7
  %v1406 = vsub.s32 2, %v1405
  %v1407 = vrot.slane %v1279, %v1406
  %v1408 = vlaneseq
  %v1409 = vshrl.u32 %v1408, 7
  %v1410 = vsub.s32 2, %v1409
  %v1411 = vrot.slane %v1280, %v1410
  %v1412 = vlaneseq
  %v1413 = vshrl.u32 %v1412, 7
  %v1414 = vsub.s32 2, %v1413
  %v1415 = vrot.slane %v1281, %v1414
  %v1416 = vlaneseq
  %v1417 = vshrl.u32 %v1416, 7
  %v1418 = vsub.s32 2, %v1417
  %v1419 = vrot.slane %v1282, %v1418
  %v1420 = vlaneseq
  %v1421 = vshrl.u32 %v1420, 7
  %v1422 = vsub.s32 2, %v1421
  %v1423 = vrot.slane %v1283, %v1422
  %v1424 = vmul.f32 %v1390, %v1395
  %v1425 = vmul.f32 %v1390, %v1399
  %v1426 = vmul.f32 %v1390, %v1403
  %v1427 = vmul.f32 %v1390, %v1407
  %v1428 = vmul.f32 %v1390, %v1411
  %v1429 = vmul.f32 %v1390, %v1415
  %v1430 = vmul.f32 %v1390, %v1419
  %v1431 = vmul.f32 %v1390, %v1423
  %v1432 = vadd.f32 %v1380, %v1424
  %v1433 = vadd.f32 %v1381, %v1425
  %v1434 = vadd.f32 %v1382, %v1426
  %v1435 = vadd.f32 %v1383, %v1427
  %v1436 = vadd.f32 %v1384, %v1428
  %v1437 = vadd.f32 %v1385, %v1429
  %v1438 = vadd.f32 %v1386, %v1430
  %v1439 = vadd.f32 %v1387, %v1431
  %1440 = vset.pattern.permute.xlu0 79
  %1441 = vperm.xlu0 %1440, %v858
  %v1442 = vpop.permute.xlu0 %1441
  %v1444 = vlaneseq
  %v1445 = vshrl.u32 %v1444, 7
  %v1446 = vsub.s32 3, %v1445
  %v1447 = vrot.slane %v1276, %v1446
  %v1448 = vlaneseq
  %v1449 = vshrl.u32 %v1448, 7
  %v1450 = vsub.s32 3, %v1449
  %v1451 = vrot.slane %v1277, %v1450
  %v1452 = vlaneseq
  %v1453 = vshrl.u32 %v1452, 7
  %v1454 = vsub.s32 3, %v1453
  %v1455 = vrot.slane %v1278, %v1454
  %v1456 = vlaneseq
  %v1457 = vshrl.u32 %v1456, 7
  %v1458 = vsub.s32 3, %v1457
  %v1459 = vrot.slane %v1279, %v1458
  %v1460 = vlaneseq
  %v1461 = vshrl.u32 %v1460, 7
  %v1462 = vsub.s32 3, %v1461
  %v1463 = vrot.slane %v1280, %v1462
  %v1464 = vlaneseq
  %v1465 = vshrl.u32 %v1464, 7
  %v1466 = vsub.s32 3, %v1465
  %v1467 = vrot.slane %v1281, %v1466
  %v1468 = vlaneseq
  %v1469 = vshrl.u32 %v1468, 7
  %v1470 = vsub.s32 3, %v1469
  %v1471 = vrot.slane %v1282, %v1470
  %v1472 = vlaneseq
  %v1473 = vshrl.u32 %v1472, 7
  %v1474 = vsub.s32 3, %v1473
  %v1475 = vrot.slane %v1283, %v1474
  %v1476 = vmul.f32 %v1442, %v1447
  %v1477 = vmul.f32 %v1442, %v1451
  %v1478 = vmul.f32 %v1442, %v1455
  %v1479 = vmul.f32 %v1442, %v1459
  %v1480 = vmul.f32 %v1442, %v1463
  %v1481 = vmul.f32 %v1442, %v1467
  %v1482 = vmul.f32 %v1442, %v1471
  %v1483 = vmul.f32 %v1442, %v1475
  %v1484 = vadd.f32 %v1432, %v1476
  %v1485 = vadd.f32 %v1433, %v1477
  %v1486 = vadd.f32 %v1434, %v1478
  %v1487 = vadd.f32 %v1435, %v1479
  %v1488 = vadd.f32 %v1436, %v1480
  %v1489 = vadd.f32 %v1437, %v1481
  %v1490 = vadd.f32 %v1438, %v1482
  %v1491 = vadd.f32 %v1439, %v1483
  %1492 = vrot.lane.b32.xlu0 %v26, 14
  %v1493 = vpop.permute.xlu0 %1492
  %1494 = vrot.lane.b32.xlu0 %v27, 14
  %v1495 = vpop.permute.xlu0 %1494
  %1498 = vrot.lane.b32.xlu0 %v20, 14
  %v1499 = vpop.permute.xlu0 %1498
  %1500 = vrot.lane.b32.xlu0 %v36, 14
  %v1501 = vpop.permute.xlu0 %1500
  %1502 = vrot.lane.b32.xlu0 %v21, 14
  %v1503 = vpop.permute.xlu0 %1502
  %1504 = vrot.lane.b32.xlu0 %v22, 14
  %v1505 = vpop.permute.xlu0 %1504
  %1506 = vrot.lane.b32.xlu0 %v37, 14
  %v1507 = vpop.permute.xlu0 %1506
  %1508 = vrot.lane.b32.xlu0 %v23, 14
  %v1509 = vpop.permute.xlu0 %1508
  %vm1510 = vcmask 113664
  %v1511 = vsel %vm1510, %v1499, %v1501
  %v1512 = vsel %vm1510, %v1501, %v1503
  %v1513 = vsel %vm1510, %v1503, %v1493
  %v1514 = vsel %vm1510, %v1505, %v1507
  %v1515 = vsel %vm1510, %v1507, %v1509
  %v1516 = vsel %vm1510, %v1509, %v1495
  %v1525 = vsel %vm1510, %v1493, %v1499
  %v1526 = vsel %vm1510, %v1495, %v1505
  %s1527 = scalar_lea.vmem %s1, 2
  %v1528 = vld [vmem:[%s1527] ss:$8 sm:$0xf]
  %v1530 = vlaneseq
  %v1531 = vshrl.u32 %v1530, 7
  %v1532 = vsub.s32 0, %v1531
  %v1533 = vrot.slane %v1528, %v1532
  %v1534 = vlaneseq
  %v1535 = vshrl.u32 %v1534, 7
  %v1536 = vsub.s32 1, %v1535
  %v1537 = vrot.slane %v1528, %v1536
  %v1538 = vlaneseq
  %v1539 = vshrl.u32 %v1538, 7
  %v1540 = vsub.s32 2, %v1539
  %v1541 = vrot.slane %v1528, %v1540
  %v1542 = vlaneseq
  %v1543 = vshrl.u32 %v1542, 7
  %v1544 = vsub.s32 3, %v1543
  %v1545 = vrot.slane %v1528, %v1544
  %v1550 = vmul.f32 %v1525, %v1533
  %v1551 = vmul.f32 %v1511, %v1537
  %v1552 = vmul.f32 %v1512, %v1541
  %v1553 = vmul.f32 %v1513, %v1545
  %v1554 = vmul.f32 %v1526, %v1533
  %v1555 = vmul.f32 %v1514, %v1537
  %v1556 = vmul.f32 %v1515, %v1541
  %v1557 = vmul.f32 %v1516, %v1545
  %v1558 = vmul.f32 %v1553, %v102
  %v1559 = vmul.f32 %v1550, %v106
  %v1560 = vmul.f32 %v1551, %v110
  %v1561 = vmul.f32 %v1552, %v114
  %v1562 = vmul.f32 %v1557, %v102
  %v1563 = vmul.f32 %v1554, %v106
  %v1564 = vmul.f32 %v1555, %v110
  %v1565 = vmul.f32 %v1556, %v114
  %v1566 = vld [vmem:[%s3] sm:$0xf]
  %1568 = vset.pattern.permute.xlu0 8
  %1569 = vperm.xlu0 %1568, %v1566
  %v1570 = vpop.permute.xlu0 %1569
  %v1572 = vlaneseq
  %v1573 = vshrl.u32 %v1572, 7
  %v1574 = vsub.s32 0, %v1573
  %v1575 = vrot.slane %v1558, %v1574
  %v1576 = vlaneseq
  %v1577 = vshrl.u32 %v1576, 7
  %v1578 = vsub.s32 0, %v1577
  %v1579 = vrot.slane %v1559, %v1578
  %v1580 = vlaneseq
  %v1581 = vshrl.u32 %v1580, 7
  %v1582 = vsub.s32 0, %v1581
  %v1583 = vrot.slane %v1560, %v1582
  %v1584 = vlaneseq
  %v1585 = vshrl.u32 %v1584, 7
  %v1586 = vsub.s32 0, %v1585
  %v1587 = vrot.slane %v1561, %v1586
  %v1588 = vlaneseq
  %v1589 = vshrl.u32 %v1588, 7
  %v1590 = vsub.s32 0, %v1589
  %v1591 = vrot.slane %v1562, %v1590
  %v1592 = vlaneseq
  %v1593 = vshrl.u32 %v1592, 7
  %v1594 = vsub.s32 0, %v1593
  %v1595 = vrot.slane %v1563, %v1594
  %v1596 = vlaneseq
  %v1597 = vshrl.u32 %v1596, 7
  %v1598 = vsub.s32 0, %v1597
  %v1599 = vrot.slane %v1564, %v1598
  %v1600 = vlaneseq
  %v1601 = vshrl.u32 %v1600, 7
  %v1602 = vsub.s32 0, %v1601
  %v1603 = vrot.slane %v1565, %v1602
  %v1604 = vmul.f32 %v1570, %v1575
  %v1605 = vmul.f32 %v1570, %v1579
  %v1606 = vmul.f32 %v1570, %v1583
  %v1607 = vmul.f32 %v1570, %v1587
  %v1608 = vmul.f32 %v1570, %v1591
  %v1609 = vmul.f32 %v1570, %v1595
  %v1610 = vmul.f32 %v1570, %v1599
  %v1611 = vmul.f32 %v1570, %v1603
  %v1612 = vadd.f32 %v1484, %v1604
  %v1613 = vadd.f32 %v1485, %v1605
  %v1614 = vadd.f32 %v1486, %v1606
  %v1615 = vadd.f32 %v1487, %v1607
  %v1616 = vadd.f32 %v1488, %v1608
  %v1617 = vadd.f32 %v1489, %v1609
  %v1618 = vadd.f32 %v1490, %v1610
  %v1619 = vadd.f32 %v1491, %v1611
  %1620 = vset.pattern.permute.xlu0 9
  %1621 = vperm.xlu0 %1620, %v1566
  %v1622 = vpop.permute.xlu0 %1621
  %v1624 = vlaneseq
  %v1625 = vshrl.u32 %v1624, 7
  %v1626 = vsub.s32 1, %v1625
  %v1627 = vrot.slane %v1558, %v1626
  %v1628 = vlaneseq
  %v1629 = vshrl.u32 %v1628, 7
  %v1630 = vsub.s32 1, %v1629
  %v1631 = vrot.slane %v1559, %v1630
  %v1632 = vlaneseq
  %v1633 = vshrl.u32 %v1632, 7
  %v1634 = vsub.s32 1, %v1633
  %v1635 = vrot.slane %v1560, %v1634
  %v1636 = vlaneseq
  %v1637 = vshrl.u32 %v1636, 7
  %v1638 = vsub.s32 1, %v1637
  %v1639 = vrot.slane %v1561, %v1638
  %v1640 = vlaneseq
  %v1641 = vshrl.u32 %v1640, 7
  %v1642 = vsub.s32 1, %v1641
  %v1643 = vrot.slane %v1562, %v1642
  %v1644 = vlaneseq
  %v1645 = vshrl.u32 %v1644, 7
  %v1646 = vsub.s32 1, %v1645
  %v1647 = vrot.slane %v1563, %v1646
  %v1648 = vlaneseq
  %v1649 = vshrl.u32 %v1648, 7
  %v1650 = vsub.s32 1, %v1649
  %v1651 = vrot.slane %v1564, %v1650
  %v1652 = vlaneseq
  %v1653 = vshrl.u32 %v1652, 7
  %v1654 = vsub.s32 1, %v1653
  %v1655 = vrot.slane %v1565, %v1654
  %v1656 = vmul.f32 %v1622, %v1627
  %v1657 = vmul.f32 %v1622, %v1631
  %v1658 = vmul.f32 %v1622, %v1635
  %v1659 = vmul.f32 %v1622, %v1639
  %v1660 = vmul.f32 %v1622, %v1643
  %v1661 = vmul.f32 %v1622, %v1647
  %v1662 = vmul.f32 %v1622, %v1651
  %v1663 = vmul.f32 %v1622, %v1655
  %v1664 = vadd.f32 %v1612, %v1656
  %v1665 = vadd.f32 %v1613, %v1657
  %v1666 = vadd.f32 %v1614, %v1658
  %v1667 = vadd.f32 %v1615, %v1659
  %v1668 = vadd.f32 %v1616, %v1660
  %v1669 = vadd.f32 %v1617, %v1661
  %v1670 = vadd.f32 %v1618, %v1662
  %v1671 = vadd.f32 %v1619, %v1663
  %1672 = vset.pattern.permute.xlu0 10
  %1673 = vperm.xlu0 %1672, %v1566
  %v1674 = vpop.permute.xlu0 %1673
  %v1676 = vlaneseq
  %v1677 = vshrl.u32 %v1676, 7
  %v1678 = vsub.s32 2, %v1677
  %v1679 = vrot.slane %v1558, %v1678
  %v1680 = vlaneseq
  %v1681 = vshrl.u32 %v1680, 7
  %v1682 = vsub.s32 2, %v1681
  %v1683 = vrot.slane %v1559, %v1682
  %v1684 = vlaneseq
  %v1685 = vshrl.u32 %v1684, 7
  %v1686 = vsub.s32 2, %v1685
  %v1687 = vrot.slane %v1560, %v1686
  %v1688 = vlaneseq
  %v1689 = vshrl.u32 %v1688, 7
  %v1690 = vsub.s32 2, %v1689
  %v1691 = vrot.slane %v1561, %v1690
  %v1692 = vlaneseq
  %v1693 = vshrl.u32 %v1692, 7
  %v1694 = vsub.s32 2, %v1693
  %v1695 = vrot.slane %v1562, %v1694
  %v1696 = vlaneseq
  %v1697 = vshrl.u32 %v1696, 7
  %v1698 = vsub.s32 2, %v1697
  %v1699 = vrot.slane %v1563, %v1698
  %v1700 = vlaneseq
  %v1701 = vshrl.u32 %v1700, 7
  %v1702 = vsub.s32 2, %v1701
  %v1703 = vrot.slane %v1564, %v1702
  %v1704 = vlaneseq
  %v1705 = vshrl.u32 %v1704, 7
  %v1706 = vsub.s32 2, %v1705
  %v1707 = vrot.slane %v1565, %v1706
  %v1708 = vmul.f32 %v1674, %v1679
  %v1709 = vmul.f32 %v1674, %v1683
  %v1710 = vmul.f32 %v1674, %v1687
  %v1711 = vmul.f32 %v1674, %v1691
  %v1712 = vmul.f32 %v1674, %v1695
  %v1713 = vmul.f32 %v1674, %v1699
  %v1714 = vmul.f32 %v1674, %v1703
  %v1715 = vmul.f32 %v1674, %v1707
  %v1716 = vadd.f32 %v1664, %v1708
  %v1717 = vadd.f32 %v1665, %v1709
  %v1718 = vadd.f32 %v1666, %v1710
  %v1719 = vadd.f32 %v1667, %v1711
  %v1720 = vadd.f32 %v1668, %v1712
  %v1721 = vadd.f32 %v1669, %v1713
  %v1722 = vadd.f32 %v1670, %v1714
  %v1723 = vadd.f32 %v1671, %v1715
  %1724 = vset.pattern.permute.xlu0 11
  %1725 = vperm.xlu0 %1724, %v1566
  %v1726 = vpop.permute.xlu0 %1725
  %v1728 = vlaneseq
  %v1729 = vshrl.u32 %v1728, 7
  %v1730 = vsub.s32 3, %v1729
  %v1731 = vrot.slane %v1558, %v1730
  %v1732 = vlaneseq
  %v1733 = vshrl.u32 %v1732, 7
  %v1734 = vsub.s32 3, %v1733
  %v1735 = vrot.slane %v1559, %v1734
  %v1736 = vlaneseq
  %v1737 = vshrl.u32 %v1736, 7
  %v1738 = vsub.s32 3, %v1737
  %v1739 = vrot.slane %v1560, %v1738
  %v1740 = vlaneseq
  %v1741 = vshrl.u32 %v1740, 7
  %v1742 = vsub.s32 3, %v1741
  %v1743 = vrot.slane %v1561, %v1742
  %v1744 = vlaneseq
  %v1745 = vshrl.u32 %v1744, 7
  %v1746 = vsub.s32 3, %v1745
  %v1747 = vrot.slane %v1562, %v1746
  %v1748 = vlaneseq
  %v1749 = vshrl.u32 %v1748, 7
  %v1750 = vsub.s32 3, %v1749
  %v1751 = vrot.slane %v1563, %v1750
  %v1752 = vlaneseq
  %v1753 = vshrl.u32 %v1752, 7
  %v1754 = vsub.s32 3, %v1753
  %v1755 = vrot.slane %v1564, %v1754
  %v1756 = vlaneseq
  %v1757 = vshrl.u32 %v1756, 7
  %v1758 = vsub.s32 3, %v1757
  %v1759 = vrot.slane %v1565, %v1758
  %v1760 = vmul.f32 %v1726, %v1731
  %v1761 = vmul.f32 %v1726, %v1735
  %v1762 = vmul.f32 %v1726, %v1739
  %v1763 = vmul.f32 %v1726, %v1743
  %v1764 = vmul.f32 %v1726, %v1747
  %v1765 = vmul.f32 %v1726, %v1751
  %v1766 = vmul.f32 %v1726, %v1755
  %v1767 = vmul.f32 %v1726, %v1759
  %v1768 = vadd.f32 %v1716, %v1760
  %v1769 = vadd.f32 %v1717, %v1761
  %v1770 = vadd.f32 %v1718, %v1762
  %v1771 = vadd.f32 %v1719, %v1763
  %v1772 = vadd.f32 %v1720, %v1764
  %v1773 = vadd.f32 %v1721, %v1765
  %v1774 = vadd.f32 %v1722, %v1766
  %v1775 = vadd.f32 %v1723, %v1767
  %1776 = vset.pattern.permute.xlu0 44
  %1777 = vperm.xlu0 %1776, %v1566
  %v1778 = vpop.permute.xlu0 %1777
  %v1780 = vlaneseq
  %v1781 = vshrl.u32 %v1780, 7
  %v1782 = vsub.s32 0, %v1781
  %v1783 = vrot.slane %v1550, %v1782
  %v1784 = vlaneseq
  %v1785 = vshrl.u32 %v1784, 7
  %v1786 = vsub.s32 0, %v1785
  %v1787 = vrot.slane %v1551, %v1786
  %v1788 = vlaneseq
  %v1789 = vshrl.u32 %v1788, 7
  %v1790 = vsub.s32 0, %v1789
  %v1791 = vrot.slane %v1552, %v1790
  %v1792 = vlaneseq
  %v1793 = vshrl.u32 %v1792, 7
  %v1794 = vsub.s32 0, %v1793
  %v1795 = vrot.slane %v1553, %v1794
  %v1796 = vlaneseq
  %v1797 = vshrl.u32 %v1796, 7
  %v1798 = vsub.s32 0, %v1797
  %v1799 = vrot.slane %v1554, %v1798
  %v1800 = vlaneseq
  %v1801 = vshrl.u32 %v1800, 7
  %v1802 = vsub.s32 0, %v1801
  %v1803 = vrot.slane %v1555, %v1802
  %v1804 = vlaneseq
  %v1805 = vshrl.u32 %v1804, 7
  %v1806 = vsub.s32 0, %v1805
  %v1807 = vrot.slane %v1556, %v1806
  %v1808 = vlaneseq
  %v1809 = vshrl.u32 %v1808, 7
  %v1810 = vsub.s32 0, %v1809
  %v1811 = vrot.slane %v1557, %v1810
  %v1812 = vmul.f32 %v1778, %v1783
  %v1813 = vmul.f32 %v1778, %v1787
  %v1814 = vmul.f32 %v1778, %v1791
  %v1815 = vmul.f32 %v1778, %v1795
  %v1816 = vmul.f32 %v1778, %v1799
  %v1817 = vmul.f32 %v1778, %v1803
  %v1818 = vmul.f32 %v1778, %v1807
  %v1819 = vmul.f32 %v1778, %v1811
  %v1820 = vadd.f32 %v1768, %v1812
  %v1821 = vadd.f32 %v1769, %v1813
  %v1822 = vadd.f32 %v1770, %v1814
  %v1823 = vadd.f32 %v1771, %v1815
  %v1824 = vadd.f32 %v1772, %v1816
  %v1825 = vadd.f32 %v1773, %v1817
  %v1826 = vadd.f32 %v1774, %v1818
  %v1827 = vadd.f32 %v1775, %v1819
  %1828 = vset.pattern.permute.xlu0 45
  %1829 = vperm.xlu0 %1828, %v1566
  %v1830 = vpop.permute.xlu0 %1829
  %v1832 = vlaneseq
  %v1833 = vshrl.u32 %v1832, 7
  %v1834 = vsub.s32 1, %v1833
  %v1835 = vrot.slane %v1550, %v1834
  %v1836 = vlaneseq
  %v1837 = vshrl.u32 %v1836, 7
  %v1838 = vsub.s32 1, %v1837
  %v1839 = vrot.slane %v1551, %v1838
  %v1840 = vlaneseq
  %v1841 = vshrl.u32 %v1840, 7
  %v1842 = vsub.s32 1, %v1841
  %v1843 = vrot.slane %v1552, %v1842
  %v1844 = vlaneseq
  %v1845 = vshrl.u32 %v1844, 7
  %v1846 = vsub.s32 1, %v1845
  %v1847 = vrot.slane %v1553, %v1846
  %v1848 = vlaneseq
  %v1849 = vshrl.u32 %v1848, 7
  %v1850 = vsub.s32 1, %v1849
  %v1851 = vrot.slane %v1554, %v1850
  %v1852 = vlaneseq
  %v1853 = vshrl.u32 %v1852, 7
  %v1854 = vsub.s32 1, %v1853
  %v1855 = vrot.slane %v1555, %v1854
  %v1856 = vlaneseq
  %v1857 = vshrl.u32 %v1856, 7
  %v1858 = vsub.s32 1, %v1857
  %v1859 = vrot.slane %v1556, %v1858
  %v1860 = vlaneseq
  %v1861 = vshrl.u32 %v1860, 7
  %v1862 = vsub.s32 1, %v1861
  %v1863 = vrot.slane %v1557, %v1862
  %v1864 = vmul.f32 %v1830, %v1835
  %v1865 = vmul.f32 %v1830, %v1839
  %v1866 = vmul.f32 %v1830, %v1843
  %v1867 = vmul.f32 %v1830, %v1847
  %v1868 = vmul.f32 %v1830, %v1851
  %v1869 = vmul.f32 %v1830, %v1855
  %v1870 = vmul.f32 %v1830, %v1859
  %v1871 = vmul.f32 %v1830, %v1863
  %v1872 = vadd.f32 %v1820, %v1864
  %v1873 = vadd.f32 %v1821, %v1865
  %v1874 = vadd.f32 %v1822, %v1866
  %v1875 = vadd.f32 %v1823, %v1867
  %v1876 = vadd.f32 %v1824, %v1868
  %v1877 = vadd.f32 %v1825, %v1869
  %v1878 = vadd.f32 %v1826, %v1870
  %v1879 = vadd.f32 %v1827, %v1871
  %1880 = vset.pattern.permute.xlu0 46
  %1881 = vperm.xlu0 %1880, %v1566
  %v1882 = vpop.permute.xlu0 %1881
  %v1884 = vlaneseq
  %v1885 = vshrl.u32 %v1884, 7
  %v1886 = vsub.s32 2, %v1885
  %v1887 = vrot.slane %v1550, %v1886
  %v1888 = vlaneseq
  %v1889 = vshrl.u32 %v1888, 7
  %v1890 = vsub.s32 2, %v1889
  %v1891 = vrot.slane %v1551, %v1890
  %v1892 = vlaneseq
  %v1893 = vshrl.u32 %v1892, 7
  %v1894 = vsub.s32 2, %v1893
  %v1895 = vrot.slane %v1552, %v1894
  %v1896 = vlaneseq
  %v1897 = vshrl.u32 %v1896, 7
  %v1898 = vsub.s32 2, %v1897
  %v1899 = vrot.slane %v1553, %v1898
  %v1900 = vlaneseq
  %v1901 = vshrl.u32 %v1900, 7
  %v1902 = vsub.s32 2, %v1901
  %v1903 = vrot.slane %v1554, %v1902
  %v1904 = vlaneseq
  %v1905 = vshrl.u32 %v1904, 7
  %v1906 = vsub.s32 2, %v1905
  %v1907 = vrot.slane %v1555, %v1906
  %v1908 = vlaneseq
  %v1909 = vshrl.u32 %v1908, 7
  %v1910 = vsub.s32 2, %v1909
  %v1911 = vrot.slane %v1556, %v1910
  %v1912 = vlaneseq
  %v1913 = vshrl.u32 %v1912, 7
  %v1914 = vsub.s32 2, %v1913
  %v1915 = vrot.slane %v1557, %v1914
  %v1916 = vmul.f32 %v1882, %v1887
  %v1917 = vmul.f32 %v1882, %v1891
  %v1918 = vmul.f32 %v1882, %v1895
  %v1919 = vmul.f32 %v1882, %v1899
  %v1920 = vmul.f32 %v1882, %v1903
  %v1921 = vmul.f32 %v1882, %v1907
  %v1922 = vmul.f32 %v1882, %v1911
  %v1923 = vmul.f32 %v1882, %v1915
  %v1924 = vadd.f32 %v1872, %v1916
  %v1925 = vadd.f32 %v1873, %v1917
  %v1926 = vadd.f32 %v1874, %v1918
  %v1927 = vadd.f32 %v1875, %v1919
  %v1928 = vadd.f32 %v1876, %v1920
  %v1929 = vadd.f32 %v1877, %v1921
  %v1930 = vadd.f32 %v1878, %v1922
  %v1931 = vadd.f32 %v1879, %v1923
  %1932 = vset.pattern.permute.xlu0 47
  %1933 = vperm.xlu0 %1932, %v1566
  %v1934 = vpop.permute.xlu0 %1933
  %v1936 = vlaneseq
  %v1937 = vshrl.u32 %v1936, 7
  %v1938 = vsub.s32 3, %v1937
  %v1939 = vrot.slane %v1550, %v1938
  %v1940 = vlaneseq
  %v1941 = vshrl.u32 %v1940, 7
  %v1942 = vsub.s32 3, %v1941
  %v1943 = vrot.slane %v1551, %v1942
  %v1944 = vlaneseq
  %v1945 = vshrl.u32 %v1944, 7
  %v1946 = vsub.s32 3, %v1945
  %v1947 = vrot.slane %v1552, %v1946
  %v1948 = vlaneseq
  %v1949 = vshrl.u32 %v1948, 7
  %v1950 = vsub.s32 3, %v1949
  %v1951 = vrot.slane %v1553, %v1950
  %v1952 = vlaneseq
  %v1953 = vshrl.u32 %v1952, 7
  %v1954 = vsub.s32 3, %v1953
  %v1955 = vrot.slane %v1554, %v1954
  %v1956 = vlaneseq
  %v1957 = vshrl.u32 %v1956, 7
  %v1958 = vsub.s32 3, %v1957
  %v1959 = vrot.slane %v1555, %v1958
  %v1960 = vlaneseq
  %v1961 = vshrl.u32 %v1960, 7
  %v1962 = vsub.s32 3, %v1961
  %v1963 = vrot.slane %v1556, %v1962
  %v1964 = vlaneseq
  %v1965 = vshrl.u32 %v1964, 7
  %v1966 = vsub.s32 3, %v1965
  %v1967 = vrot.slane %v1557, %v1966
  %v1968 = vmul.f32 %v1934, %v1939
  %v1969 = vmul.f32 %v1934, %v1943
  %v1970 = vmul.f32 %v1934, %v1947
  %v1971 = vmul.f32 %v1934, %v1951
  %v1972 = vmul.f32 %v1934, %v1955
  %v1973 = vmul.f32 %v1934, %v1959
  %v1974 = vmul.f32 %v1934, %v1963
  %v1975 = vmul.f32 %v1934, %v1967
  %v1976 = vadd.f32 %v1924, %v1968
  %v1977 = vadd.f32 %v1925, %v1969
  %v1978 = vadd.f32 %v1926, %v1970
  %v1979 = vadd.f32 %v1927, %v1971
  %v1980 = vadd.f32 %v1928, %v1972
  %v1981 = vadd.f32 %v1929, %v1973
  %v1982 = vadd.f32 %v1930, %v1974
  %v1983 = vadd.f32 %v1931, %v1975
  %v1984 = vmul.f32 %v1551, %v551
  %v1985 = vmul.f32 %v1552, %v555
  %v1986 = vmul.f32 %v1553, %v559
  %v1987 = vmul.f32 %v1550, %v563
  %v1988 = vmul.f32 %v1555, %v551
  %v1989 = vmul.f32 %v1556, %v555
  %v1990 = vmul.f32 %v1557, %v559
  %v1991 = vmul.f32 %v1554, %v563
  %1992 = vset.pattern.permute.xlu0 80
  %1993 = vperm.xlu0 %1992, %v1566
  %v1994 = vpop.permute.xlu0 %1993
  %v1996 = vlaneseq
  %v1997 = vshrl.u32 %v1996, 7
  %v1998 = vsub.s32 0, %v1997
  %v1999 = vrot.slane %v1984, %v1998
  %v2000 = vlaneseq
  %v2001 = vshrl.u32 %v2000, 7
  %v2002 = vsub.s32 0, %v2001
  %v2003 = vrot.slane %v1985, %v2002
  %v2004 = vlaneseq
  %v2005 = vshrl.u32 %v2004, 7
  %v2006 = vsub.s32 0, %v2005
  %v2007 = vrot.slane %v1986, %v2006
  %v2008 = vlaneseq
  %v2009 = vshrl.u32 %v2008, 7
  %v2010 = vsub.s32 0, %v2009
  %v2011 = vrot.slane %v1987, %v2010
  %v2012 = vlaneseq
  %v2013 = vshrl.u32 %v2012, 7
  %v2014 = vsub.s32 0, %v2013
  %v2015 = vrot.slane %v1988, %v2014
  %v2016 = vlaneseq
  %v2017 = vshrl.u32 %v2016, 7
  %v2018 = vsub.s32 0, %v2017
  %v2019 = vrot.slane %v1989, %v2018
  %v2020 = vlaneseq
  %v2021 = vshrl.u32 %v2020, 7
  %v2022 = vsub.s32 0, %v2021
  %v2023 = vrot.slane %v1990, %v2022
  %v2024 = vlaneseq
  %v2025 = vshrl.u32 %v2024, 7
  %v2026 = vsub.s32 0, %v2025
  %v2027 = vrot.slane %v1991, %v2026
  %v2028 = vmul.f32 %v1994, %v1999
  %v2029 = vmul.f32 %v1994, %v2003
  %v2030 = vmul.f32 %v1994, %v2007
  %v2031 = vmul.f32 %v1994, %v2011
  %v2032 = vmul.f32 %v1994, %v2015
  %v2033 = vmul.f32 %v1994, %v2019
  %v2034 = vmul.f32 %v1994, %v2023
  %v2035 = vmul.f32 %v1994, %v2027
  %v2036 = vadd.f32 %v1976, %v2028
  %v2037 = vadd.f32 %v1977, %v2029
  %v2038 = vadd.f32 %v1978, %v2030
  %v2039 = vadd.f32 %v1979, %v2031
  %v2040 = vadd.f32 %v1980, %v2032
  %v2041 = vadd.f32 %v1981, %v2033
  %v2042 = vadd.f32 %v1982, %v2034
  %v2043 = vadd.f32 %v1983, %v2035
  %2044 = vset.pattern.permute.xlu0 81
  %2045 = vperm.xlu0 %2044, %v1566
  %v2046 = vpop.permute.xlu0 %2045
  %v2048 = vlaneseq
  %v2049 = vshrl.u32 %v2048, 7
  %v2050 = vsub.s32 1, %v2049
  %v2051 = vrot.slane %v1984, %v2050
  %v2052 = vlaneseq
  %v2053 = vshrl.u32 %v2052, 7
  %v2054 = vsub.s32 1, %v2053
  %v2055 = vrot.slane %v1985, %v2054
  %v2056 = vlaneseq
  %v2057 = vshrl.u32 %v2056, 7
  %v2058 = vsub.s32 1, %v2057
  %v2059 = vrot.slane %v1986, %v2058
  %v2060 = vlaneseq
  %v2061 = vshrl.u32 %v2060, 7
  %v2062 = vsub.s32 1, %v2061
  %v2063 = vrot.slane %v1987, %v2062
  %v2064 = vlaneseq
  %v2065 = vshrl.u32 %v2064, 7
  %v2066 = vsub.s32 1, %v2065
  %v2067 = vrot.slane %v1988, %v2066
  %v2068 = vlaneseq
  %v2069 = vshrl.u32 %v2068, 7
  %v2070 = vsub.s32 1, %v2069
  %v2071 = vrot.slane %v1989, %v2070
  %v2072 = vlaneseq
  %v2073 = vshrl.u32 %v2072, 7
  %v2074 = vsub.s32 1, %v2073
  %v2075 = vrot.slane %v1990, %v2074
  %v2076 = vlaneseq
  %v2077 = vshrl.u32 %v2076, 7
  %v2078 = vsub.s32 1, %v2077
  %v2079 = vrot.slane %v1991, %v2078
  %v2080 = vmul.f32 %v2046, %v2051
  %v2081 = vmul.f32 %v2046, %v2055
  %v2082 = vmul.f32 %v2046, %v2059
  %v2083 = vmul.f32 %v2046, %v2063
  %v2084 = vmul.f32 %v2046, %v2067
  %v2085 = vmul.f32 %v2046, %v2071
  %v2086 = vmul.f32 %v2046, %v2075
  %v2087 = vmul.f32 %v2046, %v2079
  %v2088 = vadd.f32 %v2036, %v2080
  %v2089 = vadd.f32 %v2037, %v2081
  %v2090 = vadd.f32 %v2038, %v2082
  %v2091 = vadd.f32 %v2039, %v2083
  %v2092 = vadd.f32 %v2040, %v2084
  %v2093 = vadd.f32 %v2041, %v2085
  %v2094 = vadd.f32 %v2042, %v2086
  %v2095 = vadd.f32 %v2043, %v2087
  %2096 = vset.pattern.permute.xlu0 82
  %2097 = vperm.xlu0 %2096, %v1566
  %v2098 = vpop.permute.xlu0 %2097
  %v2100 = vlaneseq
  %v2101 = vshrl.u32 %v2100, 7
  %v2102 = vsub.s32 2, %v2101
  %v2103 = vrot.slane %v1984, %v2102
  %v2104 = vlaneseq
  %v2105 = vshrl.u32 %v2104, 7
  %v2106 = vsub.s32 2, %v2105
  %v2107 = vrot.slane %v1985, %v2106
  %v2108 = vlaneseq
  %v2109 = vshrl.u32 %v2108, 7
  %v2110 = vsub.s32 2, %v2109
  %v2111 = vrot.slane %v1986, %v2110
  %v2112 = vlaneseq
  %v2113 = vshrl.u32 %v2112, 7
  %v2114 = vsub.s32 2, %v2113
  %v2115 = vrot.slane %v1987, %v2114
  %v2116 = vlaneseq
  %v2117 = vshrl.u32 %v2116, 7
  %v2118 = vsub.s32 2, %v2117
  %v2119 = vrot.slane %v1988, %v2118
  %v2120 = vlaneseq
  %v2121 = vshrl.u32 %v2120, 7
  %v2122 = vsub.s32 2, %v2121
  %v2123 = vrot.slane %v1989, %v2122
  %v2124 = vlaneseq
  %v2125 = vshrl.u32 %v2124, 7
  %v2126 = vsub.s32 2, %v2125
  %v2127 = vrot.slane %v1990, %v2126
  %v2128 = vlaneseq
  %v2129 = vshrl.u32 %v2128, 7
  %v2130 = vsub.s32 2, %v2129
  %v2131 = vrot.slane %v1991, %v2130
  %v2132 = vmul.f32 %v2098, %v2103
  %v2133 = vmul.f32 %v2098, %v2107
  %v2134 = vmul.f32 %v2098, %v2111
  %v2135 = vmul.f32 %v2098, %v2115
  %v2136 = vmul.f32 %v2098, %v2119
  %v2137 = vmul.f32 %v2098, %v2123
  %v2138 = vmul.f32 %v2098, %v2127
  %v2139 = vmul.f32 %v2098, %v2131
  %v2140 = vadd.f32 %v2088, %v2132
  %v2141 = vadd.f32 %v2089, %v2133
  %v2142 = vadd.f32 %v2090, %v2134
  %v2143 = vadd.f32 %v2091, %v2135
  %v2144 = vadd.f32 %v2092, %v2136
  %v2145 = vadd.f32 %v2093, %v2137
  %v2146 = vadd.f32 %v2094, %v2138
  %v2147 = vadd.f32 %v2095, %v2139
  %2148 = vset.pattern.permute.xlu0 83
  %2149 = vperm.xlu0 %2148, %v1566
  %v2150 = vpop.permute.xlu0 %2149
  %v2152 = vlaneseq
  %v2153 = vshrl.u32 %v2152, 7
  %v2154 = vsub.s32 3, %v2153
  %v2155 = vrot.slane %v1984, %v2154
  %v2156 = vlaneseq
  %v2157 = vshrl.u32 %v2156, 7
  %v2158 = vsub.s32 3, %v2157
  %v2159 = vrot.slane %v1985, %v2158
  %v2160 = vlaneseq
  %v2161 = vshrl.u32 %v2160, 7
  %v2162 = vsub.s32 3, %v2161
  %v2163 = vrot.slane %v1986, %v2162
  %v2164 = vlaneseq
  %v2165 = vshrl.u32 %v2164, 7
  %v2166 = vsub.s32 3, %v2165
  %v2167 = vrot.slane %v1987, %v2166
  %v2168 = vlaneseq
  %v2169 = vshrl.u32 %v2168, 7
  %v2170 = vsub.s32 3, %v2169
  %v2171 = vrot.slane %v1988, %v2170
  %v2172 = vlaneseq
  %v2173 = vshrl.u32 %v2172, 7
  %v2174 = vsub.s32 3, %v2173
  %v2175 = vrot.slane %v1989, %v2174
  %v2176 = vlaneseq
  %v2177 = vshrl.u32 %v2176, 7
  %v2178 = vsub.s32 3, %v2177
  %v2179 = vrot.slane %v1990, %v2178
  %v2180 = vlaneseq
  %v2181 = vshrl.u32 %v2180, 7
  %v2182 = vsub.s32 3, %v2181
  %v2183 = vrot.slane %v1991, %v2182
  %v2184 = vmul.f32 %v2150, %v2155
  %v2185 = vmul.f32 %v2150, %v2159
  %v2186 = vmul.f32 %v2150, %v2163
  %v2187 = vmul.f32 %v2150, %v2167
  %v2188 = vmul.f32 %v2150, %v2171
  %v2189 = vmul.f32 %v2150, %v2175
  %v2190 = vmul.f32 %v2150, %v2179
  %v2191 = vmul.f32 %v2150, %v2183
  %v2192 = vadd.f32 %v2140, %v2184
  %v2193 = vadd.f32 %v2141, %v2185
  %v2194 = vadd.f32 %v2142, %v2186
  %v2195 = vadd.f32 %v2143, %v2187
  %v2196 = vadd.f32 %v2144, %v2188
  %v2197 = vadd.f32 %v2145, %v2189
  %v2198 = vadd.f32 %v2146, %v2190
  %v2199 = vadd.f32 %v2147, %v2191
  %2200 = vrot.lane.b32.xlu0 %v26, 2
  %v2201 = vpop.permute.xlu0 %2200
  %2202 = vrot.lane.b32.xlu0 %v27, 2
  %v2203 = vpop.permute.xlu0 %2202
  %2206 = vrot.lane.b32.xlu0 %v20, 2
  %v2207 = vpop.permute.xlu0 %2206
  %2208 = vrot.lane.b32.xlu0 %v36, 2
  %v2209 = vpop.permute.xlu0 %2208
  %2210 = vrot.lane.b32.xlu0 %v21, 2
  %v2211 = vpop.permute.xlu0 %2210
  %2212 = vrot.lane.b32.xlu0 %v22, 2
  %v2213 = vpop.permute.xlu0 %2212
  %2214 = vrot.lane.b32.xlu0 %v37, 2
  %v2215 = vpop.permute.xlu0 %2214
  %2216 = vrot.lane.b32.xlu0 %v23, 2
  %v2217 = vpop.permute.xlu0 %2216
  %vm2218 = vcmask 15360
  %v2219 = vsel %vm2218, %v2207, %v2209
  %v2220 = vsel %vm2218, %v2209, %v2211
  %v2221 = vsel %vm2218, %v2211, %v2201
  %v2222 = vsel %vm2218, %v2213, %v2215
  %v2223 = vsel %vm2218, %v2215, %v2217
  %v2224 = vsel %vm2218, %v2217, %v2203
  %v2233 = vsel %vm2218, %v2201, %v2207
  %v2234 = vsel %vm2218, %v2203, %v2213
  %s2235 = scalar_lea.vmem %s1, 3
  %v2236 = vld [vmem:[%s2235] ss:$8 sm:$0xf]
  %v2238 = vlaneseq
  %v2239 = vshrl.u32 %v2238, 7
  %v2240 = vsub.s32 0, %v2239
  %v2241 = vrot.slane %v2236, %v2240
  %v2242 = vlaneseq
  %v2243 = vshrl.u32 %v2242, 7
  %v2244 = vsub.s32 1, %v2243
  %v2245 = vrot.slane %v2236, %v2244
  %v2246 = vlaneseq
  %v2247 = vshrl.u32 %v2246, 7
  %v2248 = vsub.s32 2, %v2247
  %v2249 = vrot.slane %v2236, %v2248
  %v2250 = vlaneseq
  %v2251 = vshrl.u32 %v2250, 7
  %v2252 = vsub.s32 3, %v2251
  %v2253 = vrot.slane %v2236, %v2252
  %v2258 = vmul.f32 %v2233, %v2241
  %v2259 = vmul.f32 %v2219, %v2245
  %v2260 = vmul.f32 %v2220, %v2249
  %v2261 = vmul.f32 %v2221, %v2253
  %v2262 = vmul.f32 %v2234, %v2241
  %v2263 = vmul.f32 %v2222, %v2245
  %v2264 = vmul.f32 %v2223, %v2249
  %v2265 = vmul.f32 %v2224, %v2253
  %v2266 = vmul.f32 %v2261, %v102
  %v2267 = vmul.f32 %v2258, %v106
  %v2268 = vmul.f32 %v2259, %v110
  %v2269 = vmul.f32 %v2260, %v114
  %v2270 = vmul.f32 %v2265, %v102
  %v2271 = vmul.f32 %v2262, %v106
  %v2272 = vmul.f32 %v2263, %v110
  %v2273 = vmul.f32 %v2264, %v114
  %v2274 = vld [vmem:[%s3] sm:$0xf]
  %2276 = vset.pattern.permute.xlu0 12
  %2277 = vperm.xlu0 %2276, %v2274
  %v2278 = vpop.permute.xlu0 %2277
  %v2280 = vlaneseq
  %v2281 = vshrl.u32 %v2280, 7
  %v2282 = vsub.s32 0, %v2281
  %v2283 = vrot.slane %v2266, %v2282
  %v2284 = vlaneseq
  %v2285 = vshrl.u32 %v2284, 7
  %v2286 = vsub.s32 0, %v2285
  %v2287 = vrot.slane %v2267, %v2286
  %v2288 = vlaneseq
  %v2289 = vshrl.u32 %v2288, 7
  %v2290 = vsub.s32 0, %v2289
  %v2291 = vrot.slane %v2268, %v2290
  %v2292 = vlaneseq
  %v2293 = vshrl.u32 %v2292, 7
  %v2294 = vsub.s32 0, %v2293
  %v2295 = vrot.slane %v2269, %v2294
  %v2296 = vlaneseq
  %v2297 = vshrl.u32 %v2296, 7
  %v2298 = vsub.s32 0, %v2297
  %v2299 = vrot.slane %v2270, %v2298
  %v2300 = vlaneseq
  %v2301 = vshrl.u32 %v2300, 7
  %v2302 = vsub.s32 0, %v2301
  %v2303 = vrot.slane %v2271, %v2302
  %v2304 = vlaneseq
  %v2305 = vshrl.u32 %v2304, 7
  %v2306 = vsub.s32 0, %v2305
  %v2307 = vrot.slane %v2272, %v2306
  %v2308 = vlaneseq
  %v2309 = vshrl.u32 %v2308, 7
  %v2310 = vsub.s32 0, %v2309
  %v2311 = vrot.slane %v2273, %v2310
  %v2312 = vmul.f32 %v2278, %v2283
  %v2313 = vmul.f32 %v2278, %v2287
  %v2314 = vmul.f32 %v2278, %v2291
  %v2315 = vmul.f32 %v2278, %v2295
  %v2316 = vmul.f32 %v2278, %v2299
  %v2317 = vmul.f32 %v2278, %v2303
  %v2318 = vmul.f32 %v2278, %v2307
  %v2319 = vmul.f32 %v2278, %v2311
  %v2320 = vadd.f32 %v2192, %v2312
  %v2321 = vadd.f32 %v2193, %v2313
  %v2322 = vadd.f32 %v2194, %v2314
  %v2323 = vadd.f32 %v2195, %v2315
  %v2324 = vadd.f32 %v2196, %v2316
  %v2325 = vadd.f32 %v2197, %v2317
  %v2326 = vadd.f32 %v2198, %v2318
  %v2327 = vadd.f32 %v2199, %v2319
  %2328 = vset.pattern.permute.xlu0 13
  %2329 = vperm.xlu0 %2328, %v2274
  %v2330 = vpop.permute.xlu0 %2329
  %v2332 = vlaneseq
  %v2333 = vshrl.u32 %v2332, 7
  %v2334 = vsub.s32 1, %v2333
  %v2335 = vrot.slane %v2266, %v2334
  %v2336 = vlaneseq
  %v2337 = vshrl.u32 %v2336, 7
  %v2338 = vsub.s32 1, %v2337
  %v2339 = vrot.slane %v2267, %v2338
  %v2340 = vlaneseq
  %v2341 = vshrl.u32 %v2340, 7
  %v2342 = vsub.s32 1, %v2341
  %v2343 = vrot.slane %v2268, %v2342
  %v2344 = vlaneseq
  %v2345 = vshrl.u32 %v2344, 7
  %v2346 = vsub.s32 1, %v2345
  %v2347 = vrot.slane %v2269, %v2346
  %v2348 = vlaneseq
  %v2349 = vshrl.u32 %v2348, 7
  %v2350 = vsub.s32 1, %v2349
  %v2351 = vrot.slane %v2270, %v2350
  %v2352 = vlaneseq
  %v2353 = vshrl.u32 %v2352, 7
  %v2354 = vsub.s32 1, %v2353
  %v2355 = vrot.slane %v2271, %v2354
  %v2356 = vlaneseq
  %v2357 = vshrl.u32 %v2356, 7
  %v2358 = vsub.s32 1, %v2357
  %v2359 = vrot.slane %v2272, %v2358
  %v2360 = vlaneseq
  %v2361 = vshrl.u32 %v2360, 7
  %v2362 = vsub.s32 1, %v2361
  %v2363 = vrot.slane %v2273, %v2362
  %v2364 = vmul.f32 %v2330, %v2335
  %v2365 = vmul.f32 %v2330, %v2339
  %v2366 = vmul.f32 %v2330, %v2343
  %v2367 = vmul.f32 %v2330, %v2347
  %v2368 = vmul.f32 %v2330, %v2351
  %v2369 = vmul.f32 %v2330, %v2355
  %v2370 = vmul.f32 %v2330, %v2359
  %v2371 = vmul.f32 %v2330, %v2363
  %v2372 = vadd.f32 %v2320, %v2364
  %v2373 = vadd.f32 %v2321, %v2365
  %v2374 = vadd.f32 %v2322, %v2366
  %v2375 = vadd.f32 %v2323, %v2367
  %v2376 = vadd.f32 %v2324, %v2368
  %v2377 = vadd.f32 %v2325, %v2369
  %v2378 = vadd.f32 %v2326, %v2370
  %v2379 = vadd.f32 %v2327, %v2371
  %2380 = vset.pattern.permute.xlu0 14
  %2381 = vperm.xlu0 %2380, %v2274
  %v2382 = vpop.permute.xlu0 %2381
  %v2384 = vlaneseq
  %v2385 = vshrl.u32 %v2384, 7
  %v2386 = vsub.s32 2, %v2385
  %v2387 = vrot.slane %v2266, %v2386
  %v2388 = vlaneseq
  %v2389 = vshrl.u32 %v2388, 7
  %v2390 = vsub.s32 2, %v2389
  %v2391 = vrot.slane %v2267, %v2390
  %v2392 = vlaneseq
  %v2393 = vshrl.u32 %v2392, 7
  %v2394 = vsub.s32 2, %v2393
  %v2395 = vrot.slane %v2268, %v2394
  %v2396 = vlaneseq
  %v2397 = vshrl.u32 %v2396, 7
  %v2398 = vsub.s32 2, %v2397
  %v2399 = vrot.slane %v2269, %v2398
  %v2400 = vlaneseq
  %v2401 = vshrl.u32 %v2400, 7
  %v2402 = vsub.s32 2, %v2401
  %v2403 = vrot.slane %v2270, %v2402
  %v2404 = vlaneseq
  %v2405 = vshrl.u32 %v2404, 7
  %v2406 = vsub.s32 2, %v2405
  %v2407 = vrot.slane %v2271, %v2406
  %v2408 = vlaneseq
  %v2409 = vshrl.u32 %v2408, 7
  %v2410 = vsub.s32 2, %v2409
  %v2411 = vrot.slane %v2272, %v2410
  %v2412 = vlaneseq
  %v2413 = vshrl.u32 %v2412, 7
  %v2414 = vsub.s32 2, %v2413
  %v2415 = vrot.slane %v2273, %v2414
  %v2416 = vmul.f32 %v2382, %v2387
  %v2417 = vmul.f32 %v2382, %v2391
  %v2418 = vmul.f32 %v2382, %v2395
  %v2419 = vmul.f32 %v2382, %v2399
  %v2420 = vmul.f32 %v2382, %v2403
  %v2421 = vmul.f32 %v2382, %v2407
  %v2422 = vmul.f32 %v2382, %v2411
  %v2423 = vmul.f32 %v2382, %v2415
  %v2424 = vadd.f32 %v2372, %v2416
  %v2425 = vadd.f32 %v2373, %v2417
  %v2426 = vadd.f32 %v2374, %v2418
  %v2427 = vadd.f32 %v2375, %v2419
  %v2428 = vadd.f32 %v2376, %v2420
  %v2429 = vadd.f32 %v2377, %v2421
  %v2430 = vadd.f32 %v2378, %v2422
  %v2431 = vadd.f32 %v2379, %v2423
  %2432 = vset.pattern.permute.xlu0 15
  %2433 = vperm.xlu0 %2432, %v2274
  %v2434 = vpop.permute.xlu0 %2433
  %v2436 = vlaneseq
  %v2437 = vshrl.u32 %v2436, 7
  %v2438 = vsub.s32 3, %v2437
  %v2439 = vrot.slane %v2266, %v2438
  %v2440 = vlaneseq
  %v2441 = vshrl.u32 %v2440, 7
  %v2442 = vsub.s32 3, %v2441
  %v2443 = vrot.slane %v2267, %v2442
  %v2444 = vlaneseq
  %v2445 = vshrl.u32 %v2444, 7
  %v2446 = vsub.s32 3, %v2445
  %v2447 = vrot.slane %v2268, %v2446
  %v2448 = vlaneseq
  %v2449 = vshrl.u32 %v2448, 7
  %v2450 = vsub.s32 3, %v2449
  %v2451 = vrot.slane %v2269, %v2450
  %v2452 = vlaneseq
  %v2453 = vshrl.u32 %v2452, 7
  %v2454 = vsub.s32 3, %v2453
  %v2455 = vrot.slane %v2270, %v2454
  %v2456 = vlaneseq
  %v2457 = vshrl.u32 %v2456, 7
  %v2458 = vsub.s32 3, %v2457
  %v2459 = vrot.slane %v2271, %v2458
  %v2460 = vlaneseq
  %v2461 = vshrl.u32 %v2460, 7
  %v2462 = vsub.s32 3, %v2461
  %v2463 = vrot.slane %v2272, %v2462
  %v2464 = vlaneseq
  %v2465 = vshrl.u32 %v2464, 7
  %v2466 = vsub.s32 3, %v2465
  %v2467 = vrot.slane %v2273, %v2466
  %v2468 = vmul.f32 %v2434, %v2439
  %v2469 = vmul.f32 %v2434, %v2443
  %v2470 = vmul.f32 %v2434, %v2447
  %v2471 = vmul.f32 %v2434, %v2451
  %v2472 = vmul.f32 %v2434, %v2455
  %v2473 = vmul.f32 %v2434, %v2459
  %v2474 = vmul.f32 %v2434, %v2463
  %v2475 = vmul.f32 %v2434, %v2467
  %v2476 = vadd.f32 %v2424, %v2468
  %v2477 = vadd.f32 %v2425, %v2469
  %v2478 = vadd.f32 %v2426, %v2470
  %v2479 = vadd.f32 %v2427, %v2471
  %v2480 = vadd.f32 %v2428, %v2472
  %v2481 = vadd.f32 %v2429, %v2473
  %v2482 = vadd.f32 %v2430, %v2474
  %v2483 = vadd.f32 %v2431, %v2475
  %2484 = vset.pattern.permute.xlu0 48
  %2485 = vperm.xlu0 %2484, %v2274
  %v2486 = vpop.permute.xlu0 %2485
  %v2488 = vlaneseq
  %v2489 = vshrl.u32 %v2488, 7
  %v2490 = vsub.s32 0, %v2489
  %v2491 = vrot.slane %v2258, %v2490
  %v2492 = vlaneseq
  %v2493 = vshrl.u32 %v2492, 7
  %v2494 = vsub.s32 0, %v2493
  %v2495 = vrot.slane %v2259, %v2494
  %v2496 = vlaneseq
  %v2497 = vshrl.u32 %v2496, 7
  %v2498 = vsub.s32 0, %v2497
  %v2499 = vrot.slane %v2260, %v2498
  %v2500 = vlaneseq
  %v2501 = vshrl.u32 %v2500, 7
  %v2502 = vsub.s32 0, %v2501
  %v2503 = vrot.slane %v2261, %v2502
  %v2504 = vlaneseq
  %v2505 = vshrl.u32 %v2504, 7
  %v2506 = vsub.s32 0, %v2505
  %v2507 = vrot.slane %v2262, %v2506
  %v2508 = vlaneseq
  %v2509 = vshrl.u32 %v2508, 7
  %v2510 = vsub.s32 0, %v2509
  %v2511 = vrot.slane %v2263, %v2510
  %v2512 = vlaneseq
  %v2513 = vshrl.u32 %v2512, 7
  %v2514 = vsub.s32 0, %v2513
  %v2515 = vrot.slane %v2264, %v2514
  %v2516 = vlaneseq
  %v2517 = vshrl.u32 %v2516, 7
  %v2518 = vsub.s32 0, %v2517
  %v2519 = vrot.slane %v2265, %v2518
  %v2520 = vmul.f32 %v2486, %v2491
  %v2521 = vmul.f32 %v2486, %v2495
  %v2522 = vmul.f32 %v2486, %v2499
  %v2523 = vmul.f32 %v2486, %v2503
  %v2524 = vmul.f32 %v2486, %v2507
  %v2525 = vmul.f32 %v2486, %v2511
  %v2526 = vmul.f32 %v2486, %v2515
  %v2527 = vmul.f32 %v2486, %v2519
  %v2528 = vadd.f32 %v2476, %v2520
  %v2529 = vadd.f32 %v2477, %v2521
  %v2530 = vadd.f32 %v2478, %v2522
  %v2531 = vadd.f32 %v2479, %v2523
  %v2532 = vadd.f32 %v2480, %v2524
  %v2533 = vadd.f32 %v2481, %v2525
  %v2534 = vadd.f32 %v2482, %v2526
  %v2535 = vadd.f32 %v2483, %v2527
  %2536 = vset.pattern.permute.xlu0 49
  %2537 = vperm.xlu0 %2536, %v2274
  %v2538 = vpop.permute.xlu0 %2537
  %v2540 = vlaneseq
  %v2541 = vshrl.u32 %v2540, 7
  %v2542 = vsub.s32 1, %v2541
  %v2543 = vrot.slane %v2258, %v2542
  %v2544 = vlaneseq
  %v2545 = vshrl.u32 %v2544, 7
  %v2546 = vsub.s32 1, %v2545
  %v2547 = vrot.slane %v2259, %v2546
  %v2548 = vlaneseq
  %v2549 = vshrl.u32 %v2548, 7
  %v2550 = vsub.s32 1, %v2549
  %v2551 = vrot.slane %v2260, %v2550
  %v2552 = vlaneseq
  %v2553 = vshrl.u32 %v2552, 7
  %v2554 = vsub.s32 1, %v2553
  %v2555 = vrot.slane %v2261, %v2554
  %v2556 = vlaneseq
  %v2557 = vshrl.u32 %v2556, 7
  %v2558 = vsub.s32 1, %v2557
  %v2559 = vrot.slane %v2262, %v2558
  %v2560 = vlaneseq
  %v2561 = vshrl.u32 %v2560, 7
  %v2562 = vsub.s32 1, %v2561
  %v2563 = vrot.slane %v2263, %v2562
  %v2564 = vlaneseq
  %v2565 = vshrl.u32 %v2564, 7
  %v2566 = vsub.s32 1, %v2565
  %v2567 = vrot.slane %v2264, %v2566
  %v2568 = vlaneseq
  %v2569 = vshrl.u32 %v2568, 7
  %v2570 = vsub.s32 1, %v2569
  %v2571 = vrot.slane %v2265, %v2570
  %v2572 = vmul.f32 %v2538, %v2543
  %v2573 = vmul.f32 %v2538, %v2547
  %v2574 = vmul.f32 %v2538, %v2551
  %v2575 = vmul.f32 %v2538, %v2555
  %v2576 = vmul.f32 %v2538, %v2559
  %v2577 = vmul.f32 %v2538, %v2563
  %v2578 = vmul.f32 %v2538, %v2567
  %v2579 = vmul.f32 %v2538, %v2571
  %v2580 = vadd.f32 %v2528, %v2572
  %v2581 = vadd.f32 %v2529, %v2573
  %v2582 = vadd.f32 %v2530, %v2574
  %v2583 = vadd.f32 %v2531, %v2575
  %v2584 = vadd.f32 %v2532, %v2576
  %v2585 = vadd.f32 %v2533, %v2577
  %v2586 = vadd.f32 %v2534, %v2578
  %v2587 = vadd.f32 %v2535, %v2579
  %2588 = vset.pattern.permute.xlu0 50
  %2589 = vperm.xlu0 %2588, %v2274
  %v2590 = vpop.permute.xlu0 %2589
  %v2592 = vlaneseq
  %v2593 = vshrl.u32 %v2592, 7
  %v2594 = vsub.s32 2, %v2593
  %v2595 = vrot.slane %v2258, %v2594
  %v2596 = vlaneseq
  %v2597 = vshrl.u32 %v2596, 7
  %v2598 = vsub.s32 2, %v2597
  %v2599 = vrot.slane %v2259, %v2598
  %v2600 = vlaneseq
  %v2601 = vshrl.u32 %v2600, 7
  %v2602 = vsub.s32 2, %v2601
  %v2603 = vrot.slane %v2260, %v2602
  %v2604 = vlaneseq
  %v2605 = vshrl.u32 %v2604, 7
  %v2606 = vsub.s32 2, %v2605
  %v2607 = vrot.slane %v2261, %v2606
  %v2608 = vlaneseq
  %v2609 = vshrl.u32 %v2608, 7
  %v2610 = vsub.s32 2, %v2609
  %v2611 = vrot.slane %v2262, %v2610
  %v2612 = vlaneseq
  %v2613 = vshrl.u32 %v2612, 7
  %v2614 = vsub.s32 2, %v2613
  %v2615 = vrot.slane %v2263, %v2614
  %v2616 = vlaneseq
  %v2617 = vshrl.u32 %v2616, 7
  %v2618 = vsub.s32 2, %v2617
  %v2619 = vrot.slane %v2264, %v2618
  %v2620 = vlaneseq
  %v2621 = vshrl.u32 %v2620, 7
  %v2622 = vsub.s32 2, %v2621
  %v2623 = vrot.slane %v2265, %v2622
  %v2624 = vmul.f32 %v2590, %v2595
  %v2625 = vmul.f32 %v2590, %v2599
  %v2626 = vmul.f32 %v2590, %v2603
  %v2627 = vmul.f32 %v2590, %v2607
  %v2628 = vmul.f32 %v2590, %v2611
  %v2629 = vmul.f32 %v2590, %v2615
  %v2630 = vmul.f32 %v2590, %v2619
  %v2631 = vmul.f32 %v2590, %v2623
  %v2632 = vadd.f32 %v2580, %v2624
  %v2633 = vadd.f32 %v2581, %v2625
  %v2634 = vadd.f32 %v2582, %v2626
  %v2635 = vadd.f32 %v2583, %v2627
  %v2636 = vadd.f32 %v2584, %v2628
  %v2637 = vadd.f32 %v2585, %v2629
  %v2638 = vadd.f32 %v2586, %v2630
  %v2639 = vadd.f32 %v2587, %v2631
  %2640 = vset.pattern.permute.xlu0 51
  %2641 = vperm.xlu0 %2640, %v2274
  %v2642 = vpop.permute.xlu0 %2641
  %v2644 = vlaneseq
  %v2645 = vshrl.u32 %v2644, 7
  %v2646 = vsub.s32 3, %v2645
  %v2647 = vrot.slane %v2258, %v2646
  %v2648 = vlaneseq
  %v2649 = vshrl.u32 %v2648, 7
  %v2650 = vsub.s32 3, %v2649
  %v2651 = vrot.slane %v2259, %v2650
  %v2652 = vlaneseq
  %v2653 = vshrl.u32 %v2652, 7
  %v2654 = vsub.s32 3, %v2653
  %v2655 = vrot.slane %v2260, %v2654
  %v2656 = vlaneseq
  %v2657 = vshrl.u32 %v2656, 7
  %v2658 = vsub.s32 3, %v2657
  %v2659 = vrot.slane %v2261, %v2658
  %v2660 = vlaneseq
  %v2661 = vshrl.u32 %v2660, 7
  %v2662 = vsub.s32 3, %v2661
  %v2663 = vrot.slane %v2262, %v2662
  %v2664 = vlaneseq
  %v2665 = vshrl.u32 %v2664, 7
  %v2666 = vsub.s32 3, %v2665
  %v2667 = vrot.slane %v2263, %v2666
  %v2668 = vlaneseq
  %v2669 = vshrl.u32 %v2668, 7
  %v2670 = vsub.s32 3, %v2669
  %v2671 = vrot.slane %v2264, %v2670
  %v2672 = vlaneseq
  %v2673 = vshrl.u32 %v2672, 7
  %v2674 = vsub.s32 3, %v2673
  %v2675 = vrot.slane %v2265, %v2674
  %v2676 = vmul.f32 %v2642, %v2647
  %v2677 = vmul.f32 %v2642, %v2651
  %v2678 = vmul.f32 %v2642, %v2655
  %v2679 = vmul.f32 %v2642, %v2659
  %v2680 = vmul.f32 %v2642, %v2663
  %v2681 = vmul.f32 %v2642, %v2667
  %v2682 = vmul.f32 %v2642, %v2671
  %v2683 = vmul.f32 %v2642, %v2675
  %v2684 = vadd.f32 %v2632, %v2676
  %v2685 = vadd.f32 %v2633, %v2677
  %v2686 = vadd.f32 %v2634, %v2678
  %v2687 = vadd.f32 %v2635, %v2679
  %v2688 = vadd.f32 %v2636, %v2680
  %v2689 = vadd.f32 %v2637, %v2681
  %v2690 = vadd.f32 %v2638, %v2682
  %v2691 = vadd.f32 %v2639, %v2683
  %v2692 = vmul.f32 %v2259, %v551
  %v2693 = vmul.f32 %v2260, %v555
  %v2694 = vmul.f32 %v2261, %v559
  %v2695 = vmul.f32 %v2258, %v563
  %v2696 = vmul.f32 %v2263, %v551
  %v2697 = vmul.f32 %v2264, %v555
  %v2698 = vmul.f32 %v2265, %v559
  %v2699 = vmul.f32 %v2262, %v563
  %2700 = vset.pattern.permute.xlu0 84
  %2701 = vperm.xlu0 %2700, %v2274
  %v2702 = vpop.permute.xlu0 %2701
  %v2704 = vlaneseq
  %v2705 = vshrl.u32 %v2704, 7
  %v2706 = vsub.s32 0, %v2705
  %v2707 = vrot.slane %v2692, %v2706
  %v2708 = vlaneseq
  %v2709 = vshrl.u32 %v2708, 7
  %v2710 = vsub.s32 0, %v2709
  %v2711 = vrot.slane %v2693, %v2710
  %v2712 = vlaneseq
  %v2713 = vshrl.u32 %v2712, 7
  %v2714 = vsub.s32 0, %v2713
  %v2715 = vrot.slane %v2694, %v2714
  %v2716 = vlaneseq
  %v2717 = vshrl.u32 %v2716, 7
  %v2718 = vsub.s32 0, %v2717
  %v2719 = vrot.slane %v2695, %v2718
  %v2720 = vlaneseq
  %v2721 = vshrl.u32 %v2720, 7
  %v2722 = vsub.s32 0, %v2721
  %v2723 = vrot.slane %v2696, %v2722
  %v2724 = vlaneseq
  %v2725 = vshrl.u32 %v2724, 7
  %v2726 = vsub.s32 0, %v2725
  %v2727 = vrot.slane %v2697, %v2726
  %v2728 = vlaneseq
  %v2729 = vshrl.u32 %v2728, 7
  %v2730 = vsub.s32 0, %v2729
  %v2731 = vrot.slane %v2698, %v2730
  %v2732 = vlaneseq
  %v2733 = vshrl.u32 %v2732, 7
  %v2734 = vsub.s32 0, %v2733
  %v2735 = vrot.slane %v2699, %v2734
  %v2736 = vmul.f32 %v2702, %v2707
  %v2737 = vmul.f32 %v2702, %v2711
  %v2738 = vmul.f32 %v2702, %v2715
  %v2739 = vmul.f32 %v2702, %v2719
  %v2740 = vmul.f32 %v2702, %v2723
  %v2741 = vmul.f32 %v2702, %v2727
  %v2742 = vmul.f32 %v2702, %v2731
  %v2743 = vmul.f32 %v2702, %v2735
  %v2744 = vadd.f32 %v2684, %v2736
  %v2745 = vadd.f32 %v2685, %v2737
  %v2746 = vadd.f32 %v2686, %v2738
  %v2747 = vadd.f32 %v2687, %v2739
  %v2748 = vadd.f32 %v2688, %v2740
  %v2749 = vadd.f32 %v2689, %v2741
  %v2750 = vadd.f32 %v2690, %v2742
  %v2751 = vadd.f32 %v2691, %v2743
  %2752 = vset.pattern.permute.xlu0 85
  %2753 = vperm.xlu0 %2752, %v2274
  %v2754 = vpop.permute.xlu0 %2753
  %v2756 = vlaneseq
  %v2757 = vshrl.u32 %v2756, 7
  %v2758 = vsub.s32 1, %v2757
  %v2759 = vrot.slane %v2692, %v2758
  %v2760 = vlaneseq
  %v2761 = vshrl.u32 %v2760, 7
  %v2762 = vsub.s32 1, %v2761
  %v2763 = vrot.slane %v2693, %v2762
  %v2764 = vlaneseq
  %v2765 = vshrl.u32 %v2764, 7
  %v2766 = vsub.s32 1, %v2765
  %v2767 = vrot.slane %v2694, %v2766
  %v2768 = vlaneseq
  %v2769 = vshrl.u32 %v2768, 7
  %v2770 = vsub.s32 1, %v2769
  %v2771 = vrot.slane %v2695, %v2770
  %v2772 = vlaneseq
  %v2773 = vshrl.u32 %v2772, 7
  %v2774 = vsub.s32 1, %v2773
  %v2775 = vrot.slane %v2696, %v2774
  %v2776 = vlaneseq
  %v2777 = vshrl.u32 %v2776, 7
  %v2778 = vsub.s32 1, %v2777
  %v2779 = vrot.slane %v2697, %v2778
  %v2780 = vlaneseq
  %v2781 = vshrl.u32 %v2780, 7
  %v2782 = vsub.s32 1, %v2781
  %v2783 = vrot.slane %v2698, %v2782
  %v2784 = vlaneseq
  %v2785 = vshrl.u32 %v2784, 7
  %v2786 = vsub.s32 1, %v2785
  %v2787 = vrot.slane %v2699, %v2786
  %v2788 = vmul.f32 %v2754, %v2759
  %v2789 = vmul.f32 %v2754, %v2763
  %v2790 = vmul.f32 %v2754, %v2767
  %v2791 = vmul.f32 %v2754, %v2771
  %v2792 = vmul.f32 %v2754, %v2775
  %v2793 = vmul.f32 %v2754, %v2779
  %v2794 = vmul.f32 %v2754, %v2783
  %v2795 = vmul.f32 %v2754, %v2787
  %v2796 = vadd.f32 %v2744, %v2788
  %v2797 = vadd.f32 %v2745, %v2789
  %v2798 = vadd.f32 %v2746, %v2790
  %v2799 = vadd.f32 %v2747, %v2791
  %v2800 = vadd.f32 %v2748, %v2792
  %v2801 = vadd.f32 %v2749, %v2793
  %v2802 = vadd.f32 %v2750, %v2794
  %v2803 = vadd.f32 %v2751, %v2795
  %2804 = vset.pattern.permute.xlu0 86
  %2805 = vperm.xlu0 %2804, %v2274
  %v2806 = vpop.permute.xlu0 %2805
  %v2808 = vlaneseq
  %v2809 = vshrl.u32 %v2808, 7
  %v2810 = vsub.s32 2, %v2809
  %v2811 = vrot.slane %v2692, %v2810
  %v2812 = vlaneseq
  %v2813 = vshrl.u32 %v2812, 7
  %v2814 = vsub.s32 2, %v2813
  %v2815 = vrot.slane %v2693, %v2814
  %v2816 = vlaneseq
  %v2817 = vshrl.u32 %v2816, 7
  %v2818 = vsub.s32 2, %v2817
  %v2819 = vrot.slane %v2694, %v2818
  %v2820 = vlaneseq
  %v2821 = vshrl.u32 %v2820, 7
  %v2822 = vsub.s32 2, %v2821
  %v2823 = vrot.slane %v2695, %v2822
  %v2824 = vlaneseq
  %v2825 = vshrl.u32 %v2824, 7
  %v2826 = vsub.s32 2, %v2825
  %v2827 = vrot.slane %v2696, %v2826
  %v2828 = vlaneseq
  %v2829 = vshrl.u32 %v2828, 7
  %v2830 = vsub.s32 2, %v2829
  %v2831 = vrot.slane %v2697, %v2830
  %v2832 = vlaneseq
  %v2833 = vshrl.u32 %v2832, 7
  %v2834 = vsub.s32 2, %v2833
  %v2835 = vrot.slane %v2698, %v2834
  %v2836 = vlaneseq
  %v2837 = vshrl.u32 %v2836, 7
  %v2838 = vsub.s32 2, %v2837
  %v2839 = vrot.slane %v2699, %v2838
  %v2840 = vmul.f32 %v2806, %v2811
  %v2841 = vmul.f32 %v2806, %v2815
  %v2842 = vmul.f32 %v2806, %v2819
  %v2843 = vmul.f32 %v2806, %v2823
  %v2844 = vmul.f32 %v2806, %v2827
  %v2845 = vmul.f32 %v2806, %v2831
  %v2846 = vmul.f32 %v2806, %v2835
  %v2847 = vmul.f32 %v2806, %v2839
  %v2848 = vadd.f32 %v2796, %v2840
  %v2849 = vadd.f32 %v2797, %v2841
  %v2850 = vadd.f32 %v2798, %v2842
  %v2851 = vadd.f32 %v2799, %v2843
  %v2852 = vadd.f32 %v2800, %v2844
  %v2853 = vadd.f32 %v2801, %v2845
  %v2854 = vadd.f32 %v2802, %v2846
  %v2855 = vadd.f32 %v2803, %v2847
  %2856 = vset.pattern.permute.xlu0 87
  %2857 = vperm.xlu0 %2856, %v2274
  %v2858 = vpop.permute.xlu0 %2857
  %v2860 = vlaneseq
  %v2861 = vshrl.u32 %v2860, 7
  %v2862 = vsub.s32 3, %v2861
  %v2863 = vrot.slane %v2692, %v2862
  %v2864 = vlaneseq
  %v2865 = vshrl.u32 %v2864, 7
  %v2866 = vsub.s32 3, %v2865
  %v2867 = vrot.slane %v2693, %v2866
  %v2868 = vlaneseq
  %v2869 = vshrl.u32 %v2868, 7
  %v2870 = vsub.s32 3, %v2869
  %v2871 = vrot.slane %v2694, %v2870
  %v2872 = vlaneseq
  %v2873 = vshrl.u32 %v2872, 7
  %v2874 = vsub.s32 3, %v2873
  %v2875 = vrot.slane %v2695, %v2874
  %v2876 = vlaneseq
  %v2877 = vshrl.u32 %v2876, 7
  %v2878 = vsub.s32 3, %v2877
  %v2879 = vrot.slane %v2696, %v2878
  %v2880 = vlaneseq
  %v2881 = vshrl.u32 %v2880, 7
  %v2882 = vsub.s32 3, %v2881
  %v2883 = vrot.slane %v2697, %v2882
  %v2884 = vlaneseq
  %v2885 = vshrl.u32 %v2884, 7
  %v2886 = vsub.s32 3, %v2885
  %v2887 = vrot.slane %v2698, %v2886
  %v2888 = vlaneseq
  %v2889 = vshrl.u32 %v2888, 7
  %v2890 = vsub.s32 3, %v2889
  %v2891 = vrot.slane %v2699, %v2890
  %v2892 = vmul.f32 %v2858, %v2863
  %v2893 = vmul.f32 %v2858, %v2867
  %v2894 = vmul.f32 %v2858, %v2871
  %v2895 = vmul.f32 %v2858, %v2875
  %v2896 = vmul.f32 %v2858, %v2879
  %v2897 = vmul.f32 %v2858, %v2883
  %v2898 = vmul.f32 %v2858, %v2887
  %v2899 = vmul.f32 %v2858, %v2891
  %v2900 = vadd.f32 %v2848, %v2892
  %v2901 = vadd.f32 %v2849, %v2893
  %v2902 = vadd.f32 %v2850, %v2894
  %v2903 = vadd.f32 %v2851, %v2895
  %v2904 = vadd.f32 %v2852, %v2896
  %v2905 = vadd.f32 %v2853, %v2897
  %v2906 = vadd.f32 %v2854, %v2898
  %v2907 = vadd.f32 %v2855, %v2899
  %v2912 = vmul.f32 %v26, %v102
  %v2913 = vmul.f32 %v20, %v106
  %v2914 = vmul.f32 %v36, %v110
  %v2915 = vmul.f32 %v21, %v114
  %v2916 = vmul.f32 %v27, %v102
  %v2917 = vmul.f32 %v22, %v106
  %v2918 = vmul.f32 %v37, %v110
  %v2919 = vmul.f32 %v23, %v114
  %v2920 = vld [vmem:[%s3] sm:$0xf]
  %2922 = vset.pattern.permute.xlu0 16
  %2923 = vperm.xlu0 %2922, %v2920
  %v2924 = vpop.permute.xlu0 %2923
  %v2926 = vlaneseq
  %v2927 = vshrl.u32 %v2926, 7
  %v2928 = vsub.s32 0, %v2927
  %v2929 = vrot.slane %v2912, %v2928
  %v2930 = vlaneseq
  %v2931 = vshrl.u32 %v2930, 7
  %v2932 = vsub.s32 0, %v2931
  %v2933 = vrot.slane %v2913, %v2932
  %v2934 = vlaneseq
  %v2935 = vshrl.u32 %v2934, 7
  %v2936 = vsub.s32 0, %v2935
  %v2937 = vrot.slane %v2914, %v2936
  %v2938 = vlaneseq
  %v2939 = vshrl.u32 %v2938, 7
  %v2940 = vsub.s32 0, %v2939
  %v2941 = vrot.slane %v2915, %v2940
  %v2942 = vlaneseq
  %v2943 = vshrl.u32 %v2942, 7
  %v2944 = vsub.s32 0, %v2943
  %v2945 = vrot.slane %v2916, %v2944
  %v2946 = vlaneseq
  %v2947 = vshrl.u32 %v2946, 7
  %v2948 = vsub.s32 0, %v2947
  %v2949 = vrot.slane %v2917, %v2948
  %v2950 = vlaneseq
  %v2951 = vshrl.u32 %v2950, 7
  %v2952 = vsub.s32 0, %v2951
  %v2953 = vrot.slane %v2918, %v2952
  %v2954 = vlaneseq
  %v2955 = vshrl.u32 %v2954, 7
  %v2956 = vsub.s32 0, %v2955
  %v2957 = vrot.slane %v2919, %v2956
  %v2958 = vmul.f32 %v2924, %v2929
  %v2959 = vmul.f32 %v2924, %v2933
  %v2960 = vmul.f32 %v2924, %v2937
  %v2961 = vmul.f32 %v2924, %v2941
  %v2962 = vmul.f32 %v2924, %v2945
  %v2963 = vmul.f32 %v2924, %v2949
  %v2964 = vmul.f32 %v2924, %v2953
  %v2965 = vmul.f32 %v2924, %v2957
  %v2966 = vadd.f32 %v2900, %v2958
  %v2967 = vadd.f32 %v2901, %v2959
  %v2968 = vadd.f32 %v2902, %v2960
  %v2969 = vadd.f32 %v2903, %v2961
  %v2970 = vadd.f32 %v2904, %v2962
  %v2971 = vadd.f32 %v2905, %v2963
  %v2972 = vadd.f32 %v2906, %v2964
  %v2973 = vadd.f32 %v2907, %v2965
  %2974 = vset.pattern.permute.xlu0 17
  %2975 = vperm.xlu0 %2974, %v2920
  %v2976 = vpop.permute.xlu0 %2975
  %v2978 = vlaneseq
  %v2979 = vshrl.u32 %v2978, 7
  %v2980 = vsub.s32 1, %v2979
  %v2981 = vrot.slane %v2912, %v2980
  %v2982 = vlaneseq
  %v2983 = vshrl.u32 %v2982, 7
  %v2984 = vsub.s32 1, %v2983
  %v2985 = vrot.slane %v2913, %v2984
  %v2986 = vlaneseq
  %v2987 = vshrl.u32 %v2986, 7
  %v2988 = vsub.s32 1, %v2987
  %v2989 = vrot.slane %v2914, %v2988
  %v2990 = vlaneseq
  %v2991 = vshrl.u32 %v2990, 7
  %v2992 = vsub.s32 1, %v2991
  %v2993 = vrot.slane %v2915, %v2992
  %v2994 = vlaneseq
  %v2995 = vshrl.u32 %v2994, 7
  %v2996 = vsub.s32 1, %v2995
  %v2997 = vrot.slane %v2916, %v2996
  %v2998 = vlaneseq
  %v2999 = vshrl.u32 %v2998, 7
  %v3000 = vsub.s32 1, %v2999
  %v3001 = vrot.slane %v2917, %v3000
  %v3002 = vlaneseq
  %v3003 = vshrl.u32 %v3002, 7
  %v3004 = vsub.s32 1, %v3003
  %v3005 = vrot.slane %v2918, %v3004
  %v3006 = vlaneseq
  %v3007 = vshrl.u32 %v3006, 7
  %v3008 = vsub.s32 1, %v3007
  %v3009 = vrot.slane %v2919, %v3008
  %v3010 = vmul.f32 %v2976, %v2981
  %v3011 = vmul.f32 %v2976, %v2985
  %v3012 = vmul.f32 %v2976, %v2989
  %v3013 = vmul.f32 %v2976, %v2993
  %v3014 = vmul.f32 %v2976, %v2997
  %v3015 = vmul.f32 %v2976, %v3001
  %v3016 = vmul.f32 %v2976, %v3005
  %v3017 = vmul.f32 %v2976, %v3009
  %v3018 = vadd.f32 %v2966, %v3010
  %v3019 = vadd.f32 %v2967, %v3011
  %v3020 = vadd.f32 %v2968, %v3012
  %v3021 = vadd.f32 %v2969, %v3013
  %v3022 = vadd.f32 %v2970, %v3014
  %v3023 = vadd.f32 %v2971, %v3015
  %v3024 = vadd.f32 %v2972, %v3016
  %v3025 = vadd.f32 %v2973, %v3017
  %3026 = vset.pattern.permute.xlu0 18
  %3027 = vperm.xlu0 %3026, %v2920
  %v3028 = vpop.permute.xlu0 %3027
  %v3030 = vlaneseq
  %v3031 = vshrl.u32 %v3030, 7
  %v3032 = vsub.s32 2, %v3031
  %v3033 = vrot.slane %v2912, %v3032
  %v3034 = vlaneseq
  %v3035 = vshrl.u32 %v3034, 7
  %v3036 = vsub.s32 2, %v3035
  %v3037 = vrot.slane %v2913, %v3036
  %v3038 = vlaneseq
  %v3039 = vshrl.u32 %v3038, 7
  %v3040 = vsub.s32 2, %v3039
  %v3041 = vrot.slane %v2914, %v3040
  %v3042 = vlaneseq
  %v3043 = vshrl.u32 %v3042, 7
  %v3044 = vsub.s32 2, %v3043
  %v3045 = vrot.slane %v2915, %v3044
  %v3046 = vlaneseq
  %v3047 = vshrl.u32 %v3046, 7
  %v3048 = vsub.s32 2, %v3047
  %v3049 = vrot.slane %v2916, %v3048
  %v3050 = vlaneseq
  %v3051 = vshrl.u32 %v3050, 7
  %v3052 = vsub.s32 2, %v3051
  %v3053 = vrot.slane %v2917, %v3052
  %v3054 = vlaneseq
  %v3055 = vshrl.u32 %v3054, 7
  %v3056 = vsub.s32 2, %v3055
  %v3057 = vrot.slane %v2918, %v3056
  %v3058 = vlaneseq
  %v3059 = vshrl.u32 %v3058, 7
  %v3060 = vsub.s32 2, %v3059
  %v3061 = vrot.slane %v2919, %v3060
  %v3062 = vmul.f32 %v3028, %v3033
  %v3063 = vmul.f32 %v3028, %v3037
  %v3064 = vmul.f32 %v3028, %v3041
  %v3065 = vmul.f32 %v3028, %v3045
  %v3066 = vmul.f32 %v3028, %v3049
  %v3067 = vmul.f32 %v3028, %v3053
  %v3068 = vmul.f32 %v3028, %v3057
  %v3069 = vmul.f32 %v3028, %v3061
  %v3070 = vadd.f32 %v3018, %v3062
  %v3071 = vadd.f32 %v3019, %v3063
  %v3072 = vadd.f32 %v3020, %v3064
  %v3073 = vadd.f32 %v3021, %v3065
  %v3074 = vadd.f32 %v3022, %v3066
  %v3075 = vadd.f32 %v3023, %v3067
  %v3076 = vadd.f32 %v3024, %v3068
  %v3077 = vadd.f32 %v3025, %v3069
  %3078 = vset.pattern.permute.xlu0 19
  %3079 = vperm.xlu0 %3078, %v2920
  %v3080 = vpop.permute.xlu0 %3079
  %v3082 = vlaneseq
  %v3083 = vshrl.u32 %v3082, 7
  %v3084 = vsub.s32 3, %v3083
  %v3085 = vrot.slane %v2912, %v3084
  %v3086 = vlaneseq
  %v3087 = vshrl.u32 %v3086, 7
  %v3088 = vsub.s32 3, %v3087
  %v3089 = vrot.slane %v2913, %v3088
  %v3090 = vlaneseq
  %v3091 = vshrl.u32 %v3090, 7
  %v3092 = vsub.s32 3, %v3091
  %v3093 = vrot.slane %v2914, %v3092
  %v3094 = vlaneseq
  %v3095 = vshrl.u32 %v3094, 7
  %v3096 = vsub.s32 3, %v3095
  %v3097 = vrot.slane %v2915, %v3096
  %v3098 = vlaneseq
  %v3099 = vshrl.u32 %v3098, 7
  %v3100 = vsub.s32 3, %v3099
  %v3101 = vrot.slane %v2916, %v3100
  %v3102 = vlaneseq
  %v3103 = vshrl.u32 %v3102, 7
  %v3104 = vsub.s32 3, %v3103
  %v3105 = vrot.slane %v2917, %v3104
  %v3106 = vlaneseq
  %v3107 = vshrl.u32 %v3106, 7
  %v3108 = vsub.s32 3, %v3107
  %v3109 = vrot.slane %v2918, %v3108
  %v3110 = vlaneseq
  %v3111 = vshrl.u32 %v3110, 7
  %v3112 = vsub.s32 3, %v3111
  %v3113 = vrot.slane %v2919, %v3112
  %v3114 = vmul.f32 %v3080, %v3085
  %v3115 = vmul.f32 %v3080, %v3089
  %v3116 = vmul.f32 %v3080, %v3093
  %v3117 = vmul.f32 %v3080, %v3097
  %v3118 = vmul.f32 %v3080, %v3101
  %v3119 = vmul.f32 %v3080, %v3105
  %v3120 = vmul.f32 %v3080, %v3109
  %v3121 = vmul.f32 %v3080, %v3113
  %v3122 = vadd.f32 %v3070, %v3114
  %v3123 = vadd.f32 %v3071, %v3115
  %v3124 = vadd.f32 %v3072, %v3116
  %v3125 = vadd.f32 %v3073, %v3117
  %v3126 = vadd.f32 %v3074, %v3118
  %v3127 = vadd.f32 %v3075, %v3119
  %v3128 = vadd.f32 %v3076, %v3120
  %v3129 = vadd.f32 %v3077, %v3121
  %3130 = vset.pattern.permute.xlu0 52
  %3131 = vperm.xlu0 %3130, %v2920
  %v3132 = vpop.permute.xlu0 %3131
  %v3134 = vlaneseq
  %v3135 = vshrl.u32 %v3134, 7
  %v3136 = vsub.s32 0, %v3135
  %v3137 = vrot.slane %v20, %v3136
  %v3138 = vlaneseq
  %v3139 = vshrl.u32 %v3138, 7
  %v3140 = vsub.s32 4, %v3139
  %v3141 = vrot.slane %v20, %v3140
  %v3142 = vlaneseq
  %v3143 = vshrl.u32 %v3142, 7
  %v3144 = vsub.s32 0, %v3143
  %v3145 = vrot.slane %v21, %v3144
  %v3146 = vlaneseq
  %v3147 = vshrl.u32 %v3146, 7
  %v3148 = vsub.s32 4, %v3147
  %v3149 = vrot.slane %v21, %v3148
  %v3150 = vlaneseq
  %v3151 = vshrl.u32 %v3150, 7
  %v3152 = vsub.s32 0, %v3151
  %v3153 = vrot.slane %v22, %v3152
  %v3154 = vlaneseq
  %v3155 = vshrl.u32 %v3154, 7
  %v3156 = vsub.s32 4, %v3155
  %v3157 = vrot.slane %v22, %v3156
  %v3158 = vlaneseq
  %v3159 = vshrl.u32 %v3158, 7
  %v3160 = vsub.s32 0, %v3159
  %v3161 = vrot.slane %v23, %v3160
  %v3162 = vlaneseq
  %v3163 = vshrl.u32 %v3162, 7
  %v3164 = vsub.s32 4, %v3163
  %v3165 = vrot.slane %v23, %v3164
  %v3174 = vlaneseq
  %v3175 = vshrl.u32 %v3174, 7
  %v3176 = vsub.s32 0, %v3175
  %v3177 = vrot.slane %v3137, %v3176
  %v3178 = vlaneseq
  %v3179 = vshrl.u32 %v3178, 7
  %v3180 = vsub.s32 0, %v3179
  %v3181 = vrot.slane %v3141, %v3180
  %v3182 = vlaneseq
  %v3183 = vshrl.u32 %v3182, 7
  %v3184 = vsub.s32 0, %v3183
  %v3185 = vrot.slane %v3145, %v3184
  %v3186 = vlaneseq
  %v3187 = vshrl.u32 %v3186, 7
  %v3188 = vsub.s32 0, %v3187
  %v3189 = vrot.slane %v3149, %v3188
  %v3190 = vlaneseq
  %v3191 = vshrl.u32 %v3190, 7
  %v3192 = vsub.s32 0, %v3191
  %v3193 = vrot.slane %v3153, %v3192
  %v3194 = vlaneseq
  %v3195 = vshrl.u32 %v3194, 7
  %v3196 = vsub.s32 0, %v3195
  %v3197 = vrot.slane %v3157, %v3196
  %v3198 = vlaneseq
  %v3199 = vshrl.u32 %v3198, 7
  %v3200 = vsub.s32 0, %v3199
  %v3201 = vrot.slane %v3161, %v3200
  %v3202 = vlaneseq
  %v3203 = vshrl.u32 %v3202, 7
  %v3204 = vsub.s32 0, %v3203
  %v3205 = vrot.slane %v3165, %v3204
  %v3206 = vmul.f32 %v3132, %v3177
  %v3207 = vmul.f32 %v3132, %v3181
  %v3208 = vmul.f32 %v3132, %v3185
  %v3209 = vmul.f32 %v3132, %v3189
  %v3210 = vmul.f32 %v3132, %v3193
  %v3211 = vmul.f32 %v3132, %v3197
  %v3212 = vmul.f32 %v3132, %v3201
  %v3213 = vmul.f32 %v3132, %v3205
  %v3214 = vadd.f32 %v3122, %v3206
  %v3215 = vadd.f32 %v3123, %v3207
  %v3216 = vadd.f32 %v3124, %v3208
  %v3217 = vadd.f32 %v3125, %v3209
  %v3218 = vadd.f32 %v3126, %v3210
  %v3219 = vadd.f32 %v3127, %v3211
  %v3220 = vadd.f32 %v3128, %v3212
  %v3221 = vadd.f32 %v3129, %v3213
  %3222 = vset.pattern.permute.xlu0 53
  %3223 = vperm.xlu0 %3222, %v2920
  %v3224 = vpop.permute.xlu0 %3223
  %v3226 = vlaneseq
  %v3227 = vshrl.u32 %v3226, 7
  %v3228 = vsub.s32 1, %v3227
  %v3229 = vrot.slane %v20, %v3228
  %v3230 = vlaneseq
  %v3231 = vshrl.u32 %v3230, 7
  %v3232 = vsub.s32 5, %v3231
  %v3233 = vrot.slane %v20, %v3232
  %v3234 = vlaneseq
  %v3235 = vshrl.u32 %v3234, 7
  %v3236 = vsub.s32 1, %v3235
  %v3237 = vrot.slane %v21, %v3236
  %v3238 = vlaneseq
  %v3239 = vshrl.u32 %v3238, 7
  %v3240 = vsub.s32 5, %v3239
  %v3241 = vrot.slane %v21, %v3240
  %v3242 = vlaneseq
  %v3243 = vshrl.u32 %v3242, 7
  %v3244 = vsub.s32 1, %v3243
  %v3245 = vrot.slane %v22, %v3244
  %v3246 = vlaneseq
  %v3247 = vshrl.u32 %v3246, 7
  %v3248 = vsub.s32 5, %v3247
  %v3249 = vrot.slane %v22, %v3248
  %v3250 = vlaneseq
  %v3251 = vshrl.u32 %v3250, 7
  %v3252 = vsub.s32 1, %v3251
  %v3253 = vrot.slane %v23, %v3252
  %v3254 = vlaneseq
  %v3255 = vshrl.u32 %v3254, 7
  %v3256 = vsub.s32 5, %v3255
  %v3257 = vrot.slane %v23, %v3256
  %v3266 = vlaneseq
  %v3267 = vshrl.u32 %v3266, 7
  %v3268 = vsub.s32 1, %v3267
  %v3269 = vrot.slane %v3229, %v3268
  %v3270 = vlaneseq
  %v3271 = vshrl.u32 %v3270, 7
  %v3272 = vsub.s32 1, %v3271
  %v3273 = vrot.slane %v3233, %v3272
  %v3274 = vlaneseq
  %v3275 = vshrl.u32 %v3274, 7
  %v3276 = vsub.s32 1, %v3275
  %v3277 = vrot.slane %v3237, %v3276
  %v3278 = vlaneseq
  %v3279 = vshrl.u32 %v3278, 7
  %v3280 = vsub.s32 1, %v3279
  %v3281 = vrot.slane %v3241, %v3280
  %v3282 = vlaneseq
  %v3283 = vshrl.u32 %v3282, 7
  %v3284 = vsub.s32 1, %v3283
  %v3285 = vrot.slane %v3245, %v3284
  %v3286 = vlaneseq
  %v3287 = vshrl.u32 %v3286, 7
  %v3288 = vsub.s32 1, %v3287
  %v3289 = vrot.slane %v3249, %v3288
  %v3290 = vlaneseq
  %v3291 = vshrl.u32 %v3290, 7
  %v3292 = vsub.s32 1, %v3291
  %v3293 = vrot.slane %v3253, %v3292
  %v3294 = vlaneseq
  %v3295 = vshrl.u32 %v3294, 7
  %v3296 = vsub.s32 1, %v3295
  %v3297 = vrot.slane %v3257, %v3296
  %v3298 = vmul.f32 %v3224, %v3269
  %v3299 = vmul.f32 %v3224, %v3273
  %v3300 = vmul.f32 %v3224, %v3277
  %v3301 = vmul.f32 %v3224, %v3281
  %v3302 = vmul.f32 %v3224, %v3285
  %v3303 = vmul.f32 %v3224, %v3289
  %v3304 = vmul.f32 %v3224, %v3293
  %v3305 = vmul.f32 %v3224, %v3297
  %v3306 = vadd.f32 %v3214, %v3298
  %v3307 = vadd.f32 %v3215, %v3299
  %v3308 = vadd.f32 %v3216, %v3300
  %v3309 = vadd.f32 %v3217, %v3301
  %v3310 = vadd.f32 %v3218, %v3302
  %v3311 = vadd.f32 %v3219, %v3303
  %v3312 = vadd.f32 %v3220, %v3304
  %v3313 = vadd.f32 %v3221, %v3305
  %3314 = vset.pattern.permute.xlu0 54
  %3315 = vperm.xlu0 %3314, %v2920
  %v3316 = vpop.permute.xlu0 %3315
  %v3318 = vlaneseq
  %v3319 = vshrl.u32 %v3318, 7
  %v3320 = vsub.s32 2, %v3319
  %v3321 = vrot.slane %v20, %v3320
  %v3322 = vlaneseq
  %v3323 = vshrl.u32 %v3322, 7
  %v3324 = vsub.s32 6, %v3323
  %v3325 = vrot.slane %v20, %v3324
  %v3326 = vlaneseq
  %v3327 = vshrl.u32 %v3326, 7
  %v3328 = vsub.s32 2, %v3327
  %v3329 = vrot.slane %v21, %v3328
  %v3330 = vlaneseq
  %v3331 = vshrl.u32 %v3330, 7
  %v3332 = vsub.s32 6, %v3331
  %v3333 = vrot.slane %v21, %v3332
  %v3334 = vlaneseq
  %v3335 = vshrl.u32 %v3334, 7
  %v3336 = vsub.s32 2, %v3335
  %v3337 = vrot.slane %v22, %v3336
  %v3338 = vlaneseq
  %v3339 = vshrl.u32 %v3338, 7
  %v3340 = vsub.s32 6, %v3339
  %v3341 = vrot.slane %v22, %v3340
  %v3342 = vlaneseq
  %v3343 = vshrl.u32 %v3342, 7
  %v3344 = vsub.s32 2, %v3343
  %v3345 = vrot.slane %v23, %v3344
  %v3346 = vlaneseq
  %v3347 = vshrl.u32 %v3346, 7
  %v3348 = vsub.s32 6, %v3347
  %v3349 = vrot.slane %v23, %v3348
  %v3358 = vlaneseq
  %v3359 = vshrl.u32 %v3358, 7
  %v3360 = vsub.s32 2, %v3359
  %v3361 = vrot.slane %v3321, %v3360
  %v3362 = vlaneseq
  %v3363 = vshrl.u32 %v3362, 7
  %v3364 = vsub.s32 2, %v3363
  %v3365 = vrot.slane %v3325, %v3364
  %v3366 = vlaneseq
  %v3367 = vshrl.u32 %v3366, 7
  %v3368 = vsub.s32 2, %v3367
  %v3369 = vrot.slane %v3329, %v3368
  %v3370 = vlaneseq
  %v3371 = vshrl.u32 %v3370, 7
  %v3372 = vsub.s32 2, %v3371
  %v3373 = vrot.slane %v3333, %v3372
  %v3374 = vlaneseq
  %v3375 = vshrl.u32 %v3374, 7
  %v3376 = vsub.s32 2, %v3375
  %v3377 = vrot.slane %v3337, %v3376
  %v3378 = vlaneseq
  %v3379 = vshrl.u32 %v3378, 7
  %v3380 = vsub.s32 2, %v3379
  %v3381 = vrot.slane %v3341, %v3380
  %v3382 = vlaneseq
  %v3383 = vshrl.u32 %v3382, 7
  %v3384 = vsub.s32 2, %v3383
  %v3385 = vrot.slane %v3345, %v3384
  %v3386 = vlaneseq
  %v3387 = vshrl.u32 %v3386, 7
  %v3388 = vsub.s32 2, %v3387
  %v3389 = vrot.slane %v3349, %v3388
  %v3390 = vmul.f32 %v3316, %v3361
  %v3391 = vmul.f32 %v3316, %v3365
  %v3392 = vmul.f32 %v3316, %v3369
  %v3393 = vmul.f32 %v3316, %v3373
  %v3394 = vmul.f32 %v3316, %v3377
  %v3395 = vmul.f32 %v3316, %v3381
  %v3396 = vmul.f32 %v3316, %v3385
  %v3397 = vmul.f32 %v3316, %v3389
  %v3398 = vadd.f32 %v3306, %v3390
  %v3399 = vadd.f32 %v3307, %v3391
  %v3400 = vadd.f32 %v3308, %v3392
  %v3401 = vadd.f32 %v3309, %v3393
  %v3402 = vadd.f32 %v3310, %v3394
  %v3403 = vadd.f32 %v3311, %v3395
  %v3404 = vadd.f32 %v3312, %v3396
  %v3405 = vadd.f32 %v3313, %v3397
  %3406 = vset.pattern.permute.xlu0 55
  %3407 = vperm.xlu0 %3406, %v2920
  %v3408 = vpop.permute.xlu0 %3407
  %v3410 = vlaneseq
  %v3411 = vshrl.u32 %v3410, 7
  %v3412 = vsub.s32 3, %v3411
  %v3413 = vrot.slane %v20, %v3412
  %v3414 = vlaneseq
  %v3415 = vshrl.u32 %v3414, 7
  %v3416 = vsub.s32 7, %v3415
  %v3417 = vrot.slane %v20, %v3416
  %v3418 = vlaneseq
  %v3419 = vshrl.u32 %v3418, 7
  %v3420 = vsub.s32 3, %v3419
  %v3421 = vrot.slane %v21, %v3420
  %v3422 = vlaneseq
  %v3423 = vshrl.u32 %v3422, 7
  %v3424 = vsub.s32 7, %v3423
  %v3425 = vrot.slane %v21, %v3424
  %v3426 = vlaneseq
  %v3427 = vshrl.u32 %v3426, 7
  %v3428 = vsub.s32 3, %v3427
  %v3429 = vrot.slane %v22, %v3428
  %v3430 = vlaneseq
  %v3431 = vshrl.u32 %v3430, 7
  %v3432 = vsub.s32 7, %v3431
  %v3433 = vrot.slane %v22, %v3432
  %v3434 = vlaneseq
  %v3435 = vshrl.u32 %v3434, 7
  %v3436 = vsub.s32 3, %v3435
  %v3437 = vrot.slane %v23, %v3436
  %v3438 = vlaneseq
  %v3439 = vshrl.u32 %v3438, 7
  %v3440 = vsub.s32 7, %v3439
  %v3441 = vrot.slane %v23, %v3440
  %v3450 = vlaneseq
  %v3451 = vshrl.u32 %v3450, 7
  %v3452 = vsub.s32 3, %v3451
  %v3453 = vrot.slane %v3413, %v3452
  %v3454 = vlaneseq
  %v3455 = vshrl.u32 %v3454, 7
  %v3456 = vsub.s32 3, %v3455
  %v3457 = vrot.slane %v3417, %v3456
  %v3458 = vlaneseq
  %v3459 = vshrl.u32 %v3458, 7
  %v3460 = vsub.s32 3, %v3459
  %v3461 = vrot.slane %v3421, %v3460
  %v3462 = vlaneseq
  %v3463 = vshrl.u32 %v3462, 7
  %v3464 = vsub.s32 3, %v3463
  %v3465 = vrot.slane %v3425, %v3464
  %v3466 = vlaneseq
  %v3467 = vshrl.u32 %v3466, 7
  %v3468 = vsub.s32 3, %v3467
  %v3469 = vrot.slane %v3429, %v3468
  %v3470 = vlaneseq
  %v3471 = vshrl.u32 %v3470, 7
  %v3472 = vsub.s32 3, %v3471
  %v3473 = vrot.slane %v3433, %v3472
  %v3474 = vlaneseq
  %v3475 = vshrl.u32 %v3474, 7
  %v3476 = vsub.s32 3, %v3475
  %v3477 = vrot.slane %v3437, %v3476
  %v3478 = vlaneseq
  %v3479 = vshrl.u32 %v3478, 7
  %v3480 = vsub.s32 3, %v3479
  %v3481 = vrot.slane %v3441, %v3480
  %v3482 = vmul.f32 %v3408, %v3453
  %v3483 = vmul.f32 %v3408, %v3457
  %v3484 = vmul.f32 %v3408, %v3461
  %v3485 = vmul.f32 %v3408, %v3465
  %v3486 = vmul.f32 %v3408, %v3469
  %v3487 = vmul.f32 %v3408, %v3473
  %v3488 = vmul.f32 %v3408, %v3477
  %v3489 = vmul.f32 %v3408, %v3481
  %v3490 = vadd.f32 %v3398, %v3482
  %v3491 = vadd.f32 %v3399, %v3483
  %v3492 = vadd.f32 %v3400, %v3484
  %v3493 = vadd.f32 %v3401, %v3485
  %v3494 = vadd.f32 %v3402, %v3486
  %v3495 = vadd.f32 %v3403, %v3487
  %v3496 = vadd.f32 %v3404, %v3488
  %v3497 = vadd.f32 %v3405, %v3489
  %v3498 = vmul.f32 %v36, %v551
  %v3499 = vmul.f32 %v21, %v555
  %v3500 = vmul.f32 %v26, %v559
  %v3501 = vmul.f32 %v20, %v563
  %v3502 = vmul.f32 %v37, %v551
  %v3503 = vmul.f32 %v23, %v555
  %v3504 = vmul.f32 %v27, %v559
  %v3505 = vmul.f32 %v22, %v563
  %v3506 = vld [vmem:[%s3] sm:$0xf]
  %3508 = vset.pattern.permute.xlu0 88
  %3509 = vperm.xlu0 %3508, %v3506
  %v3510 = vpop.permute.xlu0 %3509
  %v3512 = vlaneseq
  %v3513 = vshrl.u32 %v3512, 7
  %v3514 = vsub.s32 0, %v3513
  %v3515 = vrot.slane %v3498, %v3514
  %v3516 = vlaneseq
  %v3517 = vshrl.u32 %v3516, 7
  %v3518 = vsub.s32 0, %v3517
  %v3519 = vrot.slane %v3499, %v3518
  %v3520 = vlaneseq
  %v3521 = vshrl.u32 %v3520, 7
  %v3522 = vsub.s32 0, %v3521
  %v3523 = vrot.slane %v3500, %v3522
  %v3524 = vlaneseq
  %v3525 = vshrl.u32 %v3524, 7
  %v3526 = vsub.s32 0, %v3525
  %v3527 = vrot.slane %v3501, %v3526
  %v3528 = vlaneseq
  %v3529 = vshrl.u32 %v3528, 7
  %v3530 = vsub.s32 0, %v3529
  %v3531 = vrot.slane %v3502, %v3530
  %v3532 = vlaneseq
  %v3533 = vshrl.u32 %v3532, 7
  %v3534 = vsub.s32 0, %v3533
  %v3535 = vrot.slane %v3503, %v3534
  %v3536 = vlaneseq
  %v3537 = vshrl.u32 %v3536, 7
  %v3538 = vsub.s32 0, %v3537
  %v3539 = vrot.slane %v3504, %v3538
  %v3540 = vlaneseq
  %v3541 = vshrl.u32 %v3540, 7
  %v3542 = vsub.s32 0, %v3541
  %v3543 = vrot.slane %v3505, %v3542
  %v3544 = vmul.f32 %v3510, %v3515
  %v3545 = vmul.f32 %v3510, %v3519
  %v3546 = vmul.f32 %v3510, %v3523
  %v3547 = vmul.f32 %v3510, %v3527
  %v3548 = vmul.f32 %v3510, %v3531
  %v3549 = vmul.f32 %v3510, %v3535
  %v3550 = vmul.f32 %v3510, %v3539
  %v3551 = vmul.f32 %v3510, %v3543
  %v3552 = vadd.f32 %v3490, %v3544
  %v3553 = vadd.f32 %v3491, %v3545
  %v3554 = vadd.f32 %v3492, %v3546
  %v3555 = vadd.f32 %v3493, %v3547
  %v3556 = vadd.f32 %v3494, %v3548
  %v3557 = vadd.f32 %v3495, %v3549
  %v3558 = vadd.f32 %v3496, %v3550
  %v3559 = vadd.f32 %v3497, %v3551
  %3560 = vset.pattern.permute.xlu0 89
  %3561 = vperm.xlu0 %3560, %v3506
  %v3562 = vpop.permute.xlu0 %3561
  %v3564 = vlaneseq
  %v3565 = vshrl.u32 %v3564, 7
  %v3566 = vsub.s32 1, %v3565
  %v3567 = vrot.slane %v3498, %v3566
  %v3568 = vlaneseq
  %v3569 = vshrl.u32 %v3568, 7
  %v3570 = vsub.s32 1, %v3569
  %v3571 = vrot.slane %v3499, %v3570
  %v3572 = vlaneseq
  %v3573 = vshrl.u32 %v3572, 7
  %v3574 = vsub.s32 1, %v3573
  %v3575 = vrot.slane %v3500, %v3574
  %v3576 = vlaneseq
  %v3577 = vshrl.u32 %v3576, 7
  %v3578 = vsub.s32 1, %v3577
  %v3579 = vrot.slane %v3501, %v3578
  %v3580 = vlaneseq
  %v3581 = vshrl.u32 %v3580, 7
  %v3582 = vsub.s32 1, %v3581
  %v3583 = vrot.slane %v3502, %v3582
  %v3584 = vlaneseq
  %v3585 = vshrl.u32 %v3584, 7
  %v3586 = vsub.s32 1, %v3585
  %v3587 = vrot.slane %v3503, %v3586
  %v3588 = vlaneseq
  %v3589 = vshrl.u32 %v3588, 7
  %v3590 = vsub.s32 1, %v3589
  %v3591 = vrot.slane %v3504, %v3590
  %v3592 = vlaneseq
  %v3593 = vshrl.u32 %v3592, 7
  %v3594 = vsub.s32 1, %v3593
  %v3595 = vrot.slane %v3505, %v3594
  %v3596 = vmul.f32 %v3562, %v3567
  %v3597 = vmul.f32 %v3562, %v3571
  %v3598 = vmul.f32 %v3562, %v3575
  %v3599 = vmul.f32 %v3562, %v3579
  %v3600 = vmul.f32 %v3562, %v3583
  %v3601 = vmul.f32 %v3562, %v3587
  %v3602 = vmul.f32 %v3562, %v3591
  %v3603 = vmul.f32 %v3562, %v3595
  %v3604 = vadd.f32 %v3552, %v3596
  %v3605 = vadd.f32 %v3553, %v3597
  %v3606 = vadd.f32 %v3554, %v3598
  %v3607 = vadd.f32 %v3555, %v3599
  %v3608 = vadd.f32 %v3556, %v3600
  %v3609 = vadd.f32 %v3557, %v3601
  %v3610 = vadd.f32 %v3558, %v3602
  %v3611 = vadd.f32 %v3559, %v3603
  %3612 = vset.pattern.permute.xlu0 90
  %3613 = vperm.xlu0 %3612, %v3506
  %v3614 = vpop.permute.xlu0 %3613
  %v3616 = vlaneseq
  %v3617 = vshrl.u32 %v3616, 7
  %v3618 = vsub.s32 2, %v3617
  %v3619 = vrot.slane %v3498, %v3618
  %v3620 = vlaneseq
  %v3621 = vshrl.u32 %v3620, 7
  %v3622 = vsub.s32 2, %v3621
  %v3623 = vrot.slane %v3499, %v3622
  %v3624 = vlaneseq
  %v3625 = vshrl.u32 %v3624, 7
  %v3626 = vsub.s32 2, %v3625
  %v3627 = vrot.slane %v3500, %v3626
  %v3628 = vlaneseq
  %v3629 = vshrl.u32 %v3628, 7
  %v3630 = vsub.s32 2, %v3629
  %v3631 = vrot.slane %v3501, %v3630
  %v3632 = vlaneseq
  %v3633 = vshrl.u32 %v3632, 7
  %v3634 = vsub.s32 2, %v3633
  %v3635 = vrot.slane %v3502, %v3634
  %v3636 = vlaneseq
  %v3637 = vshrl.u32 %v3636, 7
  %v3638 = vsub.s32 2, %v3637
  %v3639 = vrot.slane %v3503, %v3638
  %v3640 = vlaneseq
  %v3641 = vshrl.u32 %v3640, 7
  %v3642 = vsub.s32 2, %v3641
  %v3643 = vrot.slane %v3504, %v3642
  %v3644 = vlaneseq
  %v3645 = vshrl.u32 %v3644, 7
  %v3646 = vsub.s32 2, %v3645
  %v3647 = vrot.slane %v3505, %v3646
  %v3648 = vmul.f32 %v3614, %v3619
  %v3649 = vmul.f32 %v3614, %v3623
  %v3650 = vmul.f32 %v3614, %v3627
  %v3651 = vmul.f32 %v3614, %v3631
  %v3652 = vmul.f32 %v3614, %v3635
  %v3653 = vmul.f32 %v3614, %v3639
  %v3654 = vmul.f32 %v3614, %v3643
  %v3655 = vmul.f32 %v3614, %v3647
  %v3656 = vadd.f32 %v3604, %v3648
  %v3657 = vadd.f32 %v3605, %v3649
  %v3658 = vadd.f32 %v3606, %v3650
  %v3659 = vadd.f32 %v3607, %v3651
  %v3660 = vadd.f32 %v3608, %v3652
  %v3661 = vadd.f32 %v3609, %v3653
  %v3662 = vadd.f32 %v3610, %v3654
  %v3663 = vadd.f32 %v3611, %v3655
  %3664 = vset.pattern.permute.xlu0 91
  %3665 = vperm.xlu0 %3664, %v3506
  %v3666 = vpop.permute.xlu0 %3665
  %v3668 = vlaneseq
  %v3669 = vshrl.u32 %v3668, 7
  %v3670 = vsub.s32 3, %v3669
  %v3671 = vrot.slane %v3498, %v3670
  %v3672 = vlaneseq
  %v3673 = vshrl.u32 %v3672, 7
  %v3674 = vsub.s32 3, %v3673
  %v3675 = vrot.slane %v3499, %v3674
  %v3676 = vlaneseq
  %v3677 = vshrl.u32 %v3676, 7
  %v3678 = vsub.s32 3, %v3677
  %v3679 = vrot.slane %v3500, %v3678
  %v3680 = vlaneseq
  %v3681 = vshrl.u32 %v3680, 7
  %v3682 = vsub.s32 3, %v3681
  %v3683 = vrot.slane %v3501, %v3682
  %v3684 = vlaneseq
  %v3685 = vshrl.u32 %v3684, 7
  %v3686 = vsub.s32 3, %v3685
  %v3687 = vrot.slane %v3502, %v3686
  %v3688 = vlaneseq
  %v3689 = vshrl.u32 %v3688, 7
  %v3690 = vsub.s32 3, %v3689
  %v3691 = vrot.slane %v3503, %v3690
  %v3692 = vlaneseq
  %v3693 = vshrl.u32 %v3692, 7
  %v3694 = vsub.s32 3, %v3693
  %v3695 = vrot.slane %v3504, %v3694
  %v3696 = vlaneseq
  %v3697 = vshrl.u32 %v3696, 7
  %v3698 = vsub.s32 3, %v3697
  %v3699 = vrot.slane %v3505, %v3698
  %v3700 = vmul.f32 %v3666, %v3671
  %v3701 = vmul.f32 %v3666, %v3675
  %v3702 = vmul.f32 %v3666, %v3679
  %v3703 = vmul.f32 %v3666, %v3683
  %v3704 = vmul.f32 %v3666, %v3687
  %v3705 = vmul.f32 %v3666, %v3691
  %v3706 = vmul.f32 %v3666, %v3695
  %v3707 = vmul.f32 %v3666, %v3699
  %v3708 = vadd.f32 %v3656, %v3700
  %v3709 = vadd.f32 %v3657, %v3701
  %v3710 = vadd.f32 %v3658, %v3702
  %v3711 = vadd.f32 %v3659, %v3703
  %v3712 = vadd.f32 %v3660, %v3704
  %v3713 = vadd.f32 %v3661, %v3705
  %v3714 = vadd.f32 %v3662, %v3706
  %v3715 = vadd.f32 %v3663, %v3707
  %3716 = vrot.lane.b32.xlu0 %v20, 126
  %v3717 = vpop.permute.xlu0 %3716
  %3718 = vrot.lane.b32.xlu0 %v36, 126
  %v3719 = vpop.permute.xlu0 %3718
  %3720 = vrot.lane.b32.xlu0 %v21, 126
  %v3721 = vpop.permute.xlu0 %3720
  %3722 = vrot.lane.b32.xlu0 %v26, 126
  %v3723 = vpop.permute.xlu0 %3722
  %3724 = vrot.lane.b32.xlu0 %v22, 126
  %v3725 = vpop.permute.xlu0 %3724
  %3726 = vrot.lane.b32.xlu0 %v37, 126
  %v3727 = vpop.permute.xlu0 %3726
  %3728 = vrot.lane.b32.xlu0 %v23, 126
  %v3729 = vpop.permute.xlu0 %3728
  %3730 = vrot.lane.b32.xlu0 %v27, 126
  %v3731 = vpop.permute.xlu0 %3730
  %vm3732 = vcmask 1031168
  %v3733 = vsel %vm3732, %v3717, %v3719
  %v3734 = vsel %vm3732, %v3719, %v3721
  %v3735 = vsel %vm3732, %v3721, %v3723
  %v3736 = vsel %vm3732, %v3725, %v3727
  %v3737 = vsel %vm3732, %v3727, %v3729
  %v3738 = vsel %vm3732, %v3729, %v3731
  %v3749 = vsel %vm3732, %v3723, %v3717
  %v3750 = vsel %vm3732, %v3731, %v3725
  %s3751 = scalar_lea.vmem %s1, 5
  %v3752 = vld [vmem:[%s3751] ss:$8 sm:$0xf]
  %v3754 = vlaneseq
  %v3755 = vshrl.u32 %v3754, 7
  %v3756 = vsub.s32 0, %v3755
  %v3757 = vrot.slane %v3752, %v3756
  %v3758 = vlaneseq
  %v3759 = vshrl.u32 %v3758, 7
  %v3760 = vsub.s32 1, %v3759
  %v3761 = vrot.slane %v3752, %v3760
  %v3762 = vlaneseq
  %v3763 = vshrl.u32 %v3762, 7
  %v3764 = vsub.s32 2, %v3763
  %v3765 = vrot.slane %v3752, %v3764
  %v3766 = vlaneseq
  %v3767 = vshrl.u32 %v3766, 7
  %v3768 = vsub.s32 3, %v3767
  %v3769 = vrot.slane %v3752, %v3768
  %v3774 = vmul.f32 %v3733, %v3757
  %v3775 = vmul.f32 %v3734, %v3761
  %v3776 = vmul.f32 %v3735, %v3765
  %v3777 = vmul.f32 %v3749, %v3769
  %v3778 = vmul.f32 %v3736, %v3757
  %v3779 = vmul.f32 %v3737, %v3761
  %v3780 = vmul.f32 %v3738, %v3765
  %v3781 = vmul.f32 %v3750, %v3769
  %v3782 = vmul.f32 %v3777, %v102
  %v3783 = vmul.f32 %v3774, %v106
  %v3784 = vmul.f32 %v3775, %v110
  %v3785 = vmul.f32 %v3776, %v114
  %v3786 = vmul.f32 %v3781, %v102
  %v3787 = vmul.f32 %v3778, %v106
  %v3788 = vmul.f32 %v3779, %v110
  %v3789 = vmul.f32 %v3780, %v114
  %v3790 = vld [vmem:[%s3] sm:$0xf]
  %3792 = vset.pattern.permute.xlu0 20
  %3793 = vperm.xlu0 %3792, %v3790
  %v3794 = vpop.permute.xlu0 %3793
  %v3796 = vlaneseq
  %v3797 = vshrl.u32 %v3796, 7
  %v3798 = vsub.s32 0, %v3797
  %v3799 = vrot.slane %v3782, %v3798
  %v3800 = vlaneseq
  %v3801 = vshrl.u32 %v3800, 7
  %v3802 = vsub.s32 0, %v3801
  %v3803 = vrot.slane %v3783, %v3802
  %v3804 = vlaneseq
  %v3805 = vshrl.u32 %v3804, 7
  %v3806 = vsub.s32 0, %v3805
  %v3807 = vrot.slane %v3784, %v3806
  %v3808 = vlaneseq
  %v3809 = vshrl.u32 %v3808, 7
  %v3810 = vsub.s32 0, %v3809
  %v3811 = vrot.slane %v3785, %v3810
  %v3812 = vlaneseq
  %v3813 = vshrl.u32 %v3812, 7
  %v3814 = vsub.s32 0, %v3813
  %v3815 = vrot.slane %v3786, %v3814
  %v3816 = vlaneseq
  %v3817 = vshrl.u32 %v3816, 7
  %v3818 = vsub.s32 0, %v3817
  %v3819 = vrot.slane %v3787, %v3818
  %v3820 = vlaneseq
  %v3821 = vshrl.u32 %v3820, 7
  %v3822 = vsub.s32 0, %v3821
  %v3823 = vrot.slane %v3788, %v3822
  %v3824 = vlaneseq
  %v3825 = vshrl.u32 %v3824, 7
  %v3826 = vsub.s32 0, %v3825
  %v3827 = vrot.slane %v3789, %v3826
  %v3828 = vmul.f32 %v3794, %v3799
  %v3829 = vmul.f32 %v3794, %v3803
  %v3830 = vmul.f32 %v3794, %v3807
  %v3831 = vmul.f32 %v3794, %v3811
  %v3832 = vmul.f32 %v3794, %v3815
  %v3833 = vmul.f32 %v3794, %v3819
  %v3834 = vmul.f32 %v3794, %v3823
  %v3835 = vmul.f32 %v3794, %v3827
  %v3836 = vadd.f32 %v3708, %v3828
  %v3837 = vadd.f32 %v3709, %v3829
  %v3838 = vadd.f32 %v3710, %v3830
  %v3839 = vadd.f32 %v3711, %v3831
  %v3840 = vadd.f32 %v3712, %v3832
  %v3841 = vadd.f32 %v3713, %v3833
  %v3842 = vadd.f32 %v3714, %v3834
  %v3843 = vadd.f32 %v3715, %v3835
  %3844 = vset.pattern.permute.xlu0 21
  %3845 = vperm.xlu0 %3844, %v3790
  %v3846 = vpop.permute.xlu0 %3845
  %v3848 = vlaneseq
  %v3849 = vshrl.u32 %v3848, 7
  %v3850 = vsub.s32 1, %v3849
  %v3851 = vrot.slane %v3782, %v3850
  %v3852 = vlaneseq
  %v3853 = vshrl.u32 %v3852, 7
  %v3854 = vsub.s32 1, %v3853
  %v3855 = vrot.slane %v3783, %v3854
  %v3856 = vlaneseq
  %v3857 = vshrl.u32 %v3856, 7
  %v3858 = vsub.s32 1, %v3857
  %v3859 = vrot.slane %v3784, %v3858
  %v3860 = vlaneseq
  %v3861 = vshrl.u32 %v3860, 7
  %v3862 = vsub.s32 1, %v3861
  %v3863 = vrot.slane %v3785, %v3862
  %v3864 = vlaneseq
  %v3865 = vshrl.u32 %v3864, 7
  %v3866 = vsub.s32 1, %v3865
  %v3867 = vrot.slane %v3786, %v3866
  %v3868 = vlaneseq
  %v3869 = vshrl.u32 %v3868, 7
  %v3870 = vsub.s32 1, %v3869
  %v3871 = vrot.slane %v3787, %v3870
  %v3872 = vlaneseq
  %v3873 = vshrl.u32 %v3872, 7
  %v3874 = vsub.s32 1, %v3873
  %v3875 = vrot.slane %v3788, %v3874
  %v3876 = vlaneseq
  %v3877 = vshrl.u32 %v3876, 7
  %v3878 = vsub.s32 1, %v3877
  %v3879 = vrot.slane %v3789, %v3878
  %v3880 = vmul.f32 %v3846, %v3851
  %v3881 = vmul.f32 %v3846, %v3855
  %v3882 = vmul.f32 %v3846, %v3859
  %v3883 = vmul.f32 %v3846, %v3863
  %v3884 = vmul.f32 %v3846, %v3867
  %v3885 = vmul.f32 %v3846, %v3871
  %v3886 = vmul.f32 %v3846, %v3875
  %v3887 = vmul.f32 %v3846, %v3879
  %v3888 = vadd.f32 %v3836, %v3880
  %v3889 = vadd.f32 %v3837, %v3881
  %v3890 = vadd.f32 %v3838, %v3882
  %v3891 = vadd.f32 %v3839, %v3883
  %v3892 = vadd.f32 %v3840, %v3884
  %v3893 = vadd.f32 %v3841, %v3885
  %v3894 = vadd.f32 %v3842, %v3886
  %v3895 = vadd.f32 %v3843, %v3887
  %3896 = vset.pattern.permute.xlu0 22
  %3897 = vperm.xlu0 %3896, %v3790
  %v3898 = vpop.permute.xlu0 %3897
  %v3900 = vlaneseq
  %v3901 = vshrl.u32 %v3900, 7
  %v3902 = vsub.s32 2, %v3901
  %v3903 = vrot.slane %v3782, %v3902
  %v3904 = vlaneseq
  %v3905 = vshrl.u32 %v3904, 7
  %v3906 = vsub.s32 2, %v3905
  %v3907 = vrot.slane %v3783, %v3906
  %v3908 = vlaneseq
  %v3909 = vshrl.u32 %v3908, 7
  %v3910 = vsub.s32 2, %v3909
  %v3911 = vrot.slane %v3784, %v3910
  %v3912 = vlaneseq
  %v3913 = vshrl.u32 %v3912, 7
  %v3914 = vsub.s32 2, %v3913
  %v3915 = vrot.slane %v3785, %v3914
  %v3916 = vlaneseq
  %v3917 = vshrl.u32 %v3916, 7
  %v3918 = vsub.s32 2, %v3917
  %v3919 = vrot.slane %v3786, %v3918
  %v3920 = vlaneseq
  %v3921 = vshrl.u32 %v3920, 7
  %v3922 = vsub.s32 2, %v3921
  %v3923 = vrot.slane %v3787, %v3922
  %v3924 = vlaneseq
  %v3925 = vshrl.u32 %v3924, 7
  %v3926 = vsub.s32 2, %v3925
  %v3927 = vrot.slane %v3788, %v3926
  %v3928 = vlaneseq
  %v3929 = vshrl.u32 %v3928, 7
  %v3930 = vsub.s32 2, %v3929
  %v3931 = vrot.slane %v3789, %v3930
  %v3932 = vmul.f32 %v3898, %v3903
  %v3933 = vmul.f32 %v3898, %v3907
  %v3934 = vmul.f32 %v3898, %v3911
  %v3935 = vmul.f32 %v3898, %v3915
  %v3936 = vmul.f32 %v3898, %v3919
  %v3937 = vmul.f32 %v3898, %v3923
  %v3938 = vmul.f32 %v3898, %v3927
  %v3939 = vmul.f32 %v3898, %v3931
  %v3940 = vadd.f32 %v3888, %v3932
  %v3941 = vadd.f32 %v3889, %v3933
  %v3942 = vadd.f32 %v3890, %v3934
  %v3943 = vadd.f32 %v3891, %v3935
  %v3944 = vadd.f32 %v3892, %v3936
  %v3945 = vadd.f32 %v3893, %v3937
  %v3946 = vadd.f32 %v3894, %v3938
  %v3947 = vadd.f32 %v3895, %v3939
  %3948 = vset.pattern.permute.xlu0 23
  %3949 = vperm.xlu0 %3948, %v3790
  %v3950 = vpop.permute.xlu0 %3949
  %v3952 = vlaneseq
  %v3953 = vshrl.u32 %v3952, 7
  %v3954 = vsub.s32 3, %v3953
  %v3955 = vrot.slane %v3782, %v3954
  %v3956 = vlaneseq
  %v3957 = vshrl.u32 %v3956, 7
  %v3958 = vsub.s32 3, %v3957
  %v3959 = vrot.slane %v3783, %v3958
  %v3960 = vlaneseq
  %v3961 = vshrl.u32 %v3960, 7
  %v3962 = vsub.s32 3, %v3961
  %v3963 = vrot.slane %v3784, %v3962
  %v3964 = vlaneseq
  %v3965 = vshrl.u32 %v3964, 7
  %v3966 = vsub.s32 3, %v3965
  %v3967 = vrot.slane %v3785, %v3966
  %v3968 = vlaneseq
  %v3969 = vshrl.u32 %v3968, 7
  %v3970 = vsub.s32 3, %v3969
  %v3971 = vrot.slane %v3786, %v3970
  %v3972 = vlaneseq
  %v3973 = vshrl.u32 %v3972, 7
  %v3974 = vsub.s32 3, %v3973
  %v3975 = vrot.slane %v3787, %v3974
  %v3976 = vlaneseq
  %v3977 = vshrl.u32 %v3976, 7
  %v3978 = vsub.s32 3, %v3977
  %v3979 = vrot.slane %v3788, %v3978
  %v3980 = vlaneseq
  %v3981 = vshrl.u32 %v3980, 7
  %v3982 = vsub.s32 3, %v3981
  %v3983 = vrot.slane %v3789, %v3982
  %v3984 = vmul.f32 %v3950, %v3955
  %v3985 = vmul.f32 %v3950, %v3959
  %v3986 = vmul.f32 %v3950, %v3963
  %v3987 = vmul.f32 %v3950, %v3967
  %v3988 = vmul.f32 %v3950, %v3971
  %v3989 = vmul.f32 %v3950, %v3975
  %v3990 = vmul.f32 %v3950, %v3979
  %v3991 = vmul.f32 %v3950, %v3983
  %v3992 = vadd.f32 %v3940, %v3984
  %v3993 = vadd.f32 %v3941, %v3985
  %v3994 = vadd.f32 %v3942, %v3986
  %v3995 = vadd.f32 %v3943, %v3987
  %v3996 = vadd.f32 %v3944, %v3988
  %v3997 = vadd.f32 %v3945, %v3989
  %v3998 = vadd.f32 %v3946, %v3990
  %v3999 = vadd.f32 %v3947, %v3991
  %4000 = vset.pattern.permute.xlu0 56
  %4001 = vperm.xlu0 %4000, %v3790
  %v4002 = vpop.permute.xlu0 %4001
  %v4004 = vlaneseq
  %v4005 = vshrl.u32 %v4004, 7
  %v4006 = vsub.s32 0, %v4005
  %v4007 = vrot.slane %v3774, %v4006
  %v4008 = vlaneseq
  %v4009 = vshrl.u32 %v4008, 7
  %v4010 = vsub.s32 0, %v4009
  %v4011 = vrot.slane %v3775, %v4010
  %v4012 = vlaneseq
  %v4013 = vshrl.u32 %v4012, 7
  %v4014 = vsub.s32 0, %v4013
  %v4015 = vrot.slane %v3776, %v4014
  %v4016 = vlaneseq
  %v4017 = vshrl.u32 %v4016, 7
  %v4018 = vsub.s32 0, %v4017
  %v4019 = vrot.slane %v3777, %v4018
  %v4020 = vlaneseq
  %v4021 = vshrl.u32 %v4020, 7
  %v4022 = vsub.s32 0, %v4021
  %v4023 = vrot.slane %v3778, %v4022
  %v4024 = vlaneseq
  %v4025 = vshrl.u32 %v4024, 7
  %v4026 = vsub.s32 0, %v4025
  %v4027 = vrot.slane %v3779, %v4026
  %v4028 = vlaneseq
  %v4029 = vshrl.u32 %v4028, 7
  %v4030 = vsub.s32 0, %v4029
  %v4031 = vrot.slane %v3780, %v4030
  %v4032 = vlaneseq
  %v4033 = vshrl.u32 %v4032, 7
  %v4034 = vsub.s32 0, %v4033
  %v4035 = vrot.slane %v3781, %v4034
  %v4036 = vmul.f32 %v4002, %v4007
  %v4037 = vmul.f32 %v4002, %v4011
  %v4038 = vmul.f32 %v4002, %v4015
  %v4039 = vmul.f32 %v4002, %v4019
  %v4040 = vmul.f32 %v4002, %v4023
  %v4041 = vmul.f32 %v4002, %v4027
  %v4042 = vmul.f32 %v4002, %v4031
  %v4043 = vmul.f32 %v4002, %v4035
  %v4044 = vadd.f32 %v3992, %v4036
  %v4045 = vadd.f32 %v3993, %v4037
  %v4046 = vadd.f32 %v3994, %v4038
  %v4047 = vadd.f32 %v3995, %v4039
  %v4048 = vadd.f32 %v3996, %v4040
  %v4049 = vadd.f32 %v3997, %v4041
  %v4050 = vadd.f32 %v3998, %v4042
  %v4051 = vadd.f32 %v3999, %v4043
  %4052 = vset.pattern.permute.xlu0 57
  %4053 = vperm.xlu0 %4052, %v3790
  %v4054 = vpop.permute.xlu0 %4053
  %v4056 = vlaneseq
  %v4057 = vshrl.u32 %v4056, 7
  %v4058 = vsub.s32 1, %v4057
  %v4059 = vrot.slane %v3774, %v4058
  %v4060 = vlaneseq
  %v4061 = vshrl.u32 %v4060, 7
  %v4062 = vsub.s32 1, %v4061
  %v4063 = vrot.slane %v3775, %v4062
  %v4064 = vlaneseq
  %v4065 = vshrl.u32 %v4064, 7
  %v4066 = vsub.s32 1, %v4065
  %v4067 = vrot.slane %v3776, %v4066
  %v4068 = vlaneseq
  %v4069 = vshrl.u32 %v4068, 7
  %v4070 = vsub.s32 1, %v4069
  %v4071 = vrot.slane %v3777, %v4070
  %v4072 = vlaneseq
  %v4073 = vshrl.u32 %v4072, 7
  %v4074 = vsub.s32 1, %v4073
  %v4075 = vrot.slane %v3778, %v4074
  %v4076 = vlaneseq
  %v4077 = vshrl.u32 %v4076, 7
  %v4078 = vsub.s32 1, %v4077
  %v4079 = vrot.slane %v3779, %v4078
  %v4080 = vlaneseq
  %v4081 = vshrl.u32 %v4080, 7
  %v4082 = vsub.s32 1, %v4081
  %v4083 = vrot.slane %v3780, %v4082
  %v4084 = vlaneseq
  %v4085 = vshrl.u32 %v4084, 7
  %v4086 = vsub.s32 1, %v4085
  %v4087 = vrot.slane %v3781, %v4086
  %v4088 = vmul.f32 %v4054, %v4059
  %v4089 = vmul.f32 %v4054, %v4063
  %v4090 = vmul.f32 %v4054, %v4067
  %v4091 = vmul.f32 %v4054, %v4071
  %v4092 = vmul.f32 %v4054, %v4075
  %v4093 = vmul.f32 %v4054, %v4079
  %v4094 = vmul.f32 %v4054, %v4083
  %v4095 = vmul.f32 %v4054, %v4087
  %v4096 = vadd.f32 %v4044, %v4088
  %v4097 = vadd.f32 %v4045, %v4089
  %v4098 = vadd.f32 %v4046, %v4090
  %v4099 = vadd.f32 %v4047, %v4091
  %v4100 = vadd.f32 %v4048, %v4092
  %v4101 = vadd.f32 %v4049, %v4093
  %v4102 = vadd.f32 %v4050, %v4094
  %v4103 = vadd.f32 %v4051, %v4095
  %4104 = vset.pattern.permute.xlu0 58
  %4105 = vperm.xlu0 %4104, %v3790
  %v4106 = vpop.permute.xlu0 %4105
  %v4108 = vlaneseq
  %v4109 = vshrl.u32 %v4108, 7
  %v4110 = vsub.s32 2, %v4109
  %v4111 = vrot.slane %v3774, %v4110
  %v4112 = vlaneseq
  %v4113 = vshrl.u32 %v4112, 7
  %v4114 = vsub.s32 2, %v4113
  %v4115 = vrot.slane %v3775, %v4114
  %v4116 = vlaneseq
  %v4117 = vshrl.u32 %v4116, 7
  %v4118 = vsub.s32 2, %v4117
  %v4119 = vrot.slane %v3776, %v4118
  %v4120 = vlaneseq
  %v4121 = vshrl.u32 %v4120, 7
  %v4122 = vsub.s32 2, %v4121
  %v4123 = vrot.slane %v3777, %v4122
  %v4124 = vlaneseq
  %v4125 = vshrl.u32 %v4124, 7
  %v4126 = vsub.s32 2, %v4125
  %v4127 = vrot.slane %v3778, %v4126
  %v4128 = vlaneseq
  %v4129 = vshrl.u32 %v4128, 7
  %v4130 = vsub.s32 2, %v4129
  %v4131 = vrot.slane %v3779, %v4130
  %v4132 = vlaneseq
  %v4133 = vshrl.u32 %v4132, 7
  %v4134 = vsub.s32 2, %v4133
  %v4135 = vrot.slane %v3780, %v4134
  %v4136 = vlaneseq
  %v4137 = vshrl.u32 %v4136, 7
  %v4138 = vsub.s32 2, %v4137
  %v4139 = vrot.slane %v3781, %v4138
  %v4140 = vmul.f32 %v4106, %v4111
  %v4141 = vmul.f32 %v4106, %v4115
  %v4142 = vmul.f32 %v4106, %v4119
  %v4143 = vmul.f32 %v4106, %v4123
  %v4144 = vmul.f32 %v4106, %v4127
  %v4145 = vmul.f32 %v4106, %v4131
  %v4146 = vmul.f32 %v4106, %v4135
  %v4147 = vmul.f32 %v4106, %v4139
  %v4148 = vadd.f32 %v4096, %v4140
  %v4149 = vadd.f32 %v4097, %v4141
  %v4150 = vadd.f32 %v4098, %v4142
  %v4151 = vadd.f32 %v4099, %v4143
  %v4152 = vadd.f32 %v4100, %v4144
  %v4153 = vadd.f32 %v4101, %v4145
  %v4154 = vadd.f32 %v4102, %v4146
  %v4155 = vadd.f32 %v4103, %v4147
  %4156 = vset.pattern.permute.xlu0 59
  %4157 = vperm.xlu0 %4156, %v3790
  %v4158 = vpop.permute.xlu0 %4157
  %v4160 = vlaneseq
  %v4161 = vshrl.u32 %v4160, 7
  %v4162 = vsub.s32 3, %v4161
  %v4163 = vrot.slane %v3774, %v4162
  %v4164 = vlaneseq
  %v4165 = vshrl.u32 %v4164, 7
  %v4166 = vsub.s32 3, %v4165
  %v4167 = vrot.slane %v3775, %v4166
  %v4168 = vlaneseq
  %v4169 = vshrl.u32 %v4168, 7
  %v4170 = vsub.s32 3, %v4169
  %v4171 = vrot.slane %v3776, %v4170
  %v4172 = vlaneseq
  %v4173 = vshrl.u32 %v4172, 7
  %v4174 = vsub.s32 3, %v4173
  %v4175 = vrot.slane %v3777, %v4174
  %v4176 = vlaneseq
  %v4177 = vshrl.u32 %v4176, 7
  %v4178 = vsub.s32 3, %v4177
  %v4179 = vrot.slane %v3778, %v4178
  %v4180 = vlaneseq
  %v4181 = vshrl.u32 %v4180, 7
  %v4182 = vsub.s32 3, %v4181
  %v4183 = vrot.slane %v3779, %v4182
  %v4184 = vlaneseq
  %v4185 = vshrl.u32 %v4184, 7
  %v4186 = vsub.s32 3, %v4185
  %v4187 = vrot.slane %v3780, %v4186
  %v4188 = vlaneseq
  %v4189 = vshrl.u32 %v4188, 7
  %v4190 = vsub.s32 3, %v4189
  %v4191 = vrot.slane %v3781, %v4190
  %v4192 = vmul.f32 %v4158, %v4163
  %v4193 = vmul.f32 %v4158, %v4167
  %v4194 = vmul.f32 %v4158, %v4171
  %v4195 = vmul.f32 %v4158, %v4175
  %v4196 = vmul.f32 %v4158, %v4179
  %v4197 = vmul.f32 %v4158, %v4183
  %v4198 = vmul.f32 %v4158, %v4187
  %v4199 = vmul.f32 %v4158, %v4191
  %v4200 = vadd.f32 %v4148, %v4192
  %v4201 = vadd.f32 %v4149, %v4193
  %v4202 = vadd.f32 %v4150, %v4194
  %v4203 = vadd.f32 %v4151, %v4195
  %v4204 = vadd.f32 %v4152, %v4196
  %v4205 = vadd.f32 %v4153, %v4197
  %v4206 = vadd.f32 %v4154, %v4198
  %v4207 = vadd.f32 %v4155, %v4199
  %v4208 = vmul.f32 %v3775, %v551
  %v4209 = vmul.f32 %v3776, %v555
  %v4210 = vmul.f32 %v3777, %v559
  %v4211 = vmul.f32 %v3774, %v563
  %v4212 = vmul.f32 %v3779, %v551
  %v4213 = vmul.f32 %v3780, %v555
  %v4214 = vmul.f32 %v3781, %v559
  %v4215 = vmul.f32 %v3778, %v563
  %4216 = vset.pattern.permute.xlu0 92
  %4217 = vperm.xlu0 %4216, %v3790
  %v4218 = vpop.permute.xlu0 %4217
  %v4220 = vlaneseq
  %v4221 = vshrl.u32 %v4220, 7
  %v4222 = vsub.s32 0, %v4221
  %v4223 = vrot.slane %v4208, %v4222
  %v4224 = vlaneseq
  %v4225 = vshrl.u32 %v4224, 7
  %v4226 = vsub.s32 0, %v4225
  %v4227 = vrot.slane %v4209, %v4226
  %v4228 = vlaneseq
  %v4229 = vshrl.u32 %v4228, 7
  %v4230 = vsub.s32 0, %v4229
  %v4231 = vrot.slane %v4210, %v4230
  %v4232 = vlaneseq
  %v4233 = vshrl.u32 %v4232, 7
  %v4234 = vsub.s32 0, %v4233
  %v4235 = vrot.slane %v4211, %v4234
  %v4236 = vlaneseq
  %v4237 = vshrl.u32 %v4236, 7
  %v4238 = vsub.s32 0, %v4237
  %v4239 = vrot.slane %v4212, %v4238
  %v4240 = vlaneseq
  %v4241 = vshrl.u32 %v4240, 7
  %v4242 = vsub.s32 0, %v4241
  %v4243 = vrot.slane %v4213, %v4242
  %v4244 = vlaneseq
  %v4245 = vshrl.u32 %v4244, 7
  %v4246 = vsub.s32 0, %v4245
  %v4247 = vrot.slane %v4214, %v4246
  %v4248 = vlaneseq
  %v4249 = vshrl.u32 %v4248, 7
  %v4250 = vsub.s32 0, %v4249
  %v4251 = vrot.slane %v4215, %v4250
  %v4252 = vmul.f32 %v4218, %v4223
  %v4253 = vmul.f32 %v4218, %v4227
  %v4254 = vmul.f32 %v4218, %v4231
  %v4255 = vmul.f32 %v4218, %v4235
  %v4256 = vmul.f32 %v4218, %v4239
  %v4257 = vmul.f32 %v4218, %v4243
  %v4258 = vmul.f32 %v4218, %v4247
  %v4259 = vmul.f32 %v4218, %v4251
  %v4260 = vadd.f32 %v4200, %v4252
  %v4261 = vadd.f32 %v4201, %v4253
  %v4262 = vadd.f32 %v4202, %v4254
  %v4263 = vadd.f32 %v4203, %v4255
  %v4264 = vadd.f32 %v4204, %v4256
  %v4265 = vadd.f32 %v4205, %v4257
  %v4266 = vadd.f32 %v4206, %v4258
  %v4267 = vadd.f32 %v4207, %v4259
  %4268 = vset.pattern.permute.xlu0 93
  %4269 = vperm.xlu0 %4268, %v3790
  %v4270 = vpop.permute.xlu0 %4269
  %v4272 = vlaneseq
  %v4273 = vshrl.u32 %v4272, 7
  %v4274 = vsub.s32 1, %v4273
  %v4275 = vrot.slane %v4208, %v4274
  %v4276 = vlaneseq
  %v4277 = vshrl.u32 %v4276, 7
  %v4278 = vsub.s32 1, %v4277
  %v4279 = vrot.slane %v4209, %v4278
  %v4280 = vlaneseq
  %v4281 = vshrl.u32 %v4280, 7
  %v4282 = vsub.s32 1, %v4281
  %v4283 = vrot.slane %v4210, %v4282
  %v4284 = vlaneseq
  %v4285 = vshrl.u32 %v4284, 7
  %v4286 = vsub.s32 1, %v4285
  %v4287 = vrot.slane %v4211, %v4286
  %v4288 = vlaneseq
  %v4289 = vshrl.u32 %v4288, 7
  %v4290 = vsub.s32 1, %v4289
  %v4291 = vrot.slane %v4212, %v4290
  %v4292 = vlaneseq
  %v4293 = vshrl.u32 %v4292, 7
  %v4294 = vsub.s32 1, %v4293
  %v4295 = vrot.slane %v4213, %v4294
  %v4296 = vlaneseq
  %v4297 = vshrl.u32 %v4296, 7
  %v4298 = vsub.s32 1, %v4297
  %v4299 = vrot.slane %v4214, %v4298
  %v4300 = vlaneseq
  %v4301 = vshrl.u32 %v4300, 7
  %v4302 = vsub.s32 1, %v4301
  %v4303 = vrot.slane %v4215, %v4302
  %v4304 = vmul.f32 %v4270, %v4275
  %v4305 = vmul.f32 %v4270, %v4279
  %v4306 = vmul.f32 %v4270, %v4283
  %v4307 = vmul.f32 %v4270, %v4287
  %v4308 = vmul.f32 %v4270, %v4291
  %v4309 = vmul.f32 %v4270, %v4295
  %v4310 = vmul.f32 %v4270, %v4299
  %v4311 = vmul.f32 %v4270, %v4303
  %v4312 = vadd.f32 %v4260, %v4304
  %v4313 = vadd.f32 %v4261, %v4305
  %v4314 = vadd.f32 %v4262, %v4306
  %v4315 = vadd.f32 %v4263, %v4307
  %v4316 = vadd.f32 %v4264, %v4308
  %v4317 = vadd.f32 %v4265, %v4309
  %v4318 = vadd.f32 %v4266, %v4310
  %v4319 = vadd.f32 %v4267, %v4311
  %4320 = vset.pattern.permute.xlu0 94
  %4321 = vperm.xlu0 %4320, %v3790
  %v4322 = vpop.permute.xlu0 %4321
  %v4324 = vlaneseq
  %v4325 = vshrl.u32 %v4324, 7
  %v4326 = vsub.s32 2, %v4325
  %v4327 = vrot.slane %v4208, %v4326
  %v4328 = vlaneseq
  %v4329 = vshrl.u32 %v4328, 7
  %v4330 = vsub.s32 2, %v4329
  %v4331 = vrot.slane %v4209, %v4330
  %v4332 = vlaneseq
  %v4333 = vshrl.u32 %v4332, 7
  %v4334 = vsub.s32 2, %v4333
  %v4335 = vrot.slane %v4210, %v4334
  %v4336 = vlaneseq
  %v4337 = vshrl.u32 %v4336, 7
  %v4338 = vsub.s32 2, %v4337
  %v4339 = vrot.slane %v4211, %v4338
  %v4340 = vlaneseq
  %v4341 = vshrl.u32 %v4340, 7
  %v4342 = vsub.s32 2, %v4341
  %v4343 = vrot.slane %v4212, %v4342
  %v4344 = vlaneseq
  %v4345 = vshrl.u32 %v4344, 7
  %v4346 = vsub.s32 2, %v4345
  %v4347 = vrot.slane %v4213, %v4346
  %v4348 = vlaneseq
  %v4349 = vshrl.u32 %v4348, 7
  %v4350 = vsub.s32 2, %v4349
  %v4351 = vrot.slane %v4214, %v4350
  %v4352 = vlaneseq
  %v4353 = vshrl.u32 %v4352, 7
  %v4354 = vsub.s32 2, %v4353
  %v4355 = vrot.slane %v4215, %v4354
  %v4356 = vmul.f32 %v4322, %v4327
  %v4357 = vmul.f32 %v4322, %v4331
  %v4358 = vmul.f32 %v4322, %v4335
  %v4359 = vmul.f32 %v4322, %v4339
  %v4360 = vmul.f32 %v4322, %v4343
  %v4361 = vmul.f32 %v4322, %v4347
  %v4362 = vmul.f32 %v4322, %v4351
  %v4363 = vmul.f32 %v4322, %v4355
  %v4364 = vadd.f32 %v4312, %v4356
  %v4365 = vadd.f32 %v4313, %v4357
  %v4366 = vadd.f32 %v4314, %v4358
  %v4367 = vadd.f32 %v4315, %v4359
  %v4368 = vadd.f32 %v4316, %v4360
  %v4369 = vadd.f32 %v4317, %v4361
  %v4370 = vadd.f32 %v4318, %v4362
  %v4371 = vadd.f32 %v4319, %v4363
  %4372 = vset.pattern.permute.xlu0 95
  %4373 = vperm.xlu0 %4372, %v3790
  %v4374 = vpop.permute.xlu0 %4373
  %v4376 = vlaneseq
  %v4377 = vshrl.u32 %v4376, 7
  %v4378 = vsub.s32 3, %v4377
  %v4379 = vrot.slane %v4208, %v4378
  %v4380 = vlaneseq
  %v4381 = vshrl.u32 %v4380, 7
  %v4382 = vsub.s32 3, %v4381
  %v4383 = vrot.slane %v4209, %v4382
  %v4384 = vlaneseq
  %v4385 = vshrl.u32 %v4384, 7
  %v4386 = vsub.s32 3, %v4385
  %v4387 = vrot.slane %v4210, %v4386
  %v4388 = vlaneseq
  %v4389 = vshrl.u32 %v4388, 7
  %v4390 = vsub.s32 3, %v4389
  %v4391 = vrot.slane %v4211, %v4390
  %v4392 = vlaneseq
  %v4393 = vshrl.u32 %v4392, 7
  %v4394 = vsub.s32 3, %v4393
  %v4395 = vrot.slane %v4212, %v4394
  %v4396 = vlaneseq
  %v4397 = vshrl.u32 %v4396, 7
  %v4398 = vsub.s32 3, %v4397
  %v4399 = vrot.slane %v4213, %v4398
  %v4400 = vlaneseq
  %v4401 = vshrl.u32 %v4400, 7
  %v4402 = vsub.s32 3, %v4401
  %v4403 = vrot.slane %v4214, %v4402
  %v4404 = vlaneseq
  %v4405 = vshrl.u32 %v4404, 7
  %v4406 = vsub.s32 3, %v4405
  %v4407 = vrot.slane %v4215, %v4406
  %v4408 = vmul.f32 %v4374, %v4379
  %v4409 = vmul.f32 %v4374, %v4383
  %v4410 = vmul.f32 %v4374, %v4387
  %v4411 = vmul.f32 %v4374, %v4391
  %v4412 = vmul.f32 %v4374, %v4395
  %v4413 = vmul.f32 %v4374, %v4399
  %v4414 = vmul.f32 %v4374, %v4403
  %v4415 = vmul.f32 %v4374, %v4407
  %v4416 = vadd.f32 %v4364, %v4408
  %v4417 = vadd.f32 %v4365, %v4409
  %v4418 = vadd.f32 %v4366, %v4410
  %v4419 = vadd.f32 %v4367, %v4411
  %v4420 = vadd.f32 %v4368, %v4412
  %v4421 = vadd.f32 %v4369, %v4413
  %v4422 = vadd.f32 %v4370, %v4414
  %v4423 = vadd.f32 %v4371, %v4415
  %4424 = vrot.lane.b32.xlu0 %v20, 114
  %v4425 = vpop.permute.xlu0 %4424
  %4426 = vrot.lane.b32.xlu0 %v36, 114
  %v4427 = vpop.permute.xlu0 %4426
  %4428 = vrot.lane.b32.xlu0 %v21, 114
  %v4429 = vpop.permute.xlu0 %4428
  %4430 = vrot.lane.b32.xlu0 %v26, 114
  %v4431 = vpop.permute.xlu0 %4430
  %4432 = vrot.lane.b32.xlu0 %v22, 114
  %v4433 = vpop.permute.xlu0 %4432
  %4434 = vrot.lane.b32.xlu0 %v37, 114
  %v4435 = vpop.permute.xlu0 %4434
  %4436 = vrot.lane.b32.xlu0 %v23, 114
  %v4437 = vpop.permute.xlu0 %4436
  %4438 = vrot.lane.b32.xlu0 %v27, 114
  %v4439 = vpop.permute.xlu0 %4438
  %vm4440 = vcmask 932864
  %v4441 = vsel %vm4440, %v4425, %v4427
  %v4442 = vsel %vm4440, %v4427, %v4429
  %v4443 = vsel %vm4440, %v4429, %v4431
  %v4444 = vsel %vm4440, %v4433, %v4435
  %v4445 = vsel %vm4440, %v4435, %v4437
  %v4446 = vsel %vm4440, %v4437, %v4439
  %v4457 = vsel %vm4440, %v4431, %v4425
  %v4458 = vsel %vm4440, %v4439, %v4433
  %s4459 = scalar_lea.vmem %s1, 6
  %v4460 = vld [vmem:[%s4459] ss:$8 sm:$0xf]
  %v4462 = vlaneseq
  %v4463 = vshrl.u32 %v4462, 7
  %v4464 = vsub.s32 0, %v4463
  %v4465 = vrot.slane %v4460, %v4464
  %v4466 = vlaneseq
  %v4467 = vshrl.u32 %v4466, 7
  %v4468 = vsub.s32 1, %v4467
  %v4469 = vrot.slane %v4460, %v4468
  %v4470 = vlaneseq
  %v4471 = vshrl.u32 %v4470, 7
  %v4472 = vsub.s32 2, %v4471
  %v4473 = vrot.slane %v4460, %v4472
  %v4474 = vlaneseq
  %v4475 = vshrl.u32 %v4474, 7
  %v4476 = vsub.s32 3, %v4475
  %v4477 = vrot.slane %v4460, %v4476
  %v4482 = vmul.f32 %v4441, %v4465
  %v4483 = vmul.f32 %v4442, %v4469
  %v4484 = vmul.f32 %v4443, %v4473
  %v4485 = vmul.f32 %v4457, %v4477
  %v4486 = vmul.f32 %v4444, %v4465
  %v4487 = vmul.f32 %v4445, %v4469
  %v4488 = vmul.f32 %v4446, %v4473
  %v4489 = vmul.f32 %v4458, %v4477
  %v4490 = vmul.f32 %v4485, %v102
  %v4491 = vmul.f32 %v4482, %v106
  %v4492 = vmul.f32 %v4483, %v110
  %v4493 = vmul.f32 %v4484, %v114
  %v4494 = vmul.f32 %v4489, %v102
  %v4495 = vmul.f32 %v4486, %v106
  %v4496 = vmul.f32 %v4487, %v110
  %v4497 = vmul.f32 %v4488, %v114
  %v4498 = vld [vmem:[%s3] sm:$0xf]
  %4500 = vset.pattern.permute.xlu0 24
  %4501 = vperm.xlu0 %4500, %v4498
  %v4502 = vpop.permute.xlu0 %4501
  %v4504 = vlaneseq
  %v4505 = vshrl.u32 %v4504, 7
  %v4506 = vsub.s32 0, %v4505
  %v4507 = vrot.slane %v4490, %v4506
  %v4508 = vlaneseq
  %v4509 = vshrl.u32 %v4508, 7
  %v4510 = vsub.s32 0, %v4509
  %v4511 = vrot.slane %v4491, %v4510
  %v4512 = vlaneseq
  %v4513 = vshrl.u32 %v4512, 7
  %v4514 = vsub.s32 0, %v4513
  %v4515 = vrot.slane %v4492, %v4514
  %v4516 = vlaneseq
  %v4517 = vshrl.u32 %v4516, 7
  %v4518 = vsub.s32 0, %v4517
  %v4519 = vrot.slane %v4493, %v4518
  %v4520 = vlaneseq
  %v4521 = vshrl.u32 %v4520, 7
  %v4522 = vsub.s32 0, %v4521
  %v4523 = vrot.slane %v4494, %v4522
  %v4524 = vlaneseq
  %v4525 = vshrl.u32 %v4524, 7
  %v4526 = vsub.s32 0, %v4525
  %v4527 = vrot.slane %v4495, %v4526
  %v4528 = vlaneseq
  %v4529 = vshrl.u32 %v4528, 7
  %v4530 = vsub.s32 0, %v4529
  %v4531 = vrot.slane %v4496, %v4530
  %v4532 = vlaneseq
  %v4533 = vshrl.u32 %v4532, 7
  %v4534 = vsub.s32 0, %v4533
  %v4535 = vrot.slane %v4497, %v4534
  %v4536 = vmul.f32 %v4502, %v4507
  %v4537 = vmul.f32 %v4502, %v4511
  %v4538 = vmul.f32 %v4502, %v4515
  %v4539 = vmul.f32 %v4502, %v4519
  %v4540 = vmul.f32 %v4502, %v4523
  %v4541 = vmul.f32 %v4502, %v4527
  %v4542 = vmul.f32 %v4502, %v4531
  %v4543 = vmul.f32 %v4502, %v4535
  %v4544 = vadd.f32 %v4416, %v4536
  %v4545 = vadd.f32 %v4417, %v4537
  %v4546 = vadd.f32 %v4418, %v4538
  %v4547 = vadd.f32 %v4419, %v4539
  %v4548 = vadd.f32 %v4420, %v4540
  %v4549 = vadd.f32 %v4421, %v4541
  %v4550 = vadd.f32 %v4422, %v4542
  %v4551 = vadd.f32 %v4423, %v4543
  %4552 = vset.pattern.permute.xlu0 25
  %4553 = vperm.xlu0 %4552, %v4498
  %v4554 = vpop.permute.xlu0 %4553
  %v4556 = vlaneseq
  %v4557 = vshrl.u32 %v4556, 7
  %v4558 = vsub.s32 1, %v4557
  %v4559 = vrot.slane %v4490, %v4558
  %v4560 = vlaneseq
  %v4561 = vshrl.u32 %v4560, 7
  %v4562 = vsub.s32 1, %v4561
  %v4563 = vrot.slane %v4491, %v4562
  %v4564 = vlaneseq
  %v4565 = vshrl.u32 %v4564, 7
  %v4566 = vsub.s32 1, %v4565
  %v4567 = vrot.slane %v4492, %v4566
  %v4568 = vlaneseq
  %v4569 = vshrl.u32 %v4568, 7
  %v4570 = vsub.s32 1, %v4569
  %v4571 = vrot.slane %v4493, %v4570
  %v4572 = vlaneseq
  %v4573 = vshrl.u32 %v4572, 7
  %v4574 = vsub.s32 1, %v4573
  %v4575 = vrot.slane %v4494, %v4574
  %v4576 = vlaneseq
  %v4577 = vshrl.u32 %v4576, 7
  %v4578 = vsub.s32 1, %v4577
  %v4579 = vrot.slane %v4495, %v4578
  %v4580 = vlaneseq
  %v4581 = vshrl.u32 %v4580, 7
  %v4582 = vsub.s32 1, %v4581
  %v4583 = vrot.slane %v4496, %v4582
  %v4584 = vlaneseq
  %v4585 = vshrl.u32 %v4584, 7
  %v4586 = vsub.s32 1, %v4585
  %v4587 = vrot.slane %v4497, %v4586
  %v4588 = vmul.f32 %v4554, %v4559
  %v4589 = vmul.f32 %v4554, %v4563
  %v4590 = vmul.f32 %v4554, %v4567
  %v4591 = vmul.f32 %v4554, %v4571
  %v4592 = vmul.f32 %v4554, %v4575
  %v4593 = vmul.f32 %v4554, %v4579
  %v4594 = vmul.f32 %v4554, %v4583
  %v4595 = vmul.f32 %v4554, %v4587
  %v4596 = vadd.f32 %v4544, %v4588
  %v4597 = vadd.f32 %v4545, %v4589
  %v4598 = vadd.f32 %v4546, %v4590
  %v4599 = vadd.f32 %v4547, %v4591
  %v4600 = vadd.f32 %v4548, %v4592
  %v4601 = vadd.f32 %v4549, %v4593
  %v4602 = vadd.f32 %v4550, %v4594
  %v4603 = vadd.f32 %v4551, %v4595
  %4604 = vset.pattern.permute.xlu0 26
  %4605 = vperm.xlu0 %4604, %v4498
  %v4606 = vpop.permute.xlu0 %4605
  %v4608 = vlaneseq
  %v4609 = vshrl.u32 %v4608, 7
  %v4610 = vsub.s32 2, %v4609
  %v4611 = vrot.slane %v4490, %v4610
  %v4612 = vlaneseq
  %v4613 = vshrl.u32 %v4612, 7
  %v4614 = vsub.s32 2, %v4613
  %v4615 = vrot.slane %v4491, %v4614
  %v4616 = vlaneseq
  %v4617 = vshrl.u32 %v4616, 7
  %v4618 = vsub.s32 2, %v4617
  %v4619 = vrot.slane %v4492, %v4618
  %v4620 = vlaneseq
  %v4621 = vshrl.u32 %v4620, 7
  %v4622 = vsub.s32 2, %v4621
  %v4623 = vrot.slane %v4493, %v4622
  %v4624 = vlaneseq
  %v4625 = vshrl.u32 %v4624, 7
  %v4626 = vsub.s32 2, %v4625
  %v4627 = vrot.slane %v4494, %v4626
  %v4628 = vlaneseq
  %v4629 = vshrl.u32 %v4628, 7
  %v4630 = vsub.s32 2, %v4629
  %v4631 = vrot.slane %v4495, %v4630
  %v4632 = vlaneseq
  %v4633 = vshrl.u32 %v4632, 7
  %v4634 = vsub.s32 2, %v4633
  %v4635 = vrot.slane %v4496, %v4634
  %v4636 = vlaneseq
  %v4637 = vshrl.u32 %v4636, 7
  %v4638 = vsub.s32 2, %v4637
  %v4639 = vrot.slane %v4497, %v4638
  %v4640 = vmul.f32 %v4606, %v4611
  %v4641 = vmul.f32 %v4606, %v4615
  %v4642 = vmul.f32 %v4606, %v4619
  %v4643 = vmul.f32 %v4606, %v4623
  %v4644 = vmul.f32 %v4606, %v4627
  %v4645 = vmul.f32 %v4606, %v4631
  %v4646 = vmul.f32 %v4606, %v4635
  %v4647 = vmul.f32 %v4606, %v4639
  %v4648 = vadd.f32 %v4596, %v4640
  %v4649 = vadd.f32 %v4597, %v4641
  %v4650 = vadd.f32 %v4598, %v4642
  %v4651 = vadd.f32 %v4599, %v4643
  %v4652 = vadd.f32 %v4600, %v4644
  %v4653 = vadd.f32 %v4601, %v4645
  %v4654 = vadd.f32 %v4602, %v4646
  %v4655 = vadd.f32 %v4603, %v4647
  %4656 = vset.pattern.permute.xlu0 27
  %4657 = vperm.xlu0 %4656, %v4498
  %v4658 = vpop.permute.xlu0 %4657
  %v4660 = vlaneseq
  %v4661 = vshrl.u32 %v4660, 7
  %v4662 = vsub.s32 3, %v4661
  %v4663 = vrot.slane %v4490, %v4662
  %v4664 = vlaneseq
  %v4665 = vshrl.u32 %v4664, 7
  %v4666 = vsub.s32 3, %v4665
  %v4667 = vrot.slane %v4491, %v4666
  %v4668 = vlaneseq
  %v4669 = vshrl.u32 %v4668, 7
  %v4670 = vsub.s32 3, %v4669
  %v4671 = vrot.slane %v4492, %v4670
  %v4672 = vlaneseq
  %v4673 = vshrl.u32 %v4672, 7
  %v4674 = vsub.s32 3, %v4673
  %v4675 = vrot.slane %v4493, %v4674
  %v4676 = vlaneseq
  %v4677 = vshrl.u32 %v4676, 7
  %v4678 = vsub.s32 3, %v4677
  %v4679 = vrot.slane %v4494, %v4678
  %v4680 = vlaneseq
  %v4681 = vshrl.u32 %v4680, 7
  %v4682 = vsub.s32 3, %v4681
  %v4683 = vrot.slane %v4495, %v4682
  %v4684 = vlaneseq
  %v4685 = vshrl.u32 %v4684, 7
  %v4686 = vsub.s32 3, %v4685
  %v4687 = vrot.slane %v4496, %v4686
  %v4688 = vlaneseq
  %v4689 = vshrl.u32 %v4688, 7
  %v4690 = vsub.s32 3, %v4689
  %v4691 = vrot.slane %v4497, %v4690
  %v4692 = vmul.f32 %v4658, %v4663
  %v4693 = vmul.f32 %v4658, %v4667
  %v4694 = vmul.f32 %v4658, %v4671
  %v4695 = vmul.f32 %v4658, %v4675
  %v4696 = vmul.f32 %v4658, %v4679
  %v4697 = vmul.f32 %v4658, %v4683
  %v4698 = vmul.f32 %v4658, %v4687
  %v4699 = vmul.f32 %v4658, %v4691
  %v4700 = vadd.f32 %v4648, %v4692
  %v4701 = vadd.f32 %v4649, %v4693
  %v4702 = vadd.f32 %v4650, %v4694
  %v4703 = vadd.f32 %v4651, %v4695
  %v4704 = vadd.f32 %v4652, %v4696
  %v4705 = vadd.f32 %v4653, %v4697
  %v4706 = vadd.f32 %v4654, %v4698
  %v4707 = vadd.f32 %v4655, %v4699
  %4708 = vset.pattern.permute.xlu0 60
  %4709 = vperm.xlu0 %4708, %v4498
  %v4710 = vpop.permute.xlu0 %4709
  %v4712 = vlaneseq
  %v4713 = vshrl.u32 %v4712, 7
  %v4714 = vsub.s32 0, %v4713
  %v4715 = vrot.slane %v4482, %v4714
  %v4716 = vlaneseq
  %v4717 = vshrl.u32 %v4716, 7
  %v4718 = vsub.s32 0, %v4717
  %v4719 = vrot.slane %v4483, %v4718
  %v4720 = vlaneseq
  %v4721 = vshrl.u32 %v4720, 7
  %v4722 = vsub.s32 0, %v4721
  %v4723 = vrot.slane %v4484, %v4722
  %v4724 = vlaneseq
  %v4725 = vshrl.u32 %v4724, 7
  %v4726 = vsub.s32 0, %v4725
  %v4727 = vrot.slane %v4485, %v4726
  %v4728 = vlaneseq
  %v4729 = vshrl.u32 %v4728, 7
  %v4730 = vsub.s32 0, %v4729
  %v4731 = vrot.slane %v4486, %v4730
  %v4732 = vlaneseq
  %v4733 = vshrl.u32 %v4732, 7
  %v4734 = vsub.s32 0, %v4733
  %v4735 = vrot.slane %v4487, %v4734
  %v4736 = vlaneseq
  %v4737 = vshrl.u32 %v4736, 7
  %v4738 = vsub.s32 0, %v4737
  %v4739 = vrot.slane %v4488, %v4738
  %v4740 = vlaneseq
  %v4741 = vshrl.u32 %v4740, 7
  %v4742 = vsub.s32 0, %v4741
  %v4743 = vrot.slane %v4489, %v4742
  %v4744 = vmul.f32 %v4710, %v4715
  %v4745 = vmul.f32 %v4710, %v4719
  %v4746 = vmul.f32 %v4710, %v4723
  %v4747 = vmul.f32 %v4710, %v4727
  %v4748 = vmul.f32 %v4710, %v4731
  %v4749 = vmul.f32 %v4710, %v4735
  %v4750 = vmul.f32 %v4710, %v4739
  %v4751 = vmul.f32 %v4710, %v4743
  %v4752 = vadd.f32 %v4700, %v4744
  %v4753 = vadd.f32 %v4701, %v4745
  %v4754 = vadd.f32 %v4702, %v4746
  %v4755 = vadd.f32 %v4703, %v4747
  %v4756 = vadd.f32 %v4704, %v4748
  %v4757 = vadd.f32 %v4705, %v4749
  %v4758 = vadd.f32 %v4706, %v4750
  %v4759 = vadd.f32 %v4707, %v4751
  %4760 = vset.pattern.permute.xlu0 61
  %4761 = vperm.xlu0 %4760, %v4498
  %v4762 = vpop.permute.xlu0 %4761
  %v4764 = vlaneseq
  %v4765 = vshrl.u32 %v4764, 7
  %v4766 = vsub.s32 1, %v4765
  %v4767 = vrot.slane %v4482, %v4766
  %v4768 = vlaneseq
  %v4769 = vshrl.u32 %v4768, 7
  %v4770 = vsub.s32 1, %v4769
  %v4771 = vrot.slane %v4483, %v4770
  %v4772 = vlaneseq
  %v4773 = vshrl.u32 %v4772, 7
  %v4774 = vsub.s32 1, %v4773
  %v4775 = vrot.slane %v4484, %v4774
  %v4776 = vlaneseq
  %v4777 = vshrl.u32 %v4776, 7
  %v4778 = vsub.s32 1, %v4777
  %v4779 = vrot.slane %v4485, %v4778
  %v4780 = vlaneseq
  %v4781 = vshrl.u32 %v4780, 7
  %v4782 = vsub.s32 1, %v4781
  %v4783 = vrot.slane %v4486, %v4782
  %v4784 = vlaneseq
  %v4785 = vshrl.u32 %v4784, 7
  %v4786 = vsub.s32 1, %v4785
  %v4787 = vrot.slane %v4487, %v4786
  %v4788 = vlaneseq
  %v4789 = vshrl.u32 %v4788, 7
  %v4790 = vsub.s32 1, %v4789
  %v4791 = vrot.slane %v4488, %v4790
  %v4792 = vlaneseq
  %v4793 = vshrl.u32 %v4792, 7
  %v4794 = vsub.s32 1, %v4793
  %v4795 = vrot.slane %v4489, %v4794
  %v4796 = vmul.f32 %v4762, %v4767
  %v4797 = vmul.f32 %v4762, %v4771
  %v4798 = vmul.f32 %v4762, %v4775
  %v4799 = vmul.f32 %v4762, %v4779
  %v4800 = vmul.f32 %v4762, %v4783
  %v4801 = vmul.f32 %v4762, %v4787
  %v4802 = vmul.f32 %v4762, %v4791
  %v4803 = vmul.f32 %v4762, %v4795
  %v4804 = vadd.f32 %v4752, %v4796
  %v4805 = vadd.f32 %v4753, %v4797
  %v4806 = vadd.f32 %v4754, %v4798
  %v4807 = vadd.f32 %v4755, %v4799
  %v4808 = vadd.f32 %v4756, %v4800
  %v4809 = vadd.f32 %v4757, %v4801
  %v4810 = vadd.f32 %v4758, %v4802
  %v4811 = vadd.f32 %v4759, %v4803
  %4812 = vset.pattern.permute.xlu0 62
  %4813 = vperm.xlu0 %4812, %v4498
  %v4814 = vpop.permute.xlu0 %4813
  %v4816 = vlaneseq
  %v4817 = vshrl.u32 %v4816, 7
  %v4818 = vsub.s32 2, %v4817
  %v4819 = vrot.slane %v4482, %v4818
  %v4820 = vlaneseq
  %v4821 = vshrl.u32 %v4820, 7
  %v4822 = vsub.s32 2, %v4821
  %v4823 = vrot.slane %v4483, %v4822
  %v4824 = vlaneseq
  %v4825 = vshrl.u32 %v4824, 7
  %v4826 = vsub.s32 2, %v4825
  %v4827 = vrot.slane %v4484, %v4826
  %v4828 = vlaneseq
  %v4829 = vshrl.u32 %v4828, 7
  %v4830 = vsub.s32 2, %v4829
  %v4831 = vrot.slane %v4485, %v4830
  %v4832 = vlaneseq
  %v4833 = vshrl.u32 %v4832, 7
  %v4834 = vsub.s32 2, %v4833
  %v4835 = vrot.slane %v4486, %v4834
  %v4836 = vlaneseq
  %v4837 = vshrl.u32 %v4836, 7
  %v4838 = vsub.s32 2, %v4837
  %v4839 = vrot.slane %v4487, %v4838
  %v4840 = vlaneseq
  %v4841 = vshrl.u32 %v4840, 7
  %v4842 = vsub.s32 2, %v4841
  %v4843 = vrot.slane %v4488, %v4842
  %v4844 = vlaneseq
  %v4845 = vshrl.u32 %v4844, 7
  %v4846 = vsub.s32 2, %v4845
  %v4847 = vrot.slane %v4489, %v4846
  %v4848 = vmul.f32 %v4814, %v4819
  %v4849 = vmul.f32 %v4814, %v4823
  %v4850 = vmul.f32 %v4814, %v4827
  %v4851 = vmul.f32 %v4814, %v4831
  %v4852 = vmul.f32 %v4814, %v4835
  %v4853 = vmul.f32 %v4814, %v4839
  %v4854 = vmul.f32 %v4814, %v4843
  %v4855 = vmul.f32 %v4814, %v4847
  %v4856 = vadd.f32 %v4804, %v4848
  %v4857 = vadd.f32 %v4805, %v4849
  %v4858 = vadd.f32 %v4806, %v4850
  %v4859 = vadd.f32 %v4807, %v4851
  %v4860 = vadd.f32 %v4808, %v4852
  %v4861 = vadd.f32 %v4809, %v4853
  %v4862 = vadd.f32 %v4810, %v4854
  %v4863 = vadd.f32 %v4811, %v4855
  %4864 = vset.pattern.permute.xlu0 63
  %4865 = vperm.xlu0 %4864, %v4498
  %v4866 = vpop.permute.xlu0 %4865
  %v4868 = vlaneseq
  %v4869 = vshrl.u32 %v4868, 7
  %v4870 = vsub.s32 3, %v4869
  %v4871 = vrot.slane %v4482, %v4870
  %v4872 = vlaneseq
  %v4873 = vshrl.u32 %v4872, 7
  %v4874 = vsub.s32 3, %v4873
  %v4875 = vrot.slane %v4483, %v4874
  %v4876 = vlaneseq
  %v4877 = vshrl.u32 %v4876, 7
  %v4878 = vsub.s32 3, %v4877
  %v4879 = vrot.slane %v4484, %v4878
  %v4880 = vlaneseq
  %v4881 = vshrl.u32 %v4880, 7
  %v4882 = vsub.s32 3, %v4881
  %v4883 = vrot.slane %v4485, %v4882
  %v4884 = vlaneseq
  %v4885 = vshrl.u32 %v4884, 7
  %v4886 = vsub.s32 3, %v4885
  %v4887 = vrot.slane %v4486, %v4886
  %v4888 = vlaneseq
  %v4889 = vshrl.u32 %v4888, 7
  %v4890 = vsub.s32 3, %v4889
  %v4891 = vrot.slane %v4487, %v4890
  %v4892 = vlaneseq
  %v4893 = vshrl.u32 %v4892, 7
  %v4894 = vsub.s32 3, %v4893
  %v4895 = vrot.slane %v4488, %v4894
  %v4896 = vlaneseq
  %v4897 = vshrl.u32 %v4896, 7
  %v4898 = vsub.s32 3, %v4897
  %v4899 = vrot.slane %v4489, %v4898
  %v4900 = vmul.f32 %v4866, %v4871
  %v4901 = vmul.f32 %v4866, %v4875
  %v4902 = vmul.f32 %v4866, %v4879
  %v4903 = vmul.f32 %v4866, %v4883
  %v4904 = vmul.f32 %v4866, %v4887
  %v4905 = vmul.f32 %v4866, %v4891
  %v4906 = vmul.f32 %v4866, %v4895
  %v4907 = vmul.f32 %v4866, %v4899
  %v4908 = vadd.f32 %v4856, %v4900
  %v4909 = vadd.f32 %v4857, %v4901
  %v4910 = vadd.f32 %v4858, %v4902
  %v4911 = vadd.f32 %v4859, %v4903
  %v4912 = vadd.f32 %v4860, %v4904
  %v4913 = vadd.f32 %v4861, %v4905
  %v4914 = vadd.f32 %v4862, %v4906
  %v4915 = vadd.f32 %v4863, %v4907
  %v4916 = vmul.f32 %v4483, %v551
  %v4917 = vmul.f32 %v4484, %v555
  %v4918 = vmul.f32 %v4485, %v559
  %v4919 = vmul.f32 %v4482, %v563
  %v4920 = vmul.f32 %v4487, %v551
  %v4921 = vmul.f32 %v4488, %v555
  %v4922 = vmul.f32 %v4489, %v559
  %v4923 = vmul.f32 %v4486, %v563
  %4924 = vset.pattern.permute.xlu0 96
  %4925 = vperm.xlu0 %4924, %v4498
  %v4926 = vpop.permute.xlu0 %4925
  %v4928 = vlaneseq
  %v4929 = vshrl.u32 %v4928, 7
  %v4930 = vsub.s32 0, %v4929
  %v4931 = vrot.slane %v4916, %v4930
  %v4932 = vlaneseq
  %v4933 = vshrl.u32 %v4932, 7
  %v4934 = vsub.s32 0, %v4933
  %v4935 = vrot.slane %v4917, %v4934
  %v4936 = vlaneseq
  %v4937 = vshrl.u32 %v4936, 7
  %v4938 = vsub.s32 0, %v4937
  %v4939 = vrot.slane %v4918, %v4938
  %v4940 = vlaneseq
  %v4941 = vshrl.u32 %v4940, 7
  %v4942 = vsub.s32 0, %v4941
  %v4943 = vrot.slane %v4919, %v4942
  %v4944 = vlaneseq
  %v4945 = vshrl.u32 %v4944, 7
  %v4946 = vsub.s32 0, %v4945
  %v4947 = vrot.slane %v4920, %v4946
  %v4948 = vlaneseq
  %v4949 = vshrl.u32 %v4948, 7
  %v4950 = vsub.s32 0, %v4949
  %v4951 = vrot.slane %v4921, %v4950
  %v4952 = vlaneseq
  %v4953 = vshrl.u32 %v4952, 7
  %v4954 = vsub.s32 0, %v4953
  %v4955 = vrot.slane %v4922, %v4954
  %v4956 = vlaneseq
  %v4957 = vshrl.u32 %v4956, 7
  %v4958 = vsub.s32 0, %v4957
  %v4959 = vrot.slane %v4923, %v4958
  %v4960 = vmul.f32 %v4926, %v4931
  %v4961 = vmul.f32 %v4926, %v4935
  %v4962 = vmul.f32 %v4926, %v4939
  %v4963 = vmul.f32 %v4926, %v4943
  %v4964 = vmul.f32 %v4926, %v4947
  %v4965 = vmul.f32 %v4926, %v4951
  %v4966 = vmul.f32 %v4926, %v4955
  %v4967 = vmul.f32 %v4926, %v4959
  %v4968 = vadd.f32 %v4908, %v4960
  %v4969 = vadd.f32 %v4909, %v4961
  %v4970 = vadd.f32 %v4910, %v4962
  %v4971 = vadd.f32 %v4911, %v4963
  %v4972 = vadd.f32 %v4912, %v4964
  %v4973 = vadd.f32 %v4913, %v4965
  %v4974 = vadd.f32 %v4914, %v4966
  %v4975 = vadd.f32 %v4915, %v4967
  %4976 = vset.pattern.permute.xlu0 97
  %4977 = vperm.xlu0 %4976, %v4498
  %v4978 = vpop.permute.xlu0 %4977
  %v4980 = vlaneseq
  %v4981 = vshrl.u32 %v4980, 7
  %v4982 = vsub.s32 1, %v4981
  %v4983 = vrot.slane %v4916, %v4982
  %v4984 = vlaneseq
  %v4985 = vshrl.u32 %v4984, 7
  %v4986 = vsub.s32 1, %v4985
  %v4987 = vrot.slane %v4917, %v4986
  %v4988 = vlaneseq
  %v4989 = vshrl.u32 %v4988, 7
  %v4990 = vsub.s32 1, %v4989
  %v4991 = vrot.slane %v4918, %v4990
  %v4992 = vlaneseq
  %v4993 = vshrl.u32 %v4992, 7
  %v4994 = vsub.s32 1, %v4993
  %v4995 = vrot.slane %v4919, %v4994
  %v4996 = vlaneseq
  %v4997 = vshrl.u32 %v4996, 7
  %v4998 = vsub.s32 1, %v4997
  %v4999 = vrot.slane %v4920, %v4998
  %v5000 = vlaneseq
  %v5001 = vshrl.u32 %v5000, 7
  %v5002 = vsub.s32 1, %v5001
  %v5003 = vrot.slane %v4921, %v5002
  %v5004 = vlaneseq
  %v5005 = vshrl.u32 %v5004, 7
  %v5006 = vsub.s32 1, %v5005
  %v5007 = vrot.slane %v4922, %v5006
  %v5008 = vlaneseq
  %v5009 = vshrl.u32 %v5008, 7
  %v5010 = vsub.s32 1, %v5009
  %v5011 = vrot.slane %v4923, %v5010
  %v5012 = vmul.f32 %v4978, %v4983
  %v5013 = vmul.f32 %v4978, %v4987
  %v5014 = vmul.f32 %v4978, %v4991
  %v5015 = vmul.f32 %v4978, %v4995
  %v5016 = vmul.f32 %v4978, %v4999
  %v5017 = vmul.f32 %v4978, %v5003
  %v5018 = vmul.f32 %v4978, %v5007
  %v5019 = vmul.f32 %v4978, %v5011
  %v5020 = vadd.f32 %v4968, %v5012
  %v5021 = vadd.f32 %v4969, %v5013
  %v5022 = vadd.f32 %v4970, %v5014
  %v5023 = vadd.f32 %v4971, %v5015
  %v5024 = vadd.f32 %v4972, %v5016
  %v5025 = vadd.f32 %v4973, %v5017
  %v5026 = vadd.f32 %v4974, %v5018
  %v5027 = vadd.f32 %v4975, %v5019
  %5028 = vset.pattern.permute.xlu0 98
  %5029 = vperm.xlu0 %5028, %v4498
  %v5030 = vpop.permute.xlu0 %5029
  %v5032 = vlaneseq
  %v5033 = vshrl.u32 %v5032, 7
  %v5034 = vsub.s32 2, %v5033
  %v5035 = vrot.slane %v4916, %v5034
  %v5036 = vlaneseq
  %v5037 = vshrl.u32 %v5036, 7
  %v5038 = vsub.s32 2, %v5037
  %v5039 = vrot.slane %v4917, %v5038
  %v5040 = vlaneseq
  %v5041 = vshrl.u32 %v5040, 7
  %v5042 = vsub.s32 2, %v5041
  %v5043 = vrot.slane %v4918, %v5042
  %v5044 = vlaneseq
  %v5045 = vshrl.u32 %v5044, 7
  %v5046 = vsub.s32 2, %v5045
  %v5047 = vrot.slane %v4919, %v5046
  %v5048 = vlaneseq
  %v5049 = vshrl.u32 %v5048, 7
  %v5050 = vsub.s32 2, %v5049
  %v5051 = vrot.slane %v4920, %v5050
  %v5052 = vlaneseq
  %v5053 = vshrl.u32 %v5052, 7
  %v5054 = vsub.s32 2, %v5053
  %v5055 = vrot.slane %v4921, %v5054
  %v5056 = vlaneseq
  %v5057 = vshrl.u32 %v5056, 7
  %v5058 = vsub.s32 2, %v5057
  %v5059 = vrot.slane %v4922, %v5058
  %v5060 = vlaneseq
  %v5061 = vshrl.u32 %v5060, 7
  %v5062 = vsub.s32 2, %v5061
  %v5063 = vrot.slane %v4923, %v5062
  %v5064 = vmul.f32 %v5030, %v5035
  %v5065 = vmul.f32 %v5030, %v5039
  %v5066 = vmul.f32 %v5030, %v5043
  %v5067 = vmul.f32 %v5030, %v5047
  %v5068 = vmul.f32 %v5030, %v5051
  %v5069 = vmul.f32 %v5030, %v5055
  %v5070 = vmul.f32 %v5030, %v5059
  %v5071 = vmul.f32 %v5030, %v5063
  %v5072 = vadd.f32 %v5020, %v5064
  %v5073 = vadd.f32 %v5021, %v5065
  %v5074 = vadd.f32 %v5022, %v5066
  %v5075 = vadd.f32 %v5023, %v5067
  %v5076 = vadd.f32 %v5024, %v5068
  %v5077 = vadd.f32 %v5025, %v5069
  %v5078 = vadd.f32 %v5026, %v5070
  %v5079 = vadd.f32 %v5027, %v5071
  %5080 = vset.pattern.permute.xlu0 99
  %5081 = vperm.xlu0 %5080, %v4498
  %v5082 = vpop.permute.xlu0 %5081
  %v5084 = vlaneseq
  %v5085 = vshrl.u32 %v5084, 7
  %v5086 = vsub.s32 3, %v5085
  %v5087 = vrot.slane %v4916, %v5086
  %v5088 = vlaneseq
  %v5089 = vshrl.u32 %v5088, 7
  %v5090 = vsub.s32 3, %v5089
  %v5091 = vrot.slane %v4917, %v5090
  %v5092 = vlaneseq
  %v5093 = vshrl.u32 %v5092, 7
  %v5094 = vsub.s32 3, %v5093
  %v5095 = vrot.slane %v4918, %v5094
  %v5096 = vlaneseq
  %v5097 = vshrl.u32 %v5096, 7
  %v5098 = vsub.s32 3, %v5097
  %v5099 = vrot.slane %v4919, %v5098
  %v5100 = vlaneseq
  %v5101 = vshrl.u32 %v5100, 7
  %v5102 = vsub.s32 3, %v5101
  %v5103 = vrot.slane %v4920, %v5102
  %v5104 = vlaneseq
  %v5105 = vshrl.u32 %v5104, 7
  %v5106 = vsub.s32 3, %v5105
  %v5107 = vrot.slane %v4921, %v5106
  %v5108 = vlaneseq
  %v5109 = vshrl.u32 %v5108, 7
  %v5110 = vsub.s32 3, %v5109
  %v5111 = vrot.slane %v4922, %v5110
  %v5112 = vlaneseq
  %v5113 = vshrl.u32 %v5112, 7
  %v5114 = vsub.s32 3, %v5113
  %v5115 = vrot.slane %v4923, %v5114
  %v5116 = vmul.f32 %v5082, %v5087
  %v5117 = vmul.f32 %v5082, %v5091
  %v5118 = vmul.f32 %v5082, %v5095
  %v5119 = vmul.f32 %v5082, %v5099
  %v5120 = vmul.f32 %v5082, %v5103
  %v5121 = vmul.f32 %v5082, %v5107
  %v5122 = vmul.f32 %v5082, %v5111
  %v5123 = vmul.f32 %v5082, %v5115
  %v5124 = vadd.f32 %v5072, %v5116
  %v5125 = vadd.f32 %v5073, %v5117
  %v5126 = vadd.f32 %v5074, %v5118
  %v5127 = vadd.f32 %v5075, %v5119
  %v5128 = vadd.f32 %v5076, %v5120
  %v5129 = vadd.f32 %v5077, %v5121
  %v5130 = vadd.f32 %v5078, %v5122
  %v5131 = vadd.f32 %v5079, %v5123
  %5132 = vrot.lane.b32.xlu0 %v20, 112
  %v5133 = vpop.permute.xlu0 %5132
  %5134 = vrot.lane.b32.xlu0 %v36, 112
  %v5135 = vpop.permute.xlu0 %5134
  %5136 = vrot.lane.b32.xlu0 %v21, 112
  %v5137 = vpop.permute.xlu0 %5136
  %5138 = vrot.lane.b32.xlu0 %v26, 112
  %v5139 = vpop.permute.xlu0 %5138
  %5140 = vrot.lane.b32.xlu0 %v22, 112
  %v5141 = vpop.permute.xlu0 %5140
  %5142 = vrot.lane.b32.xlu0 %v37, 112
  %v5143 = vpop.permute.xlu0 %5142
  %5144 = vrot.lane.b32.xlu0 %v23, 112
  %v5145 = vpop.permute.xlu0 %5144
  %5146 = vrot.lane.b32.xlu0 %v27, 112
  %v5147 = vpop.permute.xlu0 %5146
  %vm5148 = vcmask 916480
  %v5149 = vsel %vm5148, %v5133, %v5135
  %v5150 = vsel %vm5148, %v5135, %v5137
  %v5151 = vsel %vm5148, %v5137, %v5139
  %v5152 = vsel %vm5148, %v5141, %v5143
  %v5153 = vsel %vm5148, %v5143, %v5145
  %v5154 = vsel %vm5148, %v5145, %v5147
  %v5165 = vsel %vm5148, %v5139, %v5133
  %v5166 = vsel %vm5148, %v5147, %v5141
  %s5167 = scalar_lea.vmem %s1, 7
  %v5168 = vld [vmem:[%s5167] ss:$8 sm:$0xf]
  %v5170 = vlaneseq
  %v5171 = vshrl.u32 %v5170, 7
  %v5172 = vsub.s32 0, %v5171
  %v5173 = vrot.slane %v5168, %v5172
  %v5174 = vlaneseq
  %v5175 = vshrl.u32 %v5174, 7
  %v5176 = vsub.s32 1, %v5175
  %v5177 = vrot.slane %v5168, %v5176
  %v5178 = vlaneseq
  %v5179 = vshrl.u32 %v5178, 7
  %v5180 = vsub.s32 2, %v5179
  %v5181 = vrot.slane %v5168, %v5180
  %v5182 = vlaneseq
  %v5183 = vshrl.u32 %v5182, 7
  %v5184 = vsub.s32 3, %v5183
  %v5185 = vrot.slane %v5168, %v5184
  %v5190 = vmul.f32 %v5149, %v5173
  %v5191 = vmul.f32 %v5150, %v5177
  %v5192 = vmul.f32 %v5151, %v5181
  %v5193 = vmul.f32 %v5165, %v5185
  %v5194 = vmul.f32 %v5152, %v5173
  %v5195 = vmul.f32 %v5153, %v5177
  %v5196 = vmul.f32 %v5154, %v5181
  %v5197 = vmul.f32 %v5166, %v5185
  %v5198 = vmul.f32 %v5193, %v102
  %v5199 = vmul.f32 %v5190, %v106
  %v5200 = vmul.f32 %v5191, %v110
  %v5201 = vmul.f32 %v5192, %v114
  %v5202 = vmul.f32 %v5197, %v102
  %v5203 = vmul.f32 %v5194, %v106
  %v5204 = vmul.f32 %v5195, %v110
  %v5205 = vmul.f32 %v5196, %v114
  %v5206 = vld [vmem:[%s3] sm:$0xf]
  %5208 = vset.pattern.permute.xlu0 28
  %5209 = vperm.xlu0 %5208, %v5206
  %v5210 = vpop.permute.xlu0 %5209
  %v5212 = vlaneseq
  %v5213 = vshrl.u32 %v5212, 7
  %v5214 = vsub.s32 0, %v5213
  %v5215 = vrot.slane %v5198, %v5214
  %v5216 = vlaneseq
  %v5217 = vshrl.u32 %v5216, 7
  %v5218 = vsub.s32 0, %v5217
  %v5219 = vrot.slane %v5199, %v5218
  %v5220 = vlaneseq
  %v5221 = vshrl.u32 %v5220, 7
  %v5222 = vsub.s32 0, %v5221
  %v5223 = vrot.slane %v5200, %v5222
  %v5224 = vlaneseq
  %v5225 = vshrl.u32 %v5224, 7
  %v5226 = vsub.s32 0, %v5225
  %v5227 = vrot.slane %v5201, %v5226
  %v5228 = vlaneseq
  %v5229 = vshrl.u32 %v5228, 7
  %v5230 = vsub.s32 0, %v5229
  %v5231 = vrot.slane %v5202, %v5230
  %v5232 = vlaneseq
  %v5233 = vshrl.u32 %v5232, 7
  %v5234 = vsub.s32 0, %v5233
  %v5235 = vrot.slane %v5203, %v5234
  %v5236 = vlaneseq
  %v5237 = vshrl.u32 %v5236, 7
  %v5238 = vsub.s32 0, %v5237
  %v5239 = vrot.slane %v5204, %v5238
  %v5240 = vlaneseq
  %v5241 = vshrl.u32 %v5240, 7
  %v5242 = vsub.s32 0, %v5241
  %v5243 = vrot.slane %v5205, %v5242
  %v5244 = vmul.f32 %v5210, %v5215
  %v5245 = vmul.f32 %v5210, %v5219
  %v5246 = vmul.f32 %v5210, %v5223
  %v5247 = vmul.f32 %v5210, %v5227
  %v5248 = vmul.f32 %v5210, %v5231
  %v5249 = vmul.f32 %v5210, %v5235
  %v5250 = vmul.f32 %v5210, %v5239
  %v5251 = vmul.f32 %v5210, %v5243
  %v5252 = vadd.f32 %v5124, %v5244
  %v5253 = vadd.f32 %v5125, %v5245
  %v5254 = vadd.f32 %v5126, %v5246
  %v5255 = vadd.f32 %v5127, %v5247
  %v5256 = vadd.f32 %v5128, %v5248
  %v5257 = vadd.f32 %v5129, %v5249
  %v5258 = vadd.f32 %v5130, %v5250
  %v5259 = vadd.f32 %v5131, %v5251
  %5260 = vset.pattern.permute.xlu0 29
  %5261 = vperm.xlu0 %5260, %v5206
  %v5262 = vpop.permute.xlu0 %5261
  %v5264 = vlaneseq
  %v5265 = vshrl.u32 %v5264, 7
  %v5266 = vsub.s32 1, %v5265
  %v5267 = vrot.slane %v5198, %v5266
  %v5268 = vlaneseq
  %v5269 = vshrl.u32 %v5268, 7
  %v5270 = vsub.s32 1, %v5269
  %v5271 = vrot.slane %v5199, %v5270
  %v5272 = vlaneseq
  %v5273 = vshrl.u32 %v5272, 7
  %v5274 = vsub.s32 1, %v5273
  %v5275 = vrot.slane %v5200, %v5274
  %v5276 = vlaneseq
  %v5277 = vshrl.u32 %v5276, 7
  %v5278 = vsub.s32 1, %v5277
  %v5279 = vrot.slane %v5201, %v5278
  %v5280 = vlaneseq
  %v5281 = vshrl.u32 %v5280, 7
  %v5282 = vsub.s32 1, %v5281
  %v5283 = vrot.slane %v5202, %v5282
  %v5284 = vlaneseq
  %v5285 = vshrl.u32 %v5284, 7
  %v5286 = vsub.s32 1, %v5285
  %v5287 = vrot.slane %v5203, %v5286
  %v5288 = vlaneseq
  %v5289 = vshrl.u32 %v5288, 7
  %v5290 = vsub.s32 1, %v5289
  %v5291 = vrot.slane %v5204, %v5290
  %v5292 = vlaneseq
  %v5293 = vshrl.u32 %v5292, 7
  %v5294 = vsub.s32 1, %v5293
  %v5295 = vrot.slane %v5205, %v5294
  %v5296 = vmul.f32 %v5262, %v5267
  %v5297 = vmul.f32 %v5262, %v5271
  %v5298 = vmul.f32 %v5262, %v5275
  %v5299 = vmul.f32 %v5262, %v5279
  %v5300 = vmul.f32 %v5262, %v5283
  %v5301 = vmul.f32 %v5262, %v5287
  %v5302 = vmul.f32 %v5262, %v5291
  %v5303 = vmul.f32 %v5262, %v5295
  %v5304 = vadd.f32 %v5252, %v5296
  %v5305 = vadd.f32 %v5253, %v5297
  %v5306 = vadd.f32 %v5254, %v5298
  %v5307 = vadd.f32 %v5255, %v5299
  %v5308 = vadd.f32 %v5256, %v5300
  %v5309 = vadd.f32 %v5257, %v5301
  %v5310 = vadd.f32 %v5258, %v5302
  %v5311 = vadd.f32 %v5259, %v5303
  %5312 = vset.pattern.permute.xlu0 30
  %5313 = vperm.xlu0 %5312, %v5206
  %v5314 = vpop.permute.xlu0 %5313
  %v5316 = vlaneseq
  %v5317 = vshrl.u32 %v5316, 7
  %v5318 = vsub.s32 2, %v5317
  %v5319 = vrot.slane %v5198, %v5318
  %v5320 = vlaneseq
  %v5321 = vshrl.u32 %v5320, 7
  %v5322 = vsub.s32 2, %v5321
  %v5323 = vrot.slane %v5199, %v5322
  %v5324 = vlaneseq
  %v5325 = vshrl.u32 %v5324, 7
  %v5326 = vsub.s32 2, %v5325
  %v5327 = vrot.slane %v5200, %v5326
  %v5328 = vlaneseq
  %v5329 = vshrl.u32 %v5328, 7
  %v5330 = vsub.s32 2, %v5329
  %v5331 = vrot.slane %v5201, %v5330
  %v5332 = vlaneseq
  %v5333 = vshrl.u32 %v5332, 7
  %v5334 = vsub.s32 2, %v5333
  %v5335 = vrot.slane %v5202, %v5334
  %v5336 = vlaneseq
  %v5337 = vshrl.u32 %v5336, 7
  %v5338 = vsub.s32 2, %v5337
  %v5339 = vrot.slane %v5203, %v5338
  %v5340 = vlaneseq
  %v5341 = vshrl.u32 %v5340, 7
  %v5342 = vsub.s32 2, %v5341
  %v5343 = vrot.slane %v5204, %v5342
  %v5344 = vlaneseq
  %v5345 = vshrl.u32 %v5344, 7
  %v5346 = vsub.s32 2, %v5345
  %v5347 = vrot.slane %v5205, %v5346
  %v5348 = vmul.f32 %v5314, %v5319
  %v5349 = vmul.f32 %v5314, %v5323
  %v5350 = vmul.f32 %v5314, %v5327
  %v5351 = vmul.f32 %v5314, %v5331
  %v5352 = vmul.f32 %v5314, %v5335
  %v5353 = vmul.f32 %v5314, %v5339
  %v5354 = vmul.f32 %v5314, %v5343
  %v5355 = vmul.f32 %v5314, %v5347
  %v5356 = vadd.f32 %v5304, %v5348
  %v5357 = vadd.f32 %v5305, %v5349
  %v5358 = vadd.f32 %v5306, %v5350
  %v5359 = vadd.f32 %v5307, %v5351
  %v5360 = vadd.f32 %v5308, %v5352
  %v5361 = vadd.f32 %v5309, %v5353
  %v5362 = vadd.f32 %v5310, %v5354
  %v5363 = vadd.f32 %v5311, %v5355
  %5364 = vset.pattern.permute.xlu0 31
  %5365 = vperm.xlu0 %5364, %v5206
  %v5366 = vpop.permute.xlu0 %5365
  %v5368 = vlaneseq
  %v5369 = vshrl.u32 %v5368, 7
  %v5370 = vsub.s32 3, %v5369
  %v5371 = vrot.slane %v5198, %v5370
  %v5372 = vlaneseq
  %v5373 = vshrl.u32 %v5372, 7
  %v5374 = vsub.s32 3, %v5373
  %v5375 = vrot.slane %v5199, %v5374
  %v5376 = vlaneseq
  %v5377 = vshrl.u32 %v5376, 7
  %v5378 = vsub.s32 3, %v5377
  %v5379 = vrot.slane %v5200, %v5378
  %v5380 = vlaneseq
  %v5381 = vshrl.u32 %v5380, 7
  %v5382 = vsub.s32 3, %v5381
  %v5383 = vrot.slane %v5201, %v5382
  %v5384 = vlaneseq
  %v5385 = vshrl.u32 %v5384, 7
  %v5386 = vsub.s32 3, %v5385
  %v5387 = vrot.slane %v5202, %v5386
  %v5388 = vlaneseq
  %v5389 = vshrl.u32 %v5388, 7
  %v5390 = vsub.s32 3, %v5389
  %v5391 = vrot.slane %v5203, %v5390
  %v5392 = vlaneseq
  %v5393 = vshrl.u32 %v5392, 7
  %v5394 = vsub.s32 3, %v5393
  %v5395 = vrot.slane %v5204, %v5394
  %v5396 = vlaneseq
  %v5397 = vshrl.u32 %v5396, 7
  %v5398 = vsub.s32 3, %v5397
  %v5399 = vrot.slane %v5205, %v5398
  %v5400 = vmul.f32 %v5366, %v5371
  %v5401 = vmul.f32 %v5366, %v5375
  %v5402 = vmul.f32 %v5366, %v5379
  %v5403 = vmul.f32 %v5366, %v5383
  %v5404 = vmul.f32 %v5366, %v5387
  %v5405 = vmul.f32 %v5366, %v5391
  %v5406 = vmul.f32 %v5366, %v5395
  %v5407 = vmul.f32 %v5366, %v5399
  %v5408 = vadd.f32 %v5356, %v5400
  %v5409 = vadd.f32 %v5357, %v5401
  %v5410 = vadd.f32 %v5358, %v5402
  %v5411 = vadd.f32 %v5359, %v5403
  %v5412 = vadd.f32 %v5360, %v5404
  %v5413 = vadd.f32 %v5361, %v5405
  %v5414 = vadd.f32 %v5362, %v5406
  %v5415 = vadd.f32 %v5363, %v5407
  %5416 = vset.pattern.permute.xlu0 64
  %5417 = vperm.xlu0 %5416, %v5206
  %v5418 = vpop.permute.xlu0 %5417
  %v5420 = vlaneseq
  %v5421 = vshrl.u32 %v5420, 7
  %v5422 = vsub.s32 0, %v5421
  %v5423 = vrot.slane %v5190, %v5422
  %v5424 = vlaneseq
  %v5425 = vshrl.u32 %v5424, 7
  %v5426 = vsub.s32 0, %v5425
  %v5427 = vrot.slane %v5191, %v5426
  %v5428 = vlaneseq
  %v5429 = vshrl.u32 %v5428, 7
  %v5430 = vsub.s32 0, %v5429
  %v5431 = vrot.slane %v5192, %v5430
  %v5432 = vlaneseq
  %v5433 = vshrl.u32 %v5432, 7
  %v5434 = vsub.s32 0, %v5433
  %v5435 = vrot.slane %v5193, %v5434
  %v5436 = vlaneseq
  %v5437 = vshrl.u32 %v5436, 7
  %v5438 = vsub.s32 0, %v5437
  %v5439 = vrot.slane %v5194, %v5438
  %v5440 = vlaneseq
  %v5441 = vshrl.u32 %v5440, 7
  %v5442 = vsub.s32 0, %v5441
  %v5443 = vrot.slane %v5195, %v5442
  %v5444 = vlaneseq
  %v5445 = vshrl.u32 %v5444, 7
  %v5446 = vsub.s32 0, %v5445
  %v5447 = vrot.slane %v5196, %v5446
  %v5448 = vlaneseq
  %v5449 = vshrl.u32 %v5448, 7
  %v5450 = vsub.s32 0, %v5449
  %v5451 = vrot.slane %v5197, %v5450
  %v5452 = vmul.f32 %v5418, %v5423
  %v5453 = vmul.f32 %v5418, %v5427
  %v5454 = vmul.f32 %v5418, %v5431
  %v5455 = vmul.f32 %v5418, %v5435
  %v5456 = vmul.f32 %v5418, %v5439
  %v5457 = vmul.f32 %v5418, %v5443
  %v5458 = vmul.f32 %v5418, %v5447
  %v5459 = vmul.f32 %v5418, %v5451
  %v5460 = vadd.f32 %v5408, %v5452
  %v5461 = vadd.f32 %v5409, %v5453
  %v5462 = vadd.f32 %v5410, %v5454
  %v5463 = vadd.f32 %v5411, %v5455
  %v5464 = vadd.f32 %v5412, %v5456
  %v5465 = vadd.f32 %v5413, %v5457
  %v5466 = vadd.f32 %v5414, %v5458
  %v5467 = vadd.f32 %v5415, %v5459
  %5468 = vset.pattern.permute.xlu0 65
  %5469 = vperm.xlu0 %5468, %v5206
  %v5470 = vpop.permute.xlu0 %5469
  %v5472 = vlaneseq
  %v5473 = vshrl.u32 %v5472, 7
  %v5474 = vsub.s32 1, %v5473
  %v5475 = vrot.slane %v5190, %v5474
  %v5476 = vlaneseq
  %v5477 = vshrl.u32 %v5476, 7
  %v5478 = vsub.s32 1, %v5477
  %v5479 = vrot.slane %v5191, %v5478
  %v5480 = vlaneseq
  %v5481 = vshrl.u32 %v5480, 7
  %v5482 = vsub.s32 1, %v5481
  %v5483 = vrot.slane %v5192, %v5482
  %v5484 = vlaneseq
  %v5485 = vshrl.u32 %v5484, 7
  %v5486 = vsub.s32 1, %v5485
  %v5487 = vrot.slane %v5193, %v5486
  %v5488 = vlaneseq
  %v5489 = vshrl.u32 %v5488, 7
  %v5490 = vsub.s32 1, %v5489
  %v5491 = vrot.slane %v5194, %v5490
  %v5492 = vlaneseq
  %v5493 = vshrl.u32 %v5492, 7
  %v5494 = vsub.s32 1, %v5493
  %v5495 = vrot.slane %v5195, %v5494
  %v5496 = vlaneseq
  %v5497 = vshrl.u32 %v5496, 7
  %v5498 = vsub.s32 1, %v5497
  %v5499 = vrot.slane %v5196, %v5498
  %v5500 = vlaneseq
  %v5501 = vshrl.u32 %v5500, 7
  %v5502 = vsub.s32 1, %v5501
  %v5503 = vrot.slane %v5197, %v5502
  %v5504 = vmul.f32 %v5470, %v5475
  %v5505 = vmul.f32 %v5470, %v5479
  %v5506 = vmul.f32 %v5470, %v5483
  %v5507 = vmul.f32 %v5470, %v5487
  %v5508 = vmul.f32 %v5470, %v5491
  %v5509 = vmul.f32 %v5470, %v5495
  %v5510 = vmul.f32 %v5470, %v5499
  %v5511 = vmul.f32 %v5470, %v5503
  %v5512 = vadd.f32 %v5460, %v5504
  %v5513 = vadd.f32 %v5461, %v5505
  %v5514 = vadd.f32 %v5462, %v5506
  %v5515 = vadd.f32 %v5463, %v5507
  %v5516 = vadd.f32 %v5464, %v5508
  %v5517 = vadd.f32 %v5465, %v5509
  %v5518 = vadd.f32 %v5466, %v5510
  %v5519 = vadd.f32 %v5467, %v5511
  %5520 = vset.pattern.permute.xlu0 66
  %5521 = vperm.xlu0 %5520, %v5206
  %v5522 = vpop.permute.xlu0 %5521
  %v5524 = vlaneseq
  %v5525 = vshrl.u32 %v5524, 7
  %v5526 = vsub.s32 2, %v5525
  %v5527 = vrot.slane %v5190, %v5526
  %v5528 = vlaneseq
  %v5529 = vshrl.u32 %v5528, 7
  %v5530 = vsub.s32 2, %v5529
  %v5531 = vrot.slane %v5191, %v5530
  %v5532 = vlaneseq
  %v5533 = vshrl.u32 %v5532, 7
  %v5534 = vsub.s32 2, %v5533
  %v5535 = vrot.slane %v5192, %v5534
  %v5536 = vlaneseq
  %v5537 = vshrl.u32 %v5536, 7
  %v5538 = vsub.s32 2, %v5537
  %v5539 = vrot.slane %v5193, %v5538
  %v5540 = vlaneseq
  %v5541 = vshrl.u32 %v5540, 7
  %v5542 = vsub.s32 2, %v5541
  %v5543 = vrot.slane %v5194, %v5542
  %v5544 = vlaneseq
  %v5545 = vshrl.u32 %v5544, 7
  %v5546 = vsub.s32 2, %v5545
  %v5547 = vrot.slane %v5195, %v5546
  %v5548 = vlaneseq
  %v5549 = vshrl.u32 %v5548, 7
  %v5550 = vsub.s32 2, %v5549
  %v5551 = vrot.slane %v5196, %v5550
  %v5552 = vlaneseq
  %v5553 = vshrl.u32 %v5552, 7
  %v5554 = vsub.s32 2, %v5553
  %v5555 = vrot.slane %v5197, %v5554
  %v5556 = vmul.f32 %v5522, %v5527
  %v5557 = vmul.f32 %v5522, %v5531
  %v5558 = vmul.f32 %v5522, %v5535
  %v5559 = vmul.f32 %v5522, %v5539
  %v5560 = vmul.f32 %v5522, %v5543
  %v5561 = vmul.f32 %v5522, %v5547
  %v5562 = vmul.f32 %v5522, %v5551
  %v5563 = vmul.f32 %v5522, %v5555
  %v5564 = vadd.f32 %v5512, %v5556
  %v5565 = vadd.f32 %v5513, %v5557
  %v5566 = vadd.f32 %v5514, %v5558
  %v5567 = vadd.f32 %v5515, %v5559
  %v5568 = vadd.f32 %v5516, %v5560
  %v5569 = vadd.f32 %v5517, %v5561
  %v5570 = vadd.f32 %v5518, %v5562
  %v5571 = vadd.f32 %v5519, %v5563
  %5572 = vset.pattern.permute.xlu0 67
  %5573 = vperm.xlu0 %5572, %v5206
  %v5574 = vpop.permute.xlu0 %5573
  %v5576 = vlaneseq
  %v5577 = vshrl.u32 %v5576, 7
  %v5578 = vsub.s32 3, %v5577
  %v5579 = vrot.slane %v5190, %v5578
  %v5580 = vlaneseq
  %v5581 = vshrl.u32 %v5580, 7
  %v5582 = vsub.s32 3, %v5581
  %v5583 = vrot.slane %v5191, %v5582
  %v5584 = vlaneseq
  %v5585 = vshrl.u32 %v5584, 7
  %v5586 = vsub.s32 3, %v5585
  %v5587 = vrot.slane %v5192, %v5586
  %v5588 = vlaneseq
  %v5589 = vshrl.u32 %v5588, 7
  %v5590 = vsub.s32 3, %v5589
  %v5591 = vrot.slane %v5193, %v5590
  %v5592 = vlaneseq
  %v5593 = vshrl.u32 %v5592, 7
  %v5594 = vsub.s32 3, %v5593
  %v5595 = vrot.slane %v5194, %v5594
  %v5596 = vlaneseq
  %v5597 = vshrl.u32 %v5596, 7
  %v5598 = vsub.s32 3, %v5597
  %v5599 = vrot.slane %v5195, %v5598
  %v5600 = vlaneseq
  %v5601 = vshrl.u32 %v5600, 7
  %v5602 = vsub.s32 3, %v5601
  %v5603 = vrot.slane %v5196, %v5602
  %v5604 = vlaneseq
  %v5605 = vshrl.u32 %v5604, 7
  %v5606 = vsub.s32 3, %v5605
  %v5607 = vrot.slane %v5197, %v5606
  %v5608 = vmul.f32 %v5574, %v5579
  %v5609 = vmul.f32 %v5574, %v5583
  %v5610 = vmul.f32 %v5574, %v5587
  %v5611 = vmul.f32 %v5574, %v5591
  %v5612 = vmul.f32 %v5574, %v5595
  %v5613 = vmul.f32 %v5574, %v5599
  %v5614 = vmul.f32 %v5574, %v5603
  %v5615 = vmul.f32 %v5574, %v5607
  %v5616 = vadd.f32 %v5564, %v5608
  %v5617 = vadd.f32 %v5565, %v5609
  %v5618 = vadd.f32 %v5566, %v5610
  %v5619 = vadd.f32 %v5567, %v5611
  %v5620 = vadd.f32 %v5568, %v5612
  %v5621 = vadd.f32 %v5569, %v5613
  %v5622 = vadd.f32 %v5570, %v5614
  %v5623 = vadd.f32 %v5571, %v5615
  %v5624 = vmul.f32 %v5191, %v551
  %v5625 = vmul.f32 %v5192, %v555
  %v5626 = vmul.f32 %v5193, %v559
  %v5627 = vmul.f32 %v5190, %v563
  %v5628 = vmul.f32 %v5195, %v551
  %v5629 = vmul.f32 %v5196, %v555
  %v5630 = vmul.f32 %v5197, %v559
  %v5631 = vmul.f32 %v5194, %v563
  %5632 = vset.pattern.permute.xlu0 100
  %5633 = vperm.xlu0 %5632, %v5206
  %v5634 = vpop.permute.xlu0 %5633
  %v5636 = vlaneseq
  %v5637 = vshrl.u32 %v5636, 7
  %v5638 = vsub.s32 0, %v5637
  %v5639 = vrot.slane %v5624, %v5638
  %v5640 = vlaneseq
  %v5641 = vshrl.u32 %v5640, 7
  %v5642 = vsub.s32 0, %v5641
  %v5643 = vrot.slane %v5625, %v5642
  %v5644 = vlaneseq
  %v5645 = vshrl.u32 %v5644, 7
  %v5646 = vsub.s32 0, %v5645
  %v5647 = vrot.slane %v5626, %v5646
  %v5648 = vlaneseq
  %v5649 = vshrl.u32 %v5648, 7
  %v5650 = vsub.s32 0, %v5649
  %v5651 = vrot.slane %v5627, %v5650
  %v5652 = vlaneseq
  %v5653 = vshrl.u32 %v5652, 7
  %v5654 = vsub.s32 0, %v5653
  %v5655 = vrot.slane %v5628, %v5654
  %v5656 = vlaneseq
  %v5657 = vshrl.u32 %v5656, 7
  %v5658 = vsub.s32 0, %v5657
  %v5659 = vrot.slane %v5629, %v5658
  %v5660 = vlaneseq
  %v5661 = vshrl.u32 %v5660, 7
  %v5662 = vsub.s32 0, %v5661
  %v5663 = vrot.slane %v5630, %v5662
  %v5664 = vlaneseq
  %v5665 = vshrl.u32 %v5664, 7
  %v5666 = vsub.s32 0, %v5665
  %v5667 = vrot.slane %v5631, %v5666
  %v5668 = vmul.f32 %v5634, %v5639
  %v5669 = vmul.f32 %v5634, %v5643
  %v5670 = vmul.f32 %v5634, %v5647
  %v5671 = vmul.f32 %v5634, %v5651
  %v5672 = vmul.f32 %v5634, %v5655
  %v5673 = vmul.f32 %v5634, %v5659
  %v5674 = vmul.f32 %v5634, %v5663
  %v5675 = vmul.f32 %v5634, %v5667
  %v5676 = vadd.f32 %v5616, %v5668
  %v5677 = vadd.f32 %v5617, %v5669
  %v5678 = vadd.f32 %v5618, %v5670
  %v5679 = vadd.f32 %v5619, %v5671
  %v5680 = vadd.f32 %v5620, %v5672
  %v5681 = vadd.f32 %v5621, %v5673
  %v5682 = vadd.f32 %v5622, %v5674
  %v5683 = vadd.f32 %v5623, %v5675
  %5684 = vset.pattern.permute.xlu0 101
  %5685 = vperm.xlu0 %5684, %v5206
  %v5686 = vpop.permute.xlu0 %5685
  %v5688 = vlaneseq
  %v5689 = vshrl.u32 %v5688, 7
  %v5690 = vsub.s32 1, %v5689
  %v5691 = vrot.slane %v5624, %v5690
  %v5692 = vlaneseq
  %v5693 = vshrl.u32 %v5692, 7
  %v5694 = vsub.s32 1, %v5693
  %v5695 = vrot.slane %v5625, %v5694
  %v5696 = vlaneseq
  %v5697 = vshrl.u32 %v5696, 7
  %v5698 = vsub.s32 1, %v5697
  %v5699 = vrot.slane %v5626, %v5698
  %v5700 = vlaneseq
  %v5701 = vshrl.u32 %v5700, 7
  %v5702 = vsub.s32 1, %v5701
  %v5703 = vrot.slane %v5627, %v5702
  %v5704 = vlaneseq
  %v5705 = vshrl.u32 %v5704, 7
  %v5706 = vsub.s32 1, %v5705
  %v5707 = vrot.slane %v5628, %v5706
  %v5708 = vlaneseq
  %v5709 = vshrl.u32 %v5708, 7
  %v5710 = vsub.s32 1, %v5709
  %v5711 = vrot.slane %v5629, %v5710
  %v5712 = vlaneseq
  %v5713 = vshrl.u32 %v5712, 7
  %v5714 = vsub.s32 1, %v5713
  %v5715 = vrot.slane %v5630, %v5714
  %v5716 = vlaneseq
  %v5717 = vshrl.u32 %v5716, 7
  %v5718 = vsub.s32 1, %v5717
  %v5719 = vrot.slane %v5631, %v5718
  %v5720 = vmul.f32 %v5686, %v5691
  %v5721 = vmul.f32 %v5686, %v5695
  %v5722 = vmul.f32 %v5686, %v5699
  %v5723 = vmul.f32 %v5686, %v5703
  %v5724 = vmul.f32 %v5686, %v5707
  %v5725 = vmul.f32 %v5686, %v5711
  %v5726 = vmul.f32 %v5686, %v5715
  %v5727 = vmul.f32 %v5686, %v5719
  %v5728 = vadd.f32 %v5676, %v5720
  %v5729 = vadd.f32 %v5677, %v5721
  %v5730 = vadd.f32 %v5678, %v5722
  %v5731 = vadd.f32 %v5679, %v5723
  %v5732 = vadd.f32 %v5680, %v5724
  %v5733 = vadd.f32 %v5681, %v5725
  %v5734 = vadd.f32 %v5682, %v5726
  %v5735 = vadd.f32 %v5683, %v5727
  %5736 = vset.pattern.permute.xlu0 102
  %5737 = vperm.xlu0 %5736, %v5206
  %v5738 = vpop.permute.xlu0 %5737
  %v5740 = vlaneseq
  %v5741 = vshrl.u32 %v5740, 7
  %v5742 = vsub.s32 2, %v5741
  %v5743 = vrot.slane %v5624, %v5742
  %v5744 = vlaneseq
  %v5745 = vshrl.u32 %v5744, 7
  %v5746 = vsub.s32 2, %v5745
  %v5747 = vrot.slane %v5625, %v5746
  %v5748 = vlaneseq
  %v5749 = vshrl.u32 %v5748, 7
  %v5750 = vsub.s32 2, %v5749
  %v5751 = vrot.slane %v5626, %v5750
  %v5752 = vlaneseq
  %v5753 = vshrl.u32 %v5752, 7
  %v5754 = vsub.s32 2, %v5753
  %v5755 = vrot.slane %v5627, %v5754
  %v5756 = vlaneseq
  %v5757 = vshrl.u32 %v5756, 7
  %v5758 = vsub.s32 2, %v5757
  %v5759 = vrot.slane %v5628, %v5758
  %v5760 = vlaneseq
  %v5761 = vshrl.u32 %v5760, 7
  %v5762 = vsub.s32 2, %v5761
  %v5763 = vrot.slane %v5629, %v5762
  %v5764 = vlaneseq
  %v5765 = vshrl.u32 %v5764, 7
  %v5766 = vsub.s32 2, %v5765
  %v5767 = vrot.slane %v5630, %v5766
  %v5768 = vlaneseq
  %v5769 = vshrl.u32 %v5768, 7
  %v5770 = vsub.s32 2, %v5769
  %v5771 = vrot.slane %v5631, %v5770
  %v5772 = vmul.f32 %v5738, %v5743
  %v5773 = vmul.f32 %v5738, %v5747
  %v5774 = vmul.f32 %v5738, %v5751
  %v5775 = vmul.f32 %v5738, %v5755
  %v5776 = vmul.f32 %v5738, %v5759
  %v5777 = vmul.f32 %v5738, %v5763
  %v5778 = vmul.f32 %v5738, %v5767
  %v5779 = vmul.f32 %v5738, %v5771
  %v5780 = vadd.f32 %v5728, %v5772
  %v5781 = vadd.f32 %v5729, %v5773
  %v5782 = vadd.f32 %v5730, %v5774
  %v5783 = vadd.f32 %v5731, %v5775
  %v5784 = vadd.f32 %v5732, %v5776
  %v5785 = vadd.f32 %v5733, %v5777
  %v5786 = vadd.f32 %v5734, %v5778
  %v5787 = vadd.f32 %v5735, %v5779
  %5788 = vset.pattern.permute.xlu0 103
  %5789 = vperm.xlu0 %5788, %v5206
  %v5790 = vpop.permute.xlu0 %5789
  %v5792 = vlaneseq
  %v5793 = vshrl.u32 %v5792, 7
  %v5794 = vsub.s32 3, %v5793
  %v5795 = vrot.slane %v5624, %v5794
  %v5796 = vlaneseq
  %v5797 = vshrl.u32 %v5796, 7
  %v5798 = vsub.s32 3, %v5797
  %v5799 = vrot.slane %v5625, %v5798
  %v5800 = vlaneseq
  %v5801 = vshrl.u32 %v5800, 7
  %v5802 = vsub.s32 3, %v5801
  %v5803 = vrot.slane %v5626, %v5802
  %v5804 = vlaneseq
  %v5805 = vshrl.u32 %v5804, 7
  %v5806 = vsub.s32 3, %v5805
  %v5807 = vrot.slane %v5627, %v5806
  %v5808 = vlaneseq
  %v5809 = vshrl.u32 %v5808, 7
  %v5810 = vsub.s32 3, %v5809
  %v5811 = vrot.slane %v5628, %v5810
  %v5812 = vlaneseq
  %v5813 = vshrl.u32 %v5812, 7
  %v5814 = vsub.s32 3, %v5813
  %v5815 = vrot.slane %v5629, %v5814
  %v5816 = vlaneseq
  %v5817 = vshrl.u32 %v5816, 7
  %v5818 = vsub.s32 3, %v5817
  %v5819 = vrot.slane %v5630, %v5818
  %v5820 = vlaneseq
  %v5821 = vshrl.u32 %v5820, 7
  %v5822 = vsub.s32 3, %v5821
  %v5823 = vrot.slane %v5631, %v5822
  %v5824 = vmul.f32 %v5790, %v5795
  %v5825 = vmul.f32 %v5790, %v5799
  %v5826 = vmul.f32 %v5790, %v5803
  %v5827 = vmul.f32 %v5790, %v5807
  %v5828 = vmul.f32 %v5790, %v5811
  %v5829 = vmul.f32 %v5790, %v5815
  %v5830 = vmul.f32 %v5790, %v5819
  %v5831 = vmul.f32 %v5790, %v5823
  %v5832 = vadd.f32 %v5780, %v5824
  %v5833 = vadd.f32 %v5781, %v5825
  %v5834 = vadd.f32 %v5782, %v5826
  %v5835 = vadd.f32 %v5783, %v5827
  %v5836 = vadd.f32 %v5784, %v5828
  %v5837 = vadd.f32 %v5785, %v5829
  %v5838 = vadd.f32 %v5786, %v5830
  %v5839 = vadd.f32 %v5787, %v5831
  %5840 = vrot.lane.b32.xlu0 %v20, 110
  %v5841 = vpop.permute.xlu0 %5840
  %5842 = vrot.lane.b32.xlu0 %v36, 110
  %v5843 = vpop.permute.xlu0 %5842
  %5844 = vrot.lane.b32.xlu0 %v21, 110
  %v5845 = vpop.permute.xlu0 %5844
  %5846 = vrot.lane.b32.xlu0 %v26, 110
  %v5847 = vpop.permute.xlu0 %5846
  %5848 = vrot.lane.b32.xlu0 %v22, 110
  %v5849 = vpop.permute.xlu0 %5848
  %5850 = vrot.lane.b32.xlu0 %v37, 110
  %v5851 = vpop.permute.xlu0 %5850
  %5852 = vrot.lane.b32.xlu0 %v23, 110
  %v5853 = vpop.permute.xlu0 %5852
  %5854 = vrot.lane.b32.xlu0 %v27, 110
  %v5855 = vpop.permute.xlu0 %5854
  %vm5856 = vcmask 900096
  %v5857 = vsel %vm5856, %v5841, %v5843
  %v5858 = vsel %vm5856, %v5843, %v5845
  %v5859 = vsel %vm5856, %v5845, %v5847
  %v5860 = vsel %vm5856, %v5849, %v5851
  %v5861 = vsel %vm5856, %v5851, %v5853
  %v5862 = vsel %vm5856, %v5853, %v5855
  %v5873 = vsel %vm5856, %v5847, %v5841
  %v5874 = vsel %vm5856, %v5855, %v5849
  %s5875 = scalar_lea.vmem %s1, 32
  %v5876 = vld [vmem:[%s5875] ss:$8 sm:$0xf]
  %v5878 = vlaneseq
  %v5879 = vshrl.u32 %v5878, 7
  %v5880 = vsub.s32 0, %v5879
  %v5881 = vrot.slane %v5876, %v5880
  %v5882 = vlaneseq
  %v5883 = vshrl.u32 %v5882, 7
  %v5884 = vsub.s32 1, %v5883
  %v5885 = vrot.slane %v5876, %v5884
  %v5886 = vlaneseq
  %v5887 = vshrl.u32 %v5886, 7
  %v5888 = vsub.s32 2, %v5887
  %v5889 = vrot.slane %v5876, %v5888
  %v5890 = vlaneseq
  %v5891 = vshrl.u32 %v5890, 7
  %v5892 = vsub.s32 3, %v5891
  %v5893 = vrot.slane %v5876, %v5892
  %v5898 = vmul.f32 %v5857, %v5881
  %v5899 = vmul.f32 %v5858, %v5885
  %v5900 = vmul.f32 %v5859, %v5889
  %v5901 = vmul.f32 %v5873, %v5893
  %v5902 = vmul.f32 %v5860, %v5881
  %v5903 = vmul.f32 %v5861, %v5885
  %v5904 = vmul.f32 %v5862, %v5889
  %v5905 = vmul.f32 %v5874, %v5893
  %v5906 = vmul.f32 %v5901, %v102
  %v5907 = vmul.f32 %v5898, %v106
  %v5908 = vmul.f32 %v5899, %v110
  %v5909 = vmul.f32 %v5900, %v114
  %v5910 = vmul.f32 %v5905, %v102
  %v5911 = vmul.f32 %v5902, %v106
  %v5912 = vmul.f32 %v5903, %v110
  %v5913 = vmul.f32 %v5904, %v114
  %v5914 = vld [vmem:[%s3] sm:$0xf]
  %5916 = vset.pattern.permute.xlu0 32
  %5917 = vperm.xlu0 %5916, %v5914
  %v5918 = vpop.permute.xlu0 %5917
  %v5920 = vlaneseq
  %v5921 = vshrl.u32 %v5920, 7
  %v5922 = vsub.s32 0, %v5921
  %v5923 = vrot.slane %v5906, %v5922
  %v5924 = vlaneseq
  %v5925 = vshrl.u32 %v5924, 7
  %v5926 = vsub.s32 0, %v5925
  %v5927 = vrot.slane %v5907, %v5926
  %v5928 = vlaneseq
  %v5929 = vshrl.u32 %v5928, 7
  %v5930 = vsub.s32 0, %v5929
  %v5931 = vrot.slane %v5908, %v5930
  %v5932 = vlaneseq
  %v5933 = vshrl.u32 %v5932, 7
  %v5934 = vsub.s32 0, %v5933
  %v5935 = vrot.slane %v5909, %v5934
  %v5936 = vlaneseq
  %v5937 = vshrl.u32 %v5936, 7
  %v5938 = vsub.s32 0, %v5937
  %v5939 = vrot.slane %v5910, %v5938
  %v5940 = vlaneseq
  %v5941 = vshrl.u32 %v5940, 7
  %v5942 = vsub.s32 0, %v5941
  %v5943 = vrot.slane %v5911, %v5942
  %v5944 = vlaneseq
  %v5945 = vshrl.u32 %v5944, 7
  %v5946 = vsub.s32 0, %v5945
  %v5947 = vrot.slane %v5912, %v5946
  %v5948 = vlaneseq
  %v5949 = vshrl.u32 %v5948, 7
  %v5950 = vsub.s32 0, %v5949
  %v5951 = vrot.slane %v5913, %v5950
  %v5952 = vmul.f32 %v5918, %v5923
  %v5953 = vmul.f32 %v5918, %v5927
  %v5954 = vmul.f32 %v5918, %v5931
  %v5955 = vmul.f32 %v5918, %v5935
  %v5956 = vmul.f32 %v5918, %v5939
  %v5957 = vmul.f32 %v5918, %v5943
  %v5958 = vmul.f32 %v5918, %v5947
  %v5959 = vmul.f32 %v5918, %v5951
  %v5960 = vadd.f32 %v5832, %v5952
  %v5961 = vadd.f32 %v5833, %v5953
  %v5962 = vadd.f32 %v5834, %v5954
  %v5963 = vadd.f32 %v5835, %v5955
  %v5964 = vadd.f32 %v5836, %v5956
  %v5965 = vadd.f32 %v5837, %v5957
  %v5966 = vadd.f32 %v5838, %v5958
  %v5967 = vadd.f32 %v5839, %v5959
  %5968 = vset.pattern.permute.xlu0 33
  %5969 = vperm.xlu0 %5968, %v5914
  %v5970 = vpop.permute.xlu0 %5969
  %v5972 = vlaneseq
  %v5973 = vshrl.u32 %v5972, 7
  %v5974 = vsub.s32 1, %v5973
  %v5975 = vrot.slane %v5906, %v5974
  %v5976 = vlaneseq
  %v5977 = vshrl.u32 %v5976, 7
  %v5978 = vsub.s32 1, %v5977
  %v5979 = vrot.slane %v5907, %v5978
  %v5980 = vlaneseq
  %v5981 = vshrl.u32 %v5980, 7
  %v5982 = vsub.s32 1, %v5981
  %v5983 = vrot.slane %v5908, %v5982
  %v5984 = vlaneseq
  %v5985 = vshrl.u32 %v5984, 7
  %v5986 = vsub.s32 1, %v5985
  %v5987 = vrot.slane %v5909, %v5986
  %v5988 = vlaneseq
  %v5989 = vshrl.u32 %v5988, 7
  %v5990 = vsub.s32 1, %v5989
  %v5991 = vrot.slane %v5910, %v5990
  %v5992 = vlaneseq
  %v5993 = vshrl.u32 %v5992, 7
  %v5994 = vsub.s32 1, %v5993
  %v5995 = vrot.slane %v5911, %v5994
  %v5996 = vlaneseq
  %v5997 = vshrl.u32 %v5996, 7
  %v5998 = vsub.s32 1, %v5997
  %v5999 = vrot.slane %v5912, %v5998
  %v6000 = vlaneseq
  %v6001 = vshrl.u32 %v6000, 7
  %v6002 = vsub.s32 1, %v6001
  %v6003 = vrot.slane %v5913, %v6002
  %v6004 = vmul.f32 %v5970, %v5975
  %v6005 = vmul.f32 %v5970, %v5979
  %v6006 = vmul.f32 %v5970, %v5983
  %v6007 = vmul.f32 %v5970, %v5987
  %v6008 = vmul.f32 %v5970, %v5991
  %v6009 = vmul.f32 %v5970, %v5995
  %v6010 = vmul.f32 %v5970, %v5999
  %v6011 = vmul.f32 %v5970, %v6003
  %v6012 = vadd.f32 %v5960, %v6004
  %v6013 = vadd.f32 %v5961, %v6005
  %v6014 = vadd.f32 %v5962, %v6006
  %v6015 = vadd.f32 %v5963, %v6007
  %v6016 = vadd.f32 %v5964, %v6008
  %v6017 = vadd.f32 %v5965, %v6009
  %v6018 = vadd.f32 %v5966, %v6010
  %v6019 = vadd.f32 %v5967, %v6011
  %6020 = vset.pattern.permute.xlu0 34
  %6021 = vperm.xlu0 %6020, %v5914
  %v6022 = vpop.permute.xlu0 %6021
  %v6024 = vlaneseq
  %v6025 = vshrl.u32 %v6024, 7
  %v6026 = vsub.s32 2, %v6025
  %v6027 = vrot.slane %v5906, %v6026
  %v6028 = vlaneseq
  %v6029 = vshrl.u32 %v6028, 7
  %v6030 = vsub.s32 2, %v6029
  %v6031 = vrot.slane %v5907, %v6030
  %v6032 = vlaneseq
  %v6033 = vshrl.u32 %v6032, 7
  %v6034 = vsub.s32 2, %v6033
  %v6035 = vrot.slane %v5908, %v6034
  %v6036 = vlaneseq
  %v6037 = vshrl.u32 %v6036, 7
  %v6038 = vsub.s32 2, %v6037
  %v6039 = vrot.slane %v5909, %v6038
  %v6040 = vlaneseq
  %v6041 = vshrl.u32 %v6040, 7
  %v6042 = vsub.s32 2, %v6041
  %v6043 = vrot.slane %v5910, %v6042
  %v6044 = vlaneseq
  %v6045 = vshrl.u32 %v6044, 7
  %v6046 = vsub.s32 2, %v6045
  %v6047 = vrot.slane %v5911, %v6046
  %v6048 = vlaneseq
  %v6049 = vshrl.u32 %v6048, 7
  %v6050 = vsub.s32 2, %v6049
  %v6051 = vrot.slane %v5912, %v6050
  %v6052 = vlaneseq
  %v6053 = vshrl.u32 %v6052, 7
  %v6054 = vsub.s32 2, %v6053
  %v6055 = vrot.slane %v5913, %v6054
  %v6056 = vmul.f32 %v6022, %v6027
  %v6057 = vmul.f32 %v6022, %v6031
  %v6058 = vmul.f32 %v6022, %v6035
  %v6059 = vmul.f32 %v6022, %v6039
  %v6060 = vmul.f32 %v6022, %v6043
  %v6061 = vmul.f32 %v6022, %v6047
  %v6062 = vmul.f32 %v6022, %v6051
  %v6063 = vmul.f32 %v6022, %v6055
  %v6064 = vadd.f32 %v6012, %v6056
  %v6065 = vadd.f32 %v6013, %v6057
  %v6066 = vadd.f32 %v6014, %v6058
  %v6067 = vadd.f32 %v6015, %v6059
  %v6068 = vadd.f32 %v6016, %v6060
  %v6069 = vadd.f32 %v6017, %v6061
  %v6070 = vadd.f32 %v6018, %v6062
  %v6071 = vadd.f32 %v6019, %v6063
  %6072 = vset.pattern.permute.xlu0 35
  %6073 = vperm.xlu0 %6072, %v5914
  %v6074 = vpop.permute.xlu0 %6073
  %v6076 = vlaneseq
  %v6077 = vshrl.u32 %v6076, 7
  %v6078 = vsub.s32 3, %v6077
  %v6079 = vrot.slane %v5906, %v6078
  %v6080 = vlaneseq
  %v6081 = vshrl.u32 %v6080, 7
  %v6082 = vsub.s32 3, %v6081
  %v6083 = vrot.slane %v5907, %v6082
  %v6084 = vlaneseq
  %v6085 = vshrl.u32 %v6084, 7
  %v6086 = vsub.s32 3, %v6085
  %v6087 = vrot.slane %v5908, %v6086
  %v6088 = vlaneseq
  %v6089 = vshrl.u32 %v6088, 7
  %v6090 = vsub.s32 3, %v6089
  %v6091 = vrot.slane %v5909, %v6090
  %v6092 = vlaneseq
  %v6093 = vshrl.u32 %v6092, 7
  %v6094 = vsub.s32 3, %v6093
  %v6095 = vrot.slane %v5910, %v6094
  %v6096 = vlaneseq
  %v6097 = vshrl.u32 %v6096, 7
  %v6098 = vsub.s32 3, %v6097
  %v6099 = vrot.slane %v5911, %v6098
  %v6100 = vlaneseq
  %v6101 = vshrl.u32 %v6100, 7
  %v6102 = vsub.s32 3, %v6101
  %v6103 = vrot.slane %v5912, %v6102
  %v6104 = vlaneseq
  %v6105 = vshrl.u32 %v6104, 7
  %v6106 = vsub.s32 3, %v6105
  %v6107 = vrot.slane %v5913, %v6106
  %v6108 = vmul.f32 %v6074, %v6079
  %v6109 = vmul.f32 %v6074, %v6083
  %v6110 = vmul.f32 %v6074, %v6087
  %v6111 = vmul.f32 %v6074, %v6091
  %v6112 = vmul.f32 %v6074, %v6095
  %v6113 = vmul.f32 %v6074, %v6099
  %v6114 = vmul.f32 %v6074, %v6103
  %v6115 = vmul.f32 %v6074, %v6107
  %v6116 = vadd.f32 %v6064, %v6108
  %v6117 = vadd.f32 %v6065, %v6109
  %v6118 = vadd.f32 %v6066, %v6110
  %v6119 = vadd.f32 %v6067, %v6111
  %v6120 = vadd.f32 %v6068, %v6112
  %v6121 = vadd.f32 %v6069, %v6113
  %v6122 = vadd.f32 %v6070, %v6114
  %v6123 = vadd.f32 %v6071, %v6115
  %6124 = vset.pattern.permute.xlu0 68
  %6125 = vperm.xlu0 %6124, %v5914
  %v6126 = vpop.permute.xlu0 %6125
  %v6128 = vlaneseq
  %v6129 = vshrl.u32 %v6128, 7
  %v6130 = vsub.s32 0, %v6129
  %v6131 = vrot.slane %v5898, %v6130
  %v6132 = vlaneseq
  %v6133 = vshrl.u32 %v6132, 7
  %v6134 = vsub.s32 0, %v6133
  %v6135 = vrot.slane %v5899, %v6134
  %v6136 = vlaneseq
  %v6137 = vshrl.u32 %v6136, 7
  %v6138 = vsub.s32 0, %v6137
  %v6139 = vrot.slane %v5900, %v6138
  %v6140 = vlaneseq
  %v6141 = vshrl.u32 %v6140, 7
  %v6142 = vsub.s32 0, %v6141
  %v6143 = vrot.slane %v5901, %v6142
  %v6144 = vlaneseq
  %v6145 = vshrl.u32 %v6144, 7
  %v6146 = vsub.s32 0, %v6145
  %v6147 = vrot.slane %v5902, %v6146
  %v6148 = vlaneseq
  %v6149 = vshrl.u32 %v6148, 7
  %v6150 = vsub.s32 0, %v6149
  %v6151 = vrot.slane %v5903, %v6150
  %v6152 = vlaneseq
  %v6153 = vshrl.u32 %v6152, 7
  %v6154 = vsub.s32 0, %v6153
  %v6155 = vrot.slane %v5904, %v6154
  %v6156 = vlaneseq
  %v6157 = vshrl.u32 %v6156, 7
  %v6158 = vsub.s32 0, %v6157
  %v6159 = vrot.slane %v5905, %v6158
  %v6160 = vmul.f32 %v6126, %v6131
  %v6161 = vmul.f32 %v6126, %v6135
  %v6162 = vmul.f32 %v6126, %v6139
  %v6163 = vmul.f32 %v6126, %v6143
  %v6164 = vmul.f32 %v6126, %v6147
  %v6165 = vmul.f32 %v6126, %v6151
  %v6166 = vmul.f32 %v6126, %v6155
  %v6167 = vmul.f32 %v6126, %v6159
  %v6168 = vadd.f32 %v6116, %v6160
  %v6169 = vadd.f32 %v6117, %v6161
  %v6170 = vadd.f32 %v6118, %v6162
  %v6171 = vadd.f32 %v6119, %v6163
  %v6172 = vadd.f32 %v6120, %v6164
  %v6173 = vadd.f32 %v6121, %v6165
  %v6174 = vadd.f32 %v6122, %v6166
  %v6175 = vadd.f32 %v6123, %v6167
  %6176 = vset.pattern.permute.xlu0 69
  %6177 = vperm.xlu0 %6176, %v5914
  %v6178 = vpop.permute.xlu0 %6177
  %v6180 = vlaneseq
  %v6181 = vshrl.u32 %v6180, 7
  %v6182 = vsub.s32 1, %v6181
  %v6183 = vrot.slane %v5898, %v6182
  %v6184 = vlaneseq
  %v6185 = vshrl.u32 %v6184, 7
  %v6186 = vsub.s32 1, %v6185
  %v6187 = vrot.slane %v5899, %v6186
  %v6188 = vlaneseq
  %v6189 = vshrl.u32 %v6188, 7
  %v6190 = vsub.s32 1, %v6189
  %v6191 = vrot.slane %v5900, %v6190
  %v6192 = vlaneseq
  %v6193 = vshrl.u32 %v6192, 7
  %v6194 = vsub.s32 1, %v6193
  %v6195 = vrot.slane %v5901, %v6194
  %v6196 = vlaneseq
  %v6197 = vshrl.u32 %v6196, 7
  %v6198 = vsub.s32 1, %v6197
  %v6199 = vrot.slane %v5902, %v6198
  %v6200 = vlaneseq
  %v6201 = vshrl.u32 %v6200, 7
  %v6202 = vsub.s32 1, %v6201
  %v6203 = vrot.slane %v5903, %v6202
  %v6204 = vlaneseq
  %v6205 = vshrl.u32 %v6204, 7
  %v6206 = vsub.s32 1, %v6205
  %v6207 = vrot.slane %v5904, %v6206
  %v6208 = vlaneseq
  %v6209 = vshrl.u32 %v6208, 7
  %v6210 = vsub.s32 1, %v6209
  %v6211 = vrot.slane %v5905, %v6210
  %v6212 = vmul.f32 %v6178, %v6183
  %v6213 = vmul.f32 %v6178, %v6187
  %v6214 = vmul.f32 %v6178, %v6191
  %v6215 = vmul.f32 %v6178, %v6195
  %v6216 = vmul.f32 %v6178, %v6199
  %v6217 = vmul.f32 %v6178, %v6203
  %v6218 = vmul.f32 %v6178, %v6207
  %v6219 = vmul.f32 %v6178, %v6211
  %v6220 = vadd.f32 %v6168, %v6212
  %v6221 = vadd.f32 %v6169, %v6213
  %v6222 = vadd.f32 %v6170, %v6214
  %v6223 = vadd.f32 %v6171, %v6215
  %v6224 = vadd.f32 %v6172, %v6216
  %v6225 = vadd.f32 %v6173, %v6217
  %v6226 = vadd.f32 %v6174, %v6218
  %v6227 = vadd.f32 %v6175, %v6219
  %6228 = vset.pattern.permute.xlu0 70
  %6229 = vperm.xlu0 %6228, %v5914
  %v6230 = vpop.permute.xlu0 %6229
  %v6232 = vlaneseq
  %v6233 = vshrl.u32 %v6232, 7
  %v6234 = vsub.s32 2, %v6233
  %v6235 = vrot.slane %v5898, %v6234
  %v6236 = vlaneseq
  %v6237 = vshrl.u32 %v6236, 7
  %v6238 = vsub.s32 2, %v6237
  %v6239 = vrot.slane %v5899, %v6238
  %v6240 = vlaneseq
  %v6241 = vshrl.u32 %v6240, 7
  %v6242 = vsub.s32 2, %v6241
  %v6243 = vrot.slane %v5900, %v6242
  %v6244 = vlaneseq
  %v6245 = vshrl.u32 %v6244, 7
  %v6246 = vsub.s32 2, %v6245
  %v6247 = vrot.slane %v5901, %v6246
  %v6248 = vlaneseq
  %v6249 = vshrl.u32 %v6248, 7
  %v6250 = vsub.s32 2, %v6249
  %v6251 = vrot.slane %v5902, %v6250
  %v6252 = vlaneseq
  %v6253 = vshrl.u32 %v6252, 7
  %v6254 = vsub.s32 2, %v6253
  %v6255 = vrot.slane %v5903, %v6254
  %v6256 = vlaneseq
  %v6257 = vshrl.u32 %v6256, 7
  %v6258 = vsub.s32 2, %v6257
  %v6259 = vrot.slane %v5904, %v6258
  %v6260 = vlaneseq
  %v6261 = vshrl.u32 %v6260, 7
  %v6262 = vsub.s32 2, %v6261
  %v6263 = vrot.slane %v5905, %v6262
  %v6264 = vmul.f32 %v6230, %v6235
  %v6265 = vmul.f32 %v6230, %v6239
  %v6266 = vmul.f32 %v6230, %v6243
  %v6267 = vmul.f32 %v6230, %v6247
  %v6268 = vmul.f32 %v6230, %v6251
  %v6269 = vmul.f32 %v6230, %v6255
  %v6270 = vmul.f32 %v6230, %v6259
  %v6271 = vmul.f32 %v6230, %v6263
  %v6272 = vadd.f32 %v6220, %v6264
  %v6273 = vadd.f32 %v6221, %v6265
  %v6274 = vadd.f32 %v6222, %v6266
  %v6275 = vadd.f32 %v6223, %v6267
  %v6276 = vadd.f32 %v6224, %v6268
  %v6277 = vadd.f32 %v6225, %v6269
  %v6278 = vadd.f32 %v6226, %v6270
  %v6279 = vadd.f32 %v6227, %v6271
  %6280 = vset.pattern.permute.xlu0 71
  %6281 = vperm.xlu0 %6280, %v5914
  %v6282 = vpop.permute.xlu0 %6281
  %v6284 = vlaneseq
  %v6285 = vshrl.u32 %v6284, 7
  %v6286 = vsub.s32 3, %v6285
  %v6287 = vrot.slane %v5898, %v6286
  %v6288 = vlaneseq
  %v6289 = vshrl.u32 %v6288, 7
  %v6290 = vsub.s32 3, %v6289
  %v6291 = vrot.slane %v5899, %v6290
  %v6292 = vlaneseq
  %v6293 = vshrl.u32 %v6292, 7
  %v6294 = vsub.s32 3, %v6293
  %v6295 = vrot.slane %v5900, %v6294
  %v6296 = vlaneseq
  %v6297 = vshrl.u32 %v6296, 7
  %v6298 = vsub.s32 3, %v6297
  %v6299 = vrot.slane %v5901, %v6298
  %v6300 = vlaneseq
  %v6301 = vshrl.u32 %v6300, 7
  %v6302 = vsub.s32 3, %v6301
  %v6303 = vrot.slane %v5902, %v6302
  %v6304 = vlaneseq
  %v6305 = vshrl.u32 %v6304, 7
  %v6306 = vsub.s32 3, %v6305
  %v6307 = vrot.slane %v5903, %v6306
  %v6308 = vlaneseq
  %v6309 = vshrl.u32 %v6308, 7
  %v6310 = vsub.s32 3, %v6309
  %v6311 = vrot.slane %v5904, %v6310
  %v6312 = vlaneseq
  %v6313 = vshrl.u32 %v6312, 7
  %v6314 = vsub.s32 3, %v6313
  %v6315 = vrot.slane %v5905, %v6314
  %v6316 = vmul.f32 %v6282, %v6287
  %v6317 = vmul.f32 %v6282, %v6291
  %v6318 = vmul.f32 %v6282, %v6295
  %v6319 = vmul.f32 %v6282, %v6299
  %v6320 = vmul.f32 %v6282, %v6303
  %v6321 = vmul.f32 %v6282, %v6307
  %v6322 = vmul.f32 %v6282, %v6311
  %v6323 = vmul.f32 %v6282, %v6315
  %v6324 = vadd.f32 %v6272, %v6316
  %v6325 = vadd.f32 %v6273, %v6317
  %v6326 = vadd.f32 %v6274, %v6318
  %v6327 = vadd.f32 %v6275, %v6319
  %v6328 = vadd.f32 %v6276, %v6320
  %v6329 = vadd.f32 %v6277, %v6321
  %v6330 = vadd.f32 %v6278, %v6322
  %v6331 = vadd.f32 %v6279, %v6323
  %v6332 = vmul.f32 %v5899, %v551
  %v6333 = vmul.f32 %v5900, %v555
  %v6334 = vmul.f32 %v5901, %v559
  %v6335 = vmul.f32 %v5898, %v563
  %v6336 = vmul.f32 %v5903, %v551
  %v6337 = vmul.f32 %v5904, %v555
  %v6338 = vmul.f32 %v5905, %v559
  %v6339 = vmul.f32 %v5902, %v563
  %6340 = vset.pattern.permute.xlu0 104
  %6341 = vperm.xlu0 %6340, %v5914
  %v6342 = vpop.permute.xlu0 %6341
  %v6344 = vlaneseq
  %v6345 = vshrl.u32 %v6344, 7
  %v6346 = vsub.s32 0, %v6345
  %v6347 = vrot.slane %v6332, %v6346
  %v6348 = vlaneseq
  %v6349 = vshrl.u32 %v6348, 7
  %v6350 = vsub.s32 0, %v6349
  %v6351 = vrot.slane %v6333, %v6350
  %v6352 = vlaneseq
  %v6353 = vshrl.u32 %v6352, 7
  %v6354 = vsub.s32 0, %v6353
  %v6355 = vrot.slane %v6334, %v6354
  %v6356 = vlaneseq
  %v6357 = vshrl.u32 %v6356, 7
  %v6358 = vsub.s32 0, %v6357
  %v6359 = vrot.slane %v6335, %v6358
  %v6360 = vlaneseq
  %v6361 = vshrl.u32 %v6360, 7
  %v6362 = vsub.s32 0, %v6361
  %v6363 = vrot.slane %v6336, %v6362
  %v6364 = vlaneseq
  %v6365 = vshrl.u32 %v6364, 7
  %v6366 = vsub.s32 0, %v6365
  %v6367 = vrot.slane %v6337, %v6366
  %v6368 = vlaneseq
  %v6369 = vshrl.u32 %v6368, 7
  %v6370 = vsub.s32 0, %v6369
  %v6371 = vrot.slane %v6338, %v6370
  %v6372 = vlaneseq
  %v6373 = vshrl.u32 %v6372, 7
  %v6374 = vsub.s32 0, %v6373
  %v6375 = vrot.slane %v6339, %v6374
  %v6376 = vmul.f32 %v6342, %v6347
  %v6377 = vmul.f32 %v6342, %v6351
  %v6378 = vmul.f32 %v6342, %v6355
  %v6379 = vmul.f32 %v6342, %v6359
  %v6380 = vmul.f32 %v6342, %v6363
  %v6381 = vmul.f32 %v6342, %v6367
  %v6382 = vmul.f32 %v6342, %v6371
  %v6383 = vmul.f32 %v6342, %v6375
  %v6384 = vadd.f32 %v6324, %v6376
  %v6385 = vadd.f32 %v6325, %v6377
  %v6386 = vadd.f32 %v6326, %v6378
  %v6387 = vadd.f32 %v6327, %v6379
  %v6388 = vadd.f32 %v6328, %v6380
  %v6389 = vadd.f32 %v6329, %v6381
  %v6390 = vadd.f32 %v6330, %v6382
  %v6391 = vadd.f32 %v6331, %v6383
  %6392 = vset.pattern.permute.xlu0 105
  %6393 = vperm.xlu0 %6392, %v5914
  %v6394 = vpop.permute.xlu0 %6393
  %v6396 = vlaneseq
  %v6397 = vshrl.u32 %v6396, 7
  %v6398 = vsub.s32 1, %v6397
  %v6399 = vrot.slane %v6332, %v6398
  %v6400 = vlaneseq
  %v6401 = vshrl.u32 %v6400, 7
  %v6402 = vsub.s32 1, %v6401
  %v6403 = vrot.slane %v6333, %v6402
  %v6404 = vlaneseq
  %v6405 = vshrl.u32 %v6404, 7
  %v6406 = vsub.s32 1, %v6405
  %v6407 = vrot.slane %v6334, %v6406
  %v6408 = vlaneseq
  %v6409 = vshrl.u32 %v6408, 7
  %v6410 = vsub.s32 1, %v6409
  %v6411 = vrot.slane %v6335, %v6410
  %v6412 = vlaneseq
  %v6413 = vshrl.u32 %v6412, 7
  %v6414 = vsub.s32 1, %v6413
  %v6415 = vrot.slane %v6336, %v6414
  %v6416 = vlaneseq
  %v6417 = vshrl.u32 %v6416, 7
  %v6418 = vsub.s32 1, %v6417
  %v6419 = vrot.slane %v6337, %v6418
  %v6420 = vlaneseq
  %v6421 = vshrl.u32 %v6420, 7
  %v6422 = vsub.s32 1, %v6421
  %v6423 = vrot.slane %v6338, %v6422
  %v6424 = vlaneseq
  %v6425 = vshrl.u32 %v6424, 7
  %v6426 = vsub.s32 1, %v6425
  %v6427 = vrot.slane %v6339, %v6426
  %v6428 = vmul.f32 %v6394, %v6399
  %v6429 = vmul.f32 %v6394, %v6403
  %v6430 = vmul.f32 %v6394, %v6407
  %v6431 = vmul.f32 %v6394, %v6411
  %v6432 = vmul.f32 %v6394, %v6415
  %v6433 = vmul.f32 %v6394, %v6419
  %v6434 = vmul.f32 %v6394, %v6423
  %v6435 = vmul.f32 %v6394, %v6427
  %v6436 = vadd.f32 %v6384, %v6428
  %v6437 = vadd.f32 %v6385, %v6429
  %v6438 = vadd.f32 %v6386, %v6430
  %v6439 = vadd.f32 %v6387, %v6431
  %v6440 = vadd.f32 %v6388, %v6432
  %v6441 = vadd.f32 %v6389, %v6433
  %v6442 = vadd.f32 %v6390, %v6434
  %v6443 = vadd.f32 %v6391, %v6435
  %6444 = vset.pattern.permute.xlu0 106
  %6445 = vperm.xlu0 %6444, %v5914
  %v6446 = vpop.permute.xlu0 %6445
  %v6448 = vlaneseq
  %v6449 = vshrl.u32 %v6448, 7
  %v6450 = vsub.s32 2, %v6449
  %v6451 = vrot.slane %v6332, %v6450
  %v6452 = vlaneseq
  %v6453 = vshrl.u32 %v6452, 7
  %v6454 = vsub.s32 2, %v6453
  %v6455 = vrot.slane %v6333, %v6454
  %v6456 = vlaneseq
  %v6457 = vshrl.u32 %v6456, 7
  %v6458 = vsub.s32 2, %v6457
  %v6459 = vrot.slane %v6334, %v6458
  %v6460 = vlaneseq
  %v6461 = vshrl.u32 %v6460, 7
  %v6462 = vsub.s32 2, %v6461
  %v6463 = vrot.slane %v6335, %v6462
  %v6464 = vlaneseq
  %v6465 = vshrl.u32 %v6464, 7
  %v6466 = vsub.s32 2, %v6465
  %v6467 = vrot.slane %v6336, %v6466
  %v6468 = vlaneseq
  %v6469 = vshrl.u32 %v6468, 7
  %v6470 = vsub.s32 2, %v6469
  %v6471 = vrot.slane %v6337, %v6470
  %v6472 = vlaneseq
  %v6473 = vshrl.u32 %v6472, 7
  %v6474 = vsub.s32 2, %v6473
  %v6475 = vrot.slane %v6338, %v6474
  %v6476 = vlaneseq
  %v6477 = vshrl.u32 %v6476, 7
  %v6478 = vsub.s32 2, %v6477
  %v6479 = vrot.slane %v6339, %v6478
  %v6480 = vmul.f32 %v6446, %v6451
  %v6481 = vmul.f32 %v6446, %v6455
  %v6482 = vmul.f32 %v6446, %v6459
  %v6483 = vmul.f32 %v6446, %v6463
  %v6484 = vmul.f32 %v6446, %v6467
  %v6485 = vmul.f32 %v6446, %v6471
  %v6486 = vmul.f32 %v6446, %v6475
  %v6487 = vmul.f32 %v6446, %v6479
  %v6488 = vadd.f32 %v6436, %v6480
  %v6489 = vadd.f32 %v6437, %v6481
  %v6490 = vadd.f32 %v6438, %v6482
  %v6491 = vadd.f32 %v6439, %v6483
  %v6492 = vadd.f32 %v6440, %v6484
  %v6493 = vadd.f32 %v6441, %v6485
  %v6494 = vadd.f32 %v6442, %v6486
  %v6495 = vadd.f32 %v6443, %v6487
  %6496 = vset.pattern.permute.xlu0 107
  %6497 = vperm.xlu0 %6496, %v5914
  %v6498 = vpop.permute.xlu0 %6497
  %v6500 = vlaneseq
  %v6501 = vshrl.u32 %v6500, 7
  %v6502 = vsub.s32 3, %v6501
  %v6503 = vrot.slane %v6332, %v6502
  %v6504 = vlaneseq
  %v6505 = vshrl.u32 %v6504, 7
  %v6506 = vsub.s32 3, %v6505
  %v6507 = vrot.slane %v6333, %v6506
  %v6508 = vlaneseq
  %v6509 = vshrl.u32 %v6508, 7
  %v6510 = vsub.s32 3, %v6509
  %v6511 = vrot.slane %v6334, %v6510
  %v6512 = vlaneseq
  %v6513 = vshrl.u32 %v6512, 7
  %v6514 = vsub.s32 3, %v6513
  %v6515 = vrot.slane %v6335, %v6514
  %v6516 = vlaneseq
  %v6517 = vshrl.u32 %v6516, 7
  %v6518 = vsub.s32 3, %v6517
  %v6519 = vrot.slane %v6336, %v6518
  %v6520 = vlaneseq
  %v6521 = vshrl.u32 %v6520, 7
  %v6522 = vsub.s32 3, %v6521
  %v6523 = vrot.slane %v6337, %v6522
  %v6524 = vlaneseq
  %v6525 = vshrl.u32 %v6524, 7
  %v6526 = vsub.s32 3, %v6525
  %v6527 = vrot.slane %v6338, %v6526
  %v6528 = vlaneseq
  %v6529 = vshrl.u32 %v6528, 7
  %v6530 = vsub.s32 3, %v6529
  %v6531 = vrot.slane %v6339, %v6530
  %v6532 = vmul.f32 %v6498, %v6503
  %v6533 = vmul.f32 %v6498, %v6507
  %v6534 = vmul.f32 %v6498, %v6511
  %v6535 = vmul.f32 %v6498, %v6515
  %v6536 = vmul.f32 %v6498, %v6519
  %v6537 = vmul.f32 %v6498, %v6523
  %v6538 = vmul.f32 %v6498, %v6527
  %v6539 = vmul.f32 %v6498, %v6531
  %v6540 = vadd.f32 %v6488, %v6532
  %v6541 = vadd.f32 %v6489, %v6533
  %v6542 = vadd.f32 %v6490, %v6534
  %v6543 = vadd.f32 %v6491, %v6535
  %v6544 = vadd.f32 %v6492, %v6536
  %v6545 = vadd.f32 %v6493, %v6537
  %v6546 = vadd.f32 %v6494, %v6538
  %v6547 = vadd.f32 %v6495, %v6539
  %v6548 = vld [vmem:[%s4] sm:$0xf]
  %6550 = vset.pattern.permute.xlu0 0
  %6551 = vperm.xlu0 %6550, %v6548
  %v6552 = vpop.permute.xlu0 %6551
  %v6554 = vadd.f32 %v6540, %v6552
  %v6555 = vadd.f32 %v6541, %v6552
  %v6556 = vadd.f32 %v6542, %v6552
  %v6557 = vadd.f32 %v6543, %v6552
  %v6558 = vadd.f32 %v6544, %v6552
  %v6559 = vadd.f32 %v6545, %v6552
  %v6560 = vadd.f32 %v6546, %v6552
  %v6561 = vadd.f32 %v6547, %v6552
  %v6562 = vxor.u32 %v6554, 2147483648
  %v6563 = vxor.u32 %v6555, 2147483648
  %v6564 = vxor.u32 %v6556, 2147483648
  %v6565 = vxor.u32 %v6557, 2147483648
  %v6566 = vxor.u32 %v6558, 2147483648
  %v6567 = vxor.u32 %v6559, 2147483648
  %v6568 = vxor.u32 %v6560, 2147483648
  %v6569 = vxor.u32 %v6561, 2147483648
  %v6570 = vmul.f32 %v6562, 1.442695
  %v6571 = vpow.pop %v6570
  %v6572 = vmul.f32 %v6563, 1.442695
  %v6573 = vpow.pop %v6572
  %v6574 = vmul.f32 %v6564, 1.442695
  %v6575 = vpow.pop %v6574
  %v6576 = vmul.f32 %v6565, 1.442695
  %v6577 = vpow.pop %v6576
  %v6578 = vmul.f32 %v6566, 1.442695
  %v6579 = vpow.pop %v6578
  %v6580 = vmul.f32 %v6567, 1.442695
  %v6581 = vpow.pop %v6580
  %v6582 = vmul.f32 %v6568, 1.442695
  %v6583 = vpow.pop %v6582
  %v6584 = vmul.f32 %v6569, 1.442695
  %v6585 = vpow.pop %v6584
  %v6586 = vadd.f32 %v6571, 1.0
  %v6587 = vadd.f32 %v6573, 1.0
  %v6588 = vadd.f32 %v6575, 1.0
  %v6589 = vadd.f32 %v6577, 1.0
  %v6590 = vadd.f32 %v6579, 1.0
  %v6591 = vadd.f32 %v6581, 1.0
  %v6592 = vadd.f32 %v6583, 1.0
  %v6593 = vadd.f32 %v6585, 1.0
  %v6594 = vrcp.pop %v6586
  %v6595 = vmul.f32 1.0, %v6594
  %v6596 = vrcp.pop %v6587
  %v6597 = vmul.f32 1.0, %v6596
  %v6598 = vrcp.pop %v6588
  %v6599 = vmul.f32 1.0, %v6598
  %v6600 = vrcp.pop %v6589
  %v6601 = vmul.f32 1.0, %v6600
  %v6602 = vrcp.pop %v6590
  %v6603 = vmul.f32 1.0, %v6602
  %v6604 = vrcp.pop %v6591
  %v6605 = vmul.f32 1.0, %v6604
  %v6606 = vrcp.pop %v6592
  %v6607 = vmul.f32 1.0, %v6606
  %v6608 = vrcp.pop %v6593
  %v6609 = vmul.f32 1.0, %v6608
  %v6618 = vcombine.low %v6595, %v6597
  %v6619 = vcombine.low %v6599, %v6601
  %v6620 = vcombine.low %v6603, %v6605
  %v6621 = vcombine.low %v6607, %v6609
  %6626 = vst [vmem:[%s5] sm:$0xff] %v6618
  %6627 = vst [vmem:[%s5 + $0x8] sm:$0xff] %v6619
  %6628 = vst [vmem:[%s5 + $0x10] sm:$0xff] %v6620
  %6629 = vst [vmem:[%s5 + $0x18] sm:$0xff] %v6621
  // Predicated region
  $region22: #{segse_forward.1} parent=0 // pred_check
    _
  $region23: #{segse_forward.1} parent=0 // pred_check_branch
    %6631 = sbr.rel (0) target = $region25
  $region24: #{segse_forward.1} parent=0 // pred_region
    _
  $region25: #{segse_forward.1} parent=0 // pred_fallthru
    _
  // Predicated region
  $region26: #{segse_forward.1} parent=0 // pred_check
    _
  $region27: #{segse_forward.1} parent=0 // pred_check_branch
    %6633 = sbr.rel (0) target = $region29
  $region28: #{segse_forward.1} parent=0 // pred_region
    _
  $region29: #{segse_forward.1} parent=0 // pred_fallthru
    _

</llo_original>
